<compile_context>
chip_gen: v6e
topology: v6e:2x2x1
jax: 0.10.0
libtpu: 0.0.40
codegen_flags: <defaults>
</compile_context>

<pallas_src>
import functools

import jax
import jax.numpy as jnp
from jax import lax
from jax.experimental import pallas as pl
from jax.experimental.pallas import tpu as pltpu


# --------------------- fused conv + bias + act + 4x4 max-pool ---------------------

def _conv_pool_kernel(xw_ref, w_ref, b_ref, o_ref, acc_ref, *, kh, wc, wp_pad, wp, act):
    # xw_ref : (H*wc, kw*Cin) bf16, width-unfolded & phase-permuted input (one batch)
    #          row (h*wc + dw*wp_pad + pw), col (j*Cin + ci) = x[h, 4*pw + dw + j, ci]
    # w_ref  : (kh, kw*Cin, Cout) bf16 ; b_ref: (1, Cout) f32
    # o_ref  : (Hp, Wp, Cout) bf16 (batch squeezed) ; acc_ref: (4*wc, Cout) f32 scratch
    hp = o_ref.shape[0]
    rows = 4 * wc                                  # M rows per pooled output row

    def body(pr, carry):
        base = pr * rows
        # kh accumulating matmuls on sublane-aligned shifted views (row-tap unfold).
        acc_ref[...] = jnp.dot(
            xw_ref[pl.ds(pl.multiple_of(base, 8), rows), :], w_ref[0],
            preferred_element_type=jnp.float32)
        for i in range(1, kh):
            start = pl.multiple_of(base + i * wc, 8)
            acc_ref[...] += jnp.dot(
                xw_ref[pl.ds(start, rows), :], w_ref[i],
                preferred_element_type=jnp.float32)
        # 4x4 max-pool: 16 aligned (wp_pad, Cout) segments (all starts multiples of 8).
        m = acc_ref[0:wp_pad, :]
        for dr in range(4):
            for dw in range(4):
                if dr == 0 and dw == 0:
                    continue
                s = dr * wc + dw * wp_pad
                m = jnp.maximum(m, acc_ref[s:s + wp_pad, :])
        y = m + b_ref[...]                         # pool-before-act is exact (monotonic)
        y = jnp.tanh(y) if act == "tanh" else jnp.maximum(y, 0.0)
        o_ref[pr] = y[:wp, :].astype(o_ref.dtype)  # drop the width-pad row(s)
        return carry

    lax.fori_loop(0, hp, body, 0)


def _width_unfold(x, kw, wp, wp_pad):
    """Cheap XLA prep (20 small slices): width-only unfold, phase-permuted & zero-padded.
    Returns (B, H * 4*wp_pad, kw*Cin) bf16 with
      out[b, h*(4*wp_pad) + dw*wp_pad + pw, j*Cin + ci] = x[b, h, 4*pw + dw + j, ci]."""
    B, H, W, Cin = x.shape
    xb = x.astype(jnp.bfloat16)
    phases = []
    for dw in range(4):
        taps = [xb[:, :, dw + j: dw + j + 4 * (wp - 1) + 1: 4, :] for j in range(kw)]
        seg = jnp.concatenate(taps, axis=-1)                    # (B, H, wp, kw*Cin)
        if wp_pad > wp:
            seg = jnp.pad(seg, ((0, 0), (0, 0), (0, wp_pad - wp), (0, 0)))
        phases.append(seg)
    xw = jnp.concatenate(phases, axis=2)                        # (B, H, 4*wp_pad, kw*Cin)
    return xw.reshape(B, H * 4 * wp_pad, kw * Cin)


def conv2d_act_pool(x, w, b, act):
    """MaxPool2d(4,4)(act(Conv2d(x)+b)); x: (B,H,W,Cin), w: (kh,kw,Cin,Cout) -> bf16 out."""
    B, H, W, Cin = x.shape
    kh, kw, _, Cout = w.shape
    Ho, Wo = H - kh + 1, W - kw + 1
    Hp, Wp = Ho // 4, Wo // 4
    Wp_pad = ((Wp + 7) // 8) * 8                  # 8-sublane aligned pool segments
    WC = 4 * Wp_pad
    K = kw * Cin

    xw = _width_unfold(x, kw, Wp, Wp_pad)                       # (B, H*WC, K) bf16
    wk = w.reshape(kh, K, Cout).astype(jnp.bfloat16)            # per-row-tap weights
    bk = b.reshape(1, Cout).astype(jnp.float32)

    kernel = functools.partial(_conv_pool_kernel, kh=kh, wc=WC,
                               wp_pad=Wp_pad, wp=Wp, act=act)
    return pl.pallas_call(
        kernel,
        out_shape=jax.ShapeDtypeStruct((B, Hp, Wp, Cout), jnp.bfloat16),
        grid=(B,),
        in_specs=[
            pl.BlockSpec((None, H * WC, K), lambda bi: (bi, 0, 0)),
            pl.BlockSpec((kh, K, Cout), lambda bi: (0, 0, 0)),
            pl.BlockSpec((1, Cout), lambda bi: (0, 0)),
        ],
        out_specs=pl.BlockSpec((None, Hp, Wp, Cout), lambda bi: (bi, 0, 0, 0)),
        scratch_shapes=[pltpu.VMEM((4 * WC, Cout), jnp.float32)],
        compiler_params=pltpu.CompilerParams(
            dimension_semantics=("parallel",),
            vmem_limit_bytes=32 * 1024 * 1024),
    )(xw, wk, bk)


# --------------------- fused conv3 + pool + FC stack (one kernel) ---------------------

def _head_kernel(x3_ref, w3c_ref, b3c_ref, wr_ref, br_ref, w1_ref, b1_ref,
                 w2_ref, b2_ref, wf3_ref, bf3_ref, o_ref):
    # conv3 (3x3, 60->240) on the 16 positions used by the 4x4 pool:
    # 9 accumulating (16,60)@(60,240) matmuls on shifted views of the (6,8,60) input.
    acc = None
    for i in range(3):
        for j in range(3):
            lhs = jnp.concatenate(
                [x3_ref[i + p, j:j + 4, :] for p in range(4)], axis=0)      # (16, 60)
            d = jnp.dot(lhs, w3c_ref[i * 3 + j], preferred_element_type=jnp.float32)
            acc = d if acc is None else acc + d
    pooled = jnp.max(acc, axis=0, keepdims=True)                            # (1, 240)
    h = jnp.maximum(pooled + b3c_ref[...], 0.0).astype(jnp.bfloat16)        # pool(relu(conv3))
    for _ in range(2):  # resnet applied twice (plain Linear+ReLU, no skip — as in reference)
        h = jnp.maximum(jnp.dot(h, wr_ref[...], preferred_element_type=jnp.float32)
                        + br_ref[...], 0.0).astype(jnp.bfloat16)
    h = jnp.maximum(jnp.dot(h, w1_ref[...], preferred_element_type=jnp.float32)
                    + b1_ref[...], 0.0).astype(jnp.bfloat16)
    h = jnp.maximum(jnp.dot(h, w2_ref[...], preferred_element_type=jnp.float32)
                    + b2_ref[...], 0.0).astype(jnp.bfloat16)
    y = jnp.dot(h, wf3_ref[...], preferred_element_type=jnp.float32) + bf3_ref[...]
    o_ref[...] = y                                                          # (1, 128); col 0 = fc3


def conv3_fc_head(x3, p):
    """pool(relu(conv3)) -> flatten -> relu(resnet) x2 -> relu(fc1) -> relu(fc2) -> fc3."""
    B = x3.shape[0]
    w3c = p["w3"].reshape(9, 60, 240).astype(jnp.bfloat16)
    b3c = p["b3"].reshape(1, 240).astype(jnp.float32)
    wr = p["wr"].astype(jnp.bfloat16)
    br = p["br"].reshape(1, -1).astype(jnp.float32)
    w1 = p["wf1"].astype(jnp.bfloat16)
    b1 = p["bf1"].reshape(1, -1).astype(jnp.float32)
    w2 = p["wf2"].astype(jnp.bfloat16)
    b2 = p["bf2"].reshape(1, -1).astype(jnp.float32)
    wf3 = jnp.pad(p["wf3"], ((0, 0), (0, 127))).astype(jnp.bfloat16)        # (60,128), col 0 real
    bf3 = jnp.pad(p["bf3"].reshape(1, -1), ((0, 0), (0, 127))).astype(jnp.float32)
    args = (x3, w3c, b3c, wr, br, w1, b1, w2, b2, wf3, bf3)

    in_specs = [pl.BlockSpec((None,) + x3.shape[1:], lambda bi: (bi, 0, 0, 0))]
    for a in args[1:]:
        in_specs.append(pl.BlockSpec(a.shape, lambda bi, nd=a.ndim: (0,) * nd))

    out = pl.pallas_call(
        _head_kernel,
        out_shape=jax.ShapeDtypeStruct((B, 1, 128), jnp.float32),
        grid=(B,),
        in_specs=in_specs,
        out_specs=pl.BlockSpec((None, 1, 128), lambda bi: (bi, 0, 0)),
        compiler_params=pltpu.CompilerParams(
            dimension_semantics=("parallel",),
            vmem_limit_bytes=32 * 1024 * 1024),
    )(*args)
    return out[:, 0, :1]                                                    # (B, 1) f32


# ------------------------------- full forward -------------------------------

def neural_net_forward(x_nchw, p):
    """Reproduces NeuralNet.forward (NCHW input like PyTorch)."""
    x = jnp.transpose(x_nchw, (0, 2, 3, 1))                     # NCHW -> NHWC (tiny)
    x = conv2d_act_pool(x, p["w1"], p["b1"], "tanh")            # (B, 29, 39, 40) bf16
    x = conv2d_act_pool(x, p["w2"], p["b2"], "tanh")            # (B, 6, 8, 60)  bf16
    return conv3_fc_head(x, p)                                  # (B, 1) f32
    # note: nn.Dropout is declared in __init__ but never used in forward -> omitted.


def init_params(key):
    """Deterministic PyTorch-style uniform(-1/sqrt(fan_in), 1/sqrt(fan_in)) init."""
    def uinit(k, shape, fan_in):
        bound = 1.0 / float(fan_in) ** 0.5
        return jax.random.uniform(k, shape, jnp.float32, -bound, bound)
    ks = jax.random.split(key, 14)
    p = {}
    p["w1"], p["b1"] = uinit(ks[0], (5, 5, 3, 40), 3 * 25), uinit(ks[1], (40,), 3 * 25)
    p["w2"], p["b2"] = uinit(ks[2], (5, 5, 40, 60), 40 * 25), uinit(ks[3], (60,), 40 * 25)
    p["w3"], p["b3"] = uinit(ks[4], (3, 3, 60, 240), 60 * 9), uinit(ks[5], (240,), 60 * 9)
    p["wr"], p["br"] = uinit(ks[6], (240, 240), 240), uinit(ks[7], (240,), 240)
    p["wf1"], p["bf1"] = uinit(ks[8], (240, 120), 240), uinit(ks[9], (120,), 240)
    p["wf2"], p["bf2"] = uinit(ks[10], (120, 60), 120), uinit(ks[11], (60,), 120)
    p["wf3"], p["bf3"] = uinit(ks[12], (60, 1), 60), uinit(ks[13], (1,), 60)
    return p


if __name__ == "__main__":
    key = jax.random.PRNGKey(0)
    pkey, xkey = jax.random.split(key)
    params = init_params(pkey)
    # batch=2, 3 channels, 120x160 spatial: 3*120*160 = 57600 = input_size.
    x = jax.random.normal(xkey, (2, 3, 120, 160), jnp.float32)
    fwd = jax.jit(neural_net_forward)
    out = fwd(x, params)
    jax.block_until_ready(out)
    assert out.shape == (2, 1), out.shape
    assert out.dtype == jnp.float32
    assert bool(jnp.all(jnp.isfinite(out)))
    print("KERNEL_OK")
</pallas_src>

<mosaic_0001>
module attributes {stable_mosaic.version = 11 : i64} {
  func.func @_conv_pool_kernel(%arg0: i32, %arg1: memref<1x19200x15xbf16, #tpu.memory_space<vmem>>, %arg2: memref<5x15x40xbf16, #tpu.memory_space<vmem>>, %arg3: memref<1x40xf32, #tpu.memory_space<vmem>>, %arg4: memref<1x29x39x40xbf16, #tpu.memory_space<vmem>>, %arg5: memref<640x40xf32, #tpu.memory_space<vmem>>) attributes {dimension_semantics = [#tpu.dimension_semantics<parallel>], iteration_bounds = array<i64: 2>, scalar_prefetch = 0 : i64, scratch_operands = 1 : i64, tpu.core_type = #tpu.core_type<tc>, window_params = [{transform_indices = @transform_0, window_bounds = array<i64: 1, 19200, 15>}, {pipeline_mode = #tpu.pipeline_mode<synchronous>, transform_indices = @transform_1, window_bounds = array<i64: 5, 15, 40>}, {pipeline_mode = #tpu.pipeline_mode<synchronous>, transform_indices = @transform_2, window_bounds = array<i64: 1, 40>}, {transform_indices = @transform_3, window_bounds = array<i64: 1, 29, 39, 40>}]} {
    %c0_i32 = arith.constant 0 : i32
    %c29_i32 = arith.constant 29 : i32
    %0 = arith.addi %c0_i32, %c29_i32 : i32
    %c1_i32 = arith.constant 1 : i32
    scf.for %arg6 = %c0_i32 to %0 step %c1_i32  : i32 {
      %c640_i32 = arith.constant 640 : i32
      %1 = arith.muli %arg6, %c640_i32 : i32
      %2 = tpu.assume_multiple %1, 8 : i32
      %c0 = arith.constant 0 : index
      %3 = arith.index_cast %2 : i32 to index
      %c0_1 = arith.constant 0 : index
      %4 = vector.load %arg1[%c0, %3, %c0_1] : memref<1x19200x15xbf16, #tpu.memory_space<vmem>>, vector<1x640x15xbf16>
      %5 = vector.shape_cast %4 : vector<1x640x15xbf16> to vector<640x15xbf16>
      %c0_2 = arith.constant 0 : index
      %c0_3 = arith.constant 0 : index
      %c0_4 = arith.constant 0 : index
      %6 = vector.load %arg2[%c0_2, %c0_3, %c0_4] : memref<5x15x40xbf16, #tpu.memory_space<vmem>>, vector<1x15x40xbf16>
      %7 = vector.shape_cast %6 : vector<1x15x40xbf16> to vector<15x40xbf16>
      %cst = arith.constant dense<0.000000e+00> : vector<640x40xf32>
      %8 = tpu.matmul %5, %7, %cst {dimension_numbers = #tpu.dot_dimension_numbers<[1], [0], [0], [1], [0, 0, 1, 1], [], []>} : vector<640x15xbf16>, vector<15x40xbf16>, vector<640x40xf32> -> vector<640x40xf32>
      %c0_5 = arith.constant 0 : index
      %c0_6 = arith.constant 0 : index
      %9 = vector.load %arg5[%c0_5, %c0_6] : memref<640x40xf32, #tpu.memory_space<vmem>>, vector<640x40xf32>
      tpu.vector_store %arg5[%c0_5, %c0_6], %8 {strides = array<i32>} : memref<640x40xf32, #tpu.memory_space<vmem>>, vector<640x40xf32>,
      %c160_i32 = arith.constant 160 : i32
      %10 = arith.addi %1, %c160_i32 : i32
      %11 = tpu.assume_multiple %10, 8 : i32
      %c0_7 = arith.constant 0 : index
      %c0_8 = arith.constant 0 : index
      %12 = vector.load %arg5[%c0_7, %c0_8] : memref<640x40xf32, #tpu.memory_space<vmem>>, vector<640x40xf32>
      %c0_9 = arith.constant 0 : index
      %13 = arith.index_cast %11 : i32 to index
      %c0_10 = arith.constant 0 : index
      %14 = vector.load %arg1[%c0_9, %13, %c0_10] : memref<1x19200x15xbf16, #tpu.memory_space<vmem>>, vector<1x640x15xbf16>
      %15 = vector.shape_cast %14 : vector<1x640x15xbf16> to vector<640x15xbf16>
      %c1 = arith.constant 1 : index
      %c0_11 = arith.constant 0 : index
      %c0_12 = arith.constant 0 : index
      %16 = vector.load %arg2[%c1, %c0_11, %c0_12] : memref<5x15x40xbf16, #tpu.memory_space<vmem>>, vector<1x15x40xbf16>
      %17 = vector.shape_cast %16 : vector<1x15x40xbf16> to vector<15x40xbf16>
      %cst_13 = arith.constant dense<0.000000e+00> : vector<640x40xf32>
      %18 = tpu.matmul %15, %17, %cst_13 {dimension_numbers = #tpu.dot_dimension_numbers<[1], [0], [0], [1], [0, 0, 1, 1], [], []>} : vector<640x15xbf16>, vector<15x40xbf16>, vector<640x40xf32> -> vector<640x40xf32>
      %19 = arith.addf %12, %18 : vector<640x40xf32>
      %c0_14 = arith.constant 0 : index
      %c0_15 = arith.constant 0 : index
      %20 = vector.load %arg5[%c0_14, %c0_15] : memref<640x40xf32, #tpu.memory_space<vmem>>, vector<640x40xf32>
      tpu.vector_store %arg5[%c0_14, %c0_15], %19 {strides = array<i32>} : memref<640x40xf32, #tpu.memory_space<vmem>>, vector<640x40xf32>,
      %c320_i32 = arith.constant 320 : i32
      %21 = arith.addi %1, %c320_i32 : i32
      %22 = tpu.assume_multiple %21, 8 : i32
      %c0_16 = arith.constant 0 : index
      %c0_17 = arith.constant 0 : index
      %23 = vector.load %arg5[%c0_16, %c0_17] : memref<640x40xf32, #tpu.memory_space<vmem>>, vector<640x40xf32>
      %c0_18 = arith.constant 0 : index
      %24 = arith.index_cast %22 : i32 to index
      %c0_19 = arith.constant 0 : index
      %25 = vector.load %arg1[%c0_18, %24, %c0_19] : memref<1x19200x15xbf16, #tpu.memory_space<vmem>>, vector<1x640x15xbf16>
      %26 = vector.shape_cast %25 : vector<1x640x15xbf16> to vector<640x15xbf16>
      %c2 = arith.constant 2 : index
      %c0_20 = arith.constant 0 : index
      %c0_21 = arith.constant 0 : index
      %27 = vector.load %arg2[%c2, %c0_20, %c0_21] : memref<5x15x40xbf16, #tpu.memory_space<vmem>>, vector<1x15x40xbf16>
      %28 = vector.shape_cast %27 : vector<1x15x40xbf16> to vector<15x40xbf16>
      %cst_22 = arith.constant dense<0.000000e+00> : vector<640x40xf32>
      %29 = tpu.matmul %26, %28, %cst_22 {dimension_numbers = #tpu.dot_dimension_numbers<[1], [0], [0], [1], [0, 0, 1, 1], [], []>} : vector<640x15xbf16>, vector<15x40xbf16>, vector<640x40xf32> -> vector<640x40xf32>
      %30 = arith.addf %23, %29 : vector<640x40xf32>
      %c0_23 = arith.constant 0 : index
      %c0_24 = arith.constant 0 : index
      %31 = vector.load %arg5[%c0_23, %c0_24] : memref<640x40xf32, #tpu.memory_space<vmem>>, vector<640x40xf32>
      tpu.vector_store %arg5[%c0_23, %c0_24], %30 {strides = array<i32>} : memref<640x40xf32, #tpu.memory_space<vmem>>, vector<640x40xf32>,
      %c480_i32 = arith.constant 480 : i32
      %32 = arith.addi %1, %c480_i32 : i32
      %33 = tpu.assume_multiple %32, 8 : i32
      %c0_25 = arith.constant 0 : index
      %c0_26 = arith.constant 0 : index
      %34 = vector.load %arg5[%c0_25, %c0_26] : memref<640x40xf32, #tpu.memory_space<vmem>>, vector<640x40xf32>
      %c0_27 = arith.constant 0 : index
      %35 = arith.index_cast %33 : i32 to index
      %c0_28 = arith.constant 0 : index
      %36 = vector.load %arg1[%c0_27, %35, %c0_28] : memref<1x19200x15xbf16, #tpu.memory_space<vmem>>, vector<1x640x15xbf16>
      %37 = vector.shape_cast %36 : vector<1x640x15xbf16> to vector<640x15xbf16>
      %c3 = arith.constant 3 : index
      %c0_29 = arith.constant 0 : index
      %c0_30 = arith.constant 0 : index
      %38 = vector.load %arg2[%c3, %c0_29, %c0_30] : memref<5x15x40xbf16, #tpu.memory_space<vmem>>, vector<1x15x40xbf16>
      %39 = vector.shape_cast %38 : vector<1x15x40xbf16> to vector<15x40xbf16>
      %cst_31 = arith.constant dense<0.000000e+00> : vector<640x40xf32>
      %40 = tpu.matmul %37, %39, %cst_31 {dimension_numbers = #tpu.dot_dimension_numbers<[1], [0], [0], [1], [0, 0, 1, 1], [], []>} : vector<640x15xbf16>, vector<15x40xbf16>, vector<640x40xf32> -> vector<640x40xf32>
      %41 = arith.addf %34, %40 : vector<640x40xf32>
      %c0_32 = arith.constant 0 : index
      %c0_33 = arith.constant 0 : index
      %42 = vector.load %arg5[%c0_32, %c0_33] : memref<640x40xf32, #tpu.memory_space<vmem>>, vector<640x40xf32>
      tpu.vector_store %arg5[%c0_32, %c0_33], %41 {strides = array<i32>} : memref<640x40xf32, #tpu.memory_space<vmem>>, vector<640x40xf32>,
      %c640_i32_34 = arith.constant 640 : i32
      %43 = arith.addi %1, %c640_i32_34 : i32
      %44 = tpu.assume_multiple %43, 8 : i32
      %c0_35 = arith.constant 0 : index
      %c0_36 = arith.constant 0 : index
      %45 = vector.load %arg5[%c0_35, %c0_36] : memref<640x40xf32, #tpu.memory_space<vmem>>, vector<640x40xf32>
      %c0_37 = arith.constant 0 : index
      %46 = arith.index_cast %44 : i32 to index
      %c0_38 = arith.constant 0 : index
      %47 = vector.load %arg1[%c0_37, %46, %c0_38] : memref<1x19200x15xbf16, #tpu.memory_space<vmem>>, vector<1x640x15xbf16>
      %48 = vector.shape_cast %47 : vector<1x640x15xbf16> to vector<640x15xbf16>
      %c4 = arith.constant 4 : index
      %c0_39 = arith.constant 0 : index
      %c0_40 = arith.constant 0 : index
      %49 = vector.load %arg2[%c4, %c0_39, %c0_40] : memref<5x15x40xbf16, #tpu.memory_space<vmem>>, vector<1x15x40xbf16>
      %50 = vector.shape_cast %49 : vector<1x15x40xbf16> to vector<15x40xbf16>
      %cst_41 = arith.constant dense<0.000000e+00> : vector<640x40xf32>
      %51 = tpu.matmul %48, %50, %cst_41 {dimension_numbers = #tpu.dot_dimension_numbers<[1], [0], [0], [1], [0, 0, 1, 1], [], []>} : vector<640x15xbf16>, vector<15x40xbf16>, vector<640x40xf32> -> vector<640x40xf32>
      %52 = arith.addf %45, %51 : vector<640x40xf32>
      %c0_42 = arith.constant 0 : index
      %c0_43 = arith.constant 0 : index
      %53 = vector.load %arg5[%c0_42, %c0_43] : memref<640x40xf32, #tpu.memory_space<vmem>>, vector<640x40xf32>
      tpu.vector_store %arg5[%c0_42, %c0_43], %52 {strides = array<i32>} : memref<640x40xf32, #tpu.memory_space<vmem>>, vector<640x40xf32>,
      %c0_44 = arith.constant 0 : index
      %c0_45 = arith.constant 0 : index
      %54 = vector.load %arg5[%c0_44, %c0_45] : memref<640x40xf32, #tpu.memory_space<vmem>>, vector<40x40xf32>
      %c40 = arith.constant 40 : index
      %c0_46 = arith.constant 0 : index
      %55 = vector.load %arg5[%c40, %c0_46] : memref<640x40xf32, #tpu.memory_space<vmem>>, vector<40x40xf32>
      %56 = arith.maximumf %54, %55 : vector<40x40xf32>
      %c80 = arith.constant 80 : index
      %c0_47 = arith.constant 0 : index
      %57 = vector.load %arg5[%c80, %c0_47] : memref<640x40xf32, #tpu.memory_space<vmem>>, vector<40x40xf32>
      %58 = arith.maximumf %56, %57 : vector<40x40xf32>
      %c120 = arith.constant 120 : index
      %c0_48 = arith.constant 0 : index
      %59 = vector.load %arg5[%c120, %c0_48] : memref<640x40xf32, #tpu.memory_space<vmem>>, vector<40x40xf32>
      %60 = arith.maximumf %58, %59 : vector<40x40xf32>
      %c160 = arith.constant 160 : index
      %c0_49 = arith.constant 0 : index
      %61 = vector.load %arg5[%c160, %c0_49] : memref<640x40xf32, #tpu.memory_space<vmem>>, vector<40x40xf32>
      %62 = arith.maximumf %60, %61 : vector<40x40xf32>
      %c200 = arith.constant 200 : index
      %c0_50 = arith.constant 0 : index
      %63 = vector.load %arg5[%c200, %c0_50] : memref<640x40xf32, #tpu.memory_space<vmem>>, vector<40x40xf32>
      %64 = arith.maximumf %62, %63 : vector<40x40xf32>
      %c240 = arith.constant 240 : index
      %c0_51 = arith.constant 0 : index
      %65 = vector.load %arg5[%c240, %c0_51] : memref<640x40xf32, #tpu.memory_space<vmem>>, vector<40x40xf32>
      %66 = arith.maximumf %64, %65 : vector<40x40xf32>
      %c280 = arith.constant 280 : index
      %c0_52 = arith.constant 0 : index
      %67 = vector.load %arg5[%c280, %c0_52] : memref<640x40xf32, #tpu.memory_space<vmem>>, vector<40x40xf32>
      %68 = arith.maximumf %66, %67 : vector<40x40xf32>
      %c320 = arith.constant 320 : index
      %c0_53 = arith.constant 0 : index
      %69 = vector.load %arg5[%c320, %c0_53] : memref<640x40xf32, #tpu.memory_space<vmem>>, vector<40x40xf32>
      %70 = arith.maximumf %68, %69 : vector<40x40xf32>
      %c360 = arith.constant 360 : index
      %c0_54 = arith.constant 0 : index
      %71 = vector.load %arg5[%c360, %c0_54] : memref<640x40xf32, #tpu.memory_space<vmem>>, vector<40x40xf32>
      %72 = arith.maximumf %70, %71 : vector<40x40xf32>
      %c400 = arith.constant 400 : index
      %c0_55 = arith.constant 0 : index
      %73 = vector.load %arg5[%c400, %c0_55] : memref<640x40xf32, #tpu.memory_space<vmem>>, vector<40x40xf32>
      %74 = arith.maximumf %72, %73 : vector<40x40xf32>
      %c440 = arith.constant 440 : index
      %c0_56 = arith.constant 0 : index
      %75 = vector.load %arg5[%c440, %c0_56] : memref<640x40xf32, #tpu.memory_space<vmem>>, vector<40x40xf32>
      %76 = arith.maximumf %74, %75 : vector<40x40xf32>
      %c480 = arith.constant 480 : index
      %c0_57 = arith.constant 0 : index
      %77 = vector.load %arg5[%c480, %c0_57] : memref<640x40xf32, #tpu.memory_space<vmem>>, vector<40x40xf32>
      %78 = arith.maximumf %76, %77 : vector<40x40xf32>
      %c520 = arith.constant 520 : index
      %c0_58 = arith.constant 0 : index
      %79 = vector.load %arg5[%c520, %c0_58] : memref<640x40xf32, #tpu.memory_space<vmem>>, vector<40x40xf32>
      %80 = arith.maximumf %78, %79 : vector<40x40xf32>
      %c560 = arith.constant 560 : index
      %c0_59 = arith.constant 0 : index
      %81 = vector.load %arg5[%c560, %c0_59] : memref<640x40xf32, #tpu.memory_space<vmem>>, vector<40x40xf32>
      %82 = arith.maximumf %80, %81 : vector<40x40xf32>
      %c600 = arith.constant 600 : index
      %c0_60 = arith.constant 0 : index
      %83 = vector.load %arg5[%c600, %c0_60] : memref<640x40xf32, #tpu.memory_space<vmem>>, vector<40x40xf32>
      %84 = arith.maximumf %82, %83 : vector<40x40xf32>
      %c0_61 = arith.constant 0 : index
      %c0_62 = arith.constant 0 : index
      %85 = vector.load %arg3[%c0_61, %c0_62] : memref<1x40xf32, #tpu.memory_space<vmem>>, vector<1x40xf32>
      %86 = vector.broadcast %85 : vector<1x40xf32> to vector<40x40xf32>
      %87 = arith.addf %84, %86 : vector<40x40xf32>
      %88 = math.tanh %87 : vector<40x40xf32>
      %89 = vector.extract_strided_slice %88 {offsets = [0, 0], sizes = [39, 40], strides = [1, 1]} : vector<40x40xf32> to vector<39x40xf32>
      %90 = arith.truncf %89 : vector<39x40xf32> to vector<39x40xbf16>
      %c0_63 = arith.constant 0 : index
      %91 = arith.index_cast %arg6 : i32 to index
      %c0_64 = arith.constant 0 : index
      %c0_65 = arith.constant 0 : index
      %92 = vector.load %arg4[%c0_63, %91, %c0_64, %c0_65] : memref<1x29x39x40xbf16, #tpu.memory_space<vmem>>, vector<1x1x39x40xbf16>
      %93 = vector.shape_cast %92 : vector<1x1x39x40xbf16> to vector<39x40xbf16>
      %94 = vector.shape_cast %90 : vector<39x40xbf16> to vector<1x1x39x40xbf16>
      tpu.vector_store %arg4[%c0_63, %91, %c0_64, %c0_65], %94 {strides = array<i32>} : memref<1x29x39x40xbf16, #tpu.memory_space<vmem>>, vector<1x1x39x40xbf16>,
    }
    %c29_i32_0 = arith.constant 29 : i32
    return
  }
  func.func @transform_0(%arg0: i32) -> (i32, i32, i32) {
    %c0_i32 = arith.constant 0 : i32
    %c0_i32_0 = arith.constant 0 : i32
    %c0_i32_1 = arith.constant 0 : i32
    return %arg0, %c0_i32, %c0_i32_0 : i32, i32, i32
  }
  func.func @transform_1(%arg0: i32) -> (i32, i32, i32) {
    %c0_i32 = arith.constant 0 : i32
    %c0_i32_0 = arith.constant 0 : i32
    %c0_i32_1 = arith.constant 0 : i32
    %c0_i32_2 = arith.constant 0 : i32
    return %c0_i32, %c0_i32_0, %c0_i32_1 : i32, i32, i32
  }
  func.func @transform_2(%arg0: i32) -> (i32, i32) {
    %c0_i32 = arith.constant 0 : i32
    %c0_i32_0 = arith.constant 0 : i32
    %c0_i32_1 = arith.constant 0 : i32
    return %c0_i32, %c0_i32_0 : i32, i32
  }
  func.func @transform_3(%arg0: i32) -> (i32, i32, i32, i32) {
    %c0_i32 = arith.constant 0 : i32
    %c0_i32_0 = arith.constant 0 : i32
    %c0_i32_1 = arith.constant 0 : i32
    %c0_i32_2 = arith.constant 0 : i32
    return %arg0, %c0_i32, %c0_i32_0, %c0_i32_1 : i32, i32, i32, i32
  }
}

module attributes {stable_mosaic.version = 11 : i64} {
  func.func @_conv_pool_kernel(%arg0: i32, %arg1: memref<1x928x200xbf16, #tpu.memory_space<vmem>>, %arg2: memref<5x200x60xbf16, #tpu.memory_space<vmem>>, %arg3: memref<1x60xf32, #tpu.memory_space<vmem>>, %arg4: memref<1x6x8x60xbf16, #tpu.memory_space<vmem>>, %arg5: memref<128x60xf32, #tpu.memory_space<vmem>>) attributes {dimension_semantics = [#tpu.dimension_semantics<parallel>], iteration_bounds = array<i64: 2>, scalar_prefetch = 0 : i64, scratch_operands = 1 : i64, tpu.core_type = #tpu.core_type<tc>, window_params = [{transform_indices = @transform_0, window_bounds = array<i64: 1, 928, 200>}, {pipeline_mode = #tpu.pipeline_mode<synchronous>, transform_indices = @transform_1, window_bounds = array<i64: 5, 200, 60>}, {pipeline_mode = #tpu.pipeline_mode<synchronous>, transform_indices = @transform_2, window_bounds = array<i64: 1, 60>}, {transform_indices = @transform_3, window_bounds = array<i64: 1, 6, 8, 60>}]} {
    %c0_i32 = arith.constant 0 : i32
    %c6_i32 = arith.constant 6 : i32
    %0 = arith.addi %c0_i32, %c6_i32 : i32
    %c1_i32 = arith.constant 1 : i32
    scf.for %arg6 = %c0_i32 to %0 step %c1_i32  : i32 {
      %c128_i32 = arith.constant 128 : i32
      %1 = arith.muli %arg6, %c128_i32 : i32
      %2 = tpu.assume_multiple %1, 8 : i32
      %c0 = arith.constant 0 : index
      %3 = arith.index_cast %2 : i32 to index
      %c0_1 = arith.constant 0 : index
      %4 = vector.load %arg1[%c0, %3, %c0_1] : memref<1x928x200xbf16, #tpu.memory_space<vmem>>, vector<1x128x200xbf16>
      %5 = vector.shape_cast %4 : vector<1x128x200xbf16> to vector<128x200xbf16>
      %c0_2 = arith.constant 0 : index
      %c0_3 = arith.constant 0 : index
      %c0_4 = arith.constant 0 : index
      %6 = vector.load %arg2[%c0_2, %c0_3, %c0_4] : memref<5x200x60xbf16, #tpu.memory_space<vmem>>, vector<1x200x60xbf16>
      %7 = vector.shape_cast %6 : vector<1x200x60xbf16> to vector<200x60xbf16>
      %cst = arith.constant dense<0.000000e+00> : vector<128x60xf32>
      %8 = tpu.matmul %5, %7, %cst {dimension_numbers = #tpu.dot_dimension_numbers<[1], [0], [0], [1], [0, 0, 1, 1], [], []>} : vector<128x200xbf16>, vector<200x60xbf16>, vector<128x60xf32> -> vector<128x60xf32>
      %c0_5 = arith.constant 0 : index
      %c0_6 = arith.constant 0 : index
      %9 = vector.load %arg5[%c0_5, %c0_6] : memref<128x60xf32, #tpu.memory_space<vmem>>, vector<128x60xf32>
      tpu.vector_store %arg5[%c0_5, %c0_6], %8 {strides = array<i32>} : memref<128x60xf32, #tpu.memory_space<vmem>>, vector<128x60xf32>,
      %c32_i32 = arith.constant 32 : i32
      %10 = arith.addi %1, %c32_i32 : i32
      %11 = tpu.assume_multiple %10, 8 : i32
      %c0_7 = arith.constant 0 : index
      %c0_8 = arith.constant 0 : index
      %12 = vector.load %arg5[%c0_7, %c0_8] : memref<128x60xf32, #tpu.memory_space<vmem>>, vector<128x60xf32>
      %c0_9 = arith.constant 0 : index
      %13 = arith.index_cast %11 : i32 to index
      %c0_10 = arith.constant 0 : index
      %14 = vector.load %arg1[%c0_9, %13, %c0_10] : memref<1x928x200xbf16, #tpu.memory_space<vmem>>, vector<1x128x200xbf16>
      %15 = vector.shape_cast %14 : vector<1x128x200xbf16> to vector<128x200xbf16>
      %c1 = arith.constant 1 : index
      %c0_11 = arith.constant 0 : index
      %c0_12 = arith.constant 0 : index
      %16 = vector.load %arg2[%c1, %c0_11, %c0_12] : memref<5x200x60xbf16, #tpu.memory_space<vmem>>, vector<1x200x60xbf16>
      %17 = vector.shape_cast %16 : vector<1x200x60xbf16> to vector<200x60xbf16>
      %cst_13 = arith.constant dense<0.000000e+00> : vector<128x60xf32>
      %18 = tpu.matmul %15, %17, %cst_13 {dimension_numbers = #tpu.dot_dimension_numbers<[1], [0], [0], [1], [0, 0, 1, 1], [], []>} : vector<128x200xbf16>, vector<200x60xbf16>, vector<128x60xf32> -> vector<128x60xf32>
      %19 = arith.addf %12, %18 : vector<128x60xf32>
      %c0_14 = arith.constant 0 : index
      %c0_15 = arith.constant 0 : index
      %20 = vector.load %arg5[%c0_14, %c0_15] : memref<128x60xf32, #tpu.memory_space<vmem>>, vector<128x60xf32>
      tpu.vector_store %arg5[%c0_14, %c0_15], %19 {strides = array<i32>} : memref<128x60xf32, #tpu.memory_space<vmem>>, vector<128x60xf32>,
      %c64_i32 = arith.constant 64 : i32
      %21 = arith.addi %1, %c64_i32 : i32
      %22 = tpu.assume_multiple %21, 8 : i32
      %c0_16 = arith.constant 0 : index
      %c0_17 = arith.constant 0 : index
      %23 = vector.load %arg5[%c0_16, %c0_17] : memref<128x60xf32, #tpu.memory_space<vmem>>, vector<128x60xf32>
      %c0_18 = arith.constant 0 : index
      %24 = arith.index_cast %22 : i32 to index
      %c0_19 = arith.constant 0 : index
      %25 = vector.load %arg1[%c0_18, %24, %c0_19] : memref<1x928x200xbf16, #tpu.memory_space<vmem>>, vector<1x128x200xbf16>
      %26 = vector.shape_cast %25 : vector<1x128x200xbf16> to vector<128x200xbf16>
      %c2 = arith.constant 2 : index
      %c0_20 = arith.constant 0 : index
      %c0_21 = arith.constant 0 : index
      %27 = vector.load %arg2[%c2, %c0_20, %c0_21] : memref<5x200x60xbf16, #tpu.memory_space<vmem>>, vector<1x200x60xbf16>
      %28 = vector.shape_cast %27 : vector<1x200x60xbf16> to vector<200x60xbf16>
      %cst_22 = arith.constant dense<0.000000e+00> : vector<128x60xf32>
      %29 = tpu.matmul %26, %28, %cst_22 {dimension_numbers = #tpu.dot_dimension_numbers<[1], [0], [0], [1], [0, 0, 1, 1], [], []>} : vector<128x200xbf16>, vector<200x60xbf16>, vector<128x60xf32> -> vector<128x60xf32>
      %30 = arith.addf %23, %29 : vector<128x60xf32>
      %c0_23 = arith.constant 0 : index
      %c0_24 = arith.constant 0 : index
      %31 = vector.load %arg5[%c0_23, %c0_24] : memref<128x60xf32, #tpu.memory_space<vmem>>, vector<128x60xf32>
      tpu.vector_store %arg5[%c0_23, %c0_24], %30 {strides = array<i32>} : memref<128x60xf32, #tpu.memory_space<vmem>>, vector<128x60xf32>,
      %c96_i32 = arith.constant 96 : i32
      %32 = arith.addi %1, %c96_i32 : i32
      %33 = tpu.assume_multiple %32, 8 : i32
      %c0_25 = arith.constant 0 : index
      %c0_26 = arith.constant 0 : index
      %34 = vector.load %arg5[%c0_25, %c0_26] : memref<128x60xf32, #tpu.memory_space<vmem>>, vector<128x60xf32>
      %c0_27 = arith.constant 0 : index
      %35 = arith.index_cast %33 : i32 to index
      %c0_28 = arith.constant 0 : index
      %36 = vector.load %arg1[%c0_27, %35, %c0_28] : memref<1x928x200xbf16, #tpu.memory_space<vmem>>, vector<1x128x200xbf16>
      %37 = vector.shape_cast %36 : vector<1x128x200xbf16> to vector<128x200xbf16>
      %c3 = arith.constant 3 : index
      %c0_29 = arith.constant 0 : index
      %c0_30 = arith.constant 0 : index
      %38 = vector.load %arg2[%c3, %c0_29, %c0_30] : memref<5x200x60xbf16, #tpu.memory_space<vmem>>, vector<1x200x60xbf16>
      %39 = vector.shape_cast %38 : vector<1x200x60xbf16> to vector<200x60xbf16>
      %cst_31 = arith.constant dense<0.000000e+00> : vector<128x60xf32>
      %40 = tpu.matmul %37, %39, %cst_31 {dimension_numbers = #tpu.dot_dimension_numbers<[1], [0], [0], [1], [0, 0, 1, 1], [], []>} : vector<128x200xbf16>, vector<200x60xbf16>, vector<128x60xf32> -> vector<128x60xf32>
      %41 = arith.addf %34, %40 : vector<128x60xf32>
      %c0_32 = arith.constant 0 : index
      %c0_33 = arith.constant 0 : index
      %42 = vector.load %arg5[%c0_32, %c0_33] : memref<128x60xf32, #tpu.memory_space<vmem>>, vector<128x60xf32>
      tpu.vector_store %arg5[%c0_32, %c0_33], %41 {strides = array<i32>} : memref<128x60xf32, #tpu.memory_space<vmem>>, vector<128x60xf32>,
      %c128_i32_34 = arith.constant 128 : i32
      %43 = arith.addi %1, %c128_i32_34 : i32
      %44 = tpu.assume_multiple %43, 8 : i32
      %c0_35 = arith.constant 0 : index
      %c0_36 = arith.constant 0 : index
      %45 = vector.load %arg5[%c0_35, %c0_36] : memref<128x60xf32, #tpu.memory_space<vmem>>, vector<128x60xf32>
      %c0_37 = arith.constant 0 : index
      %46 = arith.index_cast %44 : i32 to index
      %c0_38 = arith.constant 0 : index
      %47 = vector.load %arg1[%c0_37, %46, %c0_38] : memref<1x928x200xbf16, #tpu.memory_space<vmem>>, vector<1x128x200xbf16>
      %48 = vector.shape_cast %47 : vector<1x128x200xbf16> to vector<128x200xbf16>
      %c4 = arith.constant 4 : index
      %c0_39 = arith.constant 0 : index
      %c0_40 = arith.constant 0 : index
      %49 = vector.load %arg2[%c4, %c0_39, %c0_40] : memref<5x200x60xbf16, #tpu.memory_space<vmem>>, vector<1x200x60xbf16>
      %50 = vector.shape_cast %49 : vector<1x200x60xbf16> to vector<200x60xbf16>
      %cst_41 = arith.constant dense<0.000000e+00> : vector<128x60xf32>
      %51 = tpu.matmul %48, %50, %cst_41 {dimension_numbers = #tpu.dot_dimension_numbers<[1], [0], [0], [1], [0, 0, 1, 1], [], []>} : vector<128x200xbf16>, vector<200x60xbf16>, vector<128x60xf32> -> vector<128x60xf32>
      %52 = arith.addf %45, %51 : vector<128x60xf32>
      %c0_42 = arith.constant 0 : index
      %c0_43 = arith.constant 0 : index
      %53 = vector.load %arg5[%c0_42, %c0_43] : memref<128x60xf32, #tpu.memory_space<vmem>>, vector<128x60xf32>
      tpu.vector_store %arg5[%c0_42, %c0_43], %52 {strides = array<i32>} : memref<128x60xf32, #tpu.memory_space<vmem>>, vector<128x60xf32>,
      %c0_44 = arith.constant 0 : index
      %c0_45 = arith.constant 0 : index
      %54 = vector.load %arg5[%c0_44, %c0_45] : memref<128x60xf32, #tpu.memory_space<vmem>>, vector<8x60xf32>
      %c8 = arith.constant 8 : index
      %c0_46 = arith.constant 0 : index
      %55 = vector.load %arg5[%c8, %c0_46] : memref<128x60xf32, #tpu.memory_space<vmem>>, vector<8x60xf32>
      %56 = arith.maximumf %54, %55 : vector<8x60xf32>
      %c16 = arith.constant 16 : index
      %c0_47 = arith.constant 0 : index
      %57 = vector.load %arg5[%c16, %c0_47] : memref<128x60xf32, #tpu.memory_space<vmem>>, vector<8x60xf32>
      %58 = arith.maximumf %56, %57 : vector<8x60xf32>
      %c24 = arith.constant 24 : index
      %c0_48 = arith.constant 0 : index
      %59 = vector.load %arg5[%c24, %c0_48] : memref<128x60xf32, #tpu.memory_space<vmem>>, vector<8x60xf32>
      %60 = arith.maximumf %58, %59 : vector<8x60xf32>
      %c32 = arith.constant 32 : index
      %c0_49 = arith.constant 0 : index
      %61 = vector.load %arg5[%c32, %c0_49] : memref<128x60xf32, #tpu.memory_space<vmem>>, vector<8x60xf32>
      %62 = arith.maximumf %60, %61 : vector<8x60xf32>
      %c40 = arith.constant 40 : index
      %c0_50 = arith.constant 0 : index
      %63 = vector.load %arg5[%c40, %c0_50] : memref<128x60xf32, #tpu.memory_space<vmem>>, vector<8x60xf32>
      %64 = arith.maximumf %62, %63 : vector<8x60xf32>
      %c48 = arith.constant 48 : index
      %c0_51 = arith.constant 0 : index
      %65 = vector.load %arg5[%c48, %c0_51] : memref<128x60xf32, #tpu.memory_space<vmem>>, vector<8x60xf32>
      %66 = arith.maximumf %64, %65 : vector<8x60xf32>
      %c56 = arith.constant 56 : index
      %c0_52 = arith.constant 0 : index
      %67 = vector.load %arg5[%c56, %c0_52] : memref<128x60xf32, #tpu.memory_space<vmem>>, vector<8x60xf32>
      %68 = arith.maximumf %66, %67 : vector<8x60xf32>
      %c64 = arith.constant 64 : index
      %c0_53 = arith.constant 0 : index
      %69 = vector.load %arg5[%c64, %c0_53] : memref<128x60xf32, #tpu.memory_space<vmem>>, vector<8x60xf32>
      %70 = arith.maximumf %68, %69 : vector<8x60xf32>
      %c72 = arith.constant 72 : index
      %c0_54 = arith.constant 0 : index
      %71 = vector.load %arg5[%c72, %c0_54] : memref<128x60xf32, #tpu.memory_space<vmem>>, vector<8x60xf32>
      %72 = arith.maximumf %70, %71 : vector<8x60xf32>
      %c80 = arith.constant 80 : index
      %c0_55 = arith.constant 0 : index
      %73 = vector.load %arg5[%c80, %c0_55] : memref<128x60xf32, #tpu.memory_space<vmem>>, vector<8x60xf32>
      %74 = arith.maximumf %72, %73 : vector<8x60xf32>
      %c88 = arith.constant 88 : index
      %c0_56 = arith.constant 0 : index
      %75 = vector.load %arg5[%c88, %c0_56] : memref<128x60xf32, #tpu.memory_space<vmem>>, vector<8x60xf32>
      %76 = arith.maximumf %74, %75 : vector<8x60xf32>
      %c96 = arith.constant 96 : index
      %c0_57 = arith.constant 0 : index
      %77 = vector.load %arg5[%c96, %c0_57] : memref<128x60xf32, #tpu.memory_space<vmem>>, vector<8x60xf32>
      %78 = arith.maximumf %76, %77 : vector<8x60xf32>
      %c104 = arith.constant 104 : index
      %c0_58 = arith.constant 0 : index
      %79 = vector.load %arg5[%c104, %c0_58] : memref<128x60xf32, #tpu.memory_space<vmem>>, vector<8x60xf32>
      %80 = arith.maximumf %78, %79 : vector<8x60xf32>
      %c112 = arith.constant 112 : index
      %c0_59 = arith.constant 0 : index
      %81 = vector.load %arg5[%c112, %c0_59] : memref<128x60xf32, #tpu.memory_space<vmem>>, vector<8x60xf32>
      %82 = arith.maximumf %80, %81 : vector<8x60xf32>
      %c120 = arith.constant 120 : index
      %c0_60 = arith.constant 0 : index
      %83 = vector.load %arg5[%c120, %c0_60] : memref<128x60xf32, #tpu.memory_space<vmem>>, vector<8x60xf32>
      %84 = arith.maximumf %82, %83 : vector<8x60xf32>
      %c0_61 = arith.constant 0 : index
      %c0_62 = arith.constant 0 : index
      %85 = vector.load %arg3[%c0_61, %c0_62] : memref<1x60xf32, #tpu.memory_space<vmem>>, vector<1x60xf32>
      %86 = vector.broadcast %85 : vector<1x60xf32> to vector<8x60xf32>
      %87 = arith.addf %84, %86 : vector<8x60xf32>
      %88 = math.tanh %87 : vector<8x60xf32>
      %89 = arith.truncf %88 : vector<8x60xf32> to vector<8x60xbf16>
      %c0_63 = arith.constant 0 : index
      %90 = arith.index_cast %arg6 : i32 to index
      %c0_64 = arith.constant 0 : index
      %c0_65 = arith.constant 0 : index
      %91 = vector.load %arg4[%c0_63, %90, %c0_64, %c0_65] : memref<1x6x8x60xbf16, #tpu.memory_space<vmem>>, vector<1x1x8x60xbf16>
      %92 = vector.shape_cast %91 : vector<1x1x8x60xbf16> to vector<8x60xbf16>
      %93 = vector.shape_cast %89 : vector<8x60xbf16> to vector<1x1x8x60xbf16>
      tpu.vector_store %arg4[%c0_63, %90, %c0_64, %c0_65], %93 {strides = array<i32>} : memref<1x6x8x60xbf16, #tpu.memory_space<vmem>>, vector<1x1x8x60xbf16>,
    }
    %c6_i32_0 = arith.constant 6 : i32
    return
  }
  func.func @transform_0(%arg0: i32) -> (i32, i32, i32) {
    %c0_i32 = arith.constant 0 : i32
    %c0_i32_0 = arith.constant 0 : i32
    %c0_i32_1 = arith.constant 0 : i32
    return %arg0, %c0_i32, %c0_i32_0 : i32, i32, i32
  }
  func.func @transform_1(%arg0: i32) -> (i32, i32, i32) {
    %c0_i32 = arith.constant 0 : i32
    %c0_i32_0 = arith.constant 0 : i32
    %c0_i32_1 = arith.constant 0 : i32
    %c0_i32_2 = arith.constant 0 : i32
    return %c0_i32, %c0_i32_0, %c0_i32_1 : i32, i32, i32
  }
  func.func @transform_2(%arg0: i32) -> (i32, i32) {
    %c0_i32 = arith.constant 0 : i32
    %c0_i32_0 = arith.constant 0 : i32
    %c0_i32_1 = arith.constant 0 : i32
    return %c0_i32, %c0_i32_0 : i32, i32
  }
  func.func @transform_3(%arg0: i32) -> (i32, i32, i32, i32) {
    %c0_i32 = arith.constant 0 : i32
    %c0_i32_0 = arith.constant 0 : i32
    %c0_i32_1 = arith.constant 0 : i32
    %c0_i32_2 = arith.constant 0 : i32
    return %arg0, %c0_i32, %c0_i32_0, %c0_i32_1 : i32, i32, i32, i32
  }
}

module attributes {stable_mosaic.version = 11 : i64} {
  func.func @_head_kernel(%arg0: i32, %arg1: memref<1x6x8x60xbf16, #tpu.memory_space<vmem>>, %arg2: memref<9x60x240xbf16, #tpu.memory_space<vmem>>, %arg3: memref<1x240xf32, #tpu.memory_space<vmem>>, %arg4: memref<240x240xbf16, #tpu.memory_space<vmem>>, %arg5: memref<1x240xf32, #tpu.memory_space<vmem>>, %arg6: memref<240x120xbf16, #tpu.memory_space<vmem>>, %arg7: memref<1x120xf32, #tpu.memory_space<vmem>>, %arg8: memref<120x60xbf16, #tpu.memory_space<vmem>>, %arg9: memref<1x60xf32, #tpu.memory_space<vmem>>, %arg10: memref<60x128xbf16, #tpu.memory_space<vmem>>, %arg11: memref<1x128xf32, #tpu.memory_space<vmem>>, %arg12: memref<1x1x128xf32, #tpu.memory_space<vmem>>) attributes {dimension_semantics = [#tpu.dimension_semantics<parallel>], iteration_bounds = array<i64: 2>, scalar_prefetch = 0 : i64, scratch_operands = 0 : i64, tpu.core_type = #tpu.core_type<tc>, window_params = [{transform_indices = @transform_0, window_bounds = array<i64: 1, 6, 8, 60>}, {pipeline_mode = #tpu.pipeline_mode<synchronous>, transform_indices = @transform_1, window_bounds = array<i64: 9, 60, 240>}, {pipeline_mode = #tpu.pipeline_mode<synchronous>, transform_indices = @transform_2, window_bounds = array<i64: 1, 240>}, {pipeline_mode = #tpu.pipeline_mode<synchronous>, transform_indices = @transform_3, window_bounds = array<i64: 240, 240>}, {pipeline_mode = #tpu.pipeline_mode<synchronous>, transform_indices = @transform_4, window_bounds = array<i64: 1, 240>}, {pipeline_mode = #tpu.pipeline_mode<synchronous>, transform_indices = @transform_5, window_bounds = array<i64: 240, 120>}, {pipeline_mode = #tpu.pipeline_mode<synchronous>, transform_indices = @transform_6, window_bounds = array<i64: 1, 120>}, {pipeline_mode = #tpu.pipeline_mode<synchronous>, transform_indices = @transform_7, window_bounds = array<i64: 120, 60>}, {pipeline_mode = #tpu.pipeline_mode<synchronous>, transform_indices = @transform_8, window_bounds = array<i64: 1, 60>}, {pipeline_mode = #tpu.pipeline_mode<synchronous>, transform_indices = @transform_9, window_bounds = array<i64: 60, 128>}, {pipeline_mode = #tpu.pipeline_mode<synchronous>, transform_indices = @transform_10, window_bounds = array<i64: 1, 128>}, {transform_indices = @transform_11, window_bounds = array<i64: 1, 1, 128>}]} {
    %c0 = arith.constant 0 : index
    %c0_0 = arith.constant 0 : index
    %c0_1 = arith.constant 0 : index
    %c0_2 = arith.constant 0 : index
    %0 = vector.load %arg1[%c0, %c0_0, %c0_1, %c0_2] : memref<1x6x8x60xbf16, #tpu.memory_space<vmem>>, vector<1x1x4x60xbf16>
    %1 = vector.shape_cast %0 : vector<1x1x4x60xbf16> to vector<4x60xbf16>
    %c0_3 = arith.constant 0 : index
    %c1 = arith.constant 1 : index
    %c0_4 = arith.constant 0 : index
    %c0_5 = arith.constant 0 : index
    %2 = vector.load %arg1[%c0_3, %c1, %c0_4, %c0_5] : memref<1x6x8x60xbf16, #tpu.memory_space<vmem>>, vector<1x1x4x60xbf16>
    %3 = vector.shape_cast %2 : vector<1x1x4x60xbf16> to vector<4x60xbf16>
    %c0_6 = arith.constant 0 : index
    %c2 = arith.constant 2 : index
    %c0_7 = arith.constant 0 : index
    %c0_8 = arith.constant 0 : index
    %4 = vector.load %arg1[%c0_6, %c2, %c0_7, %c0_8] : memref<1x6x8x60xbf16, #tpu.memory_space<vmem>>, vector<1x1x4x60xbf16>
    %5 = vector.shape_cast %4 : vector<1x1x4x60xbf16> to vector<4x60xbf16>
    %c0_9 = arith.constant 0 : index
    %c3 = arith.constant 3 : index
    %c0_10 = arith.constant 0 : index
    %c0_11 = arith.constant 0 : index
    %6 = vector.load %arg1[%c0_9, %c3, %c0_10, %c0_11] : memref<1x6x8x60xbf16, #tpu.memory_space<vmem>>, vector<1x1x4x60xbf16>
    %7 = vector.shape_cast %6 : vector<1x1x4x60xbf16> to vector<4x60xbf16>
    %8 = tpu.concatenate %1, %3, %5, %7 in 0 : vector<4x60xbf16>, vector<4x60xbf16>, vector<4x60xbf16>, vector<4x60xbf16> -> vector<16x60xbf16>
    %c0_12 = arith.constant 0 : index
    %c0_13 = arith.constant 0 : index
    %c0_14 = arith.constant 0 : index
    %9 = vector.load %arg2[%c0_12, %c0_13, %c0_14] : memref<9x60x240xbf16, #tpu.memory_space<vmem>>, vector<1x60x240xbf16>
    %10 = vector.shape_cast %9 : vector<1x60x240xbf16> to vector<60x240xbf16>
    %cst = arith.constant dense<0.000000e+00> : vector<16x240xf32>
    %11 = tpu.matmul %8, %10, %cst {dimension_numbers = #tpu.dot_dimension_numbers<[1], [0], [0], [1], [0, 0, 1, 1], [], []>} : vector<16x60xbf16>, vector<60x240xbf16>, vector<16x240xf32> -> vector<16x240xf32>
    %c0_15 = arith.constant 0 : index
    %c0_16 = arith.constant 0 : index
    %c1_17 = arith.constant 1 : index
    %c0_18 = arith.constant 0 : index
    %12 = vector.load %arg1[%c0_15, %c0_16, %c1_17, %c0_18] : memref<1x6x8x60xbf16, #tpu.memory_space<vmem>>, vector<1x1x4x60xbf16>
    %13 = vector.shape_cast %12 : vector<1x1x4x60xbf16> to vector<4x60xbf16>
    %c0_19 = arith.constant 0 : index
    %c1_20 = arith.constant 1 : index
    %c1_21 = arith.constant 1 : index
    %c0_22 = arith.constant 0 : index
    %14 = vector.load %arg1[%c0_19, %c1_20, %c1_21, %c0_22] : memref<1x6x8x60xbf16, #tpu.memory_space<vmem>>, vector<1x1x4x60xbf16>
    %15 = vector.shape_cast %14 : vector<1x1x4x60xbf16> to vector<4x60xbf16>
    %c0_23 = arith.constant 0 : index
    %c2_24 = arith.constant 2 : index
    %c1_25 = arith.constant 1 : index
    %c0_26 = arith.constant 0 : index
    %16 = vector.load %arg1[%c0_23, %c2_24, %c1_25, %c0_26] : memref<1x6x8x60xbf16, #tpu.memory_space<vmem>>, vector<1x1x4x60xbf16>
    %17 = vector.shape_cast %16 : vector<1x1x4x60xbf16> to vector<4x60xbf16>
    %c0_27 = arith.constant 0 : index
    %c3_28 = arith.constant 3 : index
    %c1_29 = arith.constant 1 : index
    %c0_30 = arith.constant 0 : index
    %18 = vector.load %arg1[%c0_27, %c3_28, %c1_29, %c0_30] : memref<1x6x8x60xbf16, #tpu.memory_space<vmem>>, vector<1x1x4x60xbf16>
    %19 = vector.shape_cast %18 : vector<1x1x4x60xbf16> to vector<4x60xbf16>
    %20 = tpu.concatenate %13, %15, %17, %19 in 0 : vector<4x60xbf16>, vector<4x60xbf16>, vector<4x60xbf16>, vector<4x60xbf16> -> vector<16x60xbf16>
    %c1_31 = arith.constant 1 : index
    %c0_32 = arith.constant 0 : index
    %c0_33 = arith.constant 0 : index
    %21 = vector.load %arg2[%c1_31, %c0_32, %c0_33] : memref<9x60x240xbf16, #tpu.memory_space<vmem>>, vector<1x60x240xbf16>
    %22 = vector.shape_cast %21 : vector<1x60x240xbf16> to vector<60x240xbf16>
    %cst_34 = arith.constant dense<0.000000e+00> : vector<16x240xf32>
    %23 = tpu.matmul %20, %22, %cst_34 {dimension_numbers = #tpu.dot_dimension_numbers<[1], [0], [0], [1], [0, 0, 1, 1], [], []>} : vector<16x60xbf16>, vector<60x240xbf16>, vector<16x240xf32> -> vector<16x240xf32>
    %24 = arith.addf %11, %23 : vector<16x240xf32>
    %c0_35 = arith.constant 0 : index
    %c0_36 = arith.constant 0 : index
    %c2_37 = arith.constant 2 : index
    %c0_38 = arith.constant 0 : index
    %25 = vector.load %arg1[%c0_35, %c0_36, %c2_37, %c0_38] : memref<1x6x8x60xbf16, #tpu.memory_space<vmem>>, vector<1x1x4x60xbf16>
    %26 = vector.shape_cast %25 : vector<1x1x4x60xbf16> to vector<4x60xbf16>
    %c0_39 = arith.constant 0 : index
    %c1_40 = arith.constant 1 : index
    %c2_41 = arith.constant 2 : index
    %c0_42 = arith.constant 0 : index
    %27 = vector.load %arg1[%c0_39, %c1_40, %c2_41, %c0_42] : memref<1x6x8x60xbf16, #tpu.memory_space<vmem>>, vector<1x1x4x60xbf16>
    %28 = vector.shape_cast %27 : vector<1x1x4x60xbf16> to vector<4x60xbf16>
    %c0_43 = arith.constant 0 : index
    %c2_44 = arith.constant 2 : index
    %c2_45 = arith.constant 2 : index
    %c0_46 = arith.constant 0 : index
    %29 = vector.load %arg1[%c0_43, %c2_44, %c2_45, %c0_46] : memref<1x6x8x60xbf16, #tpu.memory_space<vmem>>, vector<1x1x4x60xbf16>
    %30 = vector.shape_cast %29 : vector<1x1x4x60xbf16> to vector<4x60xbf16>
    %c0_47 = arith.constant 0 : index
    %c3_48 = arith.constant 3 : index
    %c2_49 = arith.constant 2 : index
    %c0_50 = arith.constant 0 : index
    %31 = vector.load %arg1[%c0_47, %c3_48, %c2_49, %c0_50] : memref<1x6x8x60xbf16, #tpu.memory_space<vmem>>, vector<1x1x4x60xbf16>
    %32 = vector.shape_cast %31 : vector<1x1x4x60xbf16> to vector<4x60xbf16>
    %33 = tpu.concatenate %26, %28, %30, %32 in 0 : vector<4x60xbf16>, vector<4x60xbf16>, vector<4x60xbf16>, vector<4x60xbf16> -> vector<16x60xbf16>
    %c2_51 = arith.constant 2 : index
    %c0_52 = arith.constant 0 : index
    %c0_53 = arith.constant 0 : index
    %34 = vector.load %arg2[%c2_51, %c0_52, %c0_53] : memref<9x60x240xbf16, #tpu.memory_space<vmem>>, vector<1x60x240xbf16>
    %35 = vector.shape_cast %34 : vector<1x60x240xbf16> to vector<60x240xbf16>
    %cst_54 = arith.constant dense<0.000000e+00> : vector<16x240xf32>
    %36 = tpu.matmul %33, %35, %cst_54 {dimension_numbers = #tpu.dot_dimension_numbers<[1], [0], [0], [1], [0, 0, 1, 1], [], []>} : vector<16x60xbf16>, vector<60x240xbf16>, vector<16x240xf32> -> vector<16x240xf32>
    %37 = arith.addf %24, %36 : vector<16x240xf32>
    %c0_55 = arith.constant 0 : index
    %c1_56 = arith.constant 1 : index
    %c0_57 = arith.constant 0 : index
    %c0_58 = arith.constant 0 : index
    %38 = vector.load %arg1[%c0_55, %c1_56, %c0_57, %c0_58] : memref<1x6x8x60xbf16, #tpu.memory_space<vmem>>, vector<1x1x4x60xbf16>
    %39 = vector.shape_cast %38 : vector<1x1x4x60xbf16> to vector<4x60xbf16>
    %c0_59 = arith.constant 0 : index
    %c2_60 = arith.constant 2 : index
    %c0_61 = arith.constant 0 : index
    %c0_62 = arith.constant 0 : index
    %40 = vector.load %arg1[%c0_59, %c2_60, %c0_61, %c0_62] : memref<1x6x8x60xbf16, #tpu.memory_space<vmem>>, vector<1x1x4x60xbf16>
    %41 = vector.shape_cast %40 : vector<1x1x4x60xbf16> to vector<4x60xbf16>
    %c0_63 = arith.constant 0 : index
    %c3_64 = arith.constant 3 : index
    %c0_65 = arith.constant 0 : index
    %c0_66 = arith.constant 0 : index
    %42 = vector.load %arg1[%c0_63, %c3_64, %c0_65, %c0_66] : memref<1x6x8x60xbf16, #tpu.memory_space<vmem>>, vector<1x1x4x60xbf16>
    %43 = vector.shape_cast %42 : vector<1x1x4x60xbf16> to vector<4x60xbf16>
    %c0_67 = arith.constant 0 : index
    %c4 = arith.constant 4 : index
    %c0_68 = arith.constant 0 : index
    %c0_69 = arith.constant 0 : index
    %44 = vector.load %arg1[%c0_67, %c4, %c0_68, %c0_69] : memref<1x6x8x60xbf16, #tpu.memory_space<vmem>>, vector<1x1x4x60xbf16>
    %45 = vector.shape_cast %44 : vector<1x1x4x60xbf16> to vector<4x60xbf16>
    %46 = tpu.concatenate %39, %41, %43, %45 in 0 : vector<4x60xbf16>, vector<4x60xbf16>, vector<4x60xbf16>, vector<4x60xbf16> -> vector<16x60xbf16>
    %c3_70 = arith.constant 3 : index
    %c0_71 = arith.constant 0 : index
    %c0_72 = arith.constant 0 : index
    %47 = vector.load %arg2[%c3_70, %c0_71, %c0_72] : memref<9x60x240xbf16, #tpu.memory_space<vmem>>, vector<1x60x240xbf16>
    %48 = vector.shape_cast %47 : vector<1x60x240xbf16> to vector<60x240xbf16>
    %cst_73 = arith.constant dense<0.000000e+00> : vector<16x240xf32>
    %49 = tpu.matmul %46, %48, %cst_73 {dimension_numbers = #tpu.dot_dimension_numbers<[1], [0], [0], [1], [0, 0, 1, 1], [], []>} : vector<16x60xbf16>, vector<60x240xbf16>, vector<16x240xf32> -> vector<16x240xf32>
    %50 = arith.addf %37, %49 : vector<16x240xf32>
    %c0_74 = arith.constant 0 : index
    %c1_75 = arith.constant 1 : index
    %c1_76 = arith.constant 1 : index
    %c0_77 = arith.constant 0 : index
    %51 = vector.load %arg1[%c0_74, %c1_75, %c1_76, %c0_77] : memref<1x6x8x60xbf16, #tpu.memory_space<vmem>>, vector<1x1x4x60xbf16>
    %52 = vector.shape_cast %51 : vector<1x1x4x60xbf16> to vector<4x60xbf16>
    %c0_78 = arith.constant 0 : index
    %c2_79 = arith.constant 2 : index
    %c1_80 = arith.constant 1 : index
    %c0_81 = arith.constant 0 : index
    %53 = vector.load %arg1[%c0_78, %c2_79, %c1_80, %c0_81] : memref<1x6x8x60xbf16, #tpu.memory_space<vmem>>, vector<1x1x4x60xbf16>
    %54 = vector.shape_cast %53 : vector<1x1x4x60xbf16> to vector<4x60xbf16>
    %c0_82 = arith.constant 0 : index
    %c3_83 = arith.constant 3 : index
    %c1_84 = arith.constant 1 : index
    %c0_85 = arith.constant 0 : index
    %55 = vector.load %arg1[%c0_82, %c3_83, %c1_84, %c0_85] : memref<1x6x8x60xbf16, #tpu.memory_space<vmem>>, vector<1x1x4x60xbf16>
    %56 = vector.shape_cast %55 : vector<1x1x4x60xbf16> to vector<4x60xbf16>
    %c0_86 = arith.constant 0 : index
    %c4_87 = arith.constant 4 : index
    %c1_88 = arith.constant 1 : index
    %c0_89 = arith.constant 0 : index
    %57 = vector.load %arg1[%c0_86, %c4_87, %c1_88, %c0_89] : memref<1x6x8x60xbf16, #tpu.memory_space<vmem>>, vector<1x1x4x60xbf16>
    %58 = vector.shape_cast %57 : vector<1x1x4x60xbf16> to vector<4x60xbf16>
    %59 = tpu.concatenate %52, %54, %56, %58 in 0 : vector<4x60xbf16>, vector<4x60xbf16>, vector<4x60xbf16>, vector<4x60xbf16> -> vector<16x60xbf16>
    %c4_90 = arith.constant 4 : index
    %c0_91 = arith.constant 0 : index
    %c0_92 = arith.constant 0 : index
    %60 = vector.load %arg2[%c4_90, %c0_91, %c0_92] : memref<9x60x240xbf16, #tpu.memory_space<vmem>>, vector<1x60x240xbf16>
    %61 = vector.shape_cast %60 : vector<1x60x240xbf16> to vector<60x240xbf16>
    %cst_93 = arith.constant dense<0.000000e+00> : vector<16x240xf32>
    %62 = tpu.matmul %59, %61, %cst_93 {dimension_numbers = #tpu.dot_dimension_numbers<[1], [0], [0], [1], [0, 0, 1, 1], [], []>} : vector<16x60xbf16>, vector<60x240xbf16>, vector<16x240xf32> -> vector<16x240xf32>
    %63 = arith.addf %50, %62 : vector<16x240xf32>
    %c0_94 = arith.constant 0 : index
    %c1_95 = arith.constant 1 : index
    %c2_96 = arith.constant 2 : index
    %c0_97 = arith.constant 0 : index
    %64 = vector.load %arg1[%c0_94, %c1_95, %c2_96, %c0_97] : memref<1x6x8x60xbf16, #tpu.memory_space<vmem>>, vector<1x1x4x60xbf16>
    %65 = vector.shape_cast %64 : vector<1x1x4x60xbf16> to vector<4x60xbf16>
    %c0_98 = arith.constant 0 : index
    %c2_99 = arith.constant 2 : index
    %c2_100 = arith.constant 2 : index
    %c0_101 = arith.constant 0 : index
    %66 = vector.load %arg1[%c0_98, %c2_99, %c2_100, %c0_101] : memref<1x6x8x60xbf16, #tpu.memory_space<vmem>>, vector<1x1x4x60xbf16>
    %67 = vector.shape_cast %66 : vector<1x1x4x60xbf16> to vector<4x60xbf16>
    %c0_102 = arith.constant 0 : index
    %c3_103 = arith.constant 3 : index
    %c2_104 = arith.constant 2 : index
    %c0_105 = arith.constant 0 : index
    %68 = vector.load %arg1[%c0_102, %c3_103, %c2_104, %c0_105] : memref<1x6x8x60xbf16, #tpu.memory_space<vmem>>, vector<1x1x4x60xbf16>
    %69 = vector.shape_cast %68 : vector<1x1x4x60xbf16> to vector<4x60xbf16>
    %c0_106 = arith.constant 0 : index
    %c4_107 = arith.constant 4 : index
    %c2_108 = arith.constant 2 : index
    %c0_109 = arith.constant 0 : index
    %70 = vector.load %arg1[%c0_106, %c4_107, %c2_108, %c0_109] : memref<1x6x8x60xbf16, #tpu.memory_space<vmem>>, vector<1x1x4x60xbf16>
    %71 = vector.shape_cast %70 : vector<1x1x4x60xbf16> to vector<4x60xbf16>
    %72 = tpu.concatenate %65, %67, %69, %71 in 0 : vector<4x60xbf16>, vector<4x60xbf16>, vector<4x60xbf16>, vector<4x60xbf16> -> vector<16x60xbf16>
    %c5 = arith.constant 5 : index
    %c0_110 = arith.constant 0 : index
    %c0_111 = arith.constant 0 : index
    %73 = vector.load %arg2[%c5, %c0_110, %c0_111] : memref<9x60x240xbf16, #tpu.memory_space<vmem>>, vector<1x60x240xbf16>
    %74 = vector.shape_cast %73 : vector<1x60x240xbf16> to vector<60x240xbf16>
    %cst_112 = arith.constant dense<0.000000e+00> : vector<16x240xf32>
    %75 = tpu.matmul %72, %74, %cst_112 {dimension_numbers = #tpu.dot_dimension_numbers<[1], [0], [0], [1], [0, 0, 1, 1], [], []>} : vector<16x60xbf16>, vector<60x240xbf16>, vector<16x240xf32> -> vector<16x240xf32>
    %76 = arith.addf %63, %75 : vector<16x240xf32>
    %c0_113 = arith.constant 0 : index
    %c2_114 = arith.constant 2 : index
    %c0_115 = arith.constant 0 : index
    %c0_116 = arith.constant 0 : index
    %77 = vector.load %arg1[%c0_113, %c2_114, %c0_115, %c0_116] : memref<1x6x8x60xbf16, #tpu.memory_space<vmem>>, vector<1x1x4x60xbf16>
    %78 = vector.shape_cast %77 : vector<1x1x4x60xbf16> to vector<4x60xbf16>
    %c0_117 = arith.constant 0 : index
    %c3_118 = arith.constant 3 : index
    %c0_119 = arith.constant 0 : index
    %c0_120 = arith.constant 0 : index
    %79 = vector.load %arg1[%c0_117, %c3_118, %c0_119, %c0_120] : memref<1x6x8x60xbf16, #tpu.memory_space<vmem>>, vector<1x1x4x60xbf16>
    %80 = vector.shape_cast %79 : vector<1x1x4x60xbf16> to vector<4x60xbf16>
    %c0_121 = arith.constant 0 : index
    %c4_122 = arith.constant 4 : index
    %c0_123 = arith.constant 0 : index
    %c0_124 = arith.constant 0 : index
    %81 = vector.load %arg1[%c0_121, %c4_122, %c0_123, %c0_124] : memref<1x6x8x60xbf16, #tpu.memory_space<vmem>>, vector<1x1x4x60xbf16>
    %82 = vector.shape_cast %81 : vector<1x1x4x60xbf16> to vector<4x60xbf16>
    %c0_125 = arith.constant 0 : index
    %c5_126 = arith.constant 5 : index
    %c0_127 = arith.constant 0 : index
    %c0_128 = arith.constant 0 : index
    %83 = vector.load %arg1[%c0_125, %c5_126, %c0_127, %c0_128] : memref<1x6x8x60xbf16, #tpu.memory_space<vmem>>, vector<1x1x4x60xbf16>
    %84 = vector.shape_cast %83 : vector<1x1x4x60xbf16> to vector<4x60xbf16>
    %85 = tpu.concatenate %78, %80, %82, %84 in 0 : vector<4x60xbf16>, vector<4x60xbf16>, vector<4x60xbf16>, vector<4x60xbf16> -> vector<16x60xbf16>
    %c6 = arith.constant 6 : index
    %c0_129 = arith.constant 0 : index
    %c0_130 = arith.constant 0 : index
    %86 = vector.load %arg2[%c6, %c0_129, %c0_130] : memref<9x60x240xbf16, #tpu.memory_space<vmem>>, vector<1x60x240xbf16>
    %87 = vector.shape_cast %86 : vector<1x60x240xbf16> to vector<60x240xbf16>
    %cst_131 = arith.constant dense<0.000000e+00> : vector<16x240xf32>
    %88 = tpu.matmul %85, %87, %cst_131 {dimension_numbers = #tpu.dot_dimension_numbers<[1], [0], [0], [1], [0, 0, 1, 1], [], []>} : vector<16x60xbf16>, vector<60x240xbf16>, vector<16x240xf32> -> vector<16x240xf32>
    %89 = arith.addf %76, %88 : vector<16x240xf32>
    %c0_132 = arith.constant 0 : index
    %c2_133 = arith.constant 2 : index
    %c1_134 = arith.constant 1 : index
    %c0_135 = arith.constant 0 : index
    %90 = vector.load %arg1[%c0_132, %c2_133, %c1_134, %c0_135] : memref<1x6x8x60xbf16, #tpu.memory_space<vmem>>, vector<1x1x4x60xbf16>
    %91 = vector.shape_cast %90 : vector<1x1x4x60xbf16> to vector<4x60xbf16>
    %c0_136 = arith.constant 0 : index
    %c3_137 = arith.constant 3 : index
    %c1_138 = arith.constant 1 : index
    %c0_139 = arith.constant 0 : index
    %92 = vector.load %arg1[%c0_136, %c3_137, %c1_138, %c0_139] : memref<1x6x8x60xbf16, #tpu.memory_space<vmem>>, vector<1x1x4x60xbf16>
    %93 = vector.shape_cast %92 : vector<1x1x4x60xbf16> to vector<4x60xbf16>
    %c0_140 = arith.constant 0 : index
    %c4_141 = arith.constant 4 : index
    %c1_142 = arith.constant 1 : index
    %c0_143 = arith.constant 0 : index
    %94 = vector.load %arg1[%c0_140, %c4_141, %c1_142, %c0_143] : memref<1x6x8x60xbf16, #tpu.memory_space<vmem>>, vector<1x1x4x60xbf16>
    %95 = vector.shape_cast %94 : vector<1x1x4x60xbf16> to vector<4x60xbf16>
    %c0_144 = arith.constant 0 : index
    %c5_145 = arith.constant 5 : index
    %c1_146 = arith.constant 1 : index
    %c0_147 = arith.constant 0 : index
    %96 = vector.load %arg1[%c0_144, %c5_145, %c1_146, %c0_147] : memref<1x6x8x60xbf16, #tpu.memory_space<vmem>>, vector<1x1x4x60xbf16>
    %97 = vector.shape_cast %96 : vector<1x1x4x60xbf16> to vector<4x60xbf16>
    %98 = tpu.concatenate %91, %93, %95, %97 in 0 : vector<4x60xbf16>, vector<4x60xbf16>, vector<4x60xbf16>, vector<4x60xbf16> -> vector<16x60xbf16>
    %c7 = arith.constant 7 : index
    %c0_148 = arith.constant 0 : index
    %c0_149 = arith.constant 0 : index
    %99 = vector.load %arg2[%c7, %c0_148, %c0_149] : memref<9x60x240xbf16, #tpu.memory_space<vmem>>, vector<1x60x240xbf16>
    %100 = vector.shape_cast %99 : vector<1x60x240xbf16> to vector<60x240xbf16>
    %cst_150 = arith.constant dense<0.000000e+00> : vector<16x240xf32>
    %101 = tpu.matmul %98, %100, %cst_150 {dimension_numbers = #tpu.dot_dimension_numbers<[1], [0], [0], [1], [0, 0, 1, 1], [], []>} : vector<16x60xbf16>, vector<60x240xbf16>, vector<16x240xf32> -> vector<16x240xf32>
    %102 = arith.addf %89, %101 : vector<16x240xf32>
    %c0_151 = arith.constant 0 : index
    %c2_152 = arith.constant 2 : index
    %c2_153 = arith.constant 2 : index
    %c0_154 = arith.constant 0 : index
    %103 = vector.load %arg1[%c0_151, %c2_152, %c2_153, %c0_154] : memref<1x6x8x60xbf16, #tpu.memory_space<vmem>>, vector<1x1x4x60xbf16>
    %104 = vector.shape_cast %103 : vector<1x1x4x60xbf16> to vector<4x60xbf16>
    %c0_155 = arith.constant 0 : index
    %c3_156 = arith.constant 3 : index
    %c2_157 = arith.constant 2 : index
    %c0_158 = arith.constant 0 : index
    %105 = vector.load %arg1[%c0_155, %c3_156, %c2_157, %c0_158] : memref<1x6x8x60xbf16, #tpu.memory_space<vmem>>, vector<1x1x4x60xbf16>
    %106 = vector.shape_cast %105 : vector<1x1x4x60xbf16> to vector<4x60xbf16>
    %c0_159 = arith.constant 0 : index
    %c4_160 = arith.constant 4 : index
    %c2_161 = arith.constant 2 : index
    %c0_162 = arith.constant 0 : index
    %107 = vector.load %arg1[%c0_159, %c4_160, %c2_161, %c0_162] : memref<1x6x8x60xbf16, #tpu.memory_space<vmem>>, vector<1x1x4x60xbf16>
    %108 = vector.shape_cast %107 : vector<1x1x4x60xbf16> to vector<4x60xbf16>
    %c0_163 = arith.constant 0 : index
    %c5_164 = arith.constant 5 : index
    %c2_165 = arith.constant 2 : index
    %c0_166 = arith.constant 0 : index
    %109 = vector.load %arg1[%c0_163, %c5_164, %c2_165, %c0_166] : memref<1x6x8x60xbf16, #tpu.memory_space<vmem>>, vector<1x1x4x60xbf16>
    %110 = vector.shape_cast %109 : vector<1x1x4x60xbf16> to vector<4x60xbf16>
    %111 = tpu.concatenate %104, %106, %108, %110 in 0 : vector<4x60xbf16>, vector<4x60xbf16>, vector<4x60xbf16>, vector<4x60xbf16> -> vector<16x60xbf16>
    %c8 = arith.constant 8 : index
    %c0_167 = arith.constant 0 : index
    %c0_168 = arith.constant 0 : index
    %112 = vector.load %arg2[%c8, %c0_167, %c0_168] : memref<9x60x240xbf16, #tpu.memory_space<vmem>>, vector<1x60x240xbf16>
    %113 = vector.shape_cast %112 : vector<1x60x240xbf16> to vector<60x240xbf16>
    %cst_169 = arith.constant dense<0.000000e+00> : vector<16x240xf32>
    %114 = tpu.matmul %111, %113, %cst_169 {dimension_numbers = #tpu.dot_dimension_numbers<[1], [0], [0], [1], [0, 0, 1, 1], [], []>} : vector<16x60xbf16>, vector<60x240xbf16>, vector<16x240xf32> -> vector<16x240xf32>
    %115 = arith.addf %102, %114 : vector<16x240xf32>
    %cst_170 = arith.constant dense<0xFF800000> : vector<240xf32>
    %116 = vector.multi_reduction <maximumf>, %115, %cst_170 [0] : vector<16x240xf32> to vector<240xf32>
    %117 = vector.shape_cast %116 : vector<240xf32> to vector<1x240xf32>
    %c0_171 = arith.constant 0 : index
    %c0_172 = arith.constant 0 : index
    %118 = vector.load %arg3[%c0_171, %c0_172] : memref<1x240xf32, #tpu.memory_space<vmem>>, vector<1x240xf32>
    %119 = arith.addf %117, %118 : vector<1x240xf32>
    %cst_173 = arith.constant 0.000000e+00 : f32
    %120 = vector.broadcast %cst_173 : f32 to vector<1x240xf32>
    %121 = arith.maximumf %119, %120 : vector<1x240xf32>
    %122 = arith.truncf %121 : vector<1x240xf32> to vector<1x240xbf16>
    %c0_174 = arith.constant 0 : index
    %c0_175 = arith.constant 0 : index
    %123 = vector.load %arg4[%c0_174, %c0_175] : memref<240x240xbf16, #tpu.memory_space<vmem>>, vector<240x240xbf16>
    %cst_176 = arith.constant dense<0.000000e+00> : vector<1x240xf32>
    %124 = tpu.matmul %122, %123, %cst_176 {dimension_numbers = #tpu.dot_dimension_numbers<[1], [0], [0], [1], [0, 0, 1, 1], [], []>} : vector<1x240xbf16>, vector<240x240xbf16>, vector<1x240xf32> -> vector<1x240xf32>
    %c0_177 = arith.constant 0 : index
    %c0_178 = arith.constant 0 : index
    %125 = vector.load %arg5[%c0_177, %c0_178] : memref<1x240xf32, #tpu.memory_space<vmem>>, vector<1x240xf32>
    %126 = arith.addf %124, %125 : vector<1x240xf32>
    %cst_179 = arith.constant 0.000000e+00 : f32
    %127 = vector.broadcast %cst_179 : f32 to vector<1x240xf32>
    %128 = arith.maximumf %126, %127 : vector<1x240xf32>
    %129 = arith.truncf %128 : vector<1x240xf32> to vector<1x240xbf16>
    %c0_180 = arith.constant 0 : index
    %c0_181 = arith.constant 0 : index
    %130 = vector.load %arg4[%c0_180, %c0_181] : memref<240x240xbf16, #tpu.memory_space<vmem>>, vector<240x240xbf16>
    %cst_182 = arith.constant dense<0.000000e+00> : vector<1x240xf32>
    %131 = tpu.matmul %129, %130, %cst_182 {dimension_numbers = #tpu.dot_dimension_numbers<[1], [0], [0], [1], [0, 0, 1, 1], [], []>} : vector<1x240xbf16>, vector<240x240xbf16>, vector<1x240xf32> -> vector<1x240xf32>
    %c0_183 = arith.constant 0 : index
    %c0_184 = arith.constant 0 : index
    %132 = vector.load %arg5[%c0_183, %c0_184] : memref<1x240xf32, #tpu.memory_space<vmem>>, vector<1x240xf32>
    %133 = arith.addf %131, %132 : vector<1x240xf32>
    %cst_185 = arith.constant 0.000000e+00 : f32
    %134 = vector.broadcast %cst_185 : f32 to vector<1x240xf32>
    %135 = arith.maximumf %133, %134 : vector<1x240xf32>
    %136 = arith.truncf %135 : vector<1x240xf32> to vector<1x240xbf16>
    %c0_186 = arith.constant 0 : index
    %c0_187 = arith.constant 0 : index
    %137 = vector.load %arg6[%c0_186, %c0_187] : memref<240x120xbf16, #tpu.memory_space<vmem>>, vector<240x120xbf16>
    %cst_188 = arith.constant dense<0.000000e+00> : vector<1x120xf32>
    %138 = tpu.matmul %136, %137, %cst_188 {dimension_numbers = #tpu.dot_dimension_numbers<[1], [0], [0], [1], [0, 0, 1, 1], [], []>} : vector<1x240xbf16>, vector<240x120xbf16>, vector<1x120xf32> -> vector<1x120xf32>
    %c0_189 = arith.constant 0 : index
    %c0_190 = arith.constant 0 : index
    %139 = vector.load %arg7[%c0_189, %c0_190] : memref<1x120xf32, #tpu.memory_space<vmem>>, vector<1x120xf32>
    %140 = arith.addf %138, %139 : vector<1x120xf32>
    %cst_191 = arith.constant 0.000000e+00 : f32
    %141 = vector.broadcast %cst_191 : f32 to vector<1x120xf32>
    %142 = arith.maximumf %140, %141 : vector<1x120xf32>
    %143 = arith.truncf %142 : vector<1x120xf32> to vector<1x120xbf16>
    %c0_192 = arith.constant 0 : index
    %c0_193 = arith.constant 0 : index
    %144 = vector.load %arg8[%c0_192, %c0_193] : memref<120x60xbf16, #tpu.memory_space<vmem>>, vector<120x60xbf16>
    %cst_194 = arith.constant dense<0.000000e+00> : vector<1x60xf32>
    %145 = tpu.matmul %143, %144, %cst_194 {dimension_numbers = #tpu.dot_dimension_numbers<[1], [0], [0], [1], [0, 0, 1, 1], [], []>} : vector<1x120xbf16>, vector<120x60xbf16>, vector<1x60xf32> -> vector<1x60xf32>
    %c0_195 = arith.constant 0 : index
    %c0_196 = arith.constant 0 : index
    %146 = vector.load %arg9[%c0_195, %c0_196] : memref<1x60xf32, #tpu.memory_space<vmem>>, vector<1x60xf32>
    %147 = arith.addf %145, %146 : vector<1x60xf32>
    %cst_197 = arith.constant 0.000000e+00 : f32
    %148 = vector.broadcast %cst_197 : f32 to vector<1x60xf32>
    %149 = arith.maximumf %147, %148 : vector<1x60xf32>
    %150 = arith.truncf %149 : vector<1x60xf32> to vector<1x60xbf16>
    %c0_198 = arith.constant 0 : index
    %c0_199 = arith.constant 0 : index
    %151 = vector.load %arg10[%c0_198, %c0_199] : memref<60x128xbf16, #tpu.memory_space<vmem>>, vector<60x128xbf16>
    %cst_200 = arith.constant dense<0.000000e+00> : vector<1x128xf32>
    %152 = tpu.matmul %150, %151, %cst_200 {dimension_numbers = #tpu.dot_dimension_numbers<[1], [0], [0], [1], [0, 0, 1, 1], [], []>} : vector<1x60xbf16>, vector<60x128xbf16>, vector<1x128xf32> -> vector<1x128xf32>
    %c0_201 = arith.constant 0 : index
    %c0_202 = arith.constant 0 : index
    %153 = vector.load %arg11[%c0_201, %c0_202] : memref<1x128xf32, #tpu.memory_space<vmem>>, vector<1x128xf32>
    %154 = arith.addf %152, %153 : vector<1x128xf32>
    %c0_203 = arith.constant 0 : index
    %c0_204 = arith.constant 0 : index
    %c0_205 = arith.constant 0 : index
    %155 = vector.load %arg12[%c0_203, %c0_204, %c0_205] : memref<1x1x128xf32, #tpu.memory_space<vmem>>, vector<1x1x128xf32>
    %156 = vector.shape_cast %155 : vector<1x1x128xf32> to vector<1x128xf32>
    %157 = vector.shape_cast %154 : vector<1x128xf32> to vector<1x1x128xf32>
    tpu.vector_store %arg12[%c0_203, %c0_204, %c0_205], %157 {strides = array<i32>} : memref<1x1x128xf32, #tpu.memory_space<vmem>>, vector<1x1x128xf32>,
    return
  }
  func.func @transform_0(%arg0: i32) -> (i32, i32, i32, i32) {
    %c0_i32 = arith.constant 0 : i32
    %c0_i32_0 = arith.constant 0 : i32
    %c0_i32_1 = arith.constant 0 : i32
    %c0_i32_2 = arith.constant 0 : i32
    return %arg0, %c0_i32, %c0_i32_0, %c0_i32_1 : i32, i32, i32, i32
  }
  func.func @transform_1(%arg0: i32) -> (i32, i32, i32) {
    %c0_i32 = arith.constant 0 : i32
    %c0_i32_0 = arith.constant 0 : i32
    %c0_i32_1 = arith.constant 0 : i32
    %c0_i32_2 = arith.constant 0 : i32
    return %c0_i32, %c0_i32_0, %c0_i32_1 : i32, i32, i32
  }
  func.func @transform_2(%arg0: i32) -> (i32, i32) {
    %c0_i32 = arith.constant 0 : i32
    %c0_i32_0 = arith.constant 0 : i32
    %c0_i32_1 = arith.constant 0 : i32
    return %c0_i32, %c0_i32_0 : i32, i32
  }
  func.func @transform_3(%arg0: i32) -> (i32, i32) {
    %c0_i32 = arith.constant 0 : i32
    %c0_i32_0 = arith.constant 0 : i32
    %c0_i32_1 = arith.constant 0 : i32
    return %c0_i32, %c0_i32_0 : i32, i32
  }
  func.func @transform_4(%arg0: i32) -> (i32, i32) {
    %c0_i32 = arith.constant 0 : i32
    %c0_i32_0 = arith.constant 0 : i32
    %c0_i32_1 = arith.constant 0 : i32
    return %c0_i32, %c0_i32_0 : i32, i32
  }
  func.func @transform_5(%arg0: i32) -> (i32, i32) {
    %c0_i32 = arith.constant 0 : i32
    %c0_i32_0 = arith.constant 0 : i32
    %c0_i32_1 = arith.constant 0 : i32
    return %c0_i32, %c0_i32_0 : i32, i32
  }
  func.func @transform_6(%arg0: i32) -> (i32, i32) {
    %c0_i32 = arith.constant 0 : i32
    %c0_i32_0 = arith.constant 0 : i32
    %c0_i32_1 = arith.constant 0 : i32
    return %c0_i32, %c0_i32_0 : i32, i32
  }
  func.func @transform_7(%arg0: i32) -> (i32, i32) {
    %c0_i32 = arith.constant 0 : i32
    %c0_i32_0 = arith.constant 0 : i32
    %c0_i32_1 = arith.constant 0 : i32
    return %c0_i32, %c0_i32_0 : i32, i32
  }
  func.func @transform_8(%arg0: i32) -> (i32, i32) {
    %c0_i32 = arith.constant 0 : i32
    %c0_i32_0 = arith.constant 0 : i32
    %c0_i32_1 = arith.constant 0 : i32
    return %c0_i32, %c0_i32_0 : i32, i32
  }
  func.func @transform_9(%arg0: i32) -> (i32, i32) {
    %c0_i32 = arith.constant 0 : i32
    %c0_i32_0 = arith.constant 0 : i32
    %c0_i32_1 = arith.constant 0 : i32
    return %c0_i32, %c0_i32_0 : i32, i32
  }
  func.func @transform_10(%arg0: i32) -> (i32, i32) {
    %c0_i32 = arith.constant 0 : i32
    %c0_i32_0 = arith.constant 0 : i32
    %c0_i32_1 = arith.constant 0 : i32
    return %c0_i32, %c0_i32_0 : i32, i32
  }
  func.func @transform_11(%arg0: i32) -> (i32, i32, i32) {
    %c0_i32 = arith.constant 0 : i32
    %c0_i32_0 = arith.constant 0 : i32
    %c0_i32_1 = arith.constant 0 : i32
    return %arg0, %c0_i32, %c0_i32_0 : i32, i32, i32
  }
}

</mosaic_0001>

<llo_original>
// kernel: neural_net_forward.3
$region0: #{neural_net_forward.3}
  #allocation0 [shape = 'u32[]', space=smem, size = 0x4, offset = 0x4, fixed_abs, tag = 'smem constant byte address 0x4 - core index']
  #allocation1 [shape = 'u32[144,128]{1,0:T(1,128)}', space=vmem, size = 0x12000, scoped, tag = 'internal scratch']
  #allocation2 [shape = 'f32[640,40]{1,0:T(8,128)}', space=vmem, size = 0x50000, scoped, tag = 'scratch operand']
  %s0 = inlined_call_operand.vmem [shape: bf16[2,19200,15], index: 0, kind: input, shape index: {}]
  %s1 = inlined_call_operand.vmem [shape: bf16[5,15,40], index: 1, kind: input, shape index: {}]
  %s2 = inlined_call_operand.vmem [shape: f32[1,40], index: 2, kind: input, shape index: {}]
  %s3 = inlined_call_operand.vmem [shape: bf16[2,29,39,40], index: 3, kind: output, shape index: {}]
  %s4 = sld [smem:[#allocation0]]
  $region52: #{neural_net_forward.3} parent=0
    _
  %s6 = ssub.s32 1, %s4
  %s7 = scalar_select 0, %s6, %s4
  loop: start=0, step=1, limit=4
  $region2: #{neural_net_forward.3} parent=0 // loop_pre_header
    _
  $region3: #{neural_net_forward.3} parent=0 // loop_header
    %s9 = sphi 0, %s13
    %p10 = scmp.ge.s32.totalorder %s9, 4
    %s19 = sphi 0, %s21
    %s22 = sphi 0, %s19
    %s23 = sphi 0, %s22
    %s39 = sphi 0, %s23
    %s43 = sphi 0, %s43
    %s45 = sphi 0, %s43
    %s46 = sphi 0, %s45
    %s60 = sphi 0, %s46
    %s64 = sphi 0, %s64
    %s66 = sphi 0, %s64
    %s67 = sphi 0, %s66
    %s81 = sphi 0, %s67
    %s87 = sphi 0, %s89
    %s90 = sphi 0, %s87
    %s91 = sphi 0, %s90
    %s107 = sphi 0, %s91
  $region4: #{neural_net_forward.3} parent=0 // loop_header_branch
    %12 = sbr.rel (%p10) target = $region8
  $region5: #{neural_net_forward.3} parent=0 // loop_body
    %s14 = ssub.s32 %s9, 1
    %s15 = ssub.s32 %s9, 2
    %s16 = sadd.s32 %s9, 1
    %s17 = ssub.s32 %s9, %s16
    %p18 = scmp.eq.s32.totalorder %s17, 0
    %s20 = sadd.s32 %s19, 1
    %s21 = scalar_select %p18, %s19, %s20
    %p24 = pneg %p18
    %p25 = scmp.eq.s32.totalorder %s9, 1
    %p26 = por %p24, %p25
    %p27 = scmp.ne.s32.totalorder %s19, %s22
    %p28 = scmp.eq.s32.totalorder %s9, 0
    %p29 = por %p27, %p28
    %p30 = scmp.ne.s32.totalorder %s19, %s22
    %p31 = scmp.eq.s32.totalorder %s14, 1
    %p32 = por %p30, %p31
    %p33 = scmp.ne.s32.totalorder %s22, %s23
    %p34 = scmp.eq.s32.totalorder %s14, 0
    %p35 = por %p33, %p34
    %p36 = scmp.ne.s32.totalorder %s22, %s23
    %p37 = scmp.eq.s32.totalorder %s15, 1
    %p38 = por %p36, %p37
    %p40 = scmp.ne.s32.totalorder %s23, %s39
    %p41 = scmp.eq.s32.totalorder %s15, 0
    %p42 = por %p40, %p41
    %s44 = sadd.s32 %s43, 1
    %p47 = scmp.eq.s32.totalorder %s9, 1
    %p48 = scmp.ne.s32.totalorder %s43, %s45
    %p49 = scmp.eq.s32.totalorder %s9, 0
    %p50 = por %p48, %p49
    %p51 = scmp.ne.s32.totalorder %s43, %s45
    %p52 = scmp.eq.s32.totalorder %s14, 1
    %p53 = por %p51, %p52
    %p54 = scmp.ne.s32.totalorder %s45, %s46
    %p55 = scmp.eq.s32.totalorder %s14, 0
    %p56 = por %p54, %p55
    %p57 = scmp.ne.s32.totalorder %s45, %s46
    %p58 = scmp.eq.s32.totalorder %s15, 1
    %p59 = por %p57, %p58
    %p61 = scmp.ne.s32.totalorder %s46, %s60
    %p62 = scmp.eq.s32.totalorder %s15, 0
    %p63 = por %p61, %p62
    %s65 = sadd.s32 %s64, 1
    %p68 = scmp.eq.s32.totalorder %s9, 1
    %p69 = scmp.ne.s32.totalorder %s64, %s66
    %p70 = scmp.eq.s32.totalorder %s9, 0
    %p71 = por %p69, %p70
    %p72 = scmp.ne.s32.totalorder %s64, %s66
    %p73 = scmp.eq.s32.totalorder %s14, 1
    %p74 = por %p72, %p73
    %p75 = scmp.ne.s32.totalorder %s66, %s67
    %p76 = scmp.eq.s32.totalorder %s14, 0
    %p77 = por %p75, %p76
    %p78 = scmp.ne.s32.totalorder %s66, %s67
    %p79 = scmp.eq.s32.totalorder %s15, 1
    %p80 = por %p78, %p79
    %p82 = scmp.ne.s32.totalorder %s67, %s81
    %p83 = scmp.eq.s32.totalorder %s15, 0
    %p84 = por %p82, %p83
    %s85 = ssub.s32 %s9, %s16
    %p86 = scmp.eq.s32.totalorder %s85, 0
    %s88 = sadd.s32 %s87, 1
    %s89 = scalar_select %p86, %s87, %s88
    %p92 = pneg %p86
    %p93 = scmp.eq.s32.totalorder %s9, 1
    %p94 = por %p92, %p93
    %p95 = scmp.ne.s32.totalorder %s87, %s90
    %p96 = scmp.eq.s32.totalorder %s9, 0
    %p97 = por %p95, %p96
    %p98 = scmp.ne.s32.totalorder %s87, %s90
    %p99 = scmp.eq.s32.totalorder %s14, 1
    %p100 = por %p98, %p99
    %p101 = scmp.ne.s32.totalorder %s90, %s91
    %p102 = scmp.eq.s32.totalorder %s14, 0
    %p103 = por %p101, %p102
    %p104 = scmp.ne.s32.totalorder %s90, %s91
    %p105 = scmp.eq.s32.totalorder %s15, 1
    %p106 = por %p104, %p105
    %p108 = scmp.ne.s32.totalorder %s91, %s107
    %p109 = scmp.eq.s32.totalorder %s15, 0
    %p110 = por %p108, %p109
    %p111 = scmp.le.s32.totalorder 1, %s9
    %p112 = scmp.lt.s32.totalorder %s9, 3
    %p113 = pnand %p111, %p112
    %p114 = pneg %p113
    // Predicated region
    $region9: #{neural_net_forward.3} parent=5 // pred_check
      _
    $region10: #{neural_net_forward.3} parent=5 // pred_check_branch
      %116 = sbr.rel (%p113) target = $region12
    $region11: #{neural_net_forward.3} parent=5 // pred_region
      %s117 = ssub.s32 %s9, 1
      // Predicated region
      $region13: #{neural_net_forward.3} parent=11 // pred_check
        %p118 = pneg %p56
      $region14: #{neural_net_forward.3} parent=11 // pred_check_branch
        %120 = sbr.rel (%p118) target = $region16
      $region15: #{neural_net_forward.3} parent=11 // pred_region
        _
      $region16: #{neural_net_forward.3} parent=11 // pred_fallthru
        _
      // Predicated region
      $region17: #{neural_net_forward.3} parent=11 // pred_check
        %p121 = pneg %p77
      $region18: #{neural_net_forward.3} parent=11 // pred_check_branch
        %123 = sbr.rel (%p121) target = $region20
      $region19: #{neural_net_forward.3} parent=11 // pred_region
        _
      $region20: #{neural_net_forward.3} parent=11 // pred_fallthru
        _
    $region12: #{neural_net_forward.3} parent=5 // pred_fallthru
      _
    %p124 = scmp.lt.s32.totalorder %s9, 2
    // Predicated region
    $region21: #{neural_net_forward.3} parent=5 // pred_check
      %p125 = pneg %p124
    $region22: #{neural_net_forward.3} parent=5 // pred_check_branch
      %127 = sbr.rel (%p125) target = $region24
    $region23: #{neural_net_forward.3} parent=5 // pred_region
      // Predicated region
      $region25: #{neural_net_forward.3} parent=23 // pred_check
        %p128 = pneg %p29
      $region26: #{neural_net_forward.3} parent=23 // pred_check_branch
        %130 = sbr.rel (%p128) target = $region28
      $region27: #{neural_net_forward.3} parent=23 // pred_region
        %p131 = scmp.lt.s32.totalorder %s9, 1
        %s132 = scalar_select %p131, %s9, 1
        %s133 = smul.addr %s132, 2400
        %s134 = smul.addr %s133, 4
        %s135 = scalar_lea.vmem %s0, %s134
      $region28: #{neural_net_forward.3} parent=23 // pred_fallthru
        _
    $region24: #{neural_net_forward.3} parent=5 // pred_fallthru
      _
    %p136 = scmp.le.s32.totalorder 1, %s9
    %p137 = scmp.lt.s32.totalorder %s9, 3
    %p138 = pnand %p136, %p137
    %p139 = pneg %p138
    // Predicated region
    $region29: #{neural_net_forward.3} parent=5 // pred_check
      _
    $region30: #{neural_net_forward.3} parent=5 // pred_check_branch
      %141 = sbr.rel (%p138) target = $region32
    $region31: #{neural_net_forward.3} parent=5 // pred_region
      %s142 = ssub.s32 %s9, 1
      %p143 = scmp.lt.s32.totalorder %s14, 1
      %s144 = scalar_select %p143, %s14, 1
      %s145 = smul.addr %s144, 2400
      %s146 = smul.addr %s145, 4
      %s147 = scalar_lea.vmem %s0, %s146
      %p148 = pneg %p35
      %p149 = pneg %p32
      %p150 = pneg %p56
      %p151 = pneg %p53
      %p152 = pneg %p77
      %p153 = pneg %p74
      %p154 = pneg %p103
      %p155 = pneg %p100
      %p156 = scmp.lt.s32.totalorder %s14, 1
      %s157 = scalar_select %p156, %s14, 1
      %s158 = smul.addr %s157, 145
      %s159 = smul.addr %s158, 4
      %s160 = scalar_lea.vmem %s3, %s159
      %p161 = scmp.lt.s32.totalorder %s14, 1
      %s162 = scalar_select %p161, %s14, 1
      %s163 = smul.addr %s162, 2400
      %s164 = smul.addr %s163, 4
      %s165 = scalar_lea.vmem %s0, %s164
      %p166 = scmp.lt.s32.totalorder %s14, 1
      %s167 = scalar_select %p166, %s14, 1
      %s168 = smul.addr %s167, 145
      %s169 = smul.addr %s168, 4
      %s170 = scalar_lea.vmem %s3, %s169
      loop: start=0, step=1, limit=29
      $region33: #{neural_net_forward.3} parent=31 // loop_pre_header
        _
      $region34: #{neural_net_forward.3} parent=31 // loop_header
        %s173 = sphi 0, %s177
        %p174 = scmp.ge.s32.totalorder %s173, 29
      $region35: #{neural_net_forward.3} parent=31 // loop_header_branch
        %176 = sbr.rel (%p174) target = $region39
      $region36: #{neural_net_forward.3} parent=31 // loop_body
        %s178 = smul.u32 %s173, 640
        %s179 = sshra.s32 %s178, 3
        %s180 = sand.u32 %s178, 7
        %s181 = smul.addr %s179, 4
        %s182 = scalar_lea.vmem %s165, %s181
        %v183 = vld [vmem:[%s182] sm:$0xf]
        %v184 = vld [vmem:[%s182 + $0x4] sm:$0xf]
        %v185 = vld [vmem:[%s182 + $0x8] sm:$0xf]
        %v186 = vld [vmem:[%s182 + $0xc] sm:$0xf]
        %v187 = vld [vmem:[%s182 + $0x10] sm:$0xf]
        %v188 = vld [vmem:[%s182 + $0x14] sm:$0xf]
        %v189 = vld [vmem:[%s182 + $0x18] sm:$0xf]
        %v190 = vld [vmem:[%s182 + $0x1c] sm:$0xf]
        %v191 = vld [vmem:[%s182 + $0x20] sm:$0xf]
        %v192 = vld [vmem:[%s182 + $0x24] sm:$0xf]
        %v193 = vld [vmem:[%s182 + $0x28] sm:$0xf]
        %v194 = vld [vmem:[%s182 + $0x2c] sm:$0xf]
        %v195 = vld [vmem:[%s182 + $0x30] sm:$0xf]
        %v196 = vld [vmem:[%s182 + $0x34] sm:$0xf]
        %v197 = vld [vmem:[%s182 + $0x38] sm:$0xf]
        %v198 = vld [vmem:[%s182 + $0x3c] sm:$0xf]
        %v199 = vld [vmem:[%s182 + $0x40] sm:$0xf]
        %v200 = vld [vmem:[%s182 + $0x44] sm:$0xf]
        %v201 = vld [vmem:[%s182 + $0x48] sm:$0xf]
        %v202 = vld [vmem:[%s182 + $0x4c] sm:$0xf]
        %v203 = vld [vmem:[%s182 + $0x50] sm:$0xf]
        %v204 = vld [vmem:[%s182 + $0x54] sm:$0xf]
        %v205 = vld [vmem:[%s182 + $0x58] sm:$0xf]
        %v206 = vld [vmem:[%s182 + $0x5c] sm:$0xf]
        %v207 = vld [vmem:[%s182 + $0x60] sm:$0xf]
        %v208 = vld [vmem:[%s182 + $0x64] sm:$0xf]
        %v209 = vld [vmem:[%s182 + $0x68] sm:$0xf]
        %v210 = vld [vmem:[%s182 + $0x6c] sm:$0xf]
        %v211 = vld [vmem:[%s182 + $0x70] sm:$0xf]
        %v212 = vld [vmem:[%s182 + $0x74] sm:$0xf]
        %v213 = vld [vmem:[%s182 + $0x78] sm:$0xf]
        %v214 = vld [vmem:[%s182 + $0x7c] sm:$0xf]
        %v215 = vld [vmem:[%s182 + $0x80] sm:$0xf]
        %v216 = vld [vmem:[%s182 + $0x84] sm:$0xf]
        %v217 = vld [vmem:[%s182 + $0x88] sm:$0xf]
        %v218 = vld [vmem:[%s182 + $0x8c] sm:$0xf]
        %v219 = vld [vmem:[%s182 + $0x90] sm:$0xf]
        %v220 = vld [vmem:[%s182 + $0x94] sm:$0xf]
        %v221 = vld [vmem:[%s182 + $0x98] sm:$0xf]
        %v222 = vld [vmem:[%s182 + $0x9c] sm:$0xf]
        %v223 = vld [vmem:[%s182 + $0xa0] sm:$0xf]
        %v224 = vld [vmem:[%s182 + $0xa4] sm:$0xf]
        %v225 = vld [vmem:[%s182 + $0xa8] sm:$0xf]
        %v226 = vld [vmem:[%s182 + $0xac] sm:$0xf]
        %v227 = vld [vmem:[%s182 + $0xb0] sm:$0xf]
        %v228 = vld [vmem:[%s182 + $0xb4] sm:$0xf]
        %v229 = vld [vmem:[%s182 + $0xb8] sm:$0xf]
        %v230 = vld [vmem:[%s182 + $0xbc] sm:$0xf]
        %v231 = vld [vmem:[%s182 + $0xc0] sm:$0xf]
        %v232 = vld [vmem:[%s182 + $0xc4] sm:$0xf]
        %v233 = vld [vmem:[%s182 + $0xc8] sm:$0xf]
        %v234 = vld [vmem:[%s182 + $0xcc] sm:$0xf]
        %v235 = vld [vmem:[%s182 + $0xd0] sm:$0xf]
        %v236 = vld [vmem:[%s182 + $0xd4] sm:$0xf]
        %v237 = vld [vmem:[%s182 + $0xd8] sm:$0xf]
        %v238 = vld [vmem:[%s182 + $0xdc] sm:$0xf]
        %v239 = vld [vmem:[%s182 + $0xe0] sm:$0xf]
        %v240 = vld [vmem:[%s182 + $0xe4] sm:$0xf]
        %v241 = vld [vmem:[%s182 + $0xe8] sm:$0xf]
        %v242 = vld [vmem:[%s182 + $0xec] sm:$0xf]
        %v243 = vld [vmem:[%s182 + $0xf0] sm:$0xf]
        %v244 = vld [vmem:[%s182 + $0xf4] sm:$0xf]
        %v245 = vld [vmem:[%s182 + $0xf8] sm:$0xf]
        %v246 = vld [vmem:[%s182 + $0xfc] sm:$0xf]
        %v247 = vld [vmem:[%s182 + $0x100] sm:$0xf]
        %v248 = vld [vmem:[%s182 + $0x104] sm:$0xf]
        %v249 = vld [vmem:[%s182 + $0x108] sm:$0xf]
        %v250 = vld [vmem:[%s182 + $0x10c] sm:$0xf]
        %v251 = vld [vmem:[%s182 + $0x110] sm:$0xf]
        %v252 = vld [vmem:[%s182 + $0x114] sm:$0xf]
        %v253 = vld [vmem:[%s182 + $0x118] sm:$0xf]
        %v254 = vld [vmem:[%s182 + $0x11c] sm:$0xf]
        %v255 = vld [vmem:[%s182 + $0x120] sm:$0xf]
        %v256 = vld [vmem:[%s182 + $0x124] sm:$0xf]
        %v257 = vld [vmem:[%s182 + $0x128] sm:$0xf]
        %v258 = vld [vmem:[%s182 + $0x12c] sm:$0xf]
        %v259 = vld [vmem:[%s182 + $0x130] sm:$0xf]
        %v260 = vld [vmem:[%s182 + $0x134] sm:$0xf]
        %v261 = vld [vmem:[%s182 + $0x138] sm:$0xf]
        %v262 = vld [vmem:[%s182 + $0x13c] sm:$0xf]
        %v263 = vld [vmem:[%s1] sm:$0xf]
        %v264 = vld [vmem:[%s1 + $0x4] sm:$0xf]
        %v345 = vunpack.c.l.b16 %v183
        %v346 = vunpack.c.l.b16 %v184
        %v347 = vunpack.c.l.b16 %v185
        %v348 = vunpack.c.l.b16 %v186
        %v349 = vunpack.c.l.b16 %v187
        %v350 = vunpack.c.l.b16 %v188
        %v351 = vunpack.c.l.b16 %v189
        %v352 = vunpack.c.l.b16 %v190
        %v353 = vunpack.c.l.b16 %v191
        %v354 = vunpack.c.l.b16 %v192
        %v355 = vunpack.c.l.b16 %v193
        %v356 = vunpack.c.l.b16 %v194
        %v357 = vunpack.c.l.b16 %v195
        %v358 = vunpack.c.l.b16 %v196
        %v359 = vunpack.c.l.b16 %v197
        %v360 = vunpack.c.l.b16 %v198
        %v361 = vunpack.c.l.b16 %v199
        %v362 = vunpack.c.l.b16 %v200
        %v363 = vunpack.c.l.b16 %v201
        %v364 = vunpack.c.l.b16 %v202
        %v365 = vunpack.c.l.b16 %v203
        %v366 = vunpack.c.l.b16 %v204
        %v367 = vunpack.c.l.b16 %v205
        %v368 = vunpack.c.l.b16 %v206
        %v369 = vunpack.c.l.b16 %v207
        %v370 = vunpack.c.l.b16 %v208
        %v371 = vunpack.c.l.b16 %v209
        %v372 = vunpack.c.l.b16 %v210
        %v373 = vunpack.c.l.b16 %v211
        %v374 = vunpack.c.l.b16 %v212
        %v375 = vunpack.c.l.b16 %v213
        %v376 = vunpack.c.l.b16 %v214
        %v377 = vunpack.c.l.b16 %v215
        %v378 = vunpack.c.l.b16 %v216
        %v379 = vunpack.c.l.b16 %v217
        %v380 = vunpack.c.l.b16 %v218
        %v381 = vunpack.c.l.b16 %v219
        %v382 = vunpack.c.l.b16 %v220
        %v383 = vunpack.c.l.b16 %v221
        %v384 = vunpack.c.l.b16 %v222
        %v385 = vunpack.c.l.b16 %v223
        %v386 = vunpack.c.l.b16 %v224
        %v387 = vunpack.c.l.b16 %v225
        %v388 = vunpack.c.l.b16 %v226
        %v389 = vunpack.c.l.b16 %v227
        %v390 = vunpack.c.l.b16 %v228
        %v391 = vunpack.c.l.b16 %v229
        %v392 = vunpack.c.l.b16 %v230
        %v393 = vunpack.c.l.b16 %v231
        %v394 = vunpack.c.l.b16 %v232
        %v395 = vunpack.c.l.b16 %v233
        %v396 = vunpack.c.l.b16 %v234
        %v397 = vunpack.c.l.b16 %v235
        %v398 = vunpack.c.l.b16 %v236
        %v399 = vunpack.c.l.b16 %v237
        %v400 = vunpack.c.l.b16 %v238
        %v401 = vunpack.c.l.b16 %v239
        %v402 = vunpack.c.l.b16 %v240
        %v403 = vunpack.c.l.b16 %v241
        %v404 = vunpack.c.l.b16 %v242
        %v405 = vunpack.c.l.b16 %v243
        %v406 = vunpack.c.l.b16 %v244
        %v407 = vunpack.c.l.b16 %v245
        %v408 = vunpack.c.l.b16 %v246
        %v409 = vunpack.c.l.b16 %v247
        %v410 = vunpack.c.l.b16 %v248
        %v411 = vunpack.c.l.b16 %v249
        %v412 = vunpack.c.l.b16 %v250
        %v413 = vunpack.c.l.b16 %v251
        %v414 = vunpack.c.l.b16 %v252
        %v415 = vunpack.c.l.b16 %v253
        %v416 = vunpack.c.l.b16 %v254
        %v417 = vunpack.c.l.b16 %v255
        %v418 = vunpack.c.l.b16 %v256
        %v419 = vunpack.c.l.b16 %v257
        %v420 = vunpack.c.l.b16 %v258
        %v421 = vunpack.c.l.b16 %v259
        %v422 = vunpack.c.l.b16 %v260
        %v423 = vunpack.c.l.b16 %v261
        %v424 = vunpack.c.l.b16 %v262
        %v425 = vpack.c.b16 %v346, %v345
        %v426 = vpack.c.b16 %v348, %v347
        %v427 = vpack.c.b16 %v350, %v349
        %v428 = vpack.c.b16 %v352, %v351
        %v429 = vpack.c.b16 %v354, %v353
        %v430 = vpack.c.b16 %v356, %v355
        %v431 = vpack.c.b16 %v358, %v357
        %v432 = vpack.c.b16 %v360, %v359
        %v433 = vpack.c.b16 %v362, %v361
        %v434 = vpack.c.b16 %v364, %v363
        %v435 = vpack.c.b16 %v366, %v365
        %v436 = vpack.c.b16 %v368, %v367
        %v437 = vpack.c.b16 %v370, %v369
        %v438 = vpack.c.b16 %v372, %v371
        %v439 = vpack.c.b16 %v374, %v373
        %v440 = vpack.c.b16 %v376, %v375
        %v441 = vpack.c.b16 %v378, %v377
        %v442 = vpack.c.b16 %v380, %v379
        %v443 = vpack.c.b16 %v382, %v381
        %v444 = vpack.c.b16 %v384, %v383
        %v445 = vpack.c.b16 %v386, %v385
        %v446 = vpack.c.b16 %v388, %v387
        %v447 = vpack.c.b16 %v390, %v389
        %v448 = vpack.c.b16 %v392, %v391
        %v449 = vpack.c.b16 %v394, %v393
        %v450 = vpack.c.b16 %v396, %v395
        %v451 = vpack.c.b16 %v398, %v397
        %v452 = vpack.c.b16 %v400, %v399
        %v453 = vpack.c.b16 %v402, %v401
        %v454 = vpack.c.b16 %v404, %v403
        %v455 = vpack.c.b16 %v406, %v405
        %v456 = vpack.c.b16 %v408, %v407
        %v457 = vpack.c.b16 %v410, %v409
        %v458 = vpack.c.b16 %v412, %v411
        %v459 = vpack.c.b16 %v414, %v413
        %v460 = vpack.c.b16 %v416, %v415
        %v461 = vpack.c.b16 %v418, %v417
        %v462 = vpack.c.b16 %v420, %v419
        %v463 = vpack.c.b16 %v422, %v421
        %v464 = vpack.c.b16 %v424, %v423
        %v467 = vunpack.c.l.b16 %v263
        %v468 = vunpack.c.l.b16 %v264
        %v469 = vpack.c.b16 %v468, %v467
        %vm470 = vcmask 121856
        %v472 = vsel %vm470, %v425, 0
        %v475 = vsel %vm470, %v426, 0
        %v478 = vsel %vm470, %v427, 0
        %v481 = vsel %vm470, %v428, 0
        %v484 = vsel %vm470, %v429, 0
        %v487 = vsel %vm470, %v430, 0
        %v490 = vsel %vm470, %v431, 0
        %v493 = vsel %vm470, %v432, 0
        %v496 = vsel %vm470, %v433, 0
        %v499 = vsel %vm470, %v434, 0
        %v502 = vsel %vm470, %v435, 0
        %v505 = vsel %vm470, %v436, 0
        %v508 = vsel %vm470, %v437, 0
        %v511 = vsel %vm470, %v438, 0
        %v514 = vsel %vm470, %v439, 0
        %v517 = vsel %vm470, %v440, 0
        %v520 = vsel %vm470, %v441, 0
        %v523 = vsel %vm470, %v442, 0
        %v526 = vsel %vm470, %v443, 0
        %v529 = vsel %vm470, %v444, 0
        %v532 = vsel %vm470, %v445, 0
        %v535 = vsel %vm470, %v446, 0
        %v538 = vsel %vm470, %v447, 0
        %v541 = vsel %vm470, %v448, 0
        %v544 = vsel %vm470, %v449, 0
        %v547 = vsel %vm470, %v450, 0
        %v550 = vsel %vm470, %v451, 0
        %v553 = vsel %vm470, %v452, 0
        %v556 = vsel %vm470, %v453, 0
        %v559 = vsel %vm470, %v454, 0
        %v562 = vsel %vm470, %v455, 0
        %v565 = vsel %vm470, %v456, 0
        %v568 = vsel %vm470, %v457, 0
        %v571 = vsel %vm470, %v458, 0
        %v574 = vsel %vm470, %v459, 0
        %v577 = vsel %vm470, %v460, 0
        %v580 = vsel %vm470, %v461, 0
        %v583 = vsel %vm470, %v462, 0
        %v586 = vsel %vm470, %v463, 0
        %v589 = vsel %vm470, %v464, 0
        %vm591 = vcmask 1046528
        %vm592 = vcmask 1047552
        %v593 = vsel %vm591, 4294967295, 65535
        %v594 = vsel %vm592, %v593, 0
        %v596 = vand.u32 %v469, %v594
        %598 = vmatprep.subr.bf16.mxu0 0
        %599 = vmatpush1.bf16.msra.mxu0 0
        %600 = vmatprep.subr.bf16.mxu0 0
        %601 = vmatpush1.bf16.msra.mxu0 0
        %602 = vmatprep.subr.bf16.mxu0 0
        %603 = vmatpush1.bf16.msra.mxu0 0
        %604 = vmatprep.subr.bf16.mxu0 0
        %605 = vmatpush1.bf16.msra.mxu0 0
        %606 = vmatprep.subr.bf16.mxu0 0
        %607 = vmatpush1.bf16.msra.mxu0 0
        %608 = vmatprep.subr.bf16.mxu0 0
        %609 = vmatpush1.bf16.msra.mxu0 0
        %610 = vmatprep.subr.bf16.mxu0 0
        %611 = vmatpush1.bf16.msra.mxu0 0
        %612 = vmatprep.subr.bf16.mxu0 0
        %613 = vmatpush1.bf16.msra.mxu0 %v596
        %614 = vmatprep.subr.bf16.mxu0 0
        %615 = vmatpush2.bf16.msra.mxu0 0
        %616 = vmatprep.subr.bf16.mxu0 0
        %617 = vmatpush2.bf16.msra.mxu0 0
        %618 = vmatprep.subr.bf16.mxu0 0
        %619 = vmatpush2.bf16.msra.mxu0 0
        %620 = vmatprep.subr.bf16.mxu0 0
        %621 = vmatpush2.bf16.msra.mxu0 0
        %622 = vmatprep.subr.bf16.mxu0 0
        %623 = vmatpush2.bf16.msra.mxu0 0
        %624 = vmatprep.subr.bf16.mxu0 0
        %625 = vmatpush2.bf16.msra.mxu0 0
        %626 = vmatprep.subr.bf16.mxu0 0
        %627 = vmatpush2.bf16.msra.mxu0 0
        %628 = vmatprep.subr.bf16.mxu0 0
        %629 = vmatpush2.bf16.msra.mxu0 0
        %630 = vmatprep.mubr.bf16.mxu0 0
        %631 = vmatmul.mubr.bf16.gmra.mxu0 %v472
        %v632 = vpop.f32.mrf.mxu0
        %v633 = vadd.f32 0.0, %v632
        %v634 = vpop.f32.mrf.mxu0
        %v635 = vpop.f32.mrf.mxu0
        %v636 = vadd.f32 0.0, %v635
        %v637 = vpop.f32.mrf.mxu0
        %638 = vmatprep.mubr.bf16.mxu0 0
        %639 = vmatmul.mubr.bf16.gmra.mxu0 %v475
        %v640 = vpop.f32.mrf.mxu0
        %v641 = vadd.f32 0.0, %v640
        %v642 = vpop.f32.mrf.mxu0
        %v643 = vpop.f32.mrf.mxu0
        %v644 = vadd.f32 0.0, %v643
        %v645 = vpop.f32.mrf.mxu0
        %646 = vmatprep.mubr.bf16.mxu0 0
        %647 = vmatmul.mubr.bf16.gmra.mxu0 %v478
        %v648 = vpop.f32.mrf.mxu0
        %v649 = vadd.f32 0.0, %v648
        %v650 = vpop.f32.mrf.mxu0
        %v651 = vpop.f32.mrf.mxu0
        %v652 = vadd.f32 0.0, %v651
        %v653 = vpop.f32.mrf.mxu0
        %654 = vmatprep.mubr.bf16.mxu0 0
        %655 = vmatmul.mubr.bf16.gmra.mxu0 %v481
        %v656 = vpop.f32.mrf.mxu0
        %v657 = vadd.f32 0.0, %v656
        %v658 = vpop.f32.mrf.mxu0
        %v659 = vpop.f32.mrf.mxu0
        %v660 = vadd.f32 0.0, %v659
        %v661 = vpop.f32.mrf.mxu0
        %662 = vmatprep.mubr.bf16.mxu0 0
        %663 = vmatmul.mubr.bf16.gmra.mxu0 %v484
        %v664 = vpop.f32.mrf.mxu0
        %v665 = vadd.f32 0.0, %v664
        %v666 = vpop.f32.mrf.mxu0
        %v667 = vpop.f32.mrf.mxu0
        %v668 = vadd.f32 0.0, %v667
        %v669 = vpop.f32.mrf.mxu0
        %670 = vmatprep.mubr.bf16.mxu0 0
        %671 = vmatmul.mubr.bf16.gmra.mxu0 %v487
        %v672 = vpop.f32.mrf.mxu0
        %v673 = vadd.f32 0.0, %v672
        %v674 = vpop.f32.mrf.mxu0
        %v675 = vpop.f32.mrf.mxu0
        %v676 = vadd.f32 0.0, %v675
        %v677 = vpop.f32.mrf.mxu0
        %678 = vmatprep.mubr.bf16.mxu0 0
        %679 = vmatmul.mubr.bf16.gmra.mxu0 %v490
        %v680 = vpop.f32.mrf.mxu0
        %v681 = vadd.f32 0.0, %v680
        %v682 = vpop.f32.mrf.mxu0
        %v683 = vpop.f32.mrf.mxu0
        %v684 = vadd.f32 0.0, %v683
        %v685 = vpop.f32.mrf.mxu0
        %686 = vmatprep.mubr.bf16.mxu0 0
        %687 = vmatmul.mubr.bf16.gmra.mxu0 %v493
        %v688 = vpop.f32.mrf.mxu0
        %v689 = vadd.f32 0.0, %v688
        %v690 = vpop.f32.mrf.mxu0
        %v691 = vpop.f32.mrf.mxu0
        %v692 = vadd.f32 0.0, %v691
        %v693 = vpop.f32.mrf.mxu0
        %694 = vmatprep.mubr.bf16.mxu0 0
        %695 = vmatmul.mubr.bf16.gmra.mxu0 %v496
        %v696 = vpop.f32.mrf.mxu0
        %v697 = vadd.f32 0.0, %v696
        %v698 = vpop.f32.mrf.mxu0
        %v699 = vpop.f32.mrf.mxu0
        %v700 = vadd.f32 0.0, %v699
        %v701 = vpop.f32.mrf.mxu0
        %702 = vmatprep.mubr.bf16.mxu0 0
        %703 = vmatmul.mubr.bf16.gmra.mxu0 %v499
        %v704 = vpop.f32.mrf.mxu0
        %v705 = vadd.f32 0.0, %v704
        %v706 = vpop.f32.mrf.mxu0
        %v707 = vpop.f32.mrf.mxu0
        %v708 = vadd.f32 0.0, %v707
        %v709 = vpop.f32.mrf.mxu0
        %710 = vmatprep.mubr.bf16.mxu0 0
        %711 = vmatmul.mubr.bf16.gmra.mxu0 %v502
        %v712 = vpop.f32.mrf.mxu0
        %v713 = vadd.f32 0.0, %v712
        %v714 = vpop.f32.mrf.mxu0
        %v715 = vpop.f32.mrf.mxu0
        %v716 = vadd.f32 0.0, %v715
        %v717 = vpop.f32.mrf.mxu0
        %718 = vmatprep.mubr.bf16.mxu0 0
        %719 = vmatmul.mubr.bf16.gmra.mxu0 %v505
        %v720 = vpop.f32.mrf.mxu0
        %v721 = vadd.f32 0.0, %v720
        %v722 = vpop.f32.mrf.mxu0
        %v723 = vpop.f32.mrf.mxu0
        %v724 = vadd.f32 0.0, %v723
        %v725 = vpop.f32.mrf.mxu0
        %726 = vmatprep.mubr.bf16.mxu0 0
        %727 = vmatmul.mubr.bf16.gmra.mxu0 %v508
        %v728 = vpop.f32.mrf.mxu0
        %v729 = vadd.f32 0.0, %v728
        %v730 = vpop.f32.mrf.mxu0
        %v731 = vpop.f32.mrf.mxu0
        %v732 = vadd.f32 0.0, %v731
        %v733 = vpop.f32.mrf.mxu0
        %734 = vmatprep.mubr.bf16.mxu0 0
        %735 = vmatmul.mubr.bf16.gmra.mxu0 %v511
        %v736 = vpop.f32.mrf.mxu0
        %v737 = vadd.f32 0.0, %v736
        %v738 = vpop.f32.mrf.mxu0
        %v739 = vpop.f32.mrf.mxu0
        %v740 = vadd.f32 0.0, %v739
        %v741 = vpop.f32.mrf.mxu0
        %742 = vmatprep.mubr.bf16.mxu0 0
        %743 = vmatmul.mubr.bf16.gmra.mxu0 %v514
        %v744 = vpop.f32.mrf.mxu0
        %v745 = vadd.f32 0.0, %v744
        %v746 = vpop.f32.mrf.mxu0
        %v747 = vpop.f32.mrf.mxu0
        %v748 = vadd.f32 0.0, %v747
        %v749 = vpop.f32.mrf.mxu0
        %750 = vmatprep.mubr.bf16.mxu0 0
        %751 = vmatmul.mubr.bf16.gmra.mxu0 %v517
        %v752 = vpop.f32.mrf.mxu0
        %v753 = vadd.f32 0.0, %v752
        %v754 = vpop.f32.mrf.mxu0
        %v755 = vpop.f32.mrf.mxu0
        %v756 = vadd.f32 0.0, %v755
        %v757 = vpop.f32.mrf.mxu0
        %758 = vmatprep.mubr.bf16.mxu0 0
        %759 = vmatmul.mubr.bf16.gmra.mxu0 %v520
        %v760 = vpop.f32.mrf.mxu0
        %v761 = vadd.f32 0.0, %v760
        %v762 = vpop.f32.mrf.mxu0
        %v763 = vpop.f32.mrf.mxu0
        %v764 = vadd.f32 0.0, %v763
        %v765 = vpop.f32.mrf.mxu0
        %766 = vmatprep.mubr.bf16.mxu0 0
        %767 = vmatmul.mubr.bf16.gmra.mxu0 %v523
        %v768 = vpop.f32.mrf.mxu0
        %v769 = vadd.f32 0.0, %v768
        %v770 = vpop.f32.mrf.mxu0
        %v771 = vpop.f32.mrf.mxu0
        %v772 = vadd.f32 0.0, %v771
        %v773 = vpop.f32.mrf.mxu0
        %774 = vmatprep.mubr.bf16.mxu0 0
        %775 = vmatmul.mubr.bf16.gmra.mxu0 %v526
        %v776 = vpop.f32.mrf.mxu0
        %v777 = vadd.f32 0.0, %v776
        %v778 = vpop.f32.mrf.mxu0
        %v779 = vpop.f32.mrf.mxu0
        %v780 = vadd.f32 0.0, %v779
        %v781 = vpop.f32.mrf.mxu0
        %782 = vmatprep.mubr.bf16.mxu0 0
        %783 = vmatmul.mubr.bf16.gmra.mxu0 %v529
        %v784 = vpop.f32.mrf.mxu0
        %v785 = vadd.f32 0.0, %v784
        %v786 = vpop.f32.mrf.mxu0
        %v787 = vpop.f32.mrf.mxu0
        %v788 = vadd.f32 0.0, %v787
        %v789 = vpop.f32.mrf.mxu0
        %790 = vmatprep.mubr.bf16.mxu0 0
        %791 = vmatmul.mubr.bf16.gmra.mxu0 %v532
        %v792 = vpop.f32.mrf.mxu0
        %v793 = vadd.f32 0.0, %v792
        %v794 = vpop.f32.mrf.mxu0
        %v795 = vpop.f32.mrf.mxu0
        %v796 = vadd.f32 0.0, %v795
        %v797 = vpop.f32.mrf.mxu0
        %798 = vmatprep.mubr.bf16.mxu0 0
        %799 = vmatmul.mubr.bf16.gmra.mxu0 %v535
        %v800 = vpop.f32.mrf.mxu0
        %v801 = vadd.f32 0.0, %v800
        %v802 = vpop.f32.mrf.mxu0
        %v803 = vpop.f32.mrf.mxu0
        %v804 = vadd.f32 0.0, %v803
        %v805 = vpop.f32.mrf.mxu0
        %806 = vmatprep.mubr.bf16.mxu0 0
        %807 = vmatmul.mubr.bf16.gmra.mxu0 %v538
        %v808 = vpop.f32.mrf.mxu0
        %v809 = vadd.f32 0.0, %v808
        %v810 = vpop.f32.mrf.mxu0
        %v811 = vpop.f32.mrf.mxu0
        %v812 = vadd.f32 0.0, %v811
        %v813 = vpop.f32.mrf.mxu0
        %814 = vmatprep.mubr.bf16.mxu0 0
        %815 = vmatmul.mubr.bf16.gmra.mxu0 %v541
        %v816 = vpop.f32.mrf.mxu0
        %v817 = vadd.f32 0.0, %v816
        %v818 = vpop.f32.mrf.mxu0
        %v819 = vpop.f32.mrf.mxu0
        %v820 = vadd.f32 0.0, %v819
        %v821 = vpop.f32.mrf.mxu0
        %822 = vmatprep.mubr.bf16.mxu0 0
        %823 = vmatmul.mubr.bf16.gmra.mxu0 %v544
        %v824 = vpop.f32.mrf.mxu0
        %v825 = vadd.f32 0.0, %v824
        %v826 = vpop.f32.mrf.mxu0
        %v827 = vpop.f32.mrf.mxu0
        %v828 = vadd.f32 0.0, %v827
        %v829 = vpop.f32.mrf.mxu0
        %830 = vmatprep.mubr.bf16.mxu0 0
        %831 = vmatmul.mubr.bf16.gmra.mxu0 %v547
        %v832 = vpop.f32.mrf.mxu0
        %v833 = vadd.f32 0.0, %v832
        %v834 = vpop.f32.mrf.mxu0
        %v835 = vpop.f32.mrf.mxu0
        %v836 = vadd.f32 0.0, %v835
        %v837 = vpop.f32.mrf.mxu0
        %838 = vmatprep.mubr.bf16.mxu0 0
        %839 = vmatmul.mubr.bf16.gmra.mxu0 %v550
        %v840 = vpop.f32.mrf.mxu0
        %v841 = vadd.f32 0.0, %v840
        %v842 = vpop.f32.mrf.mxu0
        %v843 = vpop.f32.mrf.mxu0
        %v844 = vadd.f32 0.0, %v843
        %v845 = vpop.f32.mrf.mxu0
        %846 = vmatprep.mubr.bf16.mxu0 0
        %847 = vmatmul.mubr.bf16.gmra.mxu0 %v553
        %v848 = vpop.f32.mrf.mxu0
        %v849 = vadd.f32 0.0, %v848
        %v850 = vpop.f32.mrf.mxu0
        %v851 = vpop.f32.mrf.mxu0
        %v852 = vadd.f32 0.0, %v851
        %v853 = vpop.f32.mrf.mxu0
        %854 = vmatprep.mubr.bf16.mxu0 0
        %855 = vmatmul.mubr.bf16.gmra.mxu0 %v556
        %v856 = vpop.f32.mrf.mxu0
        %v857 = vadd.f32 0.0, %v856
        %v858 = vpop.f32.mrf.mxu0
        %v859 = vpop.f32.mrf.mxu0
        %v860 = vadd.f32 0.0, %v859
        %v861 = vpop.f32.mrf.mxu0
        %862 = vmatprep.mubr.bf16.mxu0 0
        %863 = vmatmul.mubr.bf16.gmra.mxu0 %v559
        %v864 = vpop.f32.mrf.mxu0
        %v865 = vadd.f32 0.0, %v864
        %v866 = vpop.f32.mrf.mxu0
        %v867 = vpop.f32.mrf.mxu0
        %v868 = vadd.f32 0.0, %v867
        %v869 = vpop.f32.mrf.mxu0
        %870 = vmatprep.mubr.bf16.mxu0 0
        %871 = vmatmul.mubr.bf16.gmra.mxu0 %v562
        %v872 = vpop.f32.mrf.mxu0
        %v873 = vadd.f32 0.0, %v872
        %v874 = vpop.f32.mrf.mxu0
        %v875 = vpop.f32.mrf.mxu0
        %v876 = vadd.f32 0.0, %v875
        %v877 = vpop.f32.mrf.mxu0
        %878 = vmatprep.mubr.bf16.mxu0 0
        %879 = vmatmul.mubr.bf16.gmra.mxu0 %v565
        %v880 = vpop.f32.mrf.mxu0
        %v881 = vadd.f32 0.0, %v880
        %v882 = vpop.f32.mrf.mxu0
        %v883 = vpop.f32.mrf.mxu0
        %v884 = vadd.f32 0.0, %v883
        %v885 = vpop.f32.mrf.mxu0
        %886 = vmatprep.mubr.bf16.mxu0 0
        %887 = vmatmul.mubr.bf16.gmra.mxu0 %v568
        %v888 = vpop.f32.mrf.mxu0
        %v889 = vadd.f32 0.0, %v888
        %v890 = vpop.f32.mrf.mxu0
        %v891 = vpop.f32.mrf.mxu0
        %v892 = vadd.f32 0.0, %v891
        %v893 = vpop.f32.mrf.mxu0
        %894 = vmatprep.mubr.bf16.mxu0 0
        %895 = vmatmul.mubr.bf16.gmra.mxu0 %v571
        %v896 = vpop.f32.mrf.mxu0
        %v897 = vadd.f32 0.0, %v896
        %v898 = vpop.f32.mrf.mxu0
        %v899 = vpop.f32.mrf.mxu0
        %v900 = vadd.f32 0.0, %v899
        %v901 = vpop.f32.mrf.mxu0
        %902 = vmatprep.mubr.bf16.mxu0 0
        %903 = vmatmul.mubr.bf16.gmra.mxu0 %v574
        %v904 = vpop.f32.mrf.mxu0
        %v905 = vadd.f32 0.0, %v904
        %v906 = vpop.f32.mrf.mxu0
        %v907 = vpop.f32.mrf.mxu0
        %v908 = vadd.f32 0.0, %v907
        %v909 = vpop.f32.mrf.mxu0
        %910 = vmatprep.mubr.bf16.mxu0 0
        %911 = vmatmul.mubr.bf16.gmra.mxu0 %v577
        %v912 = vpop.f32.mrf.mxu0
        %v913 = vadd.f32 0.0, %v912
        %v914 = vpop.f32.mrf.mxu0
        %v915 = vpop.f32.mrf.mxu0
        %v916 = vadd.f32 0.0, %v915
        %v917 = vpop.f32.mrf.mxu0
        %918 = vmatprep.mubr.bf16.mxu0 0
        %919 = vmatmul.mubr.bf16.gmra.mxu0 %v580
        %v920 = vpop.f32.mrf.mxu0
        %v921 = vadd.f32 0.0, %v920
        %v922 = vpop.f32.mrf.mxu0
        %v923 = vpop.f32.mrf.mxu0
        %v924 = vadd.f32 0.0, %v923
        %v925 = vpop.f32.mrf.mxu0
        %926 = vmatprep.mubr.bf16.mxu0 0
        %927 = vmatmul.mubr.bf16.gmra.mxu0 %v583
        %v928 = vpop.f32.mrf.mxu0
        %v929 = vadd.f32 0.0, %v928
        %v930 = vpop.f32.mrf.mxu0
        %v931 = vpop.f32.mrf.mxu0
        %v932 = vadd.f32 0.0, %v931
        %v933 = vpop.f32.mrf.mxu0
        %934 = vmatprep.mubr.bf16.mxu0 0
        %935 = vmatmul.mubr.bf16.gmra.mxu0 %v586
        %v936 = vpop.f32.mrf.mxu0
        %v937 = vadd.f32 0.0, %v936
        %v938 = vpop.f32.mrf.mxu0
        %v939 = vpop.f32.mrf.mxu0
        %v940 = vadd.f32 0.0, %v939
        %v941 = vpop.f32.mrf.mxu0
        %942 = vmatprep.mubr.bf16.mxu0 0
        %943 = vmatmul.mubr.bf16.gmra.mxu0 %v589
        %v944 = vpop.f32.mrf.mxu0
        %v945 = vadd.f32 0.0, %v944
        %v946 = vpop.f32.mrf.mxu0
        %v947 = vpop.f32.mrf.mxu0
        %v948 = vadd.f32 0.0, %v947
        %v949 = vpop.f32.mrf.mxu0
        %950 = vdwg.mxu0
        %vm951 = vcmask 326656
        %952 = vst.msk [vmem:[#allocation2] sm:$0xff] %vm951, %v633
        %953 = vst.msk [vmem:[#allocation2 + $0x8] sm:$0xff] %vm951, %v636
        %954 = vst.msk [vmem:[#allocation2 + $0x10] sm:$0xff] %vm951, %v641
        %955 = vst.msk [vmem:[#allocation2 + $0x18] sm:$0xff] %vm951, %v644
        %956 = vst.msk [vmem:[#allocation2 + $0x20] sm:$0xff] %vm951, %v649
        %957 = vst.msk [vmem:[#allocation2 + $0x28] sm:$0xff] %vm951, %v652
        %958 = vst.msk [vmem:[#allocation2 + $0x30] sm:$0xff] %vm951, %v657
        %959 = vst.msk [vmem:[#allocation2 + $0x38] sm:$0xff] %vm951, %v660
        %960 = vst.msk [vmem:[#allocation2 + $0x40] sm:$0xff] %vm951, %v665
        %961 = vst.msk [vmem:[#allocation2 + $0x48] sm:$0xff] %vm951, %v668
        %962 = vst.msk [vmem:[#allocation2 + $0x50] sm:$0xff] %vm951, %v673
        %963 = vst.msk [vmem:[#allocation2 + $0x58] sm:$0xff] %vm951, %v676
        %964 = vst.msk [vmem:[#allocation2 + $0x60] sm:$0xff] %vm951, %v681
        %965 = vst.msk [vmem:[#allocation2 + $0x68] sm:$0xff] %vm951, %v684
        %966 = vst.msk [vmem:[#allocation2 + $0x70] sm:$0xff] %vm951, %v689
        %967 = vst.msk [vmem:[#allocation2 + $0x78] sm:$0xff] %vm951, %v692
        %968 = vst.msk [vmem:[#allocation2 + $0x80] sm:$0xff] %vm951, %v697
        %969 = vst.msk [vmem:[#allocation2 + $0x88] sm:$0xff] %vm951, %v700
        %970 = vst.msk [vmem:[#allocation2 + $0x90] sm:$0xff] %vm951, %v705
        %971 = vst.msk [vmem:[#allocation2 + $0x98] sm:$0xff] %vm951, %v708
        %972 = vst.msk [vmem:[#allocation2 + $0xa0] sm:$0xff] %vm951, %v713
        %973 = vst.msk [vmem:[#allocation2 + $0xa8] sm:$0xff] %vm951, %v716
        %974 = vst.msk [vmem:[#allocation2 + $0xb0] sm:$0xff] %vm951, %v721
        %975 = vst.msk [vmem:[#allocation2 + $0xb8] sm:$0xff] %vm951, %v724
        %976 = vst.msk [vmem:[#allocation2 + $0xc0] sm:$0xff] %vm951, %v729
        %977 = vst.msk [vmem:[#allocation2 + $0xc8] sm:$0xff] %vm951, %v732
        %978 = vst.msk [vmem:[#allocation2 + $0xd0] sm:$0xff] %vm951, %v737
        %979 = vst.msk [vmem:[#allocation2 + $0xd8] sm:$0xff] %vm951, %v740
        %980 = vst.msk [vmem:[#allocation2 + $0xe0] sm:$0xff] %vm951, %v745
        %981 = vst.msk [vmem:[#allocation2 + $0xe8] sm:$0xff] %vm951, %v748
        %982 = vst.msk [vmem:[#allocation2 + $0xf0] sm:$0xff] %vm951, %v753
        %983 = vst.msk [vmem:[#allocation2 + $0xf8] sm:$0xff] %vm951, %v756
        %984 = vst.msk [vmem:[#allocation2 + $0x100] sm:$0xff] %vm951, %v761
        %985 = vst.msk [vmem:[#allocation2 + $0x108] sm:$0xff] %vm951, %v764
        %986 = vst.msk [vmem:[#allocation2 + $0x110] sm:$0xff] %vm951, %v769
        %987 = vst.msk [vmem:[#allocation2 + $0x118] sm:$0xff] %vm951, %v772
        %988 = vst.msk [vmem:[#allocation2 + $0x120] sm:$0xff] %vm951, %v777
        %989 = vst.msk [vmem:[#allocation2 + $0x128] sm:$0xff] %vm951, %v780
        %990 = vst.msk [vmem:[#allocation2 + $0x130] sm:$0xff] %vm951, %v785
        %991 = vst.msk [vmem:[#allocation2 + $0x138] sm:$0xff] %vm951, %v788
        %992 = vst.msk [vmem:[#allocation2 + $0x140] sm:$0xff] %vm951, %v793
        %993 = vst.msk [vmem:[#allocation2 + $0x148] sm:$0xff] %vm951, %v796
        %994 = vst.msk [vmem:[#allocation2 + $0x150] sm:$0xff] %vm951, %v801
        %995 = vst.msk [vmem:[#allocation2 + $0x158] sm:$0xff] %vm951, %v804
        %996 = vst.msk [vmem:[#allocation2 + $0x160] sm:$0xff] %vm951, %v809
        %997 = vst.msk [vmem:[#allocation2 + $0x168] sm:$0xff] %vm951, %v812
        %998 = vst.msk [vmem:[#allocation2 + $0x170] sm:$0xff] %vm951, %v817
        %999 = vst.msk [vmem:[#allocation2 + $0x178] sm:$0xff] %vm951, %v820
        %1000 = vst.msk [vmem:[#allocation2 + $0x180] sm:$0xff] %vm951, %v825
        %1001 = vst.msk [vmem:[#allocation2 + $0x188] sm:$0xff] %vm951, %v828
        %1002 = vst.msk [vmem:[#allocation2 + $0x190] sm:$0xff] %vm951, %v833
        %1003 = vst.msk [vmem:[#allocation2 + $0x198] sm:$0xff] %vm951, %v836
        %1004 = vst.msk [vmem:[#allocation2 + $0x1a0] sm:$0xff] %vm951, %v841
        %1005 = vst.msk [vmem:[#allocation2 + $0x1a8] sm:$0xff] %vm951, %v844
        %1006 = vst.msk [vmem:[#allocation2 + $0x1b0] sm:$0xff] %vm951, %v849
        %1007 = vst.msk [vmem:[#allocation2 + $0x1b8] sm:$0xff] %vm951, %v852
        %1008 = vst.msk [vmem:[#allocation2 + $0x1c0] sm:$0xff] %vm951, %v857
        %1009 = vst.msk [vmem:[#allocation2 + $0x1c8] sm:$0xff] %vm951, %v860
        %1010 = vst.msk [vmem:[#allocation2 + $0x1d0] sm:$0xff] %vm951, %v865
        %1011 = vst.msk [vmem:[#allocation2 + $0x1d8] sm:$0xff] %vm951, %v868
        %1012 = vst.msk [vmem:[#allocation2 + $0x1e0] sm:$0xff] %vm951, %v873
        %1013 = vst.msk [vmem:[#allocation2 + $0x1e8] sm:$0xff] %vm951, %v876
        %1014 = vst.msk [vmem:[#allocation2 + $0x1f0] sm:$0xff] %vm951, %v881
        %1015 = vst.msk [vmem:[#allocation2 + $0x1f8] sm:$0xff] %vm951, %v884
        %1016 = vst.msk [vmem:[#allocation2 + $0x200] sm:$0xff] %vm951, %v889
        %1017 = vst.msk [vmem:[#allocation2 + $0x208] sm:$0xff] %vm951, %v892
        %1018 = vst.msk [vmem:[#allocation2 + $0x210] sm:$0xff] %vm951, %v897
        %1019 = vst.msk [vmem:[#allocation2 + $0x218] sm:$0xff] %vm951, %v900
        %1020 = vst.msk [vmem:[#allocation2 + $0x220] sm:$0xff] %vm951, %v905
        %1021 = vst.msk [vmem:[#allocation2 + $0x228] sm:$0xff] %vm951, %v908
        %1022 = vst.msk [vmem:[#allocation2 + $0x230] sm:$0xff] %vm951, %v913
        %1023 = vst.msk [vmem:[#allocation2 + $0x238] sm:$0xff] %vm951, %v916
        %1024 = vst.msk [vmem:[#allocation2 + $0x240] sm:$0xff] %vm951, %v921
        %1025 = vst.msk [vmem:[#allocation2 + $0x248] sm:$0xff] %vm951, %v924
        %1026 = vst.msk [vmem:[#allocation2 + $0x250] sm:$0xff] %vm951, %v929
        %1027 = vst.msk [vmem:[#allocation2 + $0x258] sm:$0xff] %vm951, %v932
        %1028 = vst.msk [vmem:[#allocation2 + $0x260] sm:$0xff] %vm951, %v937
        %1029 = vst.msk [vmem:[#allocation2 + $0x268] sm:$0xff] %vm951, %v940
        %1030 = vst.msk [vmem:[#allocation2 + $0x270] sm:$0xff] %vm951, %v945
        %1031 = vst.msk [vmem:[#allocation2 + $0x278] sm:$0xff] %vm951, %v948
        %s1032 = sadd.s32 %s178, 160
        %v1033 = vld [vmem:[#allocation2] sm:$0xff]
        %v1034 = vld [vmem:[#allocation2 + $0x8] sm:$0xff]
        %v1035 = vld [vmem:[#allocation2 + $0x10] sm:$0xff]
        %v1036 = vld [vmem:[#allocation2 + $0x18] sm:$0xff]
        %v1037 = vld [vmem:[#allocation2 + $0x20] sm:$0xff]
        %v1038 = vld [vmem:[#allocation2 + $0x28] sm:$0xff]
        %v1039 = vld [vmem:[#allocation2 + $0x30] sm:$0xff]
        %v1040 = vld [vmem:[#allocation2 + $0x38] sm:$0xff]
        %v1041 = vld [vmem:[#allocation2 + $0x40] sm:$0xff]
        %v1042 = vld [vmem:[#allocation2 + $0x48] sm:$0xff]
        %v1043 = vld [vmem:[#allocation2 + $0x50] sm:$0xff]
        %v1044 = vld [vmem:[#allocation2 + $0x58] sm:$0xff]
        %v1045 = vld [vmem:[#allocation2 + $0x60] sm:$0xff]
        %v1046 = vld [vmem:[#allocation2 + $0x68] sm:$0xff]
        %v1047 = vld [vmem:[#allocation2 + $0x70] sm:$0xff]
        %v1048 = vld [vmem:[#allocation2 + $0x78] sm:$0xff]
        %v1049 = vld [vmem:[#allocation2 + $0x80] sm:$0xff]
        %v1050 = vld [vmem:[#allocation2 + $0x88] sm:$0xff]
        %v1051 = vld [vmem:[#allocation2 + $0x90] sm:$0xff]
        %v1052 = vld [vmem:[#allocation2 + $0x98] sm:$0xff]
        %v1053 = vld [vmem:[#allocation2 + $0xa0] sm:$0xff]
        %v1054 = vld [vmem:[#allocation2 + $0xa8] sm:$0xff]
        %v1055 = vld [vmem:[#allocation2 + $0xb0] sm:$0xff]
        %v1056 = vld [vmem:[#allocation2 + $0xb8] sm:$0xff]
        %v1057 = vld [vmem:[#allocation2 + $0xc0] sm:$0xff]
        %v1058 = vld [vmem:[#allocation2 + $0xc8] sm:$0xff]
        %v1059 = vld [vmem:[#allocation2 + $0xd0] sm:$0xff]
        %v1060 = vld [vmem:[#allocation2 + $0xd8] sm:$0xff]
        %v1061 = vld [vmem:[#allocation2 + $0xe0] sm:$0xff]
        %v1062 = vld [vmem:[#allocation2 + $0xe8] sm:$0xff]
        %v1063 = vld [vmem:[#allocation2 + $0xf0] sm:$0xff]
        %v1064 = vld [vmem:[#allocation2 + $0xf8] sm:$0xff]
        %v1065 = vld [vmem:[#allocation2 + $0x100] sm:$0xff]
        %v1066 = vld [vmem:[#allocation2 + $0x108] sm:$0xff]
        %v1067 = vld [vmem:[#allocation2 + $0x110] sm:$0xff]
        %v1068 = vld [vmem:[#allocation2 + $0x118] sm:$0xff]
        %v1069 = vld [vmem:[#allocation2 + $0x120] sm:$0xff]
        %v1070 = vld [vmem:[#allocation2 + $0x128] sm:$0xff]
        %v1071 = vld [vmem:[#allocation2 + $0x130] sm:$0xff]
        %v1072 = vld [vmem:[#allocation2 + $0x138] sm:$0xff]
        %v1073 = vld [vmem:[#allocation2 + $0x140] sm:$0xff]
        %v1074 = vld [vmem:[#allocation2 + $0x148] sm:$0xff]
        %v1075 = vld [vmem:[#allocation2 + $0x150] sm:$0xff]
        %v1076 = vld [vmem:[#allocation2 + $0x158] sm:$0xff]
        %v1077 = vld [vmem:[#allocation2 + $0x160] sm:$0xff]
        %v1078 = vld [vmem:[#allocation2 + $0x168] sm:$0xff]
        %v1079 = vld [vmem:[#allocation2 + $0x170] sm:$0xff]
        %v1080 = vld [vmem:[#allocation2 + $0x178] sm:$0xff]
        %v1081 = vld [vmem:[#allocation2 + $0x180] sm:$0xff]
        %v1082 = vld [vmem:[#allocation2 + $0x188] sm:$0xff]
        %v1083 = vld [vmem:[#allocation2 + $0x190] sm:$0xff]
        %v1084 = vld [vmem:[#allocation2 + $0x198] sm:$0xff]
        %v1085 = vld [vmem:[#allocation2 + $0x1a0] sm:$0xff]
        %v1086 = vld [vmem:[#allocation2 + $0x1a8] sm:$0xff]
        %v1087 = vld [vmem:[#allocation2 + $0x1b0] sm:$0xff]
        %v1088 = vld [vmem:[#allocation2 + $0x1b8] sm:$0xff]
        %v1089 = vld [vmem:[#allocation2 + $0x1c0] sm:$0xff]
        %v1090 = vld [vmem:[#allocation2 + $0x1c8] sm:$0xff]
        %v1091 = vld [vmem:[#allocation2 + $0x1d0] sm:$0xff]
        %v1092 = vld [vmem:[#allocation2 + $0x1d8] sm:$0xff]
        %v1093 = vld [vmem:[#allocation2 + $0x1e0] sm:$0xff]
        %v1094 = vld [vmem:[#allocation2 + $0x1e8] sm:$0xff]
        %v1095 = vld [vmem:[#allocation2 + $0x1f0] sm:$0xff]
        %v1096 = vld [vmem:[#allocation2 + $0x1f8] sm:$0xff]
        %v1097 = vld [vmem:[#allocation2 + $0x200] sm:$0xff]
        %v1098 = vld [vmem:[#allocation2 + $0x208] sm:$0xff]
        %v1099 = vld [vmem:[#allocation2 + $0x210] sm:$0xff]
        %v1100 = vld [vmem:[#allocation2 + $0x218] sm:$0xff]
        %v1101 = vld [vmem:[#allocation2 + $0x220] sm:$0xff]
        %v1102 = vld [vmem:[#allocation2 + $0x228] sm:$0xff]
        %v1103 = vld [vmem:[#allocation2 + $0x230] sm:$0xff]
        %v1104 = vld [vmem:[#allocation2 + $0x238] sm:$0xff]
        %v1105 = vld [vmem:[#allocation2 + $0x240] sm:$0xff]
        %v1106 = vld [vmem:[#allocation2 + $0x248] sm:$0xff]
        %v1107 = vld [vmem:[#allocation2 + $0x250] sm:$0xff]
        %v1108 = vld [vmem:[#allocation2 + $0x258] sm:$0xff]
        %v1109 = vld [vmem:[#allocation2 + $0x260] sm:$0xff]
        %v1110 = vld [vmem:[#allocation2 + $0x268] sm:$0xff]
        %v1111 = vld [vmem:[#allocation2 + $0x270] sm:$0xff]
        %v1112 = vld [vmem:[#allocation2 + $0x278] sm:$0xff]
        %s1113 = sshra.s32 %s1032, 3
        %s1114 = sand.u32 %s1032, 7
        %s1115 = smul.addr %s1113, 4
        %s1116 = scalar_lea.vmem %s165, %s1115
        %v1117 = vld [vmem:[%s1116] sm:$0xf]
        %v1118 = vld [vmem:[%s1116 + $0x4] sm:$0xf]
        %v1119 = vld [vmem:[%s1116 + $0x8] sm:$0xf]
        %v1120 = vld [vmem:[%s1116 + $0xc] sm:$0xf]
        %v1121 = vld [vmem:[%s1116 + $0x10] sm:$0xf]
        %v1122 = vld [vmem:[%s1116 + $0x14] sm:$0xf]
        %v1123 = vld [vmem:[%s1116 + $0x18] sm:$0xf]
        %v1124 = vld [vmem:[%s1116 + $0x1c] sm:$0xf]
        %v1125 = vld [vmem:[%s1116 + $0x20] sm:$0xf]
        %v1126 = vld [vmem:[%s1116 + $0x24] sm:$0xf]
        %v1127 = vld [vmem:[%s1116 + $0x28] sm:$0xf]
        %v1128 = vld [vmem:[%s1116 + $0x2c] sm:$0xf]
        %v1129 = vld [vmem:[%s1116 + $0x30] sm:$0xf]
        %v1130 = vld [vmem:[%s1116 + $0x34] sm:$0xf]
        %v1131 = vld [vmem:[%s1116 + $0x38] sm:$0xf]
        %v1132 = vld [vmem:[%s1116 + $0x3c] sm:$0xf]
        %v1133 = vld [vmem:[%s1116 + $0x40] sm:$0xf]
        %v1134 = vld [vmem:[%s1116 + $0x44] sm:$0xf]
        %v1135 = vld [vmem:[%s1116 + $0x48] sm:$0xf]
        %v1136 = vld [vmem:[%s1116 + $0x4c] sm:$0xf]
        %v1137 = vld [vmem:[%s1116 + $0x50] sm:$0xf]
        %v1138 = vld [vmem:[%s1116 + $0x54] sm:$0xf]
        %v1139 = vld [vmem:[%s1116 + $0x58] sm:$0xf]
        %v1140 = vld [vmem:[%s1116 + $0x5c] sm:$0xf]
        %v1141 = vld [vmem:[%s1116 + $0x60] sm:$0xf]
        %v1142 = vld [vmem:[%s1116 + $0x64] sm:$0xf]
        %v1143 = vld [vmem:[%s1116 + $0x68] sm:$0xf]
        %v1144 = vld [vmem:[%s1116 + $0x6c] sm:$0xf]
        %v1145 = vld [vmem:[%s1116 + $0x70] sm:$0xf]
        %v1146 = vld [vmem:[%s1116 + $0x74] sm:$0xf]
        %v1147 = vld [vmem:[%s1116 + $0x78] sm:$0xf]
        %v1148 = vld [vmem:[%s1116 + $0x7c] sm:$0xf]
        %v1149 = vld [vmem:[%s1116 + $0x80] sm:$0xf]
        %v1150 = vld [vmem:[%s1116 + $0x84] sm:$0xf]
        %v1151 = vld [vmem:[%s1116 + $0x88] sm:$0xf]
        %v1152 = vld [vmem:[%s1116 + $0x8c] sm:$0xf]
        %v1153 = vld [vmem:[%s1116 + $0x90] sm:$0xf]
        %v1154 = vld [vmem:[%s1116 + $0x94] sm:$0xf]
        %v1155 = vld [vmem:[%s1116 + $0x98] sm:$0xf]
        %v1156 = vld [vmem:[%s1116 + $0x9c] sm:$0xf]
        %v1157 = vld [vmem:[%s1116 + $0xa0] sm:$0xf]
        %v1158 = vld [vmem:[%s1116 + $0xa4] sm:$0xf]
        %v1159 = vld [vmem:[%s1116 + $0xa8] sm:$0xf]
        %v1160 = vld [vmem:[%s1116 + $0xac] sm:$0xf]
        %v1161 = vld [vmem:[%s1116 + $0xb0] sm:$0xf]
        %v1162 = vld [vmem:[%s1116 + $0xb4] sm:$0xf]
        %v1163 = vld [vmem:[%s1116 + $0xb8] sm:$0xf]
        %v1164 = vld [vmem:[%s1116 + $0xbc] sm:$0xf]
        %v1165 = vld [vmem:[%s1116 + $0xc0] sm:$0xf]
        %v1166 = vld [vmem:[%s1116 + $0xc4] sm:$0xf]
        %v1167 = vld [vmem:[%s1116 + $0xc8] sm:$0xf]
        %v1168 = vld [vmem:[%s1116 + $0xcc] sm:$0xf]
        %v1169 = vld [vmem:[%s1116 + $0xd0] sm:$0xf]
        %v1170 = vld [vmem:[%s1116 + $0xd4] sm:$0xf]
        %v1171 = vld [vmem:[%s1116 + $0xd8] sm:$0xf]
        %v1172 = vld [vmem:[%s1116 + $0xdc] sm:$0xf]
        %v1173 = vld [vmem:[%s1116 + $0xe0] sm:$0xf]
        %v1174 = vld [vmem:[%s1116 + $0xe4] sm:$0xf]
        %v1175 = vld [vmem:[%s1116 + $0xe8] sm:$0xf]
        %v1176 = vld [vmem:[%s1116 + $0xec] sm:$0xf]
        %v1177 = vld [vmem:[%s1116 + $0xf0] sm:$0xf]
        %v1178 = vld [vmem:[%s1116 + $0xf4] sm:$0xf]
        %v1179 = vld [vmem:[%s1116 + $0xf8] sm:$0xf]
        %v1180 = vld [vmem:[%s1116 + $0xfc] sm:$0xf]
        %v1181 = vld [vmem:[%s1116 + $0x100] sm:$0xf]
        %v1182 = vld [vmem:[%s1116 + $0x104] sm:$0xf]
        %v1183 = vld [vmem:[%s1116 + $0x108] sm:$0xf]
        %v1184 = vld [vmem:[%s1116 + $0x10c] sm:$0xf]
        %v1185 = vld [vmem:[%s1116 + $0x110] sm:$0xf]
        %v1186 = vld [vmem:[%s1116 + $0x114] sm:$0xf]
        %v1187 = vld [vmem:[%s1116 + $0x118] sm:$0xf]
        %v1188 = vld [vmem:[%s1116 + $0x11c] sm:$0xf]
        %v1189 = vld [vmem:[%s1116 + $0x120] sm:$0xf]
        %v1190 = vld [vmem:[%s1116 + $0x124] sm:$0xf]
        %v1191 = vld [vmem:[%s1116 + $0x128] sm:$0xf]
        %v1192 = vld [vmem:[%s1116 + $0x12c] sm:$0xf]
        %v1193 = vld [vmem:[%s1116 + $0x130] sm:$0xf]
        %v1194 = vld [vmem:[%s1116 + $0x134] sm:$0xf]
        %v1195 = vld [vmem:[%s1116 + $0x138] sm:$0xf]
        %v1196 = vld [vmem:[%s1116 + $0x13c] sm:$0xf]
        %s1197 = scalar_lea.vmem %s1, 8
        %v1198 = vld [vmem:[%s1197] sm:$0xf]
        %v1199 = vld [vmem:[%s1197 + $0x4] sm:$0xf]
        %v1280 = vunpack.c.l.b16 %v1117
        %v1281 = vunpack.c.l.b16 %v1118
        %v1282 = vunpack.c.l.b16 %v1119
        %v1283 = vunpack.c.l.b16 %v1120
        %v1284 = vunpack.c.l.b16 %v1121
        %v1285 = vunpack.c.l.b16 %v1122
        %v1286 = vunpack.c.l.b16 %v1123
        %v1287 = vunpack.c.l.b16 %v1124
        %v1288 = vunpack.c.l.b16 %v1125
        %v1289 = vunpack.c.l.b16 %v1126
        %v1290 = vunpack.c.l.b16 %v1127
        %v1291 = vunpack.c.l.b16 %v1128
        %v1292 = vunpack.c.l.b16 %v1129
        %v1293 = vunpack.c.l.b16 %v1130
        %v1294 = vunpack.c.l.b16 %v1131
        %v1295 = vunpack.c.l.b16 %v1132
        %v1296 = vunpack.c.l.b16 %v1133
        %v1297 = vunpack.c.l.b16 %v1134
        %v1298 = vunpack.c.l.b16 %v1135
        %v1299 = vunpack.c.l.b16 %v1136
        %v1300 = vunpack.c.l.b16 %v1137
        %v1301 = vunpack.c.l.b16 %v1138
        %v1302 = vunpack.c.l.b16 %v1139
        %v1303 = vunpack.c.l.b16 %v1140
        %v1304 = vunpack.c.l.b16 %v1141
        %v1305 = vunpack.c.l.b16 %v1142
        %v1306 = vunpack.c.l.b16 %v1143
        %v1307 = vunpack.c.l.b16 %v1144
        %v1308 = vunpack.c.l.b16 %v1145
        %v1309 = vunpack.c.l.b16 %v1146
        %v1310 = vunpack.c.l.b16 %v1147
        %v1311 = vunpack.c.l.b16 %v1148
        %v1312 = vunpack.c.l.b16 %v1149
        %v1313 = vunpack.c.l.b16 %v1150
        %v1314 = vunpack.c.l.b16 %v1151
        %v1315 = vunpack.c.l.b16 %v1152
        %v1316 = vunpack.c.l.b16 %v1153
        %v1317 = vunpack.c.l.b16 %v1154
        %v1318 = vunpack.c.l.b16 %v1155
        %v1319 = vunpack.c.l.b16 %v1156
        %v1320 = vunpack.c.l.b16 %v1157
        %v1321 = vunpack.c.l.b16 %v1158
        %v1322 = vunpack.c.l.b16 %v1159
        %v1323 = vunpack.c.l.b16 %v1160
        %v1324 = vunpack.c.l.b16 %v1161
        %v1325 = vunpack.c.l.b16 %v1162
        %v1326 = vunpack.c.l.b16 %v1163
        %v1327 = vunpack.c.l.b16 %v1164
        %v1328 = vunpack.c.l.b16 %v1165
        %v1329 = vunpack.c.l.b16 %v1166
        %v1330 = vunpack.c.l.b16 %v1167
        %v1331 = vunpack.c.l.b16 %v1168
        %v1332 = vunpack.c.l.b16 %v1169
        %v1333 = vunpack.c.l.b16 %v1170
        %v1334 = vunpack.c.l.b16 %v1171
        %v1335 = vunpack.c.l.b16 %v1172
        %v1336 = vunpack.c.l.b16 %v1173
        %v1337 = vunpack.c.l.b16 %v1174
        %v1338 = vunpack.c.l.b16 %v1175
        %v1339 = vunpack.c.l.b16 %v1176
        %v1340 = vunpack.c.l.b16 %v1177
        %v1341 = vunpack.c.l.b16 %v1178
        %v1342 = vunpack.c.l.b16 %v1179
        %v1343 = vunpack.c.l.b16 %v1180
        %v1344 = vunpack.c.l.b16 %v1181
        %v1345 = vunpack.c.l.b16 %v1182
        %v1346 = vunpack.c.l.b16 %v1183
        %v1347 = vunpack.c.l.b16 %v1184
        %v1348 = vunpack.c.l.b16 %v1185
        %v1349 = vunpack.c.l.b16 %v1186
        %v1350 = vunpack.c.l.b16 %v1187
        %v1351 = vunpack.c.l.b16 %v1188
        %v1352 = vunpack.c.l.b16 %v1189
        %v1353 = vunpack.c.l.b16 %v1190
        %v1354 = vunpack.c.l.b16 %v1191
        %v1355 = vunpack.c.l.b16 %v1192
        %v1356 = vunpack.c.l.b16 %v1193
        %v1357 = vunpack.c.l.b16 %v1194
        %v1358 = vunpack.c.l.b16 %v1195
        %v1359 = vunpack.c.l.b16 %v1196
        %v1360 = vpack.c.b16 %v1281, %v1280
        %v1361 = vpack.c.b16 %v1283, %v1282
        %v1362 = vpack.c.b16 %v1285, %v1284
        %v1363 = vpack.c.b16 %v1287, %v1286
        %v1364 = vpack.c.b16 %v1289, %v1288
        %v1365 = vpack.c.b16 %v1291, %v1290
        %v1366 = vpack.c.b16 %v1293, %v1292
        %v1367 = vpack.c.b16 %v1295, %v1294
        %v1368 = vpack.c.b16 %v1297, %v1296
        %v1369 = vpack.c.b16 %v1299, %v1298
        %v1370 = vpack.c.b16 %v1301, %v1300
        %v1371 = vpack.c.b16 %v1303, %v1302
        %v1372 = vpack.c.b16 %v1305, %v1304
        %v1373 = vpack.c.b16 %v1307, %v1306
        %v1374 = vpack.c.b16 %v1309, %v1308
        %v1375 = vpack.c.b16 %v1311, %v1310
        %v1376 = vpack.c.b16 %v1313, %v1312
        %v1377 = vpack.c.b16 %v1315, %v1314
        %v1378 = vpack.c.b16 %v1317, %v1316
        %v1379 = vpack.c.b16 %v1319, %v1318
        %v1380 = vpack.c.b16 %v1321, %v1320
        %v1381 = vpack.c.b16 %v1323, %v1322
        %v1382 = vpack.c.b16 %v1325, %v1324
        %v1383 = vpack.c.b16 %v1327, %v1326
        %v1384 = vpack.c.b16 %v1329, %v1328
        %v1385 = vpack.c.b16 %v1331, %v1330
        %v1386 = vpack.c.b16 %v1333, %v1332
        %v1387 = vpack.c.b16 %v1335, %v1334
        %v1388 = vpack.c.b16 %v1337, %v1336
        %v1389 = vpack.c.b16 %v1339, %v1338
        %v1390 = vpack.c.b16 %v1341, %v1340
        %v1391 = vpack.c.b16 %v1343, %v1342
        %v1392 = vpack.c.b16 %v1345, %v1344
        %v1393 = vpack.c.b16 %v1347, %v1346
        %v1394 = vpack.c.b16 %v1349, %v1348
        %v1395 = vpack.c.b16 %v1351, %v1350
        %v1396 = vpack.c.b16 %v1353, %v1352
        %v1397 = vpack.c.b16 %v1355, %v1354
        %v1398 = vpack.c.b16 %v1357, %v1356
        %v1399 = vpack.c.b16 %v1359, %v1358
        %v1402 = vunpack.c.l.b16 %v1198
        %v1403 = vunpack.c.l.b16 %v1199
        %v1404 = vpack.c.b16 %v1403, %v1402
        %v1406 = vsel %vm470, %v1360, 0
        %v1409 = vsel %vm470, %v1361, 0
        %v1412 = vsel %vm470, %v1362, 0
        %v1415 = vsel %vm470, %v1363, 0
        %v1418 = vsel %vm470, %v1364, 0
        %v1421 = vsel %vm470, %v1365, 0
        %v1424 = vsel %vm470, %v1366, 0
        %v1427 = vsel %vm470, %v1367, 0
        %v1430 = vsel %vm470, %v1368, 0
        %v1433 = vsel %vm470, %v1369, 0
        %v1436 = vsel %vm470, %v1370, 0
        %v1439 = vsel %vm470, %v1371, 0
        %v1442 = vsel %vm470, %v1372, 0
        %v1445 = vsel %vm470, %v1373, 0
        %v1448 = vsel %vm470, %v1374, 0
        %v1451 = vsel %vm470, %v1375, 0
        %v1454 = vsel %vm470, %v1376, 0
        %v1457 = vsel %vm470, %v1377, 0
        %v1460 = vsel %vm470, %v1378, 0
        %v1463 = vsel %vm470, %v1379, 0
        %v1466 = vsel %vm470, %v1380, 0
        %v1469 = vsel %vm470, %v1381, 0
        %v1472 = vsel %vm470, %v1382, 0
        %v1475 = vsel %vm470, %v1383, 0
        %v1478 = vsel %vm470, %v1384, 0
        %v1481 = vsel %vm470, %v1385, 0
        %v1484 = vsel %vm470, %v1386, 0
        %v1487 = vsel %vm470, %v1387, 0
        %v1490 = vsel %vm470, %v1388, 0
        %v1493 = vsel %vm470, %v1389, 0
        %v1496 = vsel %vm470, %v1390, 0
        %v1499 = vsel %vm470, %v1391, 0
        %v1502 = vsel %vm470, %v1392, 0
        %v1505 = vsel %vm470, %v1393, 0
        %v1508 = vsel %vm470, %v1394, 0
        %v1511 = vsel %vm470, %v1395, 0
        %v1514 = vsel %vm470, %v1396, 0
        %v1517 = vsel %vm470, %v1397, 0
        %v1520 = vsel %vm470, %v1398, 0
        %v1523 = vsel %vm470, %v1399, 0
        %v1526 = vand.u32 %v1404, %v594
        %1528 = vmatprep.subr.bf16.mxu0 0
        %1529 = vmatpush1.bf16.msra.mxu0 0
        %1530 = vmatprep.subr.bf16.mxu0 0
        %1531 = vmatpush1.bf16.msra.mxu0 0
        %1532 = vmatprep.subr.bf16.mxu0 0
        %1533 = vmatpush1.bf16.msra.mxu0 0
        %1534 = vmatprep.subr.bf16.mxu0 0
        %1535 = vmatpush1.bf16.msra.mxu0 0
        %1536 = vmatprep.subr.bf16.mxu0 0
        %1537 = vmatpush1.bf16.msra.mxu0 0
        %1538 = vmatprep.subr.bf16.mxu0 0
        %1539 = vmatpush1.bf16.msra.mxu0 0
        %1540 = vmatprep.subr.bf16.mxu0 0
        %1541 = vmatpush1.bf16.msra.mxu0 0
        %1542 = vmatprep.subr.bf16.mxu0 0
        %1543 = vmatpush1.bf16.msra.mxu0 %v1526
        %1544 = vmatprep.subr.bf16.mxu0 0
        %1545 = vmatpush2.bf16.msra.mxu0 0
        %1546 = vmatprep.subr.bf16.mxu0 0
        %1547 = vmatpush2.bf16.msra.mxu0 0
        %1548 = vmatprep.subr.bf16.mxu0 0
        %1549 = vmatpush2.bf16.msra.mxu0 0
        %1550 = vmatprep.subr.bf16.mxu0 0
        %1551 = vmatpush2.bf16.msra.mxu0 0
        %1552 = vmatprep.subr.bf16.mxu0 0
        %1553 = vmatpush2.bf16.msra.mxu0 0
        %1554 = vmatprep.subr.bf16.mxu0 0
        %1555 = vmatpush2.bf16.msra.mxu0 0
        %1556 = vmatprep.subr.bf16.mxu0 0
        %1557 = vmatpush2.bf16.msra.mxu0 0
        %1558 = vmatprep.subr.bf16.mxu0 0
        %1559 = vmatpush2.bf16.msra.mxu0 0
        %1560 = vmatprep.mubr.bf16.mxu0 0
        %1561 = vmatmul.mubr.bf16.gmra.mxu0 %v1406
        %v1562 = vpop.f32.mrf.mxu0
        %v1563 = vadd.f32 0.0, %v1562
        %v1564 = vpop.f32.mrf.mxu0
        %v1565 = vpop.f32.mrf.mxu0
        %v1566 = vadd.f32 0.0, %v1565
        %v1567 = vpop.f32.mrf.mxu0
        %1568 = vmatprep.mubr.bf16.mxu0 0
        %1569 = vmatmul.mubr.bf16.gmra.mxu0 %v1409
        %v1570 = vpop.f32.mrf.mxu0
        %v1571 = vadd.f32 0.0, %v1570
        %v1572 = vpop.f32.mrf.mxu0
        %v1573 = vpop.f32.mrf.mxu0
        %v1574 = vadd.f32 0.0, %v1573
        %v1575 = vpop.f32.mrf.mxu0
        %1576 = vmatprep.mubr.bf16.mxu0 0
        %1577 = vmatmul.mubr.bf16.gmra.mxu0 %v1412
        %v1578 = vpop.f32.mrf.mxu0
        %v1579 = vadd.f32 0.0, %v1578
        %v1580 = vpop.f32.mrf.mxu0
        %v1581 = vpop.f32.mrf.mxu0
        %v1582 = vadd.f32 0.0, %v1581
        %v1583 = vpop.f32.mrf.mxu0
        %1584 = vmatprep.mubr.bf16.mxu0 0
        %1585 = vmatmul.mubr.bf16.gmra.mxu0 %v1415
        %v1586 = vpop.f32.mrf.mxu0
        %v1587 = vadd.f32 0.0, %v1586
        %v1588 = vpop.f32.mrf.mxu0
        %v1589 = vpop.f32.mrf.mxu0
        %v1590 = vadd.f32 0.0, %v1589
        %v1591 = vpop.f32.mrf.mxu0
        %1592 = vmatprep.mubr.bf16.mxu0 0
        %1593 = vmatmul.mubr.bf16.gmra.mxu0 %v1418
        %v1594 = vpop.f32.mrf.mxu0
        %v1595 = vadd.f32 0.0, %v1594
        %v1596 = vpop.f32.mrf.mxu0
        %v1597 = vpop.f32.mrf.mxu0
        %v1598 = vadd.f32 0.0, %v1597
        %v1599 = vpop.f32.mrf.mxu0
        %1600 = vmatprep.mubr.bf16.mxu0 0
        %1601 = vmatmul.mubr.bf16.gmra.mxu0 %v1421
        %v1602 = vpop.f32.mrf.mxu0
        %v1603 = vadd.f32 0.0, %v1602
        %v1604 = vpop.f32.mrf.mxu0
        %v1605 = vpop.f32.mrf.mxu0
        %v1606 = vadd.f32 0.0, %v1605
        %v1607 = vpop.f32.mrf.mxu0
        %1608 = vmatprep.mubr.bf16.mxu0 0
        %1609 = vmatmul.mubr.bf16.gmra.mxu0 %v1424
        %v1610 = vpop.f32.mrf.mxu0
        %v1611 = vadd.f32 0.0, %v1610
        %v1612 = vpop.f32.mrf.mxu0
        %v1613 = vpop.f32.mrf.mxu0
        %v1614 = vadd.f32 0.0, %v1613
        %v1615 = vpop.f32.mrf.mxu0
        %1616 = vmatprep.mubr.bf16.mxu0 0
        %1617 = vmatmul.mubr.bf16.gmra.mxu0 %v1427
        %v1618 = vpop.f32.mrf.mxu0
        %v1619 = vadd.f32 0.0, %v1618
        %v1620 = vpop.f32.mrf.mxu0
        %v1621 = vpop.f32.mrf.mxu0
        %v1622 = vadd.f32 0.0, %v1621
        %v1623 = vpop.f32.mrf.mxu0
        %1624 = vmatprep.mubr.bf16.mxu0 0
        %1625 = vmatmul.mubr.bf16.gmra.mxu0 %v1430
        %v1626 = vpop.f32.mrf.mxu0
        %v1627 = vadd.f32 0.0, %v1626
        %v1628 = vpop.f32.mrf.mxu0
        %v1629 = vpop.f32.mrf.mxu0
        %v1630 = vadd.f32 0.0, %v1629
        %v1631 = vpop.f32.mrf.mxu0
        %1632 = vmatprep.mubr.bf16.mxu0 0
        %1633 = vmatmul.mubr.bf16.gmra.mxu0 %v1433
        %v1634 = vpop.f32.mrf.mxu0
        %v1635 = vadd.f32 0.0, %v1634
        %v1636 = vpop.f32.mrf.mxu0
        %v1637 = vpop.f32.mrf.mxu0
        %v1638 = vadd.f32 0.0, %v1637
        %v1639 = vpop.f32.mrf.mxu0
        %1640 = vmatprep.mubr.bf16.mxu0 0
        %1641 = vmatmul.mubr.bf16.gmra.mxu0 %v1436
        %v1642 = vpop.f32.mrf.mxu0
        %v1643 = vadd.f32 0.0, %v1642
        %v1644 = vpop.f32.mrf.mxu0
        %v1645 = vpop.f32.mrf.mxu0
        %v1646 = vadd.f32 0.0, %v1645
        %v1647 = vpop.f32.mrf.mxu0
        %1648 = vmatprep.mubr.bf16.mxu0 0
        %1649 = vmatmul.mubr.bf16.gmra.mxu0 %v1439
        %v1650 = vpop.f32.mrf.mxu0
        %v1651 = vadd.f32 0.0, %v1650
        %v1652 = vpop.f32.mrf.mxu0
        %v1653 = vpop.f32.mrf.mxu0
        %v1654 = vadd.f32 0.0, %v1653
        %v1655 = vpop.f32.mrf.mxu0
        %1656 = vmatprep.mubr.bf16.mxu0 0
        %1657 = vmatmul.mubr.bf16.gmra.mxu0 %v1442
        %v1658 = vpop.f32.mrf.mxu0
        %v1659 = vadd.f32 0.0, %v1658
        %v1660 = vpop.f32.mrf.mxu0
        %v1661 = vpop.f32.mrf.mxu0
        %v1662 = vadd.f32 0.0, %v1661
        %v1663 = vpop.f32.mrf.mxu0
        %1664 = vmatprep.mubr.bf16.mxu0 0
        %1665 = vmatmul.mubr.bf16.gmra.mxu0 %v1445
        %v1666 = vpop.f32.mrf.mxu0
        %v1667 = vadd.f32 0.0, %v1666
        %v1668 = vpop.f32.mrf.mxu0
        %v1669 = vpop.f32.mrf.mxu0
        %v1670 = vadd.f32 0.0, %v1669
        %v1671 = vpop.f32.mrf.mxu0
        %1672 = vmatprep.mubr.bf16.mxu0 0
        %1673 = vmatmul.mubr.bf16.gmra.mxu0 %v1448
        %v1674 = vpop.f32.mrf.mxu0
        %v1675 = vadd.f32 0.0, %v1674
        %v1676 = vpop.f32.mrf.mxu0
        %v1677 = vpop.f32.mrf.mxu0
        %v1678 = vadd.f32 0.0, %v1677
        %v1679 = vpop.f32.mrf.mxu0
        %1680 = vmatprep.mubr.bf16.mxu0 0
        %1681 = vmatmul.mubr.bf16.gmra.mxu0 %v1451
        %v1682 = vpop.f32.mrf.mxu0
        %v1683 = vadd.f32 0.0, %v1682
        %v1684 = vpop.f32.mrf.mxu0
        %v1685 = vpop.f32.mrf.mxu0
        %v1686 = vadd.f32 0.0, %v1685
        %v1687 = vpop.f32.mrf.mxu0
        %1688 = vmatprep.mubr.bf16.mxu0 0
        %1689 = vmatmul.mubr.bf16.gmra.mxu0 %v1454
        %v1690 = vpop.f32.mrf.mxu0
        %v1691 = vadd.f32 0.0, %v1690
        %v1692 = vpop.f32.mrf.mxu0
        %v1693 = vpop.f32.mrf.mxu0
        %v1694 = vadd.f32 0.0, %v1693
        %v1695 = vpop.f32.mrf.mxu0
        %1696 = vmatprep.mubr.bf16.mxu0 0
        %1697 = vmatmul.mubr.bf16.gmra.mxu0 %v1457
        %v1698 = vpop.f32.mrf.mxu0
        %v1699 = vadd.f32 0.0, %v1698
        %v1700 = vpop.f32.mrf.mxu0
        %v1701 = vpop.f32.mrf.mxu0
        %v1702 = vadd.f32 0.0, %v1701
        %v1703 = vpop.f32.mrf.mxu0
        %1704 = vmatprep.mubr.bf16.mxu0 0
        %1705 = vmatmul.mubr.bf16.gmra.mxu0 %v1460
        %v1706 = vpop.f32.mrf.mxu0
        %v1707 = vadd.f32 0.0, %v1706
        %v1708 = vpop.f32.mrf.mxu0
        %v1709 = vpop.f32.mrf.mxu0
        %v1710 = vadd.f32 0.0, %v1709
        %v1711 = vpop.f32.mrf.mxu0
        %1712 = vmatprep.mubr.bf16.mxu0 0
        %1713 = vmatmul.mubr.bf16.gmra.mxu0 %v1463
        %v1714 = vpop.f32.mrf.mxu0
        %v1715 = vadd.f32 0.0, %v1714
        %v1716 = vpop.f32.mrf.mxu0
        %v1717 = vpop.f32.mrf.mxu0
        %v1718 = vadd.f32 0.0, %v1717
        %v1719 = vpop.f32.mrf.mxu0
        %1720 = vmatprep.mubr.bf16.mxu0 0
        %1721 = vmatmul.mubr.bf16.gmra.mxu0 %v1466
        %v1722 = vpop.f32.mrf.mxu0
        %v1723 = vadd.f32 0.0, %v1722
        %v1724 = vpop.f32.mrf.mxu0
        %v1725 = vpop.f32.mrf.mxu0
        %v1726 = vadd.f32 0.0, %v1725
        %v1727 = vpop.f32.mrf.mxu0
        %1728 = vmatprep.mubr.bf16.mxu0 0
        %1729 = vmatmul.mubr.bf16.gmra.mxu0 %v1469
        %v1730 = vpop.f32.mrf.mxu0
        %v1731 = vadd.f32 0.0, %v1730
        %v1732 = vpop.f32.mrf.mxu0
        %v1733 = vpop.f32.mrf.mxu0
        %v1734 = vadd.f32 0.0, %v1733
        %v1735 = vpop.f32.mrf.mxu0
        %1736 = vmatprep.mubr.bf16.mxu0 0
        %1737 = vmatmul.mubr.bf16.gmra.mxu0 %v1472
        %v1738 = vpop.f32.mrf.mxu0
        %v1739 = vadd.f32 0.0, %v1738
        %v1740 = vpop.f32.mrf.mxu0
        %v1741 = vpop.f32.mrf.mxu0
        %v1742 = vadd.f32 0.0, %v1741
        %v1743 = vpop.f32.mrf.mxu0
        %1744 = vmatprep.mubr.bf16.mxu0 0
        %1745 = vmatmul.mubr.bf16.gmra.mxu0 %v1475
        %v1746 = vpop.f32.mrf.mxu0
        %v1747 = vadd.f32 0.0, %v1746
        %v1748 = vpop.f32.mrf.mxu0
        %v1749 = vpop.f32.mrf.mxu0
        %v1750 = vadd.f32 0.0, %v1749
        %v1751 = vpop.f32.mrf.mxu0
        %1752 = vmatprep.mubr.bf16.mxu0 0
        %1753 = vmatmul.mubr.bf16.gmra.mxu0 %v1478
        %v1754 = vpop.f32.mrf.mxu0
        %v1755 = vadd.f32 0.0, %v1754
        %v1756 = vpop.f32.mrf.mxu0
        %v1757 = vpop.f32.mrf.mxu0
        %v1758 = vadd.f32 0.0, %v1757
        %v1759 = vpop.f32.mrf.mxu0
        %1760 = vmatprep.mubr.bf16.mxu0 0
        %1761 = vmatmul.mubr.bf16.gmra.mxu0 %v1481
        %v1762 = vpop.f32.mrf.mxu0
        %v1763 = vadd.f32 0.0, %v1762
        %v1764 = vpop.f32.mrf.mxu0
        %v1765 = vpop.f32.mrf.mxu0
        %v1766 = vadd.f32 0.0, %v1765
        %v1767 = vpop.f32.mrf.mxu0
        %1768 = vmatprep.mubr.bf16.mxu0 0
        %1769 = vmatmul.mubr.bf16.gmra.mxu0 %v1484
        %v1770 = vpop.f32.mrf.mxu0
        %v1771 = vadd.f32 0.0, %v1770
        %v1772 = vpop.f32.mrf.mxu0
        %v1773 = vpop.f32.mrf.mxu0
        %v1774 = vadd.f32 0.0, %v1773
        %v1775 = vpop.f32.mrf.mxu0
        %1776 = vmatprep.mubr.bf16.mxu0 0
        %1777 = vmatmul.mubr.bf16.gmra.mxu0 %v1487
        %v1778 = vpop.f32.mrf.mxu0
        %v1779 = vadd.f32 0.0, %v1778
        %v1780 = vpop.f32.mrf.mxu0
        %v1781 = vpop.f32.mrf.mxu0
        %v1782 = vadd.f32 0.0, %v1781
        %v1783 = vpop.f32.mrf.mxu0
        %1784 = vmatprep.mubr.bf16.mxu0 0
        %1785 = vmatmul.mubr.bf16.gmra.mxu0 %v1490
        %v1786 = vpop.f32.mrf.mxu0
        %v1787 = vadd.f32 0.0, %v1786
        %v1788 = vpop.f32.mrf.mxu0
        %v1789 = vpop.f32.mrf.mxu0
        %v1790 = vadd.f32 0.0, %v1789
        %v1791 = vpop.f32.mrf.mxu0
        %1792 = vmatprep.mubr.bf16.mxu0 0
        %1793 = vmatmul.mubr.bf16.gmra.mxu0 %v1493
        %v1794 = vpop.f32.mrf.mxu0
        %v1795 = vadd.f32 0.0, %v1794
        %v1796 = vpop.f32.mrf.mxu0
        %v1797 = vpop.f32.mrf.mxu0
        %v1798 = vadd.f32 0.0, %v1797
        %v1799 = vpop.f32.mrf.mxu0
        %1800 = vmatprep.mubr.bf16.mxu0 0
        %1801 = vmatmul.mubr.bf16.gmra.mxu0 %v1496
        %v1802 = vpop.f32.mrf.mxu0
        %v1803 = vadd.f32 0.0, %v1802
        %v1804 = vpop.f32.mrf.mxu0
        %v1805 = vpop.f32.mrf.mxu0
        %v1806 = vadd.f32 0.0, %v1805
        %v1807 = vpop.f32.mrf.mxu0
        %1808 = vmatprep.mubr.bf16.mxu0 0
        %1809 = vmatmul.mubr.bf16.gmra.mxu0 %v1499
        %v1810 = vpop.f32.mrf.mxu0
        %v1811 = vadd.f32 0.0, %v1810
        %v1812 = vpop.f32.mrf.mxu0
        %v1813 = vpop.f32.mrf.mxu0
        %v1814 = vadd.f32 0.0, %v1813
        %v1815 = vpop.f32.mrf.mxu0
        %1816 = vmatprep.mubr.bf16.mxu0 0
        %1817 = vmatmul.mubr.bf16.gmra.mxu0 %v1502
        %v1818 = vpop.f32.mrf.mxu0
        %v1819 = vadd.f32 0.0, %v1818
        %v1820 = vpop.f32.mrf.mxu0
        %v1821 = vpop.f32.mrf.mxu0
        %v1822 = vadd.f32 0.0, %v1821
        %v1823 = vpop.f32.mrf.mxu0
        %1824 = vmatprep.mubr.bf16.mxu0 0
        %1825 = vmatmul.mubr.bf16.gmra.mxu0 %v1505
        %v1826 = vpop.f32.mrf.mxu0
        %v1827 = vadd.f32 0.0, %v1826
        %v1828 = vpop.f32.mrf.mxu0
        %v1829 = vpop.f32.mrf.mxu0
        %v1830 = vadd.f32 0.0, %v1829
        %v1831 = vpop.f32.mrf.mxu0
        %1832 = vmatprep.mubr.bf16.mxu0 0
        %1833 = vmatmul.mubr.bf16.gmra.mxu0 %v1508
        %v1834 = vpop.f32.mrf.mxu0
        %v1835 = vadd.f32 0.0, %v1834
        %v1836 = vpop.f32.mrf.mxu0
        %v1837 = vpop.f32.mrf.mxu0
        %v1838 = vadd.f32 0.0, %v1837
        %v1839 = vpop.f32.mrf.mxu0
        %1840 = vmatprep.mubr.bf16.mxu0 0
        %1841 = vmatmul.mubr.bf16.gmra.mxu0 %v1511
        %v1842 = vpop.f32.mrf.mxu0
        %v1843 = vadd.f32 0.0, %v1842
        %v1844 = vpop.f32.mrf.mxu0
        %v1845 = vpop.f32.mrf.mxu0
        %v1846 = vadd.f32 0.0, %v1845
        %v1847 = vpop.f32.mrf.mxu0
        %1848 = vmatprep.mubr.bf16.mxu0 0
        %1849 = vmatmul.mubr.bf16.gmra.mxu0 %v1514
        %v1850 = vpop.f32.mrf.mxu0
        %v1851 = vadd.f32 0.0, %v1850
        %v1852 = vpop.f32.mrf.mxu0
        %v1853 = vpop.f32.mrf.mxu0
        %v1854 = vadd.f32 0.0, %v1853
        %v1855 = vpop.f32.mrf.mxu0
        %1856 = vmatprep.mubr.bf16.mxu0 0
        %1857 = vmatmul.mubr.bf16.gmra.mxu0 %v1517
        %v1858 = vpop.f32.mrf.mxu0
        %v1859 = vadd.f32 0.0, %v1858
        %v1860 = vpop.f32.mrf.mxu0
        %v1861 = vpop.f32.mrf.mxu0
        %v1862 = vadd.f32 0.0, %v1861
        %v1863 = vpop.f32.mrf.mxu0
        %1864 = vmatprep.mubr.bf16.mxu0 0
        %1865 = vmatmul.mubr.bf16.gmra.mxu0 %v1520
        %v1866 = vpop.f32.mrf.mxu0
        %v1867 = vadd.f32 0.0, %v1866
        %v1868 = vpop.f32.mrf.mxu0
        %v1869 = vpop.f32.mrf.mxu0
        %v1870 = vadd.f32 0.0, %v1869
        %v1871 = vpop.f32.mrf.mxu0
        %1872 = vmatprep.mubr.bf16.mxu0 0
        %1873 = vmatmul.mubr.bf16.gmra.mxu0 %v1523
        %v1874 = vpop.f32.mrf.mxu0
        %v1875 = vadd.f32 0.0, %v1874
        %v1876 = vpop.f32.mrf.mxu0
        %v1877 = vpop.f32.mrf.mxu0
        %v1878 = vadd.f32 0.0, %v1877
        %v1879 = vpop.f32.mrf.mxu0
        %1880 = vdwg.mxu0
        %v1881 = vadd.f32 %v1033, %v1563
        %v1882 = vadd.f32 %v1034, %v1566
        %v1883 = vadd.f32 %v1035, %v1571
        %v1884 = vadd.f32 %v1036, %v1574
        %v1885 = vadd.f32 %v1037, %v1579
        %v1886 = vadd.f32 %v1038, %v1582
        %v1887 = vadd.f32 %v1039, %v1587
        %v1888 = vadd.f32 %v1040, %v1590
        %v1889 = vadd.f32 %v1041, %v1595
        %v1890 = vadd.f32 %v1042, %v1598
        %v1891 = vadd.f32 %v1043, %v1603
        %v1892 = vadd.f32 %v1044, %v1606
        %v1893 = vadd.f32 %v1045, %v1611
        %v1894 = vadd.f32 %v1046, %v1614
        %v1895 = vadd.f32 %v1047, %v1619
        %v1896 = vadd.f32 %v1048, %v1622
        %v1897 = vadd.f32 %v1049, %v1627
        %v1898 = vadd.f32 %v1050, %v1630
        %v1899 = vadd.f32 %v1051, %v1635
        %v1900 = vadd.f32 %v1052, %v1638
        %v1901 = vadd.f32 %v1053, %v1643
        %v1902 = vadd.f32 %v1054, %v1646
        %v1903 = vadd.f32 %v1055, %v1651
        %v1904 = vadd.f32 %v1056, %v1654
        %v1905 = vadd.f32 %v1057, %v1659
        %v1906 = vadd.f32 %v1058, %v1662
        %v1907 = vadd.f32 %v1059, %v1667
        %v1908 = vadd.f32 %v1060, %v1670
        %v1909 = vadd.f32 %v1061, %v1675
        %v1910 = vadd.f32 %v1062, %v1678
        %v1911 = vadd.f32 %v1063, %v1683
        %v1912 = vadd.f32 %v1064, %v1686
        %v1913 = vadd.f32 %v1065, %v1691
        %v1914 = vadd.f32 %v1066, %v1694
        %v1915 = vadd.f32 %v1067, %v1699
        %v1916 = vadd.f32 %v1068, %v1702
        %v1917 = vadd.f32 %v1069, %v1707
        %v1918 = vadd.f32 %v1070, %v1710
        %v1919 = vadd.f32 %v1071, %v1715
        %v1920 = vadd.f32 %v1072, %v1718
        %v1921 = vadd.f32 %v1073, %v1723
        %v1922 = vadd.f32 %v1074, %v1726
        %v1923 = vadd.f32 %v1075, %v1731
        %v1924 = vadd.f32 %v1076, %v1734
        %v1925 = vadd.f32 %v1077, %v1739
        %v1926 = vadd.f32 %v1078, %v1742
        %v1927 = vadd.f32 %v1079, %v1747
        %v1928 = vadd.f32 %v1080, %v1750
        %v1929 = vadd.f32 %v1081, %v1755
        %v1930 = vadd.f32 %v1082, %v1758
        %v1931 = vadd.f32 %v1083, %v1763
        %v1932 = vadd.f32 %v1084, %v1766
        %v1933 = vadd.f32 %v1085, %v1771
        %v1934 = vadd.f32 %v1086, %v1774
        %v1935 = vadd.f32 %v1087, %v1779
        %v1936 = vadd.f32 %v1088, %v1782
        %v1937 = vadd.f32 %v1089, %v1787
        %v1938 = vadd.f32 %v1090, %v1790
        %v1939 = vadd.f32 %v1091, %v1795
        %v1940 = vadd.f32 %v1092, %v1798
        %v1941 = vadd.f32 %v1093, %v1803
        %v1942 = vadd.f32 %v1094, %v1806
        %v1943 = vadd.f32 %v1095, %v1811
        %v1944 = vadd.f32 %v1096, %v1814
        %v1945 = vadd.f32 %v1097, %v1819
        %v1946 = vadd.f32 %v1098, %v1822
        %v1947 = vadd.f32 %v1099, %v1827
        %v1948 = vadd.f32 %v1100, %v1830
        %v1949 = vadd.f32 %v1101, %v1835
        %v1950 = vadd.f32 %v1102, %v1838
        %v1951 = vadd.f32 %v1103, %v1843
        %v1952 = vadd.f32 %v1104, %v1846
        %v1953 = vadd.f32 %v1105, %v1851
        %v1954 = vadd.f32 %v1106, %v1854
        %v1955 = vadd.f32 %v1107, %v1859
        %v1956 = vadd.f32 %v1108, %v1862
        %v1957 = vadd.f32 %v1109, %v1867
        %v1958 = vadd.f32 %v1110, %v1870
        %v1959 = vadd.f32 %v1111, %v1875
        %v1960 = vadd.f32 %v1112, %v1878
        %1961 = vst.msk [vmem:[#allocation2] sm:$0xff] %vm951, %v1881
        %1962 = vst.msk [vmem:[#allocation2 + $0x8] sm:$0xff] %vm951, %v1882
        %1963 = vst.msk [vmem:[#allocation2 + $0x10] sm:$0xff] %vm951, %v1883
        %1964 = vst.msk [vmem:[#allocation2 + $0x18] sm:$0xff] %vm951, %v1884
        %1965 = vst.msk [vmem:[#allocation2 + $0x20] sm:$0xff] %vm951, %v1885
        %1966 = vst.msk [vmem:[#allocation2 + $0x28] sm:$0xff] %vm951, %v1886
        %1967 = vst.msk [vmem:[#allocation2 + $0x30] sm:$0xff] %vm951, %v1887
        %1968 = vst.msk [vmem:[#allocation2 + $0x38] sm:$0xff] %vm951, %v1888
        %1969 = vst.msk [vmem:[#allocation2 + $0x40] sm:$0xff] %vm951, %v1889
        %1970 = vst.msk [vmem:[#allocation2 + $0x48] sm:$0xff] %vm951, %v1890
        %1971 = vst.msk [vmem:[#allocation2 + $0x50] sm:$0xff] %vm951, %v1891
        %1972 = vst.msk [vmem:[#allocation2 + $0x58] sm:$0xff] %vm951, %v1892
        %1973 = vst.msk [vmem:[#allocation2 + $0x60] sm:$0xff] %vm951, %v1893
        %1974 = vst.msk [vmem:[#allocation2 + $0x68] sm:$0xff] %vm951, %v1894
        %1975 = vst.msk [vmem:[#allocation2 + $0x70] sm:$0xff] %vm951, %v1895
        %1976 = vst.msk [vmem:[#allocation2 + $0x78] sm:$0xff] %vm951, %v1896
        %1977 = vst.msk [vmem:[#allocation2 + $0x80] sm:$0xff] %vm951, %v1897
        %1978 = vst.msk [vmem:[#allocation2 + $0x88] sm:$0xff] %vm951, %v1898
        %1979 = vst.msk [vmem:[#allocation2 + $0x90] sm:$0xff] %vm951, %v1899
        %1980 = vst.msk [vmem:[#allocation2 + $0x98] sm:$0xff] %vm951, %v1900
        %1981 = vst.msk [vmem:[#allocation2 + $0xa0] sm:$0xff] %vm951, %v1901
        %1982 = vst.msk [vmem:[#allocation2 + $0xa8] sm:$0xff] %vm951, %v1902
        %1983 = vst.msk [vmem:[#allocation2 + $0xb0] sm:$0xff] %vm951, %v1903
        %1984 = vst.msk [vmem:[#allocation2 + $0xb8] sm:$0xff] %vm951, %v1904
        %1985 = vst.msk [vmem:[#allocation2 + $0xc0] sm:$0xff] %vm951, %v1905
        %1986 = vst.msk [vmem:[#allocation2 + $0xc8] sm:$0xff] %vm951, %v1906
        %1987 = vst.msk [vmem:[#allocation2 + $0xd0] sm:$0xff] %vm951, %v1907
        %1988 = vst.msk [vmem:[#allocation2 + $0xd8] sm:$0xff] %vm951, %v1908
        %1989 = vst.msk [vmem:[#allocation2 + $0xe0] sm:$0xff] %vm951, %v1909
        %1990 = vst.msk [vmem:[#allocation2 + $0xe8] sm:$0xff] %vm951, %v1910
        %1991 = vst.msk [vmem:[#allocation2 + $0xf0] sm:$0xff] %vm951, %v1911
        %1992 = vst.msk [vmem:[#allocation2 + $0xf8] sm:$0xff] %vm951, %v1912
        %1993 = vst.msk [vmem:[#allocation2 + $0x100] sm:$0xff] %vm951, %v1913
        %1994 = vst.msk [vmem:[#allocation2 + $0x108] sm:$0xff] %vm951, %v1914
        %1995 = vst.msk [vmem:[#allocation2 + $0x110] sm:$0xff] %vm951, %v1915
        %1996 = vst.msk [vmem:[#allocation2 + $0x118] sm:$0xff] %vm951, %v1916
        %1997 = vst.msk [vmem:[#allocation2 + $0x120] sm:$0xff] %vm951, %v1917
        %1998 = vst.msk [vmem:[#allocation2 + $0x128] sm:$0xff] %vm951, %v1918
        %1999 = vst.msk [vmem:[#allocation2 + $0x130] sm:$0xff] %vm951, %v1919
        %2000 = vst.msk [vmem:[#allocation2 + $0x138] sm:$0xff] %vm951, %v1920
        %2001 = vst.msk [vmem:[#allocation2 + $0x140] sm:$0xff] %vm951, %v1921
        %2002 = vst.msk [vmem:[#allocation2 + $0x148] sm:$0xff] %vm951, %v1922
        %2003 = vst.msk [vmem:[#allocation2 + $0x150] sm:$0xff] %vm951, %v1923
        %2004 = vst.msk [vmem:[#allocation2 + $0x158] sm:$0xff] %vm951, %v1924
        %2005 = vst.msk [vmem:[#allocation2 + $0x160] sm:$0xff] %vm951, %v1925
        %2006 = vst.msk [vmem:[#allocation2 + $0x168] sm:$0xff] %vm951, %v1926
        %2007 = vst.msk [vmem:[#allocation2 + $0x170] sm:$0xff] %vm951, %v1927
        %2008 = vst.msk [vmem:[#allocation2 + $0x178] sm:$0xff] %vm951, %v1928
        %2009 = vst.msk [vmem:[#allocation2 + $0x180] sm:$0xff] %vm951, %v1929
        %2010 = vst.msk [vmem:[#allocation2 + $0x188] sm:$0xff] %vm951, %v1930
        %2011 = vst.msk [vmem:[#allocation2 + $0x190] sm:$0xff] %vm951, %v1931
        %2012 = vst.msk [vmem:[#allocation2 + $0x198] sm:$0xff] %vm951, %v1932
        %2013 = vst.msk [vmem:[#allocation2 + $0x1a0] sm:$0xff] %vm951, %v1933
        %2014 = vst.msk [vmem:[#allocation2 + $0x1a8] sm:$0xff] %vm951, %v1934
        %2015 = vst.msk [vmem:[#allocation2 + $0x1b0] sm:$0xff] %vm951, %v1935
        %2016 = vst.msk [vmem:[#allocation2 + $0x1b8] sm:$0xff] %vm951, %v1936
        %2017 = vst.msk [vmem:[#allocation2 + $0x1c0] sm:$0xff] %vm951, %v1937
        %2018 = vst.msk [vmem:[#allocation2 + $0x1c8] sm:$0xff] %vm951, %v1938
        %2019 = vst.msk [vmem:[#allocation2 + $0x1d0] sm:$0xff] %vm951, %v1939
        %2020 = vst.msk [vmem:[#allocation2 + $0x1d8] sm:$0xff] %vm951, %v1940
        %2021 = vst.msk [vmem:[#allocation2 + $0x1e0] sm:$0xff] %vm951, %v1941
        %2022 = vst.msk [vmem:[#allocation2 + $0x1e8] sm:$0xff] %vm951, %v1942
        %2023 = vst.msk [vmem:[#allocation2 + $0x1f0] sm:$0xff] %vm951, %v1943
        %2024 = vst.msk [vmem:[#allocation2 + $0x1f8] sm:$0xff] %vm951, %v1944
        %2025 = vst.msk [vmem:[#allocation2 + $0x200] sm:$0xff] %vm951, %v1945
        %2026 = vst.msk [vmem:[#allocation2 + $0x208] sm:$0xff] %vm951, %v1946
        %2027 = vst.msk [vmem:[#allocation2 + $0x210] sm:$0xff] %vm951, %v1947
        %2028 = vst.msk [vmem:[#allocation2 + $0x218] sm:$0xff] %vm951, %v1948
        %2029 = vst.msk [vmem:[#allocation2 + $0x220] sm:$0xff] %vm951, %v1949
        %2030 = vst.msk [vmem:[#allocation2 + $0x228] sm:$0xff] %vm951, %v1950
        %2031 = vst.msk [vmem:[#allocation2 + $0x230] sm:$0xff] %vm951, %v1951
        %2032 = vst.msk [vmem:[#allocation2 + $0x238] sm:$0xff] %vm951, %v1952
        %2033 = vst.msk [vmem:[#allocation2 + $0x240] sm:$0xff] %vm951, %v1953
        %2034 = vst.msk [vmem:[#allocation2 + $0x248] sm:$0xff] %vm951, %v1954
        %2035 = vst.msk [vmem:[#allocation2 + $0x250] sm:$0xff] %vm951, %v1955
        %2036 = vst.msk [vmem:[#allocation2 + $0x258] sm:$0xff] %vm951, %v1956
        %2037 = vst.msk [vmem:[#allocation2 + $0x260] sm:$0xff] %vm951, %v1957
        %2038 = vst.msk [vmem:[#allocation2 + $0x268] sm:$0xff] %vm951, %v1958
        %2039 = vst.msk [vmem:[#allocation2 + $0x270] sm:$0xff] %vm951, %v1959
        %2040 = vst.msk [vmem:[#allocation2 + $0x278] sm:$0xff] %vm951, %v1960
        %s2041 = sadd.s32 %s178, 320
        %v2042 = vld [vmem:[#allocation2] sm:$0xff]
        %v2043 = vld [vmem:[#allocation2 + $0x8] sm:$0xff]
        %v2044 = vld [vmem:[#allocation2 + $0x10] sm:$0xff]
        %v2045 = vld [vmem:[#allocation2 + $0x18] sm:$0xff]
        %v2046 = vld [vmem:[#allocation2 + $0x20] sm:$0xff]
        %v2047 = vld [vmem:[#allocation2 + $0x28] sm:$0xff]
        %v2048 = vld [vmem:[#allocation2 + $0x30] sm:$0xff]
        %v2049 = vld [vmem:[#allocation2 + $0x38] sm:$0xff]
        %v2050 = vld [vmem:[#allocation2 + $0x40] sm:$0xff]
        %v2051 = vld [vmem:[#allocation2 + $0x48] sm:$0xff]
        %v2052 = vld [vmem:[#allocation2 + $0x50] sm:$0xff]
        %v2053 = vld [vmem:[#allocation2 + $0x58] sm:$0xff]
        %v2054 = vld [vmem:[#allocation2 + $0x60] sm:$0xff]
        %v2055 = vld [vmem:[#allocation2 + $0x68] sm:$0xff]
        %v2056 = vld [vmem:[#allocation2 + $0x70] sm:$0xff]
        %v2057 = vld [vmem:[#allocation2 + $0x78] sm:$0xff]
        %v2058 = vld [vmem:[#allocation2 + $0x80] sm:$0xff]
        %v2059 = vld [vmem:[#allocation2 + $0x88] sm:$0xff]
        %v2060 = vld [vmem:[#allocation2 + $0x90] sm:$0xff]
        %v2061 = vld [vmem:[#allocation2 + $0x98] sm:$0xff]
        %v2062 = vld [vmem:[#allocation2 + $0xa0] sm:$0xff]
        %v2063 = vld [vmem:[#allocation2 + $0xa8] sm:$0xff]
        %v2064 = vld [vmem:[#allocation2 + $0xb0] sm:$0xff]
        %v2065 = vld [vmem:[#allocation2 + $0xb8] sm:$0xff]
        %v2066 = vld [vmem:[#allocation2 + $0xc0] sm:$0xff]
        %v2067 = vld [vmem:[#allocation2 + $0xc8] sm:$0xff]
        %v2068 = vld [vmem:[#allocation2 + $0xd0] sm:$0xff]
        %v2069 = vld [vmem:[#allocation2 + $0xd8] sm:$0xff]
        %v2070 = vld [vmem:[#allocation2 + $0xe0] sm:$0xff]
        %v2071 = vld [vmem:[#allocation2 + $0xe8] sm:$0xff]
        %v2072 = vld [vmem:[#allocation2 + $0xf0] sm:$0xff]
        %v2073 = vld [vmem:[#allocation2 + $0xf8] sm:$0xff]
        %v2074 = vld [vmem:[#allocation2 + $0x100] sm:$0xff]
        %v2075 = vld [vmem:[#allocation2 + $0x108] sm:$0xff]
        %v2076 = vld [vmem:[#allocation2 + $0x110] sm:$0xff]
        %v2077 = vld [vmem:[#allocation2 + $0x118] sm:$0xff]
        %v2078 = vld [vmem:[#allocation2 + $0x120] sm:$0xff]
        %v2079 = vld [vmem:[#allocation2 + $0x128] sm:$0xff]
        %v2080 = vld [vmem:[#allocation2 + $0x130] sm:$0xff]
        %v2081 = vld [vmem:[#allocation2 + $0x138] sm:$0xff]
        %v2082 = vld [vmem:[#allocation2 + $0x140] sm:$0xff]
        %v2083 = vld [vmem:[#allocation2 + $0x148] sm:$0xff]
        %v2084 = vld [vmem:[#allocation2 + $0x150] sm:$0xff]
        %v2085 = vld [vmem:[#allocation2 + $0x158] sm:$0xff]
        %v2086 = vld [vmem:[#allocation2 + $0x160] sm:$0xff]
        %v2087 = vld [vmem:[#allocation2 + $0x168] sm:$0xff]
        %v2088 = vld [vmem:[#allocation2 + $0x170] sm:$0xff]
        %v2089 = vld [vmem:[#allocation2 + $0x178] sm:$0xff]
        %v2090 = vld [vmem:[#allocation2 + $0x180] sm:$0xff]
        %v2091 = vld [vmem:[#allocation2 + $0x188] sm:$0xff]
        %v2092 = vld [vmem:[#allocation2 + $0x190] sm:$0xff]
        %v2093 = vld [vmem:[#allocation2 + $0x198] sm:$0xff]
        %v2094 = vld [vmem:[#allocation2 + $0x1a0] sm:$0xff]
        %v2095 = vld [vmem:[#allocation2 + $0x1a8] sm:$0xff]
        %v2096 = vld [vmem:[#allocation2 + $0x1b0] sm:$0xff]
        %v2097 = vld [vmem:[#allocation2 + $0x1b8] sm:$0xff]
        %v2098 = vld [vmem:[#allocation2 + $0x1c0] sm:$0xff]
        %v2099 = vld [vmem:[#allocation2 + $0x1c8] sm:$0xff]
        %v2100 = vld [vmem:[#allocation2 + $0x1d0] sm:$0xff]
        %v2101 = vld [vmem:[#allocation2 + $0x1d8] sm:$0xff]
        %v2102 = vld [vmem:[#allocation2 + $0x1e0] sm:$0xff]
        %v2103 = vld [vmem:[#allocation2 + $0x1e8] sm:$0xff]
        %v2104 = vld [vmem:[#allocation2 + $0x1f0] sm:$0xff]
        %v2105 = vld [vmem:[#allocation2 + $0x1f8] sm:$0xff]
        %v2106 = vld [vmem:[#allocation2 + $0x200] sm:$0xff]
        %v2107 = vld [vmem:[#allocation2 + $0x208] sm:$0xff]
        %v2108 = vld [vmem:[#allocation2 + $0x210] sm:$0xff]
        %v2109 = vld [vmem:[#allocation2 + $0x218] sm:$0xff]
        %v2110 = vld [vmem:[#allocation2 + $0x220] sm:$0xff]
        %v2111 = vld [vmem:[#allocation2 + $0x228] sm:$0xff]
        %v2112 = vld [vmem:[#allocation2 + $0x230] sm:$0xff]
        %v2113 = vld [vmem:[#allocation2 + $0x238] sm:$0xff]
        %v2114 = vld [vmem:[#allocation2 + $0x240] sm:$0xff]
        %v2115 = vld [vmem:[#allocation2 + $0x248] sm:$0xff]
        %v2116 = vld [vmem:[#allocation2 + $0x250] sm:$0xff]
        %v2117 = vld [vmem:[#allocation2 + $0x258] sm:$0xff]
        %v2118 = vld [vmem:[#allocation2 + $0x260] sm:$0xff]
        %v2119 = vld [vmem:[#allocation2 + $0x268] sm:$0xff]
        %v2120 = vld [vmem:[#allocation2 + $0x270] sm:$0xff]
        %v2121 = vld [vmem:[#allocation2 + $0x278] sm:$0xff]
        %s2122 = sshra.s32 %s2041, 3
        %s2123 = sand.u32 %s2041, 7
        %s2124 = smul.addr %s2122, 4
        %s2125 = scalar_lea.vmem %s165, %s2124
        %v2126 = vld [vmem:[%s2125] sm:$0xf]
        %v2127 = vld [vmem:[%s2125 + $0x4] sm:$0xf]
        %v2128 = vld [vmem:[%s2125 + $0x8] sm:$0xf]
        %v2129 = vld [vmem:[%s2125 + $0xc] sm:$0xf]
        %v2130 = vld [vmem:[%s2125 + $0x10] sm:$0xf]
        %v2131 = vld [vmem:[%s2125 + $0x14] sm:$0xf]
        %v2132 = vld [vmem:[%s2125 + $0x18] sm:$0xf]
        %v2133 = vld [vmem:[%s2125 + $0x1c] sm:$0xf]
        %v2134 = vld [vmem:[%s2125 + $0x20] sm:$0xf]
        %v2135 = vld [vmem:[%s2125 + $0x24] sm:$0xf]
        %v2136 = vld [vmem:[%s2125 + $0x28] sm:$0xf]
        %v2137 = vld [vmem:[%s2125 + $0x2c] sm:$0xf]
        %v2138 = vld [vmem:[%s2125 + $0x30] sm:$0xf]
        %v2139 = vld [vmem:[%s2125 + $0x34] sm:$0xf]
        %v2140 = vld [vmem:[%s2125 + $0x38] sm:$0xf]
        %v2141 = vld [vmem:[%s2125 + $0x3c] sm:$0xf]
        %v2142 = vld [vmem:[%s2125 + $0x40] sm:$0xf]
        %v2143 = vld [vmem:[%s2125 + $0x44] sm:$0xf]
        %v2144 = vld [vmem:[%s2125 + $0x48] sm:$0xf]
        %v2145 = vld [vmem:[%s2125 + $0x4c] sm:$0xf]
        %v2146 = vld [vmem:[%s2125 + $0x50] sm:$0xf]
        %v2147 = vld [vmem:[%s2125 + $0x54] sm:$0xf]
        %v2148 = vld [vmem:[%s2125 + $0x58] sm:$0xf]
        %v2149 = vld [vmem:[%s2125 + $0x5c] sm:$0xf]
        %v2150 = vld [vmem:[%s2125 + $0x60] sm:$0xf]
        %v2151 = vld [vmem:[%s2125 + $0x64] sm:$0xf]
        %v2152 = vld [vmem:[%s2125 + $0x68] sm:$0xf]
        %v2153 = vld [vmem:[%s2125 + $0x6c] sm:$0xf]
        %v2154 = vld [vmem:[%s2125 + $0x70] sm:$0xf]
        %v2155 = vld [vmem:[%s2125 + $0x74] sm:$0xf]
        %v2156 = vld [vmem:[%s2125 + $0x78] sm:$0xf]
        %v2157 = vld [vmem:[%s2125 + $0x7c] sm:$0xf]
        %v2158 = vld [vmem:[%s2125 + $0x80] sm:$0xf]
        %v2159 = vld [vmem:[%s2125 + $0x84] sm:$0xf]
        %v2160 = vld [vmem:[%s2125 + $0x88] sm:$0xf]
        %v2161 = vld [vmem:[%s2125 + $0x8c] sm:$0xf]
        %v2162 = vld [vmem:[%s2125 + $0x90] sm:$0xf]
        %v2163 = vld [vmem:[%s2125 + $0x94] sm:$0xf]
        %v2164 = vld [vmem:[%s2125 + $0x98] sm:$0xf]
        %v2165 = vld [vmem:[%s2125 + $0x9c] sm:$0xf]
        %v2166 = vld [vmem:[%s2125 + $0xa0] sm:$0xf]
        %v2167 = vld [vmem:[%s2125 + $0xa4] sm:$0xf]
        %v2168 = vld [vmem:[%s2125 + $0xa8] sm:$0xf]
        %v2169 = vld [vmem:[%s2125 + $0xac] sm:$0xf]
        %v2170 = vld [vmem:[%s2125 + $0xb0] sm:$0xf]
        %v2171 = vld [vmem:[%s2125 + $0xb4] sm:$0xf]
        %v2172 = vld [vmem:[%s2125 + $0xb8] sm:$0xf]
        %v2173 = vld [vmem:[%s2125 + $0xbc] sm:$0xf]
        %v2174 = vld [vmem:[%s2125 + $0xc0] sm:$0xf]
        %v2175 = vld [vmem:[%s2125 + $0xc4] sm:$0xf]
        %v2176 = vld [vmem:[%s2125 + $0xc8] sm:$0xf]
        %v2177 = vld [vmem:[%s2125 + $0xcc] sm:$0xf]
        %v2178 = vld [vmem:[%s2125 + $0xd0] sm:$0xf]
        %v2179 = vld [vmem:[%s2125 + $0xd4] sm:$0xf]
        %v2180 = vld [vmem:[%s2125 + $0xd8] sm:$0xf]
        %v2181 = vld [vmem:[%s2125 + $0xdc] sm:$0xf]
        %v2182 = vld [vmem:[%s2125 + $0xe0] sm:$0xf]
        %v2183 = vld [vmem:[%s2125 + $0xe4] sm:$0xf]
        %v2184 = vld [vmem:[%s2125 + $0xe8] sm:$0xf]
        %v2185 = vld [vmem:[%s2125 + $0xec] sm:$0xf]
        %v2186 = vld [vmem:[%s2125 + $0xf0] sm:$0xf]
        %v2187 = vld [vmem:[%s2125 + $0xf4] sm:$0xf]
        %v2188 = vld [vmem:[%s2125 + $0xf8] sm:$0xf]
        %v2189 = vld [vmem:[%s2125 + $0xfc] sm:$0xf]
        %v2190 = vld [vmem:[%s2125 + $0x100] sm:$0xf]
        %v2191 = vld [vmem:[%s2125 + $0x104] sm:$0xf]
        %v2192 = vld [vmem:[%s2125 + $0x108] sm:$0xf]
        %v2193 = vld [vmem:[%s2125 + $0x10c] sm:$0xf]
        %v2194 = vld [vmem:[%s2125 + $0x110] sm:$0xf]
        %v2195 = vld [vmem:[%s2125 + $0x114] sm:$0xf]
        %v2196 = vld [vmem:[%s2125 + $0x118] sm:$0xf]
        %v2197 = vld [vmem:[%s2125 + $0x11c] sm:$0xf]
        %v2198 = vld [vmem:[%s2125 + $0x120] sm:$0xf]
        %v2199 = vld [vmem:[%s2125 + $0x124] sm:$0xf]
        %v2200 = vld [vmem:[%s2125 + $0x128] sm:$0xf]
        %v2201 = vld [vmem:[%s2125 + $0x12c] sm:$0xf]
        %v2202 = vld [vmem:[%s2125 + $0x130] sm:$0xf]
        %v2203 = vld [vmem:[%s2125 + $0x134] sm:$0xf]
        %v2204 = vld [vmem:[%s2125 + $0x138] sm:$0xf]
        %v2205 = vld [vmem:[%s2125 + $0x13c] sm:$0xf]
        %s2206 = scalar_lea.vmem %s1, 16
        %v2207 = vld [vmem:[%s2206] sm:$0xf]
        %v2208 = vld [vmem:[%s2206 + $0x4] sm:$0xf]
        %v2289 = vunpack.c.l.b16 %v2126
        %v2290 = vunpack.c.l.b16 %v2127
        %v2291 = vunpack.c.l.b16 %v2128
        %v2292 = vunpack.c.l.b16 %v2129
        %v2293 = vunpack.c.l.b16 %v2130
        %v2294 = vunpack.c.l.b16 %v2131
        %v2295 = vunpack.c.l.b16 %v2132
        %v2296 = vunpack.c.l.b16 %v2133
        %v2297 = vunpack.c.l.b16 %v2134
        %v2298 = vunpack.c.l.b16 %v2135
        %v2299 = vunpack.c.l.b16 %v2136
        %v2300 = vunpack.c.l.b16 %v2137
        %v2301 = vunpack.c.l.b16 %v2138
        %v2302 = vunpack.c.l.b16 %v2139
        %v2303 = vunpack.c.l.b16 %v2140
        %v2304 = vunpack.c.l.b16 %v2141
        %v2305 = vunpack.c.l.b16 %v2142
        %v2306 = vunpack.c.l.b16 %v2143
        %v2307 = vunpack.c.l.b16 %v2144
        %v2308 = vunpack.c.l.b16 %v2145
        %v2309 = vunpack.c.l.b16 %v2146
        %v2310 = vunpack.c.l.b16 %v2147
        %v2311 = vunpack.c.l.b16 %v2148
        %v2312 = vunpack.c.l.b16 %v2149
        %v2313 = vunpack.c.l.b16 %v2150
        %v2314 = vunpack.c.l.b16 %v2151
        %v2315 = vunpack.c.l.b16 %v2152
        %v2316 = vunpack.c.l.b16 %v2153
        %v2317 = vunpack.c.l.b16 %v2154
        %v2318 = vunpack.c.l.b16 %v2155
        %v2319 = vunpack.c.l.b16 %v2156
        %v2320 = vunpack.c.l.b16 %v2157
        %v2321 = vunpack.c.l.b16 %v2158
        %v2322 = vunpack.c.l.b16 %v2159
        %v2323 = vunpack.c.l.b16 %v2160
        %v2324 = vunpack.c.l.b16 %v2161
        %v2325 = vunpack.c.l.b16 %v2162
        %v2326 = vunpack.c.l.b16 %v2163
        %v2327 = vunpack.c.l.b16 %v2164
        %v2328 = vunpack.c.l.b16 %v2165
        %v2329 = vunpack.c.l.b16 %v2166
        %v2330 = vunpack.c.l.b16 %v2167
        %v2331 = vunpack.c.l.b16 %v2168
        %v2332 = vunpack.c.l.b16 %v2169
        %v2333 = vunpack.c.l.b16 %v2170
        %v2334 = vunpack.c.l.b16 %v2171
        %v2335 = vunpack.c.l.b16 %v2172
        %v2336 = vunpack.c.l.b16 %v2173
        %v2337 = vunpack.c.l.b16 %v2174
        %v2338 = vunpack.c.l.b16 %v2175
        %v2339 = vunpack.c.l.b16 %v2176
        %v2340 = vunpack.c.l.b16 %v2177
        %v2341 = vunpack.c.l.b16 %v2178
        %v2342 = vunpack.c.l.b16 %v2179
        %v2343 = vunpack.c.l.b16 %v2180
        %v2344 = vunpack.c.l.b16 %v2181
        %v2345 = vunpack.c.l.b16 %v2182
        %v2346 = vunpack.c.l.b16 %v2183
        %v2347 = vunpack.c.l.b16 %v2184
        %v2348 = vunpack.c.l.b16 %v2185
        %v2349 = vunpack.c.l.b16 %v2186
        %v2350 = vunpack.c.l.b16 %v2187
        %v2351 = vunpack.c.l.b16 %v2188
        %v2352 = vunpack.c.l.b16 %v2189
        %v2353 = vunpack.c.l.b16 %v2190
        %v2354 = vunpack.c.l.b16 %v2191
        %v2355 = vunpack.c.l.b16 %v2192
        %v2356 = vunpack.c.l.b16 %v2193
        %v2357 = vunpack.c.l.b16 %v2194
        %v2358 = vunpack.c.l.b16 %v2195
        %v2359 = vunpack.c.l.b16 %v2196
        %v2360 = vunpack.c.l.b16 %v2197
        %v2361 = vunpack.c.l.b16 %v2198
        %v2362 = vunpack.c.l.b16 %v2199
        %v2363 = vunpack.c.l.b16 %v2200
        %v2364 = vunpack.c.l.b16 %v2201
        %v2365 = vunpack.c.l.b16 %v2202
        %v2366 = vunpack.c.l.b16 %v2203
        %v2367 = vunpack.c.l.b16 %v2204
        %v2368 = vunpack.c.l.b16 %v2205
        %v2369 = vpack.c.b16 %v2290, %v2289
        %v2370 = vpack.c.b16 %v2292, %v2291
        %v2371 = vpack.c.b16 %v2294, %v2293
        %v2372 = vpack.c.b16 %v2296, %v2295
        %v2373 = vpack.c.b16 %v2298, %v2297
        %v2374 = vpack.c.b16 %v2300, %v2299
        %v2375 = vpack.c.b16 %v2302, %v2301
        %v2376 = vpack.c.b16 %v2304, %v2303
        %v2377 = vpack.c.b16 %v2306, %v2305
        %v2378 = vpack.c.b16 %v2308, %v2307
        %v2379 = vpack.c.b16 %v2310, %v2309
        %v2380 = vpack.c.b16 %v2312, %v2311
        %v2381 = vpack.c.b16 %v2314, %v2313
        %v2382 = vpack.c.b16 %v2316, %v2315
        %v2383 = vpack.c.b16 %v2318, %v2317
        %v2384 = vpack.c.b16 %v2320, %v2319
        %v2385 = vpack.c.b16 %v2322, %v2321
        %v2386 = vpack.c.b16 %v2324, %v2323
        %v2387 = vpack.c.b16 %v2326, %v2325
        %v2388 = vpack.c.b16 %v2328, %v2327
        %v2389 = vpack.c.b16 %v2330, %v2329
        %v2390 = vpack.c.b16 %v2332, %v2331
        %v2391 = vpack.c.b16 %v2334, %v2333
        %v2392 = vpack.c.b16 %v2336, %v2335
        %v2393 = vpack.c.b16 %v2338, %v2337
        %v2394 = vpack.c.b16 %v2340, %v2339
        %v2395 = vpack.c.b16 %v2342, %v2341
        %v2396 = vpack.c.b16 %v2344, %v2343
        %v2397 = vpack.c.b16 %v2346, %v2345
        %v2398 = vpack.c.b16 %v2348, %v2347
        %v2399 = vpack.c.b16 %v2350, %v2349
        %v2400 = vpack.c.b16 %v2352, %v2351
        %v2401 = vpack.c.b16 %v2354, %v2353
        %v2402 = vpack.c.b16 %v2356, %v2355
        %v2403 = vpack.c.b16 %v2358, %v2357
        %v2404 = vpack.c.b16 %v2360, %v2359
        %v2405 = vpack.c.b16 %v2362, %v2361
        %v2406 = vpack.c.b16 %v2364, %v2363
        %v2407 = vpack.c.b16 %v2366, %v2365
        %v2408 = vpack.c.b16 %v2368, %v2367
        %v2411 = vunpack.c.l.b16 %v2207
        %v2412 = vunpack.c.l.b16 %v2208
        %v2413 = vpack.c.b16 %v2412, %v2411
        %v2415 = vsel %vm470, %v2369, 0
        %v2418 = vsel %vm470, %v2370, 0
        %v2421 = vsel %vm470, %v2371, 0
        %v2424 = vsel %vm470, %v2372, 0
        %v2427 = vsel %vm470, %v2373, 0
        %v2430 = vsel %vm470, %v2374, 0
        %v2433 = vsel %vm470, %v2375, 0
        %v2436 = vsel %vm470, %v2376, 0
        %v2439 = vsel %vm470, %v2377, 0
        %v2442 = vsel %vm470, %v2378, 0
        %v2445 = vsel %vm470, %v2379, 0
        %v2448 = vsel %vm470, %v2380, 0
        %v2451 = vsel %vm470, %v2381, 0
        %v2454 = vsel %vm470, %v2382, 0
        %v2457 = vsel %vm470, %v2383, 0
        %v2460 = vsel %vm470, %v2384, 0
        %v2463 = vsel %vm470, %v2385, 0
        %v2466 = vsel %vm470, %v2386, 0
        %v2469 = vsel %vm470, %v2387, 0
        %v2472 = vsel %vm470, %v2388, 0
        %v2475 = vsel %vm470, %v2389, 0
        %v2478 = vsel %vm470, %v2390, 0
        %v2481 = vsel %vm470, %v2391, 0
        %v2484 = vsel %vm470, %v2392, 0
        %v2487 = vsel %vm470, %v2393, 0
        %v2490 = vsel %vm470, %v2394, 0
        %v2493 = vsel %vm470, %v2395, 0
        %v2496 = vsel %vm470, %v2396, 0
        %v2499 = vsel %vm470, %v2397, 0
        %v2502 = vsel %vm470, %v2398, 0
        %v2505 = vsel %vm470, %v2399, 0
        %v2508 = vsel %vm470, %v2400, 0
        %v2511 = vsel %vm470, %v2401, 0
        %v2514 = vsel %vm470, %v2402, 0
        %v2517 = vsel %vm470, %v2403, 0
        %v2520 = vsel %vm470, %v2404, 0
        %v2523 = vsel %vm470, %v2405, 0
        %v2526 = vsel %vm470, %v2406, 0
        %v2529 = vsel %vm470, %v2407, 0
        %v2532 = vsel %vm470, %v2408, 0
        %v2535 = vand.u32 %v2413, %v594
        %2537 = vmatprep.subr.bf16.mxu0 0
        %2538 = vmatpush1.bf16.msra.mxu0 0
        %2539 = vmatprep.subr.bf16.mxu0 0
        %2540 = vmatpush1.bf16.msra.mxu0 0
        %2541 = vmatprep.subr.bf16.mxu0 0
        %2542 = vmatpush1.bf16.msra.mxu0 0
        %2543 = vmatprep.subr.bf16.mxu0 0
        %2544 = vmatpush1.bf16.msra.mxu0 0
        %2545 = vmatprep.subr.bf16.mxu0 0
        %2546 = vmatpush1.bf16.msra.mxu0 0
        %2547 = vmatprep.subr.bf16.mxu0 0
        %2548 = vmatpush1.bf16.msra.mxu0 0
        %2549 = vmatprep.subr.bf16.mxu0 0
        %2550 = vmatpush1.bf16.msra.mxu0 0
        %2551 = vmatprep.subr.bf16.mxu0 0
        %2552 = vmatpush1.bf16.msra.mxu0 %v2535
        %2553 = vmatprep.subr.bf16.mxu0 0
        %2554 = vmatpush2.bf16.msra.mxu0 0
        %2555 = vmatprep.subr.bf16.mxu0 0
        %2556 = vmatpush2.bf16.msra.mxu0 0
        %2557 = vmatprep.subr.bf16.mxu0 0
        %2558 = vmatpush2.bf16.msra.mxu0 0
        %2559 = vmatprep.subr.bf16.mxu0 0
        %2560 = vmatpush2.bf16.msra.mxu0 0
        %2561 = vmatprep.subr.bf16.mxu0 0
        %2562 = vmatpush2.bf16.msra.mxu0 0
        %2563 = vmatprep.subr.bf16.mxu0 0
        %2564 = vmatpush2.bf16.msra.mxu0 0
        %2565 = vmatprep.subr.bf16.mxu0 0
        %2566 = vmatpush2.bf16.msra.mxu0 0
        %2567 = vmatprep.subr.bf16.mxu0 0
        %2568 = vmatpush2.bf16.msra.mxu0 0
        %2569 = vmatprep.mubr.bf16.mxu0 0
        %2570 = vmatmul.mubr.bf16.gmra.mxu0 %v2415
        %v2571 = vpop.f32.mrf.mxu0
        %v2572 = vadd.f32 0.0, %v2571
        %v2573 = vpop.f32.mrf.mxu0
        %v2574 = vpop.f32.mrf.mxu0
        %v2575 = vadd.f32 0.0, %v2574
        %v2576 = vpop.f32.mrf.mxu0
        %2577 = vmatprep.mubr.bf16.mxu0 0
        %2578 = vmatmul.mubr.bf16.gmra.mxu0 %v2418
        %v2579 = vpop.f32.mrf.mxu0
        %v2580 = vadd.f32 0.0, %v2579
        %v2581 = vpop.f32.mrf.mxu0
        %v2582 = vpop.f32.mrf.mxu0
        %v2583 = vadd.f32 0.0, %v2582
        %v2584 = vpop.f32.mrf.mxu0
        %2585 = vmatprep.mubr.bf16.mxu0 0
        %2586 = vmatmul.mubr.bf16.gmra.mxu0 %v2421
        %v2587 = vpop.f32.mrf.mxu0
        %v2588 = vadd.f32 0.0, %v2587
        %v2589 = vpop.f32.mrf.mxu0
        %v2590 = vpop.f32.mrf.mxu0
        %v2591 = vadd.f32 0.0, %v2590
        %v2592 = vpop.f32.mrf.mxu0
        %2593 = vmatprep.mubr.bf16.mxu0 0
        %2594 = vmatmul.mubr.bf16.gmra.mxu0 %v2424
        %v2595 = vpop.f32.mrf.mxu0
        %v2596 = vadd.f32 0.0, %v2595
        %v2597 = vpop.f32.mrf.mxu0
        %v2598 = vpop.f32.mrf.mxu0
        %v2599 = vadd.f32 0.0, %v2598
        %v2600 = vpop.f32.mrf.mxu0
        %2601 = vmatprep.mubr.bf16.mxu0 0
        %2602 = vmatmul.mubr.bf16.gmra.mxu0 %v2427
        %v2603 = vpop.f32.mrf.mxu0
        %v2604 = vadd.f32 0.0, %v2603
        %v2605 = vpop.f32.mrf.mxu0
        %v2606 = vpop.f32.mrf.mxu0
        %v2607 = vadd.f32 0.0, %v2606
        %v2608 = vpop.f32.mrf.mxu0
        %2609 = vmatprep.mubr.bf16.mxu0 0
        %2610 = vmatmul.mubr.bf16.gmra.mxu0 %v2430
        %v2611 = vpop.f32.mrf.mxu0
        %v2612 = vadd.f32 0.0, %v2611
        %v2613 = vpop.f32.mrf.mxu0
        %v2614 = vpop.f32.mrf.mxu0
        %v2615 = vadd.f32 0.0, %v2614
        %v2616 = vpop.f32.mrf.mxu0
        %2617 = vmatprep.mubr.bf16.mxu0 0
        %2618 = vmatmul.mubr.bf16.gmra.mxu0 %v2433
        %v2619 = vpop.f32.mrf.mxu0
        %v2620 = vadd.f32 0.0, %v2619
        %v2621 = vpop.f32.mrf.mxu0
        %v2622 = vpop.f32.mrf.mxu0
        %v2623 = vadd.f32 0.0, %v2622
        %v2624 = vpop.f32.mrf.mxu0
        %2625 = vmatprep.mubr.bf16.mxu0 0
        %2626 = vmatmul.mubr.bf16.gmra.mxu0 %v2436
        %v2627 = vpop.f32.mrf.mxu0
        %v2628 = vadd.f32 0.0, %v2627
        %v2629 = vpop.f32.mrf.mxu0
        %v2630 = vpop.f32.mrf.mxu0
        %v2631 = vadd.f32 0.0, %v2630
        %v2632 = vpop.f32.mrf.mxu0
        %2633 = vmatprep.mubr.bf16.mxu0 0
        %2634 = vmatmul.mubr.bf16.gmra.mxu0 %v2439
        %v2635 = vpop.f32.mrf.mxu0
        %v2636 = vadd.f32 0.0, %v2635
        %v2637 = vpop.f32.mrf.mxu0
        %v2638 = vpop.f32.mrf.mxu0
        %v2639 = vadd.f32 0.0, %v2638
        %v2640 = vpop.f32.mrf.mxu0
        %2641 = vmatprep.mubr.bf16.mxu0 0
        %2642 = vmatmul.mubr.bf16.gmra.mxu0 %v2442
        %v2643 = vpop.f32.mrf.mxu0
        %v2644 = vadd.f32 0.0, %v2643
        %v2645 = vpop.f32.mrf.mxu0
        %v2646 = vpop.f32.mrf.mxu0
        %v2647 = vadd.f32 0.0, %v2646
        %v2648 = vpop.f32.mrf.mxu0
        %2649 = vmatprep.mubr.bf16.mxu0 0
        %2650 = vmatmul.mubr.bf16.gmra.mxu0 %v2445
        %v2651 = vpop.f32.mrf.mxu0
        %v2652 = vadd.f32 0.0, %v2651
        %v2653 = vpop.f32.mrf.mxu0
        %v2654 = vpop.f32.mrf.mxu0
        %v2655 = vadd.f32 0.0, %v2654
        %v2656 = vpop.f32.mrf.mxu0
        %2657 = vmatprep.mubr.bf16.mxu0 0
        %2658 = vmatmul.mubr.bf16.gmra.mxu0 %v2448
        %v2659 = vpop.f32.mrf.mxu0
        %v2660 = vadd.f32 0.0, %v2659
        %v2661 = vpop.f32.mrf.mxu0
        %v2662 = vpop.f32.mrf.mxu0
        %v2663 = vadd.f32 0.0, %v2662
        %v2664 = vpop.f32.mrf.mxu0
        %2665 = vmatprep.mubr.bf16.mxu0 0
        %2666 = vmatmul.mubr.bf16.gmra.mxu0 %v2451
        %v2667 = vpop.f32.mrf.mxu0
        %v2668 = vadd.f32 0.0, %v2667
        %v2669 = vpop.f32.mrf.mxu0
        %v2670 = vpop.f32.mrf.mxu0
        %v2671 = vadd.f32 0.0, %v2670
        %v2672 = vpop.f32.mrf.mxu0
        %2673 = vmatprep.mubr.bf16.mxu0 0
        %2674 = vmatmul.mubr.bf16.gmra.mxu0 %v2454
        %v2675 = vpop.f32.mrf.mxu0
        %v2676 = vadd.f32 0.0, %v2675
        %v2677 = vpop.f32.mrf.mxu0
        %v2678 = vpop.f32.mrf.mxu0
        %v2679 = vadd.f32 0.0, %v2678
        %v2680 = vpop.f32.mrf.mxu0
        %2681 = vmatprep.mubr.bf16.mxu0 0
        %2682 = vmatmul.mubr.bf16.gmra.mxu0 %v2457
        %v2683 = vpop.f32.mrf.mxu0
        %v2684 = vadd.f32 0.0, %v2683
        %v2685 = vpop.f32.mrf.mxu0
        %v2686 = vpop.f32.mrf.mxu0
        %v2687 = vadd.f32 0.0, %v2686
        %v2688 = vpop.f32.mrf.mxu0
        %2689 = vmatprep.mubr.bf16.mxu0 0
        %2690 = vmatmul.mubr.bf16.gmra.mxu0 %v2460
        %v2691 = vpop.f32.mrf.mxu0
        %v2692 = vadd.f32 0.0, %v2691
        %v2693 = vpop.f32.mrf.mxu0
        %v2694 = vpop.f32.mrf.mxu0
        %v2695 = vadd.f32 0.0, %v2694
        %v2696 = vpop.f32.mrf.mxu0
        %2697 = vmatprep.mubr.bf16.mxu0 0
        %2698 = vmatmul.mubr.bf16.gmra.mxu0 %v2463
        %v2699 = vpop.f32.mrf.mxu0
        %v2700 = vadd.f32 0.0, %v2699
        %v2701 = vpop.f32.mrf.mxu0
        %v2702 = vpop.f32.mrf.mxu0
        %v2703 = vadd.f32 0.0, %v2702
        %v2704 = vpop.f32.mrf.mxu0
        %2705 = vmatprep.mubr.bf16.mxu0 0
        %2706 = vmatmul.mubr.bf16.gmra.mxu0 %v2466
        %v2707 = vpop.f32.mrf.mxu0
        %v2708 = vadd.f32 0.0, %v2707
        %v2709 = vpop.f32.mrf.mxu0
        %v2710 = vpop.f32.mrf.mxu0
        %v2711 = vadd.f32 0.0, %v2710
        %v2712 = vpop.f32.mrf.mxu0
        %2713 = vmatprep.mubr.bf16.mxu0 0
        %2714 = vmatmul.mubr.bf16.gmra.mxu0 %v2469
        %v2715 = vpop.f32.mrf.mxu0
        %v2716 = vadd.f32 0.0, %v2715
        %v2717 = vpop.f32.mrf.mxu0
        %v2718 = vpop.f32.mrf.mxu0
        %v2719 = vadd.f32 0.0, %v2718
        %v2720 = vpop.f32.mrf.mxu0
        %2721 = vmatprep.mubr.bf16.mxu0 0
        %2722 = vmatmul.mubr.bf16.gmra.mxu0 %v2472
        %v2723 = vpop.f32.mrf.mxu0
        %v2724 = vadd.f32 0.0, %v2723
        %v2725 = vpop.f32.mrf.mxu0
        %v2726 = vpop.f32.mrf.mxu0
        %v2727 = vadd.f32 0.0, %v2726
        %v2728 = vpop.f32.mrf.mxu0
        %2729 = vmatprep.mubr.bf16.mxu0 0
        %2730 = vmatmul.mubr.bf16.gmra.mxu0 %v2475
        %v2731 = vpop.f32.mrf.mxu0
        %v2732 = vadd.f32 0.0, %v2731
        %v2733 = vpop.f32.mrf.mxu0
        %v2734 = vpop.f32.mrf.mxu0
        %v2735 = vadd.f32 0.0, %v2734
        %v2736 = vpop.f32.mrf.mxu0
        %2737 = vmatprep.mubr.bf16.mxu0 0
        %2738 = vmatmul.mubr.bf16.gmra.mxu0 %v2478
        %v2739 = vpop.f32.mrf.mxu0
        %v2740 = vadd.f32 0.0, %v2739
        %v2741 = vpop.f32.mrf.mxu0
        %v2742 = vpop.f32.mrf.mxu0
        %v2743 = vadd.f32 0.0, %v2742
        %v2744 = vpop.f32.mrf.mxu0
        %2745 = vmatprep.mubr.bf16.mxu0 0
        %2746 = vmatmul.mubr.bf16.gmra.mxu0 %v2481
        %v2747 = vpop.f32.mrf.mxu0
        %v2748 = vadd.f32 0.0, %v2747
        %v2749 = vpop.f32.mrf.mxu0
        %v2750 = vpop.f32.mrf.mxu0
        %v2751 = vadd.f32 0.0, %v2750
        %v2752 = vpop.f32.mrf.mxu0
        %2753 = vmatprep.mubr.bf16.mxu0 0
        %2754 = vmatmul.mubr.bf16.gmra.mxu0 %v2484
        %v2755 = vpop.f32.mrf.mxu0
        %v2756 = vadd.f32 0.0, %v2755
        %v2757 = vpop.f32.mrf.mxu0
        %v2758 = vpop.f32.mrf.mxu0
        %v2759 = vadd.f32 0.0, %v2758
        %v2760 = vpop.f32.mrf.mxu0
        %2761 = vmatprep.mubr.bf16.mxu0 0
        %2762 = vmatmul.mubr.bf16.gmra.mxu0 %v2487
        %v2763 = vpop.f32.mrf.mxu0
        %v2764 = vadd.f32 0.0, %v2763
        %v2765 = vpop.f32.mrf.mxu0
        %v2766 = vpop.f32.mrf.mxu0
        %v2767 = vadd.f32 0.0, %v2766
        %v2768 = vpop.f32.mrf.mxu0
        %2769 = vmatprep.mubr.bf16.mxu0 0
        %2770 = vmatmul.mubr.bf16.gmra.mxu0 %v2490
        %v2771 = vpop.f32.mrf.mxu0
        %v2772 = vadd.f32 0.0, %v2771
        %v2773 = vpop.f32.mrf.mxu0
        %v2774 = vpop.f32.mrf.mxu0
        %v2775 = vadd.f32 0.0, %v2774
        %v2776 = vpop.f32.mrf.mxu0
        %2777 = vmatprep.mubr.bf16.mxu0 0
        %2778 = vmatmul.mubr.bf16.gmra.mxu0 %v2493
        %v2779 = vpop.f32.mrf.mxu0
        %v2780 = vadd.f32 0.0, %v2779
        %v2781 = vpop.f32.mrf.mxu0
        %v2782 = vpop.f32.mrf.mxu0
        %v2783 = vadd.f32 0.0, %v2782
        %v2784 = vpop.f32.mrf.mxu0
        %2785 = vmatprep.mubr.bf16.mxu0 0
        %2786 = vmatmul.mubr.bf16.gmra.mxu0 %v2496
        %v2787 = vpop.f32.mrf.mxu0
        %v2788 = vadd.f32 0.0, %v2787
        %v2789 = vpop.f32.mrf.mxu0
        %v2790 = vpop.f32.mrf.mxu0
        %v2791 = vadd.f32 0.0, %v2790
        %v2792 = vpop.f32.mrf.mxu0
        %2793 = vmatprep.mubr.bf16.mxu0 0
        %2794 = vmatmul.mubr.bf16.gmra.mxu0 %v2499
        %v2795 = vpop.f32.mrf.mxu0
        %v2796 = vadd.f32 0.0, %v2795
        %v2797 = vpop.f32.mrf.mxu0
        %v2798 = vpop.f32.mrf.mxu0
        %v2799 = vadd.f32 0.0, %v2798
        %v2800 = vpop.f32.mrf.mxu0
        %2801 = vmatprep.mubr.bf16.mxu0 0
        %2802 = vmatmul.mubr.bf16.gmra.mxu0 %v2502
        %v2803 = vpop.f32.mrf.mxu0
        %v2804 = vadd.f32 0.0, %v2803
        %v2805 = vpop.f32.mrf.mxu0
        %v2806 = vpop.f32.mrf.mxu0
        %v2807 = vadd.f32 0.0, %v2806
        %v2808 = vpop.f32.mrf.mxu0
        %2809 = vmatprep.mubr.bf16.mxu0 0
        %2810 = vmatmul.mubr.bf16.gmra.mxu0 %v2505
        %v2811 = vpop.f32.mrf.mxu0
        %v2812 = vadd.f32 0.0, %v2811
        %v2813 = vpop.f32.mrf.mxu0
        %v2814 = vpop.f32.mrf.mxu0
        %v2815 = vadd.f32 0.0, %v2814
        %v2816 = vpop.f32.mrf.mxu0
        %2817 = vmatprep.mubr.bf16.mxu0 0
        %2818 = vmatmul.mubr.bf16.gmra.mxu0 %v2508
        %v2819 = vpop.f32.mrf.mxu0
        %v2820 = vadd.f32 0.0, %v2819
        %v2821 = vpop.f32.mrf.mxu0
        %v2822 = vpop.f32.mrf.mxu0
        %v2823 = vadd.f32 0.0, %v2822
        %v2824 = vpop.f32.mrf.mxu0
        %2825 = vmatprep.mubr.bf16.mxu0 0
        %2826 = vmatmul.mubr.bf16.gmra.mxu0 %v2511
        %v2827 = vpop.f32.mrf.mxu0
        %v2828 = vadd.f32 0.0, %v2827
        %v2829 = vpop.f32.mrf.mxu0
        %v2830 = vpop.f32.mrf.mxu0
        %v2831 = vadd.f32 0.0, %v2830
        %v2832 = vpop.f32.mrf.mxu0
        %2833 = vmatprep.mubr.bf16.mxu0 0
        %2834 = vmatmul.mubr.bf16.gmra.mxu0 %v2514
        %v2835 = vpop.f32.mrf.mxu0
        %v2836 = vadd.f32 0.0, %v2835
        %v2837 = vpop.f32.mrf.mxu0
        %v2838 = vpop.f32.mrf.mxu0
        %v2839 = vadd.f32 0.0, %v2838
        %v2840 = vpop.f32.mrf.mxu0
        %2841 = vmatprep.mubr.bf16.mxu0 0
        %2842 = vmatmul.mubr.bf16.gmra.mxu0 %v2517
        %v2843 = vpop.f32.mrf.mxu0
        %v2844 = vadd.f32 0.0, %v2843
        %v2845 = vpop.f32.mrf.mxu0
        %v2846 = vpop.f32.mrf.mxu0
        %v2847 = vadd.f32 0.0, %v2846
        %v2848 = vpop.f32.mrf.mxu0
        %2849 = vmatprep.mubr.bf16.mxu0 0
        %2850 = vmatmul.mubr.bf16.gmra.mxu0 %v2520
        %v2851 = vpop.f32.mrf.mxu0
        %v2852 = vadd.f32 0.0, %v2851
        %v2853 = vpop.f32.mrf.mxu0
        %v2854 = vpop.f32.mrf.mxu0
        %v2855 = vadd.f32 0.0, %v2854
        %v2856 = vpop.f32.mrf.mxu0
        %2857 = vmatprep.mubr.bf16.mxu0 0
        %2858 = vmatmul.mubr.bf16.gmra.mxu0 %v2523
        %v2859 = vpop.f32.mrf.mxu0
        %v2860 = vadd.f32 0.0, %v2859
        %v2861 = vpop.f32.mrf.mxu0
        %v2862 = vpop.f32.mrf.mxu0
        %v2863 = vadd.f32 0.0, %v2862
        %v2864 = vpop.f32.mrf.mxu0
        %2865 = vmatprep.mubr.bf16.mxu0 0
        %2866 = vmatmul.mubr.bf16.gmra.mxu0 %v2526
        %v2867 = vpop.f32.mrf.mxu0
        %v2868 = vadd.f32 0.0, %v2867
        %v2869 = vpop.f32.mrf.mxu0
        %v2870 = vpop.f32.mrf.mxu0
        %v2871 = vadd.f32 0.0, %v2870
        %v2872 = vpop.f32.mrf.mxu0
        %2873 = vmatprep.mubr.bf16.mxu0 0
        %2874 = vmatmul.mubr.bf16.gmra.mxu0 %v2529
        %v2875 = vpop.f32.mrf.mxu0
        %v2876 = vadd.f32 0.0, %v2875
        %v2877 = vpop.f32.mrf.mxu0
        %v2878 = vpop.f32.mrf.mxu0
        %v2879 = vadd.f32 0.0, %v2878
        %v2880 = vpop.f32.mrf.mxu0
        %2881 = vmatprep.mubr.bf16.mxu0 0
        %2882 = vmatmul.mubr.bf16.gmra.mxu0 %v2532
        %v2883 = vpop.f32.mrf.mxu0
        %v2884 = vadd.f32 0.0, %v2883
        %v2885 = vpop.f32.mrf.mxu0
        %v2886 = vpop.f32.mrf.mxu0
        %v2887 = vadd.f32 0.0, %v2886
        %v2888 = vpop.f32.mrf.mxu0
        %2889 = vdwg.mxu0
        %v2890 = vadd.f32 %v2042, %v2572
        %v2891 = vadd.f32 %v2043, %v2575
        %v2892 = vadd.f32 %v2044, %v2580
        %v2893 = vadd.f32 %v2045, %v2583
        %v2894 = vadd.f32 %v2046, %v2588
        %v2895 = vadd.f32 %v2047, %v2591
        %v2896 = vadd.f32 %v2048, %v2596
        %v2897 = vadd.f32 %v2049, %v2599
        %v2898 = vadd.f32 %v2050, %v2604
        %v2899 = vadd.f32 %v2051, %v2607
        %v2900 = vadd.f32 %v2052, %v2612
        %v2901 = vadd.f32 %v2053, %v2615
        %v2902 = vadd.f32 %v2054, %v2620
        %v2903 = vadd.f32 %v2055, %v2623
        %v2904 = vadd.f32 %v2056, %v2628
        %v2905 = vadd.f32 %v2057, %v2631
        %v2906 = vadd.f32 %v2058, %v2636
        %v2907 = vadd.f32 %v2059, %v2639
        %v2908 = vadd.f32 %v2060, %v2644
        %v2909 = vadd.f32 %v2061, %v2647
        %v2910 = vadd.f32 %v2062, %v2652
        %v2911 = vadd.f32 %v2063, %v2655
        %v2912 = vadd.f32 %v2064, %v2660
        %v2913 = vadd.f32 %v2065, %v2663
        %v2914 = vadd.f32 %v2066, %v2668
        %v2915 = vadd.f32 %v2067, %v2671
        %v2916 = vadd.f32 %v2068, %v2676
        %v2917 = vadd.f32 %v2069, %v2679
        %v2918 = vadd.f32 %v2070, %v2684
        %v2919 = vadd.f32 %v2071, %v2687
        %v2920 = vadd.f32 %v2072, %v2692
        %v2921 = vadd.f32 %v2073, %v2695
        %v2922 = vadd.f32 %v2074, %v2700
        %v2923 = vadd.f32 %v2075, %v2703
        %v2924 = vadd.f32 %v2076, %v2708
        %v2925 = vadd.f32 %v2077, %v2711
        %v2926 = vadd.f32 %v2078, %v2716
        %v2927 = vadd.f32 %v2079, %v2719
        %v2928 = vadd.f32 %v2080, %v2724
        %v2929 = vadd.f32 %v2081, %v2727
        %v2930 = vadd.f32 %v2082, %v2732
        %v2931 = vadd.f32 %v2083, %v2735
        %v2932 = vadd.f32 %v2084, %v2740
        %v2933 = vadd.f32 %v2085, %v2743
        %v2934 = vadd.f32 %v2086, %v2748
        %v2935 = vadd.f32 %v2087, %v2751
        %v2936 = vadd.f32 %v2088, %v2756
        %v2937 = vadd.f32 %v2089, %v2759
        %v2938 = vadd.f32 %v2090, %v2764
        %v2939 = vadd.f32 %v2091, %v2767
        %v2940 = vadd.f32 %v2092, %v2772
        %v2941 = vadd.f32 %v2093, %v2775
        %v2942 = vadd.f32 %v2094, %v2780
        %v2943 = vadd.f32 %v2095, %v2783
        %v2944 = vadd.f32 %v2096, %v2788
        %v2945 = vadd.f32 %v2097, %v2791
        %v2946 = vadd.f32 %v2098, %v2796
        %v2947 = vadd.f32 %v2099, %v2799
        %v2948 = vadd.f32 %v2100, %v2804
        %v2949 = vadd.f32 %v2101, %v2807
        %v2950 = vadd.f32 %v2102, %v2812
        %v2951 = vadd.f32 %v2103, %v2815
        %v2952 = vadd.f32 %v2104, %v2820
        %v2953 = vadd.f32 %v2105, %v2823
        %v2954 = vadd.f32 %v2106, %v2828
        %v2955 = vadd.f32 %v2107, %v2831
        %v2956 = vadd.f32 %v2108, %v2836
        %v2957 = vadd.f32 %v2109, %v2839
        %v2958 = vadd.f32 %v2110, %v2844
        %v2959 = vadd.f32 %v2111, %v2847
        %v2960 = vadd.f32 %v2112, %v2852
        %v2961 = vadd.f32 %v2113, %v2855
        %v2962 = vadd.f32 %v2114, %v2860
        %v2963 = vadd.f32 %v2115, %v2863
        %v2964 = vadd.f32 %v2116, %v2868
        %v2965 = vadd.f32 %v2117, %v2871
        %v2966 = vadd.f32 %v2118, %v2876
        %v2967 = vadd.f32 %v2119, %v2879
        %v2968 = vadd.f32 %v2120, %v2884
        %v2969 = vadd.f32 %v2121, %v2887
        %2970 = vst.msk [vmem:[#allocation2] sm:$0xff] %vm951, %v2890
        %2971 = vst.msk [vmem:[#allocation2 + $0x8] sm:$0xff] %vm951, %v2891
        %2972 = vst.msk [vmem:[#allocation2 + $0x10] sm:$0xff] %vm951, %v2892
        %2973 = vst.msk [vmem:[#allocation2 + $0x18] sm:$0xff] %vm951, %v2893
        %2974 = vst.msk [vmem:[#allocation2 + $0x20] sm:$0xff] %vm951, %v2894
        %2975 = vst.msk [vmem:[#allocation2 + $0x28] sm:$0xff] %vm951, %v2895
        %2976 = vst.msk [vmem:[#allocation2 + $0x30] sm:$0xff] %vm951, %v2896
        %2977 = vst.msk [vmem:[#allocation2 + $0x38] sm:$0xff] %vm951, %v2897
        %2978 = vst.msk [vmem:[#allocation2 + $0x40] sm:$0xff] %vm951, %v2898
        %2979 = vst.msk [vmem:[#allocation2 + $0x48] sm:$0xff] %vm951, %v2899
        %2980 = vst.msk [vmem:[#allocation2 + $0x50] sm:$0xff] %vm951, %v2900
        %2981 = vst.msk [vmem:[#allocation2 + $0x58] sm:$0xff] %vm951, %v2901
        %2982 = vst.msk [vmem:[#allocation2 + $0x60] sm:$0xff] %vm951, %v2902
        %2983 = vst.msk [vmem:[#allocation2 + $0x68] sm:$0xff] %vm951, %v2903
        %2984 = vst.msk [vmem:[#allocation2 + $0x70] sm:$0xff] %vm951, %v2904
        %2985 = vst.msk [vmem:[#allocation2 + $0x78] sm:$0xff] %vm951, %v2905
        %2986 = vst.msk [vmem:[#allocation2 + $0x80] sm:$0xff] %vm951, %v2906
        %2987 = vst.msk [vmem:[#allocation2 + $0x88] sm:$0xff] %vm951, %v2907
        %2988 = vst.msk [vmem:[#allocation2 + $0x90] sm:$0xff] %vm951, %v2908
        %2989 = vst.msk [vmem:[#allocation2 + $0x98] sm:$0xff] %vm951, %v2909
        %2990 = vst.msk [vmem:[#allocation2 + $0xa0] sm:$0xff] %vm951, %v2910
        %2991 = vst.msk [vmem:[#allocation2 + $0xa8] sm:$0xff] %vm951, %v2911
        %2992 = vst.msk [vmem:[#allocation2 + $0xb0] sm:$0xff] %vm951, %v2912
        %2993 = vst.msk [vmem:[#allocation2 + $0xb8] sm:$0xff] %vm951, %v2913
        %2994 = vst.msk [vmem:[#allocation2 + $0xc0] sm:$0xff] %vm951, %v2914
        %2995 = vst.msk [vmem:[#allocation2 + $0xc8] sm:$0xff] %vm951, %v2915
        %2996 = vst.msk [vmem:[#allocation2 + $0xd0] sm:$0xff] %vm951, %v2916
        %2997 = vst.msk [vmem:[#allocation2 + $0xd8] sm:$0xff] %vm951, %v2917
        %2998 = vst.msk [vmem:[#allocation2 + $0xe0] sm:$0xff] %vm951, %v2918
        %2999 = vst.msk [vmem:[#allocation2 + $0xe8] sm:$0xff] %vm951, %v2919
        %3000 = vst.msk [vmem:[#allocation2 + $0xf0] sm:$0xff] %vm951, %v2920
        %3001 = vst.msk [vmem:[#allocation2 + $0xf8] sm:$0xff] %vm951, %v2921
        %3002 = vst.msk [vmem:[#allocation2 + $0x100] sm:$0xff] %vm951, %v2922
        %3003 = vst.msk [vmem:[#allocation2 + $0x108] sm:$0xff] %vm951, %v2923
        %3004 = vst.msk [vmem:[#allocation2 + $0x110] sm:$0xff] %vm951, %v2924
        %3005 = vst.msk [vmem:[#allocation2 + $0x118] sm:$0xff] %vm951, %v2925
        %3006 = vst.msk [vmem:[#allocation2 + $0x120] sm:$0xff] %vm951, %v2926
        %3007 = vst.msk [vmem:[#allocation2 + $0x128] sm:$0xff] %vm951, %v2927
        %3008 = vst.msk [vmem:[#allocation2 + $0x130] sm:$0xff] %vm951, %v2928
        %3009 = vst.msk [vmem:[#allocation2 + $0x138] sm:$0xff] %vm951, %v2929
        %3010 = vst.msk [vmem:[#allocation2 + $0x140] sm:$0xff] %vm951, %v2930
        %3011 = vst.msk [vmem:[#allocation2 + $0x148] sm:$0xff] %vm951, %v2931
        %3012 = vst.msk [vmem:[#allocation2 + $0x150] sm:$0xff] %vm951, %v2932
        %3013 = vst.msk [vmem:[#allocation2 + $0x158] sm:$0xff] %vm951, %v2933
        %3014 = vst.msk [vmem:[#allocation2 + $0x160] sm:$0xff] %vm951, %v2934
        %3015 = vst.msk [vmem:[#allocation2 + $0x168] sm:$0xff] %vm951, %v2935
        %3016 = vst.msk [vmem:[#allocation2 + $0x170] sm:$0xff] %vm951, %v2936
        %3017 = vst.msk [vmem:[#allocation2 + $0x178] sm:$0xff] %vm951, %v2937
        %3018 = vst.msk [vmem:[#allocation2 + $0x180] sm:$0xff] %vm951, %v2938
        %3019 = vst.msk [vmem:[#allocation2 + $0x188] sm:$0xff] %vm951, %v2939
        %3020 = vst.msk [vmem:[#allocation2 + $0x190] sm:$0xff] %vm951, %v2940
        %3021 = vst.msk [vmem:[#allocation2 + $0x198] sm:$0xff] %vm951, %v2941
        %3022 = vst.msk [vmem:[#allocation2 + $0x1a0] sm:$0xff] %vm951, %v2942
        %3023 = vst.msk [vmem:[#allocation2 + $0x1a8] sm:$0xff] %vm951, %v2943
        %3024 = vst.msk [vmem:[#allocation2 + $0x1b0] sm:$0xff] %vm951, %v2944
        %3025 = vst.msk [vmem:[#allocation2 + $0x1b8] sm:$0xff] %vm951, %v2945
        %3026 = vst.msk [vmem:[#allocation2 + $0x1c0] sm:$0xff] %vm951, %v2946
        %3027 = vst.msk [vmem:[#allocation2 + $0x1c8] sm:$0xff] %vm951, %v2947
        %3028 = vst.msk [vmem:[#allocation2 + $0x1d0] sm:$0xff] %vm951, %v2948
        %3029 = vst.msk [vmem:[#allocation2 + $0x1d8] sm:$0xff] %vm951, %v2949
        %3030 = vst.msk [vmem:[#allocation2 + $0x1e0] sm:$0xff] %vm951, %v2950
        %3031 = vst.msk [vmem:[#allocation2 + $0x1e8] sm:$0xff] %vm951, %v2951
        %3032 = vst.msk [vmem:[#allocation2 + $0x1f0] sm:$0xff] %vm951, %v2952
        %3033 = vst.msk [vmem:[#allocation2 + $0x1f8] sm:$0xff] %vm951, %v2953
        %3034 = vst.msk [vmem:[#allocation2 + $0x200] sm:$0xff] %vm951, %v2954
        %3035 = vst.msk [vmem:[#allocation2 + $0x208] sm:$0xff] %vm951, %v2955
        %3036 = vst.msk [vmem:[#allocation2 + $0x210] sm:$0xff] %vm951, %v2956
        %3037 = vst.msk [vmem:[#allocation2 + $0x218] sm:$0xff] %vm951, %v2957
        %3038 = vst.msk [vmem:[#allocation2 + $0x220] sm:$0xff] %vm951, %v2958
        %3039 = vst.msk [vmem:[#allocation2 + $0x228] sm:$0xff] %vm951, %v2959
        %3040 = vst.msk [vmem:[#allocation2 + $0x230] sm:$0xff] %vm951, %v2960
        %3041 = vst.msk [vmem:[#allocation2 + $0x238] sm:$0xff] %vm951, %v2961
        %3042 = vst.msk [vmem:[#allocation2 + $0x240] sm:$0xff] %vm951, %v2962
        %3043 = vst.msk [vmem:[#allocation2 + $0x248] sm:$0xff] %vm951, %v2963
        %3044 = vst.msk [vmem:[#allocation2 + $0x250] sm:$0xff] %vm951, %v2964
        %3045 = vst.msk [vmem:[#allocation2 + $0x258] sm:$0xff] %vm951, %v2965
        %3046 = vst.msk [vmem:[#allocation2 + $0x260] sm:$0xff] %vm951, %v2966
        %3047 = vst.msk [vmem:[#allocation2 + $0x268] sm:$0xff] %vm951, %v2967
        %3048 = vst.msk [vmem:[#allocation2 + $0x270] sm:$0xff] %vm951, %v2968
        %3049 = vst.msk [vmem:[#allocation2 + $0x278] sm:$0xff] %vm951, %v2969
        %s3050 = sadd.s32 %s178, 480
        %v3051 = vld [vmem:[#allocation2] sm:$0xff]
        %v3052 = vld [vmem:[#allocation2 + $0x8] sm:$0xff]
        %v3053 = vld [vmem:[#allocation2 + $0x10] sm:$0xff]
        %v3054 = vld [vmem:[#allocation2 + $0x18] sm:$0xff]
        %v3055 = vld [vmem:[#allocation2 + $0x20] sm:$0xff]
        %v3056 = vld [vmem:[#allocation2 + $0x28] sm:$0xff]
        %v3057 = vld [vmem:[#allocation2 + $0x30] sm:$0xff]
        %v3058 = vld [vmem:[#allocation2 + $0x38] sm:$0xff]
        %v3059 = vld [vmem:[#allocation2 + $0x40] sm:$0xff]
        %v3060 = vld [vmem:[#allocation2 + $0x48] sm:$0xff]
        %v3061 = vld [vmem:[#allocation2 + $0x50] sm:$0xff]
        %v3062 = vld [vmem:[#allocation2 + $0x58] sm:$0xff]
        %v3063 = vld [vmem:[#allocation2 + $0x60] sm:$0xff]
        %v3064 = vld [vmem:[#allocation2 + $0x68] sm:$0xff]
        %v3065 = vld [vmem:[#allocation2 + $0x70] sm:$0xff]
        %v3066 = vld [vmem:[#allocation2 + $0x78] sm:$0xff]
        %v3067 = vld [vmem:[#allocation2 + $0x80] sm:$0xff]
        %v3068 = vld [vmem:[#allocation2 + $0x88] sm:$0xff]
        %v3069 = vld [vmem:[#allocation2 + $0x90] sm:$0xff]
        %v3070 = vld [vmem:[#allocation2 + $0x98] sm:$0xff]
        %v3071 = vld [vmem:[#allocation2 + $0xa0] sm:$0xff]
        %v3072 = vld [vmem:[#allocation2 + $0xa8] sm:$0xff]
        %v3073 = vld [vmem:[#allocation2 + $0xb0] sm:$0xff]
        %v3074 = vld [vmem:[#allocation2 + $0xb8] sm:$0xff]
        %v3075 = vld [vmem:[#allocation2 + $0xc0] sm:$0xff]
        %v3076 = vld [vmem:[#allocation2 + $0xc8] sm:$0xff]
        %v3077 = vld [vmem:[#allocation2 + $0xd0] sm:$0xff]
        %v3078 = vld [vmem:[#allocation2 + $0xd8] sm:$0xff]
        %v3079 = vld [vmem:[#allocation2 + $0xe0] sm:$0xff]
        %v3080 = vld [vmem:[#allocation2 + $0xe8] sm:$0xff]
        %v3081 = vld [vmem:[#allocation2 + $0xf0] sm:$0xff]
        %v3082 = vld [vmem:[#allocation2 + $0xf8] sm:$0xff]
        %v3083 = vld [vmem:[#allocation2 + $0x100] sm:$0xff]
        %v3084 = vld [vmem:[#allocation2 + $0x108] sm:$0xff]
        %v3085 = vld [vmem:[#allocation2 + $0x110] sm:$0xff]
        %v3086 = vld [vmem:[#allocation2 + $0x118] sm:$0xff]
        %v3087 = vld [vmem:[#allocation2 + $0x120] sm:$0xff]
        %v3088 = vld [vmem:[#allocation2 + $0x128] sm:$0xff]
        %v3089 = vld [vmem:[#allocation2 + $0x130] sm:$0xff]
        %v3090 = vld [vmem:[#allocation2 + $0x138] sm:$0xff]
        %v3091 = vld [vmem:[#allocation2 + $0x140] sm:$0xff]
        %v3092 = vld [vmem:[#allocation2 + $0x148] sm:$0xff]
        %v3093 = vld [vmem:[#allocation2 + $0x150] sm:$0xff]
        %v3094 = vld [vmem:[#allocation2 + $0x158] sm:$0xff]
        %v3095 = vld [vmem:[#allocation2 + $0x160] sm:$0xff]
        %v3096 = vld [vmem:[#allocation2 + $0x168] sm:$0xff]
        %v3097 = vld [vmem:[#allocation2 + $0x170] sm:$0xff]
        %v3098 = vld [vmem:[#allocation2 + $0x178] sm:$0xff]
        %v3099 = vld [vmem:[#allocation2 + $0x180] sm:$0xff]
        %v3100 = vld [vmem:[#allocation2 + $0x188] sm:$0xff]
        %v3101 = vld [vmem:[#allocation2 + $0x190] sm:$0xff]
        %v3102 = vld [vmem:[#allocation2 + $0x198] sm:$0xff]
        %v3103 = vld [vmem:[#allocation2 + $0x1a0] sm:$0xff]
        %v3104 = vld [vmem:[#allocation2 + $0x1a8] sm:$0xff]
        %v3105 = vld [vmem:[#allocation2 + $0x1b0] sm:$0xff]
        %v3106 = vld [vmem:[#allocation2 + $0x1b8] sm:$0xff]
        %v3107 = vld [vmem:[#allocation2 + $0x1c0] sm:$0xff]
        %v3108 = vld [vmem:[#allocation2 + $0x1c8] sm:$0xff]
        %v3109 = vld [vmem:[#allocation2 + $0x1d0] sm:$0xff]
        %v3110 = vld [vmem:[#allocation2 + $0x1d8] sm:$0xff]
        %v3111 = vld [vmem:[#allocation2 + $0x1e0] sm:$0xff]
        %v3112 = vld [vmem:[#allocation2 + $0x1e8] sm:$0xff]
        %v3113 = vld [vmem:[#allocation2 + $0x1f0] sm:$0xff]
        %v3114 = vld [vmem:[#allocation2 + $0x1f8] sm:$0xff]
        %v3115 = vld [vmem:[#allocation2 + $0x200] sm:$0xff]
        %v3116 = vld [vmem:[#allocation2 + $0x208] sm:$0xff]
        %v3117 = vld [vmem:[#allocation2 + $0x210] sm:$0xff]
        %v3118 = vld [vmem:[#allocation2 + $0x218] sm:$0xff]
        %v3119 = vld [vmem:[#allocation2 + $0x220] sm:$0xff]
        %v3120 = vld [vmem:[#allocation2 + $0x228] sm:$0xff]
        %v3121 = vld [vmem:[#allocation2 + $0x230] sm:$0xff]
        %v3122 = vld [vmem:[#allocation2 + $0x238] sm:$0xff]
        %v3123 = vld [vmem:[#allocation2 + $0x240] sm:$0xff]
        %v3124 = vld [vmem:[#allocation2 + $0x248] sm:$0xff]
        %v3125 = vld [vmem:[#allocation2 + $0x250] sm:$0xff]
        %v3126 = vld [vmem:[#allocation2 + $0x258] sm:$0xff]
        %v3127 = vld [vmem:[#allocation2 + $0x260] sm:$0xff]
        %v3128 = vld [vmem:[#allocation2 + $0x268] sm:$0xff]
        %v3129 = vld [vmem:[#allocation2 + $0x270] sm:$0xff]
        %v3130 = vld [vmem:[#allocation2 + $0x278] sm:$0xff]
        %s3131 = sshra.s32 %s3050, 3
        %s3132 = sand.u32 %s3050, 7
        %s3133 = smul.addr %s3131, 4
        %s3134 = scalar_lea.vmem %s165, %s3133
        %v3135 = vld [vmem:[%s3134] sm:$0xf]
        %v3136 = vld [vmem:[%s3134 + $0x4] sm:$0xf]
        %v3137 = vld [vmem:[%s3134 + $0x8] sm:$0xf]
        %v3138 = vld [vmem:[%s3134 + $0xc] sm:$0xf]
        %v3139 = vld [vmem:[%s3134 + $0x10] sm:$0xf]
        %v3140 = vld [vmem:[%s3134 + $0x14] sm:$0xf]
        %v3141 = vld [vmem:[%s3134 + $0x18] sm:$0xf]
        %v3142 = vld [vmem:[%s3134 + $0x1c] sm:$0xf]
        %v3143 = vld [vmem:[%s3134 + $0x20] sm:$0xf]
        %v3144 = vld [vmem:[%s3134 + $0x24] sm:$0xf]
        %v3145 = vld [vmem:[%s3134 + $0x28] sm:$0xf]
        %v3146 = vld [vmem:[%s3134 + $0x2c] sm:$0xf]
        %v3147 = vld [vmem:[%s3134 + $0x30] sm:$0xf]
        %v3148 = vld [vmem:[%s3134 + $0x34] sm:$0xf]
        %v3149 = vld [vmem:[%s3134 + $0x38] sm:$0xf]
        %v3150 = vld [vmem:[%s3134 + $0x3c] sm:$0xf]
        %v3151 = vld [vmem:[%s3134 + $0x40] sm:$0xf]
        %v3152 = vld [vmem:[%s3134 + $0x44] sm:$0xf]
        %v3153 = vld [vmem:[%s3134 + $0x48] sm:$0xf]
        %v3154 = vld [vmem:[%s3134 + $0x4c] sm:$0xf]
        %v3155 = vld [vmem:[%s3134 + $0x50] sm:$0xf]
        %v3156 = vld [vmem:[%s3134 + $0x54] sm:$0xf]
        %v3157 = vld [vmem:[%s3134 + $0x58] sm:$0xf]
        %v3158 = vld [vmem:[%s3134 + $0x5c] sm:$0xf]
        %v3159 = vld [vmem:[%s3134 + $0x60] sm:$0xf]
        %v3160 = vld [vmem:[%s3134 + $0x64] sm:$0xf]
        %v3161 = vld [vmem:[%s3134 + $0x68] sm:$0xf]
        %v3162 = vld [vmem:[%s3134 + $0x6c] sm:$0xf]
        %v3163 = vld [vmem:[%s3134 + $0x70] sm:$0xf]
        %v3164 = vld [vmem:[%s3134 + $0x74] sm:$0xf]
        %v3165 = vld [vmem:[%s3134 + $0x78] sm:$0xf]
        %v3166 = vld [vmem:[%s3134 + $0x7c] sm:$0xf]
        %v3167 = vld [vmem:[%s3134 + $0x80] sm:$0xf]
        %v3168 = vld [vmem:[%s3134 + $0x84] sm:$0xf]
        %v3169 = vld [vmem:[%s3134 + $0x88] sm:$0xf]
        %v3170 = vld [vmem:[%s3134 + $0x8c] sm:$0xf]
        %v3171 = vld [vmem:[%s3134 + $0x90] sm:$0xf]
        %v3172 = vld [vmem:[%s3134 + $0x94] sm:$0xf]
        %v3173 = vld [vmem:[%s3134 + $0x98] sm:$0xf]
        %v3174 = vld [vmem:[%s3134 + $0x9c] sm:$0xf]
        %v3175 = vld [vmem:[%s3134 + $0xa0] sm:$0xf]
        %v3176 = vld [vmem:[%s3134 + $0xa4] sm:$0xf]
        %v3177 = vld [vmem:[%s3134 + $0xa8] sm:$0xf]
        %v3178 = vld [vmem:[%s3134 + $0xac] sm:$0xf]
        %v3179 = vld [vmem:[%s3134 + $0xb0] sm:$0xf]
        %v3180 = vld [vmem:[%s3134 + $0xb4] sm:$0xf]
        %v3181 = vld [vmem:[%s3134 + $0xb8] sm:$0xf]
        %v3182 = vld [vmem:[%s3134 + $0xbc] sm:$0xf]
        %v3183 = vld [vmem:[%s3134 + $0xc0] sm:$0xf]
        %v3184 = vld [vmem:[%s3134 + $0xc4] sm:$0xf]
        %v3185 = vld [vmem:[%s3134 + $0xc8] sm:$0xf]
        %v3186 = vld [vmem:[%s3134 + $0xcc] sm:$0xf]
        %v3187 = vld [vmem:[%s3134 + $0xd0] sm:$0xf]
        %v3188 = vld [vmem:[%s3134 + $0xd4] sm:$0xf]
        %v3189 = vld [vmem:[%s3134 + $0xd8] sm:$0xf]
        %v3190 = vld [vmem:[%s3134 + $0xdc] sm:$0xf]
        %v3191 = vld [vmem:[%s3134 + $0xe0] sm:$0xf]
        %v3192 = vld [vmem:[%s3134 + $0xe4] sm:$0xf]
        %v3193 = vld [vmem:[%s3134 + $0xe8] sm:$0xf]
        %v3194 = vld [vmem:[%s3134 + $0xec] sm:$0xf]
        %v3195 = vld [vmem:[%s3134 + $0xf0] sm:$0xf]
        %v3196 = vld [vmem:[%s3134 + $0xf4] sm:$0xf]
        %v3197 = vld [vmem:[%s3134 + $0xf8] sm:$0xf]
        %v3198 = vld [vmem:[%s3134 + $0xfc] sm:$0xf]
        %v3199 = vld [vmem:[%s3134 + $0x100] sm:$0xf]
        %v3200 = vld [vmem:[%s3134 + $0x104] sm:$0xf]
        %v3201 = vld [vmem:[%s3134 + $0x108] sm:$0xf]
        %v3202 = vld [vmem:[%s3134 + $0x10c] sm:$0xf]
        %v3203 = vld [vmem:[%s3134 + $0x110] sm:$0xf]
        %v3204 = vld [vmem:[%s3134 + $0x114] sm:$0xf]
        %v3205 = vld [vmem:[%s3134 + $0x118] sm:$0xf]
        %v3206 = vld [vmem:[%s3134 + $0x11c] sm:$0xf]
        %v3207 = vld [vmem:[%s3134 + $0x120] sm:$0xf]
        %v3208 = vld [vmem:[%s3134 + $0x124] sm:$0xf]
        %v3209 = vld [vmem:[%s3134 + $0x128] sm:$0xf]
        %v3210 = vld [vmem:[%s3134 + $0x12c] sm:$0xf]
        %v3211 = vld [vmem:[%s3134 + $0x130] sm:$0xf]
        %v3212 = vld [vmem:[%s3134 + $0x134] sm:$0xf]
        %v3213 = vld [vmem:[%s3134 + $0x138] sm:$0xf]
        %v3214 = vld [vmem:[%s3134 + $0x13c] sm:$0xf]
        %s3215 = scalar_lea.vmem %s1, 24
        %v3216 = vld [vmem:[%s3215] sm:$0xf]
        %v3217 = vld [vmem:[%s3215 + $0x4] sm:$0xf]
        %v3298 = vunpack.c.l.b16 %v3135
        %v3299 = vunpack.c.l.b16 %v3136
        %v3300 = vunpack.c.l.b16 %v3137
        %v3301 = vunpack.c.l.b16 %v3138
        %v3302 = vunpack.c.l.b16 %v3139
        %v3303 = vunpack.c.l.b16 %v3140
        %v3304 = vunpack.c.l.b16 %v3141
        %v3305 = vunpack.c.l.b16 %v3142
        %v3306 = vunpack.c.l.b16 %v3143
        %v3307 = vunpack.c.l.b16 %v3144
        %v3308 = vunpack.c.l.b16 %v3145
        %v3309 = vunpack.c.l.b16 %v3146
        %v3310 = vunpack.c.l.b16 %v3147
        %v3311 = vunpack.c.l.b16 %v3148
        %v3312 = vunpack.c.l.b16 %v3149
        %v3313 = vunpack.c.l.b16 %v3150
        %v3314 = vunpack.c.l.b16 %v3151
        %v3315 = vunpack.c.l.b16 %v3152
        %v3316 = vunpack.c.l.b16 %v3153
        %v3317 = vunpack.c.l.b16 %v3154
        %v3318 = vunpack.c.l.b16 %v3155
        %v3319 = vunpack.c.l.b16 %v3156
        %v3320 = vunpack.c.l.b16 %v3157
        %v3321 = vunpack.c.l.b16 %v3158
        %v3322 = vunpack.c.l.b16 %v3159
        %v3323 = vunpack.c.l.b16 %v3160
        %v3324 = vunpack.c.l.b16 %v3161
        %v3325 = vunpack.c.l.b16 %v3162
        %v3326 = vunpack.c.l.b16 %v3163
        %v3327 = vunpack.c.l.b16 %v3164
        %v3328 = vunpack.c.l.b16 %v3165
        %v3329 = vunpack.c.l.b16 %v3166
        %v3330 = vunpack.c.l.b16 %v3167
        %v3331 = vunpack.c.l.b16 %v3168
        %v3332 = vunpack.c.l.b16 %v3169
        %v3333 = vunpack.c.l.b16 %v3170
        %v3334 = vunpack.c.l.b16 %v3171
        %v3335 = vunpack.c.l.b16 %v3172
        %v3336 = vunpack.c.l.b16 %v3173
        %v3337 = vunpack.c.l.b16 %v3174
        %v3338 = vunpack.c.l.b16 %v3175
        %v3339 = vunpack.c.l.b16 %v3176
        %v3340 = vunpack.c.l.b16 %v3177
        %v3341 = vunpack.c.l.b16 %v3178
        %v3342 = vunpack.c.l.b16 %v3179
        %v3343 = vunpack.c.l.b16 %v3180
        %v3344 = vunpack.c.l.b16 %v3181
        %v3345 = vunpack.c.l.b16 %v3182
        %v3346 = vunpack.c.l.b16 %v3183
        %v3347 = vunpack.c.l.b16 %v3184
        %v3348 = vunpack.c.l.b16 %v3185
        %v3349 = vunpack.c.l.b16 %v3186
        %v3350 = vunpack.c.l.b16 %v3187
        %v3351 = vunpack.c.l.b16 %v3188
        %v3352 = vunpack.c.l.b16 %v3189
        %v3353 = vunpack.c.l.b16 %v3190
        %v3354 = vunpack.c.l.b16 %v3191
        %v3355 = vunpack.c.l.b16 %v3192
        %v3356 = vunpack.c.l.b16 %v3193
        %v3357 = vunpack.c.l.b16 %v3194
        %v3358 = vunpack.c.l.b16 %v3195
        %v3359 = vunpack.c.l.b16 %v3196
        %v3360 = vunpack.c.l.b16 %v3197
        %v3361 = vunpack.c.l.b16 %v3198
        %v3362 = vunpack.c.l.b16 %v3199
        %v3363 = vunpack.c.l.b16 %v3200
        %v3364 = vunpack.c.l.b16 %v3201
        %v3365 = vunpack.c.l.b16 %v3202
        %v3366 = vunpack.c.l.b16 %v3203
        %v3367 = vunpack.c.l.b16 %v3204
        %v3368 = vunpack.c.l.b16 %v3205
        %v3369 = vunpack.c.l.b16 %v3206
        %v3370 = vunpack.c.l.b16 %v3207
        %v3371 = vunpack.c.l.b16 %v3208
        %v3372 = vunpack.c.l.b16 %v3209
        %v3373 = vunpack.c.l.b16 %v3210
        %v3374 = vunpack.c.l.b16 %v3211
        %v3375 = vunpack.c.l.b16 %v3212
        %v3376 = vunpack.c.l.b16 %v3213
        %v3377 = vunpack.c.l.b16 %v3214
        %v3378 = vpack.c.b16 %v3299, %v3298
        %v3379 = vpack.c.b16 %v3301, %v3300
        %v3380 = vpack.c.b16 %v3303, %v3302
        %v3381 = vpack.c.b16 %v3305, %v3304
        %v3382 = vpack.c.b16 %v3307, %v3306
        %v3383 = vpack.c.b16 %v3309, %v3308
        %v3384 = vpack.c.b16 %v3311, %v3310
        %v3385 = vpack.c.b16 %v3313, %v3312
        %v3386 = vpack.c.b16 %v3315, %v3314
        %v3387 = vpack.c.b16 %v3317, %v3316
        %v3388 = vpack.c.b16 %v3319, %v3318
        %v3389 = vpack.c.b16 %v3321, %v3320
        %v3390 = vpack.c.b16 %v3323, %v3322
        %v3391 = vpack.c.b16 %v3325, %v3324
        %v3392 = vpack.c.b16 %v3327, %v3326
        %v3393 = vpack.c.b16 %v3329, %v3328
        %v3394 = vpack.c.b16 %v3331, %v3330
        %v3395 = vpack.c.b16 %v3333, %v3332
        %v3396 = vpack.c.b16 %v3335, %v3334
        %v3397 = vpack.c.b16 %v3337, %v3336
        %v3398 = vpack.c.b16 %v3339, %v3338
        %v3399 = vpack.c.b16 %v3341, %v3340
        %v3400 = vpack.c.b16 %v3343, %v3342
        %v3401 = vpack.c.b16 %v3345, %v3344
        %v3402 = vpack.c.b16 %v3347, %v3346
        %v3403 = vpack.c.b16 %v3349, %v3348
        %v3404 = vpack.c.b16 %v3351, %v3350
        %v3405 = vpack.c.b16 %v3353, %v3352
        %v3406 = vpack.c.b16 %v3355, %v3354
        %v3407 = vpack.c.b16 %v3357, %v3356
        %v3408 = vpack.c.b16 %v3359, %v3358
        %v3409 = vpack.c.b16 %v3361, %v3360
        %v3410 = vpack.c.b16 %v3363, %v3362
        %v3411 = vpack.c.b16 %v3365, %v3364
        %v3412 = vpack.c.b16 %v3367, %v3366
        %v3413 = vpack.c.b16 %v3369, %v3368
        %v3414 = vpack.c.b16 %v3371, %v3370
        %v3415 = vpack.c.b16 %v3373, %v3372
        %v3416 = vpack.c.b16 %v3375, %v3374
        %v3417 = vpack.c.b16 %v3377, %v3376
        %v3420 = vunpack.c.l.b16 %v3216
        %v3421 = vunpack.c.l.b16 %v3217
        %v3422 = vpack.c.b16 %v3421, %v3420
        %v3424 = vsel %vm470, %v3378, 0
        %v3427 = vsel %vm470, %v3379, 0
        %v3430 = vsel %vm470, %v3380, 0
        %v3433 = vsel %vm470, %v3381, 0
        %v3436 = vsel %vm470, %v3382, 0
        %v3439 = vsel %vm470, %v3383, 0
        %v3442 = vsel %vm470, %v3384, 0
        %v3445 = vsel %vm470, %v3385, 0
        %v3448 = vsel %vm470, %v3386, 0
        %v3451 = vsel %vm470, %v3387, 0
        %v3454 = vsel %vm470, %v3388, 0
        %v3457 = vsel %vm470, %v3389, 0
        %v3460 = vsel %vm470, %v3390, 0
        %v3463 = vsel %vm470, %v3391, 0
        %v3466 = vsel %vm470, %v3392, 0
        %v3469 = vsel %vm470, %v3393, 0
        %v3472 = vsel %vm470, %v3394, 0
        %v3475 = vsel %vm470, %v3395, 0
        %v3478 = vsel %vm470, %v3396, 0
        %v3481 = vsel %vm470, %v3397, 0
        %v3484 = vsel %vm470, %v3398, 0
        %v3487 = vsel %vm470, %v3399, 0
        %v3490 = vsel %vm470, %v3400, 0
        %v3493 = vsel %vm470, %v3401, 0
        %v3496 = vsel %vm470, %v3402, 0
        %v3499 = vsel %vm470, %v3403, 0
        %v3502 = vsel %vm470, %v3404, 0
        %v3505 = vsel %vm470, %v3405, 0
        %v3508 = vsel %vm470, %v3406, 0
        %v3511 = vsel %vm470, %v3407, 0
        %v3514 = vsel %vm470, %v3408, 0
        %v3517 = vsel %vm470, %v3409, 0
        %v3520 = vsel %vm470, %v3410, 0
        %v3523 = vsel %vm470, %v3411, 0
        %v3526 = vsel %vm470, %v3412, 0
        %v3529 = vsel %vm470, %v3413, 0
        %v3532 = vsel %vm470, %v3414, 0
        %v3535 = vsel %vm470, %v3415, 0
        %v3538 = vsel %vm470, %v3416, 0
        %v3541 = vsel %vm470, %v3417, 0
        %v3544 = vand.u32 %v3422, %v594
        %3546 = vmatprep.subr.bf16.mxu0 0
        %3547 = vmatpush1.bf16.msra.mxu0 0
        %3548 = vmatprep.subr.bf16.mxu0 0
        %3549 = vmatpush1.bf16.msra.mxu0 0
        %3550 = vmatprep.subr.bf16.mxu0 0
        %3551 = vmatpush1.bf16.msra.mxu0 0
        %3552 = vmatprep.subr.bf16.mxu0 0
        %3553 = vmatpush1.bf16.msra.mxu0 0
        %3554 = vmatprep.subr.bf16.mxu0 0
        %3555 = vmatpush1.bf16.msra.mxu0 0
        %3556 = vmatprep.subr.bf16.mxu0 0
        %3557 = vmatpush1.bf16.msra.mxu0 0
        %3558 = vmatprep.subr.bf16.mxu0 0
        %3559 = vmatpush1.bf16.msra.mxu0 0
        %3560 = vmatprep.subr.bf16.mxu0 0
        %3561 = vmatpush1.bf16.msra.mxu0 %v3544
        %3562 = vmatprep.subr.bf16.mxu0 0
        %3563 = vmatpush2.bf16.msra.mxu0 0
        %3564 = vmatprep.subr.bf16.mxu0 0
        %3565 = vmatpush2.bf16.msra.mxu0 0
        %3566 = vmatprep.subr.bf16.mxu0 0
        %3567 = vmatpush2.bf16.msra.mxu0 0
        %3568 = vmatprep.subr.bf16.mxu0 0
        %3569 = vmatpush2.bf16.msra.mxu0 0
        %3570 = vmatprep.subr.bf16.mxu0 0
        %3571 = vmatpush2.bf16.msra.mxu0 0
        %3572 = vmatprep.subr.bf16.mxu0 0
        %3573 = vmatpush2.bf16.msra.mxu0 0
        %3574 = vmatprep.subr.bf16.mxu0 0
        %3575 = vmatpush2.bf16.msra.mxu0 0
        %3576 = vmatprep.subr.bf16.mxu0 0
        %3577 = vmatpush2.bf16.msra.mxu0 0
        %3578 = vmatprep.mubr.bf16.mxu0 0
        %3579 = vmatmul.mubr.bf16.gmra.mxu0 %v3424
        %v3580 = vpop.f32.mrf.mxu0
        %v3581 = vadd.f32 0.0, %v3580
        %v3582 = vpop.f32.mrf.mxu0
        %v3583 = vpop.f32.mrf.mxu0
        %v3584 = vadd.f32 0.0, %v3583
        %v3585 = vpop.f32.mrf.mxu0
        %3586 = vmatprep.mubr.bf16.mxu0 0
        %3587 = vmatmul.mubr.bf16.gmra.mxu0 %v3427
        %v3588 = vpop.f32.mrf.mxu0
        %v3589 = vadd.f32 0.0, %v3588
        %v3590 = vpop.f32.mrf.mxu0
        %v3591 = vpop.f32.mrf.mxu0
        %v3592 = vadd.f32 0.0, %v3591
        %v3593 = vpop.f32.mrf.mxu0
        %3594 = vmatprep.mubr.bf16.mxu0 0
        %3595 = vmatmul.mubr.bf16.gmra.mxu0 %v3430
        %v3596 = vpop.f32.mrf.mxu0
        %v3597 = vadd.f32 0.0, %v3596
        %v3598 = vpop.f32.mrf.mxu0
        %v3599 = vpop.f32.mrf.mxu0
        %v3600 = vadd.f32 0.0, %v3599
        %v3601 = vpop.f32.mrf.mxu0
        %3602 = vmatprep.mubr.bf16.mxu0 0
        %3603 = vmatmul.mubr.bf16.gmra.mxu0 %v3433
        %v3604 = vpop.f32.mrf.mxu0
        %v3605 = vadd.f32 0.0, %v3604
        %v3606 = vpop.f32.mrf.mxu0
        %v3607 = vpop.f32.mrf.mxu0
        %v3608 = vadd.f32 0.0, %v3607
        %v3609 = vpop.f32.mrf.mxu0
        %3610 = vmatprep.mubr.bf16.mxu0 0
        %3611 = vmatmul.mubr.bf16.gmra.mxu0 %v3436
        %v3612 = vpop.f32.mrf.mxu0
        %v3613 = vadd.f32 0.0, %v3612
        %v3614 = vpop.f32.mrf.mxu0
        %v3615 = vpop.f32.mrf.mxu0
        %v3616 = vadd.f32 0.0, %v3615
        %v3617 = vpop.f32.mrf.mxu0
        %3618 = vmatprep.mubr.bf16.mxu0 0
        %3619 = vmatmul.mubr.bf16.gmra.mxu0 %v3439
        %v3620 = vpop.f32.mrf.mxu0
        %v3621 = vadd.f32 0.0, %v3620
        %v3622 = vpop.f32.mrf.mxu0
        %v3623 = vpop.f32.mrf.mxu0
        %v3624 = vadd.f32 0.0, %v3623
        %v3625 = vpop.f32.mrf.mxu0
        %3626 = vmatprep.mubr.bf16.mxu0 0
        %3627 = vmatmul.mubr.bf16.gmra.mxu0 %v3442
        %v3628 = vpop.f32.mrf.mxu0
        %v3629 = vadd.f32 0.0, %v3628
        %v3630 = vpop.f32.mrf.mxu0
        %v3631 = vpop.f32.mrf.mxu0
        %v3632 = vadd.f32 0.0, %v3631
        %v3633 = vpop.f32.mrf.mxu0
        %3634 = vmatprep.mubr.bf16.mxu0 0
        %3635 = vmatmul.mubr.bf16.gmra.mxu0 %v3445
        %v3636 = vpop.f32.mrf.mxu0
        %v3637 = vadd.f32 0.0, %v3636
        %v3638 = vpop.f32.mrf.mxu0
        %v3639 = vpop.f32.mrf.mxu0
        %v3640 = vadd.f32 0.0, %v3639
        %v3641 = vpop.f32.mrf.mxu0
        %3642 = vmatprep.mubr.bf16.mxu0 0
        %3643 = vmatmul.mubr.bf16.gmra.mxu0 %v3448
        %v3644 = vpop.f32.mrf.mxu0
        %v3645 = vadd.f32 0.0, %v3644
        %v3646 = vpop.f32.mrf.mxu0
        %v3647 = vpop.f32.mrf.mxu0
        %v3648 = vadd.f32 0.0, %v3647
        %v3649 = vpop.f32.mrf.mxu0
        %3650 = vmatprep.mubr.bf16.mxu0 0
        %3651 = vmatmul.mubr.bf16.gmra.mxu0 %v3451
        %v3652 = vpop.f32.mrf.mxu0
        %v3653 = vadd.f32 0.0, %v3652
        %v3654 = vpop.f32.mrf.mxu0
        %v3655 = vpop.f32.mrf.mxu0
        %v3656 = vadd.f32 0.0, %v3655
        %v3657 = vpop.f32.mrf.mxu0
        %3658 = vmatprep.mubr.bf16.mxu0 0
        %3659 = vmatmul.mubr.bf16.gmra.mxu0 %v3454
        %v3660 = vpop.f32.mrf.mxu0
        %v3661 = vadd.f32 0.0, %v3660
        %v3662 = vpop.f32.mrf.mxu0
        %v3663 = vpop.f32.mrf.mxu0
        %v3664 = vadd.f32 0.0, %v3663
        %v3665 = vpop.f32.mrf.mxu0
        %3666 = vmatprep.mubr.bf16.mxu0 0
        %3667 = vmatmul.mubr.bf16.gmra.mxu0 %v3457
        %v3668 = vpop.f32.mrf.mxu0
        %v3669 = vadd.f32 0.0, %v3668
        %v3670 = vpop.f32.mrf.mxu0
        %v3671 = vpop.f32.mrf.mxu0
        %v3672 = vadd.f32 0.0, %v3671
        %v3673 = vpop.f32.mrf.mxu0
        %3674 = vmatprep.mubr.bf16.mxu0 0
        %3675 = vmatmul.mubr.bf16.gmra.mxu0 %v3460
        %v3676 = vpop.f32.mrf.mxu0
        %v3677 = vadd.f32 0.0, %v3676
        %v3678 = vpop.f32.mrf.mxu0
        %v3679 = vpop.f32.mrf.mxu0
        %v3680 = vadd.f32 0.0, %v3679
        %v3681 = vpop.f32.mrf.mxu0
        %3682 = vmatprep.mubr.bf16.mxu0 0
        %3683 = vmatmul.mubr.bf16.gmra.mxu0 %v3463
        %v3684 = vpop.f32.mrf.mxu0
        %v3685 = vadd.f32 0.0, %v3684
        %v3686 = vpop.f32.mrf.mxu0
        %v3687 = vpop.f32.mrf.mxu0
        %v3688 = vadd.f32 0.0, %v3687
        %v3689 = vpop.f32.mrf.mxu0
        %3690 = vmatprep.mubr.bf16.mxu0 0
        %3691 = vmatmul.mubr.bf16.gmra.mxu0 %v3466
        %v3692 = vpop.f32.mrf.mxu0
        %v3693 = vadd.f32 0.0, %v3692
        %v3694 = vpop.f32.mrf.mxu0
        %v3695 = vpop.f32.mrf.mxu0
        %v3696 = vadd.f32 0.0, %v3695
        %v3697 = vpop.f32.mrf.mxu0
        %3698 = vmatprep.mubr.bf16.mxu0 0
        %3699 = vmatmul.mubr.bf16.gmra.mxu0 %v3469
        %v3700 = vpop.f32.mrf.mxu0
        %v3701 = vadd.f32 0.0, %v3700
        %v3702 = vpop.f32.mrf.mxu0
        %v3703 = vpop.f32.mrf.mxu0
        %v3704 = vadd.f32 0.0, %v3703
        %v3705 = vpop.f32.mrf.mxu0
        %3706 = vmatprep.mubr.bf16.mxu0 0
        %3707 = vmatmul.mubr.bf16.gmra.mxu0 %v3472
        %v3708 = vpop.f32.mrf.mxu0
        %v3709 = vadd.f32 0.0, %v3708
        %v3710 = vpop.f32.mrf.mxu0
        %v3711 = vpop.f32.mrf.mxu0
        %v3712 = vadd.f32 0.0, %v3711
        %v3713 = vpop.f32.mrf.mxu0
        %3714 = vmatprep.mubr.bf16.mxu0 0
        %3715 = vmatmul.mubr.bf16.gmra.mxu0 %v3475
        %v3716 = vpop.f32.mrf.mxu0
        %v3717 = vadd.f32 0.0, %v3716
        %v3718 = vpop.f32.mrf.mxu0
        %v3719 = vpop.f32.mrf.mxu0
        %v3720 = vadd.f32 0.0, %v3719
        %v3721 = vpop.f32.mrf.mxu0
        %3722 = vmatprep.mubr.bf16.mxu0 0
        %3723 = vmatmul.mubr.bf16.gmra.mxu0 %v3478
        %v3724 = vpop.f32.mrf.mxu0
        %v3725 = vadd.f32 0.0, %v3724
        %v3726 = vpop.f32.mrf.mxu0
        %v3727 = vpop.f32.mrf.mxu0
        %v3728 = vadd.f32 0.0, %v3727
        %v3729 = vpop.f32.mrf.mxu0
        %3730 = vmatprep.mubr.bf16.mxu0 0
        %3731 = vmatmul.mubr.bf16.gmra.mxu0 %v3481
        %v3732 = vpop.f32.mrf.mxu0
        %v3733 = vadd.f32 0.0, %v3732
        %v3734 = vpop.f32.mrf.mxu0
        %v3735 = vpop.f32.mrf.mxu0
        %v3736 = vadd.f32 0.0, %v3735
        %v3737 = vpop.f32.mrf.mxu0
        %3738 = vmatprep.mubr.bf16.mxu0 0
        %3739 = vmatmul.mubr.bf16.gmra.mxu0 %v3484
        %v3740 = vpop.f32.mrf.mxu0
        %v3741 = vadd.f32 0.0, %v3740
        %v3742 = vpop.f32.mrf.mxu0
        %v3743 = vpop.f32.mrf.mxu0
        %v3744 = vadd.f32 0.0, %v3743
        %v3745 = vpop.f32.mrf.mxu0
        %3746 = vmatprep.mubr.bf16.mxu0 0
        %3747 = vmatmul.mubr.bf16.gmra.mxu0 %v3487
        %v3748 = vpop.f32.mrf.mxu0
        %v3749 = vadd.f32 0.0, %v3748
        %v3750 = vpop.f32.mrf.mxu0
        %v3751 = vpop.f32.mrf.mxu0
        %v3752 = vadd.f32 0.0, %v3751
        %v3753 = vpop.f32.mrf.mxu0
        %3754 = vmatprep.mubr.bf16.mxu0 0
        %3755 = vmatmul.mubr.bf16.gmra.mxu0 %v3490
        %v3756 = vpop.f32.mrf.mxu0
        %v3757 = vadd.f32 0.0, %v3756
        %v3758 = vpop.f32.mrf.mxu0
        %v3759 = vpop.f32.mrf.mxu0
        %v3760 = vadd.f32 0.0, %v3759
        %v3761 = vpop.f32.mrf.mxu0
        %3762 = vmatprep.mubr.bf16.mxu0 0
        %3763 = vmatmul.mubr.bf16.gmra.mxu0 %v3493
        %v3764 = vpop.f32.mrf.mxu0
        %v3765 = vadd.f32 0.0, %v3764
        %v3766 = vpop.f32.mrf.mxu0
        %v3767 = vpop.f32.mrf.mxu0
        %v3768 = vadd.f32 0.0, %v3767
        %v3769 = vpop.f32.mrf.mxu0
        %3770 = vmatprep.mubr.bf16.mxu0 0
        %3771 = vmatmul.mubr.bf16.gmra.mxu0 %v3496
        %v3772 = vpop.f32.mrf.mxu0
        %v3773 = vadd.f32 0.0, %v3772
        %v3774 = vpop.f32.mrf.mxu0
        %v3775 = vpop.f32.mrf.mxu0
        %v3776 = vadd.f32 0.0, %v3775
        %v3777 = vpop.f32.mrf.mxu0
        %3778 = vmatprep.mubr.bf16.mxu0 0
        %3779 = vmatmul.mubr.bf16.gmra.mxu0 %v3499
        %v3780 = vpop.f32.mrf.mxu0
        %v3781 = vadd.f32 0.0, %v3780
        %v3782 = vpop.f32.mrf.mxu0
        %v3783 = vpop.f32.mrf.mxu0
        %v3784 = vadd.f32 0.0, %v3783
        %v3785 = vpop.f32.mrf.mxu0
        %3786 = vmatprep.mubr.bf16.mxu0 0
        %3787 = vmatmul.mubr.bf16.gmra.mxu0 %v3502
        %v3788 = vpop.f32.mrf.mxu0
        %v3789 = vadd.f32 0.0, %v3788
        %v3790 = vpop.f32.mrf.mxu0
        %v3791 = vpop.f32.mrf.mxu0
        %v3792 = vadd.f32 0.0, %v3791
        %v3793 = vpop.f32.mrf.mxu0
        %3794 = vmatprep.mubr.bf16.mxu0 0
        %3795 = vmatmul.mubr.bf16.gmra.mxu0 %v3505
        %v3796 = vpop.f32.mrf.mxu0
        %v3797 = vadd.f32 0.0, %v3796
        %v3798 = vpop.f32.mrf.mxu0
        %v3799 = vpop.f32.mrf.mxu0
        %v3800 = vadd.f32 0.0, %v3799
        %v3801 = vpop.f32.mrf.mxu0
        %3802 = vmatprep.mubr.bf16.mxu0 0
        %3803 = vmatmul.mubr.bf16.gmra.mxu0 %v3508
        %v3804 = vpop.f32.mrf.mxu0
        %v3805 = vadd.f32 0.0, %v3804
        %v3806 = vpop.f32.mrf.mxu0
        %v3807 = vpop.f32.mrf.mxu0
        %v3808 = vadd.f32 0.0, %v3807
        %v3809 = vpop.f32.mrf.mxu0
        %3810 = vmatprep.mubr.bf16.mxu0 0
        %3811 = vmatmul.mubr.bf16.gmra.mxu0 %v3511
        %v3812 = vpop.f32.mrf.mxu0
        %v3813 = vadd.f32 0.0, %v3812
        %v3814 = vpop.f32.mrf.mxu0
        %v3815 = vpop.f32.mrf.mxu0
        %v3816 = vadd.f32 0.0, %v3815
        %v3817 = vpop.f32.mrf.mxu0
        %3818 = vmatprep.mubr.bf16.mxu0 0
        %3819 = vmatmul.mubr.bf16.gmra.mxu0 %v3514
        %v3820 = vpop.f32.mrf.mxu0
        %v3821 = vadd.f32 0.0, %v3820
        %v3822 = vpop.f32.mrf.mxu0
        %v3823 = vpop.f32.mrf.mxu0
        %v3824 = vadd.f32 0.0, %v3823
        %v3825 = vpop.f32.mrf.mxu0
        %3826 = vmatprep.mubr.bf16.mxu0 0
        %3827 = vmatmul.mubr.bf16.gmra.mxu0 %v3517
        %v3828 = vpop.f32.mrf.mxu0
        %v3829 = vadd.f32 0.0, %v3828
        %v3830 = vpop.f32.mrf.mxu0
        %v3831 = vpop.f32.mrf.mxu0
        %v3832 = vadd.f32 0.0, %v3831
        %v3833 = vpop.f32.mrf.mxu0
        %3834 = vmatprep.mubr.bf16.mxu0 0
        %3835 = vmatmul.mubr.bf16.gmra.mxu0 %v3520
        %v3836 = vpop.f32.mrf.mxu0
        %v3837 = vadd.f32 0.0, %v3836
        %v3838 = vpop.f32.mrf.mxu0
        %v3839 = vpop.f32.mrf.mxu0
        %v3840 = vadd.f32 0.0, %v3839
        %v3841 = vpop.f32.mrf.mxu0
        %3842 = vmatprep.mubr.bf16.mxu0 0
        %3843 = vmatmul.mubr.bf16.gmra.mxu0 %v3523
        %v3844 = vpop.f32.mrf.mxu0
        %v3845 = vadd.f32 0.0, %v3844
        %v3846 = vpop.f32.mrf.mxu0
        %v3847 = vpop.f32.mrf.mxu0
        %v3848 = vadd.f32 0.0, %v3847
        %v3849 = vpop.f32.mrf.mxu0
        %3850 = vmatprep.mubr.bf16.mxu0 0
        %3851 = vmatmul.mubr.bf16.gmra.mxu0 %v3526
        %v3852 = vpop.f32.mrf.mxu0
        %v3853 = vadd.f32 0.0, %v3852
        %v3854 = vpop.f32.mrf.mxu0
        %v3855 = vpop.f32.mrf.mxu0
        %v3856 = vadd.f32 0.0, %v3855
        %v3857 = vpop.f32.mrf.mxu0
        %3858 = vmatprep.mubr.bf16.mxu0 0
        %3859 = vmatmul.mubr.bf16.gmra.mxu0 %v3529
        %v3860 = vpop.f32.mrf.mxu0
        %v3861 = vadd.f32 0.0, %v3860
        %v3862 = vpop.f32.mrf.mxu0
        %v3863 = vpop.f32.mrf.mxu0
        %v3864 = vadd.f32 0.0, %v3863
        %v3865 = vpop.f32.mrf.mxu0
        %3866 = vmatprep.mubr.bf16.mxu0 0
        %3867 = vmatmul.mubr.bf16.gmra.mxu0 %v3532
        %v3868 = vpop.f32.mrf.mxu0
        %v3869 = vadd.f32 0.0, %v3868
        %v3870 = vpop.f32.mrf.mxu0
        %v3871 = vpop.f32.mrf.mxu0
        %v3872 = vadd.f32 0.0, %v3871
        %v3873 = vpop.f32.mrf.mxu0
        %3874 = vmatprep.mubr.bf16.mxu0 0
        %3875 = vmatmul.mubr.bf16.gmra.mxu0 %v3535
        %v3876 = vpop.f32.mrf.mxu0
        %v3877 = vadd.f32 0.0, %v3876
        %v3878 = vpop.f32.mrf.mxu0
        %v3879 = vpop.f32.mrf.mxu0
        %v3880 = vadd.f32 0.0, %v3879
        %v3881 = vpop.f32.mrf.mxu0
        %3882 = vmatprep.mubr.bf16.mxu0 0
        %3883 = vmatmul.mubr.bf16.gmra.mxu0 %v3538
        %v3884 = vpop.f32.mrf.mxu0
        %v3885 = vadd.f32 0.0, %v3884
        %v3886 = vpop.f32.mrf.mxu0
        %v3887 = vpop.f32.mrf.mxu0
        %v3888 = vadd.f32 0.0, %v3887
        %v3889 = vpop.f32.mrf.mxu0
        %3890 = vmatprep.mubr.bf16.mxu0 0
        %3891 = vmatmul.mubr.bf16.gmra.mxu0 %v3541
        %v3892 = vpop.f32.mrf.mxu0
        %v3893 = vadd.f32 0.0, %v3892
        %v3894 = vpop.f32.mrf.mxu0
        %v3895 = vpop.f32.mrf.mxu0
        %v3896 = vadd.f32 0.0, %v3895
        %v3897 = vpop.f32.mrf.mxu0
        %3898 = vdwg.mxu0
        %v3899 = vadd.f32 %v3051, %v3581
        %v3900 = vadd.f32 %v3052, %v3584
        %v3901 = vadd.f32 %v3053, %v3589
        %v3902 = vadd.f32 %v3054, %v3592
        %v3903 = vadd.f32 %v3055, %v3597
        %v3904 = vadd.f32 %v3056, %v3600
        %v3905 = vadd.f32 %v3057, %v3605
        %v3906 = vadd.f32 %v3058, %v3608
        %v3907 = vadd.f32 %v3059, %v3613
        %v3908 = vadd.f32 %v3060, %v3616
        %v3909 = vadd.f32 %v3061, %v3621
        %v3910 = vadd.f32 %v3062, %v3624
        %v3911 = vadd.f32 %v3063, %v3629
        %v3912 = vadd.f32 %v3064, %v3632
        %v3913 = vadd.f32 %v3065, %v3637
        %v3914 = vadd.f32 %v3066, %v3640
        %v3915 = vadd.f32 %v3067, %v3645
        %v3916 = vadd.f32 %v3068, %v3648
        %v3917 = vadd.f32 %v3069, %v3653
        %v3918 = vadd.f32 %v3070, %v3656
        %v3919 = vadd.f32 %v3071, %v3661
        %v3920 = vadd.f32 %v3072, %v3664
        %v3921 = vadd.f32 %v3073, %v3669
        %v3922 = vadd.f32 %v3074, %v3672
        %v3923 = vadd.f32 %v3075, %v3677
        %v3924 = vadd.f32 %v3076, %v3680
        %v3925 = vadd.f32 %v3077, %v3685
        %v3926 = vadd.f32 %v3078, %v3688
        %v3927 = vadd.f32 %v3079, %v3693
        %v3928 = vadd.f32 %v3080, %v3696
        %v3929 = vadd.f32 %v3081, %v3701
        %v3930 = vadd.f32 %v3082, %v3704
        %v3931 = vadd.f32 %v3083, %v3709
        %v3932 = vadd.f32 %v3084, %v3712
        %v3933 = vadd.f32 %v3085, %v3717
        %v3934 = vadd.f32 %v3086, %v3720
        %v3935 = vadd.f32 %v3087, %v3725
        %v3936 = vadd.f32 %v3088, %v3728
        %v3937 = vadd.f32 %v3089, %v3733
        %v3938 = vadd.f32 %v3090, %v3736
        %v3939 = vadd.f32 %v3091, %v3741
        %v3940 = vadd.f32 %v3092, %v3744
        %v3941 = vadd.f32 %v3093, %v3749
        %v3942 = vadd.f32 %v3094, %v3752
        %v3943 = vadd.f32 %v3095, %v3757
        %v3944 = vadd.f32 %v3096, %v3760
        %v3945 = vadd.f32 %v3097, %v3765
        %v3946 = vadd.f32 %v3098, %v3768
        %v3947 = vadd.f32 %v3099, %v3773
        %v3948 = vadd.f32 %v3100, %v3776
        %v3949 = vadd.f32 %v3101, %v3781
        %v3950 = vadd.f32 %v3102, %v3784
        %v3951 = vadd.f32 %v3103, %v3789
        %v3952 = vadd.f32 %v3104, %v3792
        %v3953 = vadd.f32 %v3105, %v3797
        %v3954 = vadd.f32 %v3106, %v3800
        %v3955 = vadd.f32 %v3107, %v3805
        %v3956 = vadd.f32 %v3108, %v3808
        %v3957 = vadd.f32 %v3109, %v3813
        %v3958 = vadd.f32 %v3110, %v3816
        %v3959 = vadd.f32 %v3111, %v3821
        %v3960 = vadd.f32 %v3112, %v3824
        %v3961 = vadd.f32 %v3113, %v3829
        %v3962 = vadd.f32 %v3114, %v3832
        %v3963 = vadd.f32 %v3115, %v3837
        %v3964 = vadd.f32 %v3116, %v3840
        %v3965 = vadd.f32 %v3117, %v3845
        %v3966 = vadd.f32 %v3118, %v3848
        %v3967 = vadd.f32 %v3119, %v3853
        %v3968 = vadd.f32 %v3120, %v3856
        %v3969 = vadd.f32 %v3121, %v3861
        %v3970 = vadd.f32 %v3122, %v3864
        %v3971 = vadd.f32 %v3123, %v3869
        %v3972 = vadd.f32 %v3124, %v3872
        %v3973 = vadd.f32 %v3125, %v3877
        %v3974 = vadd.f32 %v3126, %v3880
        %v3975 = vadd.f32 %v3127, %v3885
        %v3976 = vadd.f32 %v3128, %v3888
        %v3977 = vadd.f32 %v3129, %v3893
        %v3978 = vadd.f32 %v3130, %v3896
        %3979 = vst.msk [vmem:[#allocation2] sm:$0xff] %vm951, %v3899
        %3980 = vst.msk [vmem:[#allocation2 + $0x8] sm:$0xff] %vm951, %v3900
        %3981 = vst.msk [vmem:[#allocation2 + $0x10] sm:$0xff] %vm951, %v3901
        %3982 = vst.msk [vmem:[#allocation2 + $0x18] sm:$0xff] %vm951, %v3902
        %3983 = vst.msk [vmem:[#allocation2 + $0x20] sm:$0xff] %vm951, %v3903
        %3984 = vst.msk [vmem:[#allocation2 + $0x28] sm:$0xff] %vm951, %v3904
        %3985 = vst.msk [vmem:[#allocation2 + $0x30] sm:$0xff] %vm951, %v3905
        %3986 = vst.msk [vmem:[#allocation2 + $0x38] sm:$0xff] %vm951, %v3906
        %3987 = vst.msk [vmem:[#allocation2 + $0x40] sm:$0xff] %vm951, %v3907
        %3988 = vst.msk [vmem:[#allocation2 + $0x48] sm:$0xff] %vm951, %v3908
        %3989 = vst.msk [vmem:[#allocation2 + $0x50] sm:$0xff] %vm951, %v3909
        %3990 = vst.msk [vmem:[#allocation2 + $0x58] sm:$0xff] %vm951, %v3910
        %3991 = vst.msk [vmem:[#allocation2 + $0x60] sm:$0xff] %vm951, %v3911
        %3992 = vst.msk [vmem:[#allocation2 + $0x68] sm:$0xff] %vm951, %v3912
        %3993 = vst.msk [vmem:[#allocation2 + $0x70] sm:$0xff] %vm951, %v3913
        %3994 = vst.msk [vmem:[#allocation2 + $0x78] sm:$0xff] %vm951, %v3914
        %3995 = vst.msk [vmem:[#allocation2 + $0x80] sm:$0xff] %vm951, %v3915
        %3996 = vst.msk [vmem:[#allocation2 + $0x88] sm:$0xff] %vm951, %v3916
        %3997 = vst.msk [vmem:[#allocation2 + $0x90] sm:$0xff] %vm951, %v3917
        %3998 = vst.msk [vmem:[#allocation2 + $0x98] sm:$0xff] %vm951, %v3918
        %3999 = vst.msk [vmem:[#allocation2 + $0xa0] sm:$0xff] %vm951, %v3919
        %4000 = vst.msk [vmem:[#allocation2 + $0xa8] sm:$0xff] %vm951, %v3920
        %4001 = vst.msk [vmem:[#allocation2 + $0xb0] sm:$0xff] %vm951, %v3921
        %4002 = vst.msk [vmem:[#allocation2 + $0xb8] sm:$0xff] %vm951, %v3922
        %4003 = vst.msk [vmem:[#allocation2 + $0xc0] sm:$0xff] %vm951, %v3923
        %4004 = vst.msk [vmem:[#allocation2 + $0xc8] sm:$0xff] %vm951, %v3924
        %4005 = vst.msk [vmem:[#allocation2 + $0xd0] sm:$0xff] %vm951, %v3925
        %4006 = vst.msk [vmem:[#allocation2 + $0xd8] sm:$0xff] %vm951, %v3926
        %4007 = vst.msk [vmem:[#allocation2 + $0xe0] sm:$0xff] %vm951, %v3927
        %4008 = vst.msk [vmem:[#allocation2 + $0xe8] sm:$0xff] %vm951, %v3928
        %4009 = vst.msk [vmem:[#allocation2 + $0xf0] sm:$0xff] %vm951, %v3929
        %4010 = vst.msk [vmem:[#allocation2 + $0xf8] sm:$0xff] %vm951, %v3930
        %4011 = vst.msk [vmem:[#allocation2 + $0x100] sm:$0xff] %vm951, %v3931
        %4012 = vst.msk [vmem:[#allocation2 + $0x108] sm:$0xff] %vm951, %v3932
        %4013 = vst.msk [vmem:[#allocation2 + $0x110] sm:$0xff] %vm951, %v3933
        %4014 = vst.msk [vmem:[#allocation2 + $0x118] sm:$0xff] %vm951, %v3934
        %4015 = vst.msk [vmem:[#allocation2 + $0x120] sm:$0xff] %vm951, %v3935
        %4016 = vst.msk [vmem:[#allocation2 + $0x128] sm:$0xff] %vm951, %v3936
        %4017 = vst.msk [vmem:[#allocation2 + $0x130] sm:$0xff] %vm951, %v3937
        %4018 = vst.msk [vmem:[#allocation2 + $0x138] sm:$0xff] %vm951, %v3938
        %4019 = vst.msk [vmem:[#allocation2 + $0x140] sm:$0xff] %vm951, %v3939
        %4020 = vst.msk [vmem:[#allocation2 + $0x148] sm:$0xff] %vm951, %v3940
        %4021 = vst.msk [vmem:[#allocation2 + $0x150] sm:$0xff] %vm951, %v3941
        %4022 = vst.msk [vmem:[#allocation2 + $0x158] sm:$0xff] %vm951, %v3942
        %4023 = vst.msk [vmem:[#allocation2 + $0x160] sm:$0xff] %vm951, %v3943
        %4024 = vst.msk [vmem:[#allocation2 + $0x168] sm:$0xff] %vm951, %v3944
        %4025 = vst.msk [vmem:[#allocation2 + $0x170] sm:$0xff] %vm951, %v3945
        %4026 = vst.msk [vmem:[#allocation2 + $0x178] sm:$0xff] %vm951, %v3946
        %4027 = vst.msk [vmem:[#allocation2 + $0x180] sm:$0xff] %vm951, %v3947
        %4028 = vst.msk [vmem:[#allocation2 + $0x188] sm:$0xff] %vm951, %v3948
        %4029 = vst.msk [vmem:[#allocation2 + $0x190] sm:$0xff] %vm951, %v3949
        %4030 = vst.msk [vmem:[#allocation2 + $0x198] sm:$0xff] %vm951, %v3950
        %4031 = vst.msk [vmem:[#allocation2 + $0x1a0] sm:$0xff] %vm951, %v3951
        %4032 = vst.msk [vmem:[#allocation2 + $0x1a8] sm:$0xff] %vm951, %v3952
        %4033 = vst.msk [vmem:[#allocation2 + $0x1b0] sm:$0xff] %vm951, %v3953
        %4034 = vst.msk [vmem:[#allocation2 + $0x1b8] sm:$0xff] %vm951, %v3954
        %4035 = vst.msk [vmem:[#allocation2 + $0x1c0] sm:$0xff] %vm951, %v3955
        %4036 = vst.msk [vmem:[#allocation2 + $0x1c8] sm:$0xff] %vm951, %v3956
        %4037 = vst.msk [vmem:[#allocation2 + $0x1d0] sm:$0xff] %vm951, %v3957
        %4038 = vst.msk [vmem:[#allocation2 + $0x1d8] sm:$0xff] %vm951, %v3958
        %4039 = vst.msk [vmem:[#allocation2 + $0x1e0] sm:$0xff] %vm951, %v3959
        %4040 = vst.msk [vmem:[#allocation2 + $0x1e8] sm:$0xff] %vm951, %v3960
        %4041 = vst.msk [vmem:[#allocation2 + $0x1f0] sm:$0xff] %vm951, %v3961
        %4042 = vst.msk [vmem:[#allocation2 + $0x1f8] sm:$0xff] %vm951, %v3962
        %4043 = vst.msk [vmem:[#allocation2 + $0x200] sm:$0xff] %vm951, %v3963
        %4044 = vst.msk [vmem:[#allocation2 + $0x208] sm:$0xff] %vm951, %v3964
        %4045 = vst.msk [vmem:[#allocation2 + $0x210] sm:$0xff] %vm951, %v3965
        %4046 = vst.msk [vmem:[#allocation2 + $0x218] sm:$0xff] %vm951, %v3966
        %4047 = vst.msk [vmem:[#allocation2 + $0x220] sm:$0xff] %vm951, %v3967
        %4048 = vst.msk [vmem:[#allocation2 + $0x228] sm:$0xff] %vm951, %v3968
        %4049 = vst.msk [vmem:[#allocation2 + $0x230] sm:$0xff] %vm951, %v3969
        %4050 = vst.msk [vmem:[#allocation2 + $0x238] sm:$0xff] %vm951, %v3970
        %4051 = vst.msk [vmem:[#allocation2 + $0x240] sm:$0xff] %vm951, %v3971
        %4052 = vst.msk [vmem:[#allocation2 + $0x248] sm:$0xff] %vm951, %v3972
        %4053 = vst.msk [vmem:[#allocation2 + $0x250] sm:$0xff] %vm951, %v3973
        %4054 = vst.msk [vmem:[#allocation2 + $0x258] sm:$0xff] %vm951, %v3974
        %4055 = vst.msk [vmem:[#allocation2 + $0x260] sm:$0xff] %vm951, %v3975
        %4056 = vst.msk [vmem:[#allocation2 + $0x268] sm:$0xff] %vm951, %v3976
        %4057 = vst.msk [vmem:[#allocation2 + $0x270] sm:$0xff] %vm951, %v3977
        %4058 = vst.msk [vmem:[#allocation2 + $0x278] sm:$0xff] %vm951, %v3978
        %s4059 = sadd.s32 %s178, 640
        %v4060 = vld [vmem:[#allocation2] sm:$0xff]
        %v4061 = vld [vmem:[#allocation2 + $0x8] sm:$0xff]
        %v4062 = vld [vmem:[#allocation2 + $0x10] sm:$0xff]
        %v4063 = vld [vmem:[#allocation2 + $0x18] sm:$0xff]
        %v4064 = vld [vmem:[#allocation2 + $0x20] sm:$0xff]
        %v4065 = vld [vmem:[#allocation2 + $0x28] sm:$0xff]
        %v4066 = vld [vmem:[#allocation2 + $0x30] sm:$0xff]
        %v4067 = vld [vmem:[#allocation2 + $0x38] sm:$0xff]
        %v4068 = vld [vmem:[#allocation2 + $0x40] sm:$0xff]
        %v4069 = vld [vmem:[#allocation2 + $0x48] sm:$0xff]
        %v4070 = vld [vmem:[#allocation2 + $0x50] sm:$0xff]
        %v4071 = vld [vmem:[#allocation2 + $0x58] sm:$0xff]
        %v4072 = vld [vmem:[#allocation2 + $0x60] sm:$0xff]
        %v4073 = vld [vmem:[#allocation2 + $0x68] sm:$0xff]
        %v4074 = vld [vmem:[#allocation2 + $0x70] sm:$0xff]
        %v4075 = vld [vmem:[#allocation2 + $0x78] sm:$0xff]
        %v4076 = vld [vmem:[#allocation2 + $0x80] sm:$0xff]
        %v4077 = vld [vmem:[#allocation2 + $0x88] sm:$0xff]
        %v4078 = vld [vmem:[#allocation2 + $0x90] sm:$0xff]
        %v4079 = vld [vmem:[#allocation2 + $0x98] sm:$0xff]
        %v4080 = vld [vmem:[#allocation2 + $0xa0] sm:$0xff]
        %v4081 = vld [vmem:[#allocation2 + $0xa8] sm:$0xff]
        %v4082 = vld [vmem:[#allocation2 + $0xb0] sm:$0xff]
        %v4083 = vld [vmem:[#allocation2 + $0xb8] sm:$0xff]
        %v4084 = vld [vmem:[#allocation2 + $0xc0] sm:$0xff]
        %v4085 = vld [vmem:[#allocation2 + $0xc8] sm:$0xff]
        %v4086 = vld [vmem:[#allocation2 + $0xd0] sm:$0xff]
        %v4087 = vld [vmem:[#allocation2 + $0xd8] sm:$0xff]
        %v4088 = vld [vmem:[#allocation2 + $0xe0] sm:$0xff]
        %v4089 = vld [vmem:[#allocation2 + $0xe8] sm:$0xff]
        %v4090 = vld [vmem:[#allocation2 + $0xf0] sm:$0xff]
        %v4091 = vld [vmem:[#allocation2 + $0xf8] sm:$0xff]
        %v4092 = vld [vmem:[#allocation2 + $0x100] sm:$0xff]
        %v4093 = vld [vmem:[#allocation2 + $0x108] sm:$0xff]
        %v4094 = vld [vmem:[#allocation2 + $0x110] sm:$0xff]
        %v4095 = vld [vmem:[#allocation2 + $0x118] sm:$0xff]
        %v4096 = vld [vmem:[#allocation2 + $0x120] sm:$0xff]
        %v4097 = vld [vmem:[#allocation2 + $0x128] sm:$0xff]
        %v4098 = vld [vmem:[#allocation2 + $0x130] sm:$0xff]
        %v4099 = vld [vmem:[#allocation2 + $0x138] sm:$0xff]
        %v4100 = vld [vmem:[#allocation2 + $0x140] sm:$0xff]
        %v4101 = vld [vmem:[#allocation2 + $0x148] sm:$0xff]
        %v4102 = vld [vmem:[#allocation2 + $0x150] sm:$0xff]
        %v4103 = vld [vmem:[#allocation2 + $0x158] sm:$0xff]
        %v4104 = vld [vmem:[#allocation2 + $0x160] sm:$0xff]
        %v4105 = vld [vmem:[#allocation2 + $0x168] sm:$0xff]
        %v4106 = vld [vmem:[#allocation2 + $0x170] sm:$0xff]
        %v4107 = vld [vmem:[#allocation2 + $0x178] sm:$0xff]
        %v4108 = vld [vmem:[#allocation2 + $0x180] sm:$0xff]
        %v4109 = vld [vmem:[#allocation2 + $0x188] sm:$0xff]
        %v4110 = vld [vmem:[#allocation2 + $0x190] sm:$0xff]
        %v4111 = vld [vmem:[#allocation2 + $0x198] sm:$0xff]
        %v4112 = vld [vmem:[#allocation2 + $0x1a0] sm:$0xff]
        %v4113 = vld [vmem:[#allocation2 + $0x1a8] sm:$0xff]
        %v4114 = vld [vmem:[#allocation2 + $0x1b0] sm:$0xff]
        %v4115 = vld [vmem:[#allocation2 + $0x1b8] sm:$0xff]
        %v4116 = vld [vmem:[#allocation2 + $0x1c0] sm:$0xff]
        %v4117 = vld [vmem:[#allocation2 + $0x1c8] sm:$0xff]
        %v4118 = vld [vmem:[#allocation2 + $0x1d0] sm:$0xff]
        %v4119 = vld [vmem:[#allocation2 + $0x1d8] sm:$0xff]
        %v4120 = vld [vmem:[#allocation2 + $0x1e0] sm:$0xff]
        %v4121 = vld [vmem:[#allocation2 + $0x1e8] sm:$0xff]
        %v4122 = vld [vmem:[#allocation2 + $0x1f0] sm:$0xff]
        %v4123 = vld [vmem:[#allocation2 + $0x1f8] sm:$0xff]
        %v4124 = vld [vmem:[#allocation2 + $0x200] sm:$0xff]
        %v4125 = vld [vmem:[#allocation2 + $0x208] sm:$0xff]
        %v4126 = vld [vmem:[#allocation2 + $0x210] sm:$0xff]
        %v4127 = vld [vmem:[#allocation2 + $0x218] sm:$0xff]
        %v4128 = vld [vmem:[#allocation2 + $0x220] sm:$0xff]
        %v4129 = vld [vmem:[#allocation2 + $0x228] sm:$0xff]
        %v4130 = vld [vmem:[#allocation2 + $0x230] sm:$0xff]
        %v4131 = vld [vmem:[#allocation2 + $0x238] sm:$0xff]
        %v4132 = vld [vmem:[#allocation2 + $0x240] sm:$0xff]
        %v4133 = vld [vmem:[#allocation2 + $0x248] sm:$0xff]
        %v4134 = vld [vmem:[#allocation2 + $0x250] sm:$0xff]
        %v4135 = vld [vmem:[#allocation2 + $0x258] sm:$0xff]
        %v4136 = vld [vmem:[#allocation2 + $0x260] sm:$0xff]
        %v4137 = vld [vmem:[#allocation2 + $0x268] sm:$0xff]
        %v4138 = vld [vmem:[#allocation2 + $0x270] sm:$0xff]
        %v4139 = vld [vmem:[#allocation2 + $0x278] sm:$0xff]
        %s4140 = sshra.s32 %s4059, 3
        %s4141 = sand.u32 %s4059, 7
        %s4142 = smul.addr %s4140, 4
        %s4143 = scalar_lea.vmem %s165, %s4142
        %v4144 = vld [vmem:[%s4143] sm:$0xf]
        %v4145 = vld [vmem:[%s4143 + $0x4] sm:$0xf]
        %v4146 = vld [vmem:[%s4143 + $0x8] sm:$0xf]
        %v4147 = vld [vmem:[%s4143 + $0xc] sm:$0xf]
        %v4148 = vld [vmem:[%s4143 + $0x10] sm:$0xf]
        %v4149 = vld [vmem:[%s4143 + $0x14] sm:$0xf]
        %v4150 = vld [vmem:[%s4143 + $0x18] sm:$0xf]
        %v4151 = vld [vmem:[%s4143 + $0x1c] sm:$0xf]
        %v4152 = vld [vmem:[%s4143 + $0x20] sm:$0xf]
        %v4153 = vld [vmem:[%s4143 + $0x24] sm:$0xf]
        %v4154 = vld [vmem:[%s4143 + $0x28] sm:$0xf]
        %v4155 = vld [vmem:[%s4143 + $0x2c] sm:$0xf]
        %v4156 = vld [vmem:[%s4143 + $0x30] sm:$0xf]
        %v4157 = vld [vmem:[%s4143 + $0x34] sm:$0xf]
        %v4158 = vld [vmem:[%s4143 + $0x38] sm:$0xf]
        %v4159 = vld [vmem:[%s4143 + $0x3c] sm:$0xf]
        %v4160 = vld [vmem:[%s4143 + $0x40] sm:$0xf]
        %v4161 = vld [vmem:[%s4143 + $0x44] sm:$0xf]
        %v4162 = vld [vmem:[%s4143 + $0x48] sm:$0xf]
        %v4163 = vld [vmem:[%s4143 + $0x4c] sm:$0xf]
        %v4164 = vld [vmem:[%s4143 + $0x50] sm:$0xf]
        %v4165 = vld [vmem:[%s4143 + $0x54] sm:$0xf]
        %v4166 = vld [vmem:[%s4143 + $0x58] sm:$0xf]
        %v4167 = vld [vmem:[%s4143 + $0x5c] sm:$0xf]
        %v4168 = vld [vmem:[%s4143 + $0x60] sm:$0xf]
        %v4169 = vld [vmem:[%s4143 + $0x64] sm:$0xf]
        %v4170 = vld [vmem:[%s4143 + $0x68] sm:$0xf]
        %v4171 = vld [vmem:[%s4143 + $0x6c] sm:$0xf]
        %v4172 = vld [vmem:[%s4143 + $0x70] sm:$0xf]
        %v4173 = vld [vmem:[%s4143 + $0x74] sm:$0xf]
        %v4174 = vld [vmem:[%s4143 + $0x78] sm:$0xf]
        %v4175 = vld [vmem:[%s4143 + $0x7c] sm:$0xf]
        %v4176 = vld [vmem:[%s4143 + $0x80] sm:$0xf]
        %v4177 = vld [vmem:[%s4143 + $0x84] sm:$0xf]
        %v4178 = vld [vmem:[%s4143 + $0x88] sm:$0xf]
        %v4179 = vld [vmem:[%s4143 + $0x8c] sm:$0xf]
        %v4180 = vld [vmem:[%s4143 + $0x90] sm:$0xf]
        %v4181 = vld [vmem:[%s4143 + $0x94] sm:$0xf]
        %v4182 = vld [vmem:[%s4143 + $0x98] sm:$0xf]
        %v4183 = vld [vmem:[%s4143 + $0x9c] sm:$0xf]
        %v4184 = vld [vmem:[%s4143 + $0xa0] sm:$0xf]
        %v4185 = vld [vmem:[%s4143 + $0xa4] sm:$0xf]
        %v4186 = vld [vmem:[%s4143 + $0xa8] sm:$0xf]
        %v4187 = vld [vmem:[%s4143 + $0xac] sm:$0xf]
        %v4188 = vld [vmem:[%s4143 + $0xb0] sm:$0xf]
        %v4189 = vld [vmem:[%s4143 + $0xb4] sm:$0xf]
        %v4190 = vld [vmem:[%s4143 + $0xb8] sm:$0xf]
        %v4191 = vld [vmem:[%s4143 + $0xbc] sm:$0xf]
        %v4192 = vld [vmem:[%s4143 + $0xc0] sm:$0xf]
        %v4193 = vld [vmem:[%s4143 + $0xc4] sm:$0xf]
        %v4194 = vld [vmem:[%s4143 + $0xc8] sm:$0xf]
        %v4195 = vld [vmem:[%s4143 + $0xcc] sm:$0xf]
        %v4196 = vld [vmem:[%s4143 + $0xd0] sm:$0xf]
        %v4197 = vld [vmem:[%s4143 + $0xd4] sm:$0xf]
        %v4198 = vld [vmem:[%s4143 + $0xd8] sm:$0xf]
        %v4199 = vld [vmem:[%s4143 + $0xdc] sm:$0xf]
        %v4200 = vld [vmem:[%s4143 + $0xe0] sm:$0xf]
        %v4201 = vld [vmem:[%s4143 + $0xe4] sm:$0xf]
        %v4202 = vld [vmem:[%s4143 + $0xe8] sm:$0xf]
        %v4203 = vld [vmem:[%s4143 + $0xec] sm:$0xf]
        %v4204 = vld [vmem:[%s4143 + $0xf0] sm:$0xf]
        %v4205 = vld [vmem:[%s4143 + $0xf4] sm:$0xf]
        %v4206 = vld [vmem:[%s4143 + $0xf8] sm:$0xf]
        %v4207 = vld [vmem:[%s4143 + $0xfc] sm:$0xf]
        %v4208 = vld [vmem:[%s4143 + $0x100] sm:$0xf]
        %v4209 = vld [vmem:[%s4143 + $0x104] sm:$0xf]
        %v4210 = vld [vmem:[%s4143 + $0x108] sm:$0xf]
        %v4211 = vld [vmem:[%s4143 + $0x10c] sm:$0xf]
        %v4212 = vld [vmem:[%s4143 + $0x110] sm:$0xf]
        %v4213 = vld [vmem:[%s4143 + $0x114] sm:$0xf]
        %v4214 = vld [vmem:[%s4143 + $0x118] sm:$0xf]
        %v4215 = vld [vmem:[%s4143 + $0x11c] sm:$0xf]
        %v4216 = vld [vmem:[%s4143 + $0x120] sm:$0xf]
        %v4217 = vld [vmem:[%s4143 + $0x124] sm:$0xf]
        %v4218 = vld [vmem:[%s4143 + $0x128] sm:$0xf]
        %v4219 = vld [vmem:[%s4143 + $0x12c] sm:$0xf]
        %v4220 = vld [vmem:[%s4143 + $0x130] sm:$0xf]
        %v4221 = vld [vmem:[%s4143 + $0x134] sm:$0xf]
        %v4222 = vld [vmem:[%s4143 + $0x138] sm:$0xf]
        %v4223 = vld [vmem:[%s4143 + $0x13c] sm:$0xf]
        %s4224 = scalar_lea.vmem %s1, 32
        %v4225 = vld [vmem:[%s4224] sm:$0xf]
        %v4226 = vld [vmem:[%s4224 + $0x4] sm:$0xf]
        %v4307 = vunpack.c.l.b16 %v4144
        %v4308 = vunpack.c.l.b16 %v4145
        %v4309 = vunpack.c.l.b16 %v4146
        %v4310 = vunpack.c.l.b16 %v4147
        %v4311 = vunpack.c.l.b16 %v4148
        %v4312 = vunpack.c.l.b16 %v4149
        %v4313 = vunpack.c.l.b16 %v4150
        %v4314 = vunpack.c.l.b16 %v4151
        %v4315 = vunpack.c.l.b16 %v4152
        %v4316 = vunpack.c.l.b16 %v4153
        %v4317 = vunpack.c.l.b16 %v4154
        %v4318 = vunpack.c.l.b16 %v4155
        %v4319 = vunpack.c.l.b16 %v4156
        %v4320 = vunpack.c.l.b16 %v4157
        %v4321 = vunpack.c.l.b16 %v4158
        %v4322 = vunpack.c.l.b16 %v4159
        %v4323 = vunpack.c.l.b16 %v4160
        %v4324 = vunpack.c.l.b16 %v4161
        %v4325 = vunpack.c.l.b16 %v4162
        %v4326 = vunpack.c.l.b16 %v4163
        %v4327 = vunpack.c.l.b16 %v4164
        %v4328 = vunpack.c.l.b16 %v4165
        %v4329 = vunpack.c.l.b16 %v4166
        %v4330 = vunpack.c.l.b16 %v4167
        %v4331 = vunpack.c.l.b16 %v4168
        %v4332 = vunpack.c.l.b16 %v4169
        %v4333 = vunpack.c.l.b16 %v4170
        %v4334 = vunpack.c.l.b16 %v4171
        %v4335 = vunpack.c.l.b16 %v4172
        %v4336 = vunpack.c.l.b16 %v4173
        %v4337 = vunpack.c.l.b16 %v4174
        %v4338 = vunpack.c.l.b16 %v4175
        %v4339 = vunpack.c.l.b16 %v4176
        %v4340 = vunpack.c.l.b16 %v4177
        %v4341 = vunpack.c.l.b16 %v4178
        %v4342 = vunpack.c.l.b16 %v4179
        %v4343 = vunpack.c.l.b16 %v4180
        %v4344 = vunpack.c.l.b16 %v4181
        %v4345 = vunpack.c.l.b16 %v4182
        %v4346 = vunpack.c.l.b16 %v4183
        %v4347 = vunpack.c.l.b16 %v4184
        %v4348 = vunpack.c.l.b16 %v4185
        %v4349 = vunpack.c.l.b16 %v4186
        %v4350 = vunpack.c.l.b16 %v4187
        %v4351 = vunpack.c.l.b16 %v4188
        %v4352 = vunpack.c.l.b16 %v4189
        %v4353 = vunpack.c.l.b16 %v4190
        %v4354 = vunpack.c.l.b16 %v4191
        %v4355 = vunpack.c.l.b16 %v4192
        %v4356 = vunpack.c.l.b16 %v4193
        %v4357 = vunpack.c.l.b16 %v4194
        %v4358 = vunpack.c.l.b16 %v4195
        %v4359 = vunpack.c.l.b16 %v4196
        %v4360 = vunpack.c.l.b16 %v4197
        %v4361 = vunpack.c.l.b16 %v4198
        %v4362 = vunpack.c.l.b16 %v4199
        %v4363 = vunpack.c.l.b16 %v4200
        %v4364 = vunpack.c.l.b16 %v4201
        %v4365 = vunpack.c.l.b16 %v4202
        %v4366 = vunpack.c.l.b16 %v4203
        %v4367 = vunpack.c.l.b16 %v4204
        %v4368 = vunpack.c.l.b16 %v4205
        %v4369 = vunpack.c.l.b16 %v4206
        %v4370 = vunpack.c.l.b16 %v4207
        %v4371 = vunpack.c.l.b16 %v4208
        %v4372 = vunpack.c.l.b16 %v4209
        %v4373 = vunpack.c.l.b16 %v4210
        %v4374 = vunpack.c.l.b16 %v4211
        %v4375 = vunpack.c.l.b16 %v4212
        %v4376 = vunpack.c.l.b16 %v4213
        %v4377 = vunpack.c.l.b16 %v4214
        %v4378 = vunpack.c.l.b16 %v4215
        %v4379 = vunpack.c.l.b16 %v4216
        %v4380 = vunpack.c.l.b16 %v4217
        %v4381 = vunpack.c.l.b16 %v4218
        %v4382 = vunpack.c.l.b16 %v4219
        %v4383 = vunpack.c.l.b16 %v4220
        %v4384 = vunpack.c.l.b16 %v4221
        %v4385 = vunpack.c.l.b16 %v4222
        %v4386 = vunpack.c.l.b16 %v4223
        %v4387 = vpack.c.b16 %v4308, %v4307
        %v4388 = vpack.c.b16 %v4310, %v4309
        %v4389 = vpack.c.b16 %v4312, %v4311
        %v4390 = vpack.c.b16 %v4314, %v4313
        %v4391 = vpack.c.b16 %v4316, %v4315
        %v4392 = vpack.c.b16 %v4318, %v4317
        %v4393 = vpack.c.b16 %v4320, %v4319
        %v4394 = vpack.c.b16 %v4322, %v4321
        %v4395 = vpack.c.b16 %v4324, %v4323
        %v4396 = vpack.c.b16 %v4326, %v4325
        %v4397 = vpack.c.b16 %v4328, %v4327
        %v4398 = vpack.c.b16 %v4330, %v4329
        %v4399 = vpack.c.b16 %v4332, %v4331
        %v4400 = vpack.c.b16 %v4334, %v4333
        %v4401 = vpack.c.b16 %v4336, %v4335
        %v4402 = vpack.c.b16 %v4338, %v4337
        %v4403 = vpack.c.b16 %v4340, %v4339
        %v4404 = vpack.c.b16 %v4342, %v4341
        %v4405 = vpack.c.b16 %v4344, %v4343
        %v4406 = vpack.c.b16 %v4346, %v4345
        %v4407 = vpack.c.b16 %v4348, %v4347
        %v4408 = vpack.c.b16 %v4350, %v4349
        %v4409 = vpack.c.b16 %v4352, %v4351
        %v4410 = vpack.c.b16 %v4354, %v4353
        %v4411 = vpack.c.b16 %v4356, %v4355
        %v4412 = vpack.c.b16 %v4358, %v4357
        %v4413 = vpack.c.b16 %v4360, %v4359
        %v4414 = vpack.c.b16 %v4362, %v4361
        %v4415 = vpack.c.b16 %v4364, %v4363
        %v4416 = vpack.c.b16 %v4366, %v4365
        %v4417 = vpack.c.b16 %v4368, %v4367
        %v4418 = vpack.c.b16 %v4370, %v4369
        %v4419 = vpack.c.b16 %v4372, %v4371
        %v4420 = vpack.c.b16 %v4374, %v4373
        %v4421 = vpack.c.b16 %v4376, %v4375
        %v4422 = vpack.c.b16 %v4378, %v4377
        %v4423 = vpack.c.b16 %v4380, %v4379
        %v4424 = vpack.c.b16 %v4382, %v4381
        %v4425 = vpack.c.b16 %v4384, %v4383
        %v4426 = vpack.c.b16 %v4386, %v4385
        %v4429 = vunpack.c.l.b16 %v4225
        %v4430 = vunpack.c.l.b16 %v4226
        %v4431 = vpack.c.b16 %v4430, %v4429
        %v4433 = vsel %vm470, %v4387, 0
        %v4436 = vsel %vm470, %v4388, 0
        %v4439 = vsel %vm470, %v4389, 0
        %v4442 = vsel %vm470, %v4390, 0
        %v4445 = vsel %vm470, %v4391, 0
        %v4448 = vsel %vm470, %v4392, 0
        %v4451 = vsel %vm470, %v4393, 0
        %v4454 = vsel %vm470, %v4394, 0
        %v4457 = vsel %vm470, %v4395, 0
        %v4460 = vsel %vm470, %v4396, 0
        %v4463 = vsel %vm470, %v4397, 0
        %v4466 = vsel %vm470, %v4398, 0
        %v4469 = vsel %vm470, %v4399, 0
        %v4472 = vsel %vm470, %v4400, 0
        %v4475 = vsel %vm470, %v4401, 0
        %v4478 = vsel %vm470, %v4402, 0
        %v4481 = vsel %vm470, %v4403, 0
        %v4484 = vsel %vm470, %v4404, 0
        %v4487 = vsel %vm470, %v4405, 0
        %v4490 = vsel %vm470, %v4406, 0
        %v4493 = vsel %vm470, %v4407, 0
        %v4496 = vsel %vm470, %v4408, 0
        %v4499 = vsel %vm470, %v4409, 0
        %v4502 = vsel %vm470, %v4410, 0
        %v4505 = vsel %vm470, %v4411, 0
        %v4508 = vsel %vm470, %v4412, 0
        %v4511 = vsel %vm470, %v4413, 0
        %v4514 = vsel %vm470, %v4414, 0
        %v4517 = vsel %vm470, %v4415, 0
        %v4520 = vsel %vm470, %v4416, 0
        %v4523 = vsel %vm470, %v4417, 0
        %v4526 = vsel %vm470, %v4418, 0
        %v4529 = vsel %vm470, %v4419, 0
        %v4532 = vsel %vm470, %v4420, 0
        %v4535 = vsel %vm470, %v4421, 0
        %v4538 = vsel %vm470, %v4422, 0
        %v4541 = vsel %vm470, %v4423, 0
        %v4544 = vsel %vm470, %v4424, 0
        %v4547 = vsel %vm470, %v4425, 0
        %v4550 = vsel %vm470, %v4426, 0
        %v4553 = vand.u32 %v4431, %v594
        %4555 = vmatprep.subr.bf16.mxu0 0
        %4556 = vmatpush1.bf16.msra.mxu0 0
        %4557 = vmatprep.subr.bf16.mxu0 0
        %4558 = vmatpush1.bf16.msra.mxu0 0
        %4559 = vmatprep.subr.bf16.mxu0 0
        %4560 = vmatpush1.bf16.msra.mxu0 0
        %4561 = vmatprep.subr.bf16.mxu0 0
        %4562 = vmatpush1.bf16.msra.mxu0 0
        %4563 = vmatprep.subr.bf16.mxu0 0
        %4564 = vmatpush1.bf16.msra.mxu0 0
        %4565 = vmatprep.subr.bf16.mxu0 0
        %4566 = vmatpush1.bf16.msra.mxu0 0
        %4567 = vmatprep.subr.bf16.mxu0 0
        %4568 = vmatpush1.bf16.msra.mxu0 0
        %4569 = vmatprep.subr.bf16.mxu0 0
        %4570 = vmatpush1.bf16.msra.mxu0 %v4553
        %4571 = vmatprep.subr.bf16.mxu0 0
        %4572 = vmatpush2.bf16.msra.mxu0 0
        %4573 = vmatprep.subr.bf16.mxu0 0
        %4574 = vmatpush2.bf16.msra.mxu0 0
        %4575 = vmatprep.subr.bf16.mxu0 0
        %4576 = vmatpush2.bf16.msra.mxu0 0
        %4577 = vmatprep.subr.bf16.mxu0 0
        %4578 = vmatpush2.bf16.msra.mxu0 0
        %4579 = vmatprep.subr.bf16.mxu0 0
        %4580 = vmatpush2.bf16.msra.mxu0 0
        %4581 = vmatprep.subr.bf16.mxu0 0
        %4582 = vmatpush2.bf16.msra.mxu0 0
        %4583 = vmatprep.subr.bf16.mxu0 0
        %4584 = vmatpush2.bf16.msra.mxu0 0
        %4585 = vmatprep.subr.bf16.mxu0 0
        %4586 = vmatpush2.bf16.msra.mxu0 0
        %4587 = vmatprep.mubr.bf16.mxu0 0
        %4588 = vmatmul.mubr.bf16.gmra.mxu0 %v4433
        %v4589 = vpop.f32.mrf.mxu0
        %v4590 = vadd.f32 0.0, %v4589
        %v4591 = vpop.f32.mrf.mxu0
        %v4592 = vpop.f32.mrf.mxu0
        %v4593 = vadd.f32 0.0, %v4592
        %v4594 = vpop.f32.mrf.mxu0
        %4595 = vmatprep.mubr.bf16.mxu0 0
        %4596 = vmatmul.mubr.bf16.gmra.mxu0 %v4436
        %v4597 = vpop.f32.mrf.mxu0
        %v4598 = vadd.f32 0.0, %v4597
        %v4599 = vpop.f32.mrf.mxu0
        %v4600 = vpop.f32.mrf.mxu0
        %v4601 = vadd.f32 0.0, %v4600
        %v4602 = vpop.f32.mrf.mxu0
        %4603 = vmatprep.mubr.bf16.mxu0 0
        %4604 = vmatmul.mubr.bf16.gmra.mxu0 %v4439
        %v4605 = vpop.f32.mrf.mxu0
        %v4606 = vadd.f32 0.0, %v4605
        %v4607 = vpop.f32.mrf.mxu0
        %v4608 = vpop.f32.mrf.mxu0
        %v4609 = vadd.f32 0.0, %v4608
        %v4610 = vpop.f32.mrf.mxu0
        %4611 = vmatprep.mubr.bf16.mxu0 0
        %4612 = vmatmul.mubr.bf16.gmra.mxu0 %v4442
        %v4613 = vpop.f32.mrf.mxu0
        %v4614 = vadd.f32 0.0, %v4613
        %v4615 = vpop.f32.mrf.mxu0
        %v4616 = vpop.f32.mrf.mxu0
        %v4617 = vadd.f32 0.0, %v4616
        %v4618 = vpop.f32.mrf.mxu0
        %4619 = vmatprep.mubr.bf16.mxu0 0
        %4620 = vmatmul.mubr.bf16.gmra.mxu0 %v4445
        %v4621 = vpop.f32.mrf.mxu0
        %v4622 = vadd.f32 0.0, %v4621
        %v4623 = vpop.f32.mrf.mxu0
        %v4624 = vpop.f32.mrf.mxu0
        %v4625 = vadd.f32 0.0, %v4624
        %v4626 = vpop.f32.mrf.mxu0
        %4627 = vmatprep.mubr.bf16.mxu0 0
        %4628 = vmatmul.mubr.bf16.gmra.mxu0 %v4448
        %v4629 = vpop.f32.mrf.mxu0
        %v4630 = vadd.f32 0.0, %v4629
        %v4631 = vpop.f32.mrf.mxu0
        %v4632 = vpop.f32.mrf.mxu0
        %v4633 = vadd.f32 0.0, %v4632
        %v4634 = vpop.f32.mrf.mxu0
        %4635 = vmatprep.mubr.bf16.mxu0 0
        %4636 = vmatmul.mubr.bf16.gmra.mxu0 %v4451
        %v4637 = vpop.f32.mrf.mxu0
        %v4638 = vadd.f32 0.0, %v4637
        %v4639 = vpop.f32.mrf.mxu0
        %v4640 = vpop.f32.mrf.mxu0
        %v4641 = vadd.f32 0.0, %v4640
        %v4642 = vpop.f32.mrf.mxu0
        %4643 = vmatprep.mubr.bf16.mxu0 0
        %4644 = vmatmul.mubr.bf16.gmra.mxu0 %v4454
        %v4645 = vpop.f32.mrf.mxu0
        %v4646 = vadd.f32 0.0, %v4645
        %v4647 = vpop.f32.mrf.mxu0
        %v4648 = vpop.f32.mrf.mxu0
        %v4649 = vadd.f32 0.0, %v4648
        %v4650 = vpop.f32.mrf.mxu0
        %4651 = vmatprep.mubr.bf16.mxu0 0
        %4652 = vmatmul.mubr.bf16.gmra.mxu0 %v4457
        %v4653 = vpop.f32.mrf.mxu0
        %v4654 = vadd.f32 0.0, %v4653
        %v4655 = vpop.f32.mrf.mxu0
        %v4656 = vpop.f32.mrf.mxu0
        %v4657 = vadd.f32 0.0, %v4656
        %v4658 = vpop.f32.mrf.mxu0
        %4659 = vmatprep.mubr.bf16.mxu0 0
        %4660 = vmatmul.mubr.bf16.gmra.mxu0 %v4460
        %v4661 = vpop.f32.mrf.mxu0
        %v4662 = vadd.f32 0.0, %v4661
        %v4663 = vpop.f32.mrf.mxu0
        %v4664 = vpop.f32.mrf.mxu0
        %v4665 = vadd.f32 0.0, %v4664
        %v4666 = vpop.f32.mrf.mxu0
        %4667 = vmatprep.mubr.bf16.mxu0 0
        %4668 = vmatmul.mubr.bf16.gmra.mxu0 %v4463
        %v4669 = vpop.f32.mrf.mxu0
        %v4670 = vadd.f32 0.0, %v4669
        %v4671 = vpop.f32.mrf.mxu0
        %v4672 = vpop.f32.mrf.mxu0
        %v4673 = vadd.f32 0.0, %v4672
        %v4674 = vpop.f32.mrf.mxu0
        %4675 = vmatprep.mubr.bf16.mxu0 0
        %4676 = vmatmul.mubr.bf16.gmra.mxu0 %v4466
        %v4677 = vpop.f32.mrf.mxu0
        %v4678 = vadd.f32 0.0, %v4677
        %v4679 = vpop.f32.mrf.mxu0
        %v4680 = vpop.f32.mrf.mxu0
        %v4681 = vadd.f32 0.0, %v4680
        %v4682 = vpop.f32.mrf.mxu0
        %4683 = vmatprep.mubr.bf16.mxu0 0
        %4684 = vmatmul.mubr.bf16.gmra.mxu0 %v4469
        %v4685 = vpop.f32.mrf.mxu0
        %v4686 = vadd.f32 0.0, %v4685
        %v4687 = vpop.f32.mrf.mxu0
        %v4688 = vpop.f32.mrf.mxu0
        %v4689 = vadd.f32 0.0, %v4688
        %v4690 = vpop.f32.mrf.mxu0
        %4691 = vmatprep.mubr.bf16.mxu0 0
        %4692 = vmatmul.mubr.bf16.gmra.mxu0 %v4472
        %v4693 = vpop.f32.mrf.mxu0
        %v4694 = vadd.f32 0.0, %v4693
        %v4695 = vpop.f32.mrf.mxu0
        %v4696 = vpop.f32.mrf.mxu0
        %v4697 = vadd.f32 0.0, %v4696
        %v4698 = vpop.f32.mrf.mxu0
        %4699 = vmatprep.mubr.bf16.mxu0 0
        %4700 = vmatmul.mubr.bf16.gmra.mxu0 %v4475
        %v4701 = vpop.f32.mrf.mxu0
        %v4702 = vadd.f32 0.0, %v4701
        %v4703 = vpop.f32.mrf.mxu0
        %v4704 = vpop.f32.mrf.mxu0
        %v4705 = vadd.f32 0.0, %v4704
        %v4706 = vpop.f32.mrf.mxu0
        %4707 = vmatprep.mubr.bf16.mxu0 0
        %4708 = vmatmul.mubr.bf16.gmra.mxu0 %v4478
        %v4709 = vpop.f32.mrf.mxu0
        %v4710 = vadd.f32 0.0, %v4709
        %v4711 = vpop.f32.mrf.mxu0
        %v4712 = vpop.f32.mrf.mxu0
        %v4713 = vadd.f32 0.0, %v4712
        %v4714 = vpop.f32.mrf.mxu0
        %4715 = vmatprep.mubr.bf16.mxu0 0
        %4716 = vmatmul.mubr.bf16.gmra.mxu0 %v4481
        %v4717 = vpop.f32.mrf.mxu0
        %v4718 = vadd.f32 0.0, %v4717
        %v4719 = vpop.f32.mrf.mxu0
        %v4720 = vpop.f32.mrf.mxu0
        %v4721 = vadd.f32 0.0, %v4720
        %v4722 = vpop.f32.mrf.mxu0
        %4723 = vmatprep.mubr.bf16.mxu0 0
        %4724 = vmatmul.mubr.bf16.gmra.mxu0 %v4484
        %v4725 = vpop.f32.mrf.mxu0
        %v4726 = vadd.f32 0.0, %v4725
        %v4727 = vpop.f32.mrf.mxu0
        %v4728 = vpop.f32.mrf.mxu0
        %v4729 = vadd.f32 0.0, %v4728
        %v4730 = vpop.f32.mrf.mxu0
        %4731 = vmatprep.mubr.bf16.mxu0 0
        %4732 = vmatmul.mubr.bf16.gmra.mxu0 %v4487
        %v4733 = vpop.f32.mrf.mxu0
        %v4734 = vadd.f32 0.0, %v4733
        %v4735 = vpop.f32.mrf.mxu0
        %v4736 = vpop.f32.mrf.mxu0
        %v4737 = vadd.f32 0.0, %v4736
        %v4738 = vpop.f32.mrf.mxu0
        %4739 = vmatprep.mubr.bf16.mxu0 0
        %4740 = vmatmul.mubr.bf16.gmra.mxu0 %v4490
        %v4741 = vpop.f32.mrf.mxu0
        %v4742 = vadd.f32 0.0, %v4741
        %v4743 = vpop.f32.mrf.mxu0
        %v4744 = vpop.f32.mrf.mxu0
        %v4745 = vadd.f32 0.0, %v4744
        %v4746 = vpop.f32.mrf.mxu0
        %4747 = vmatprep.mubr.bf16.mxu0 0
        %4748 = vmatmul.mubr.bf16.gmra.mxu0 %v4493
        %v4749 = vpop.f32.mrf.mxu0
        %v4750 = vadd.f32 0.0, %v4749
        %v4751 = vpop.f32.mrf.mxu0
        %v4752 = vpop.f32.mrf.mxu0
        %v4753 = vadd.f32 0.0, %v4752
        %v4754 = vpop.f32.mrf.mxu0
        %4755 = vmatprep.mubr.bf16.mxu0 0
        %4756 = vmatmul.mubr.bf16.gmra.mxu0 %v4496
        %v4757 = vpop.f32.mrf.mxu0
        %v4758 = vadd.f32 0.0, %v4757
        %v4759 = vpop.f32.mrf.mxu0
        %v4760 = vpop.f32.mrf.mxu0
        %v4761 = vadd.f32 0.0, %v4760
        %v4762 = vpop.f32.mrf.mxu0
        %4763 = vmatprep.mubr.bf16.mxu0 0
        %4764 = vmatmul.mubr.bf16.gmra.mxu0 %v4499
        %v4765 = vpop.f32.mrf.mxu0
        %v4766 = vadd.f32 0.0, %v4765
        %v4767 = vpop.f32.mrf.mxu0
        %v4768 = vpop.f32.mrf.mxu0
        %v4769 = vadd.f32 0.0, %v4768
        %v4770 = vpop.f32.mrf.mxu0
        %4771 = vmatprep.mubr.bf16.mxu0 0
        %4772 = vmatmul.mubr.bf16.gmra.mxu0 %v4502
        %v4773 = vpop.f32.mrf.mxu0
        %v4774 = vadd.f32 0.0, %v4773
        %v4775 = vpop.f32.mrf.mxu0
        %v4776 = vpop.f32.mrf.mxu0
        %v4777 = vadd.f32 0.0, %v4776
        %v4778 = vpop.f32.mrf.mxu0
        %4779 = vmatprep.mubr.bf16.mxu0 0
        %4780 = vmatmul.mubr.bf16.gmra.mxu0 %v4505
        %v4781 = vpop.f32.mrf.mxu0
        %v4782 = vadd.f32 0.0, %v4781
        %v4783 = vpop.f32.mrf.mxu0
        %v4784 = vpop.f32.mrf.mxu0
        %v4785 = vadd.f32 0.0, %v4784
        %v4786 = vpop.f32.mrf.mxu0
        %4787 = vmatprep.mubr.bf16.mxu0 0
        %4788 = vmatmul.mubr.bf16.gmra.mxu0 %v4508
        %v4789 = vpop.f32.mrf.mxu0
        %v4790 = vadd.f32 0.0, %v4789
        %v4791 = vpop.f32.mrf.mxu0
        %v4792 = vpop.f32.mrf.mxu0
        %v4793 = vadd.f32 0.0, %v4792
        %v4794 = vpop.f32.mrf.mxu0
        %4795 = vmatprep.mubr.bf16.mxu0 0
        %4796 = vmatmul.mubr.bf16.gmra.mxu0 %v4511
        %v4797 = vpop.f32.mrf.mxu0
        %v4798 = vadd.f32 0.0, %v4797
        %v4799 = vpop.f32.mrf.mxu0
        %v4800 = vpop.f32.mrf.mxu0
        %v4801 = vadd.f32 0.0, %v4800
        %v4802 = vpop.f32.mrf.mxu0
        %4803 = vmatprep.mubr.bf16.mxu0 0
        %4804 = vmatmul.mubr.bf16.gmra.mxu0 %v4514
        %v4805 = vpop.f32.mrf.mxu0
        %v4806 = vadd.f32 0.0, %v4805
        %v4807 = vpop.f32.mrf.mxu0
        %v4808 = vpop.f32.mrf.mxu0
        %v4809 = vadd.f32 0.0, %v4808
        %v4810 = vpop.f32.mrf.mxu0
        %4811 = vmatprep.mubr.bf16.mxu0 0
        %4812 = vmatmul.mubr.bf16.gmra.mxu0 %v4517
        %v4813 = vpop.f32.mrf.mxu0
        %v4814 = vadd.f32 0.0, %v4813
        %v4815 = vpop.f32.mrf.mxu0
        %v4816 = vpop.f32.mrf.mxu0
        %v4817 = vadd.f32 0.0, %v4816
        %v4818 = vpop.f32.mrf.mxu0
        %4819 = vmatprep.mubr.bf16.mxu0 0
        %4820 = vmatmul.mubr.bf16.gmra.mxu0 %v4520
        %v4821 = vpop.f32.mrf.mxu0
        %v4822 = vadd.f32 0.0, %v4821
        %v4823 = vpop.f32.mrf.mxu0
        %v4824 = vpop.f32.mrf.mxu0
        %v4825 = vadd.f32 0.0, %v4824
        %v4826 = vpop.f32.mrf.mxu0
        %4827 = vmatprep.mubr.bf16.mxu0 0
        %4828 = vmatmul.mubr.bf16.gmra.mxu0 %v4523
        %v4829 = vpop.f32.mrf.mxu0
        %v4830 = vadd.f32 0.0, %v4829
        %v4831 = vpop.f32.mrf.mxu0
        %v4832 = vpop.f32.mrf.mxu0
        %v4833 = vadd.f32 0.0, %v4832
        %v4834 = vpop.f32.mrf.mxu0
        %4835 = vmatprep.mubr.bf16.mxu0 0
        %4836 = vmatmul.mubr.bf16.gmra.mxu0 %v4526
        %v4837 = vpop.f32.mrf.mxu0
        %v4838 = vadd.f32 0.0, %v4837
        %v4839 = vpop.f32.mrf.mxu0
        %v4840 = vpop.f32.mrf.mxu0
        %v4841 = vadd.f32 0.0, %v4840
        %v4842 = vpop.f32.mrf.mxu0
        %4843 = vmatprep.mubr.bf16.mxu0 0
        %4844 = vmatmul.mubr.bf16.gmra.mxu0 %v4529
        %v4845 = vpop.f32.mrf.mxu0
        %v4846 = vadd.f32 0.0, %v4845
        %v4847 = vpop.f32.mrf.mxu0
        %v4848 = vpop.f32.mrf.mxu0
        %v4849 = vadd.f32 0.0, %v4848
        %v4850 = vpop.f32.mrf.mxu0
        %4851 = vmatprep.mubr.bf16.mxu0 0
        %4852 = vmatmul.mubr.bf16.gmra.mxu0 %v4532
        %v4853 = vpop.f32.mrf.mxu0
        %v4854 = vadd.f32 0.0, %v4853
        %v4855 = vpop.f32.mrf.mxu0
        %v4856 = vpop.f32.mrf.mxu0
        %v4857 = vadd.f32 0.0, %v4856
        %v4858 = vpop.f32.mrf.mxu0
        %4859 = vmatprep.mubr.bf16.mxu0 0
        %4860 = vmatmul.mubr.bf16.gmra.mxu0 %v4535
        %v4861 = vpop.f32.mrf.mxu0
        %v4862 = vadd.f32 0.0, %v4861
        %v4863 = vpop.f32.mrf.mxu0
        %v4864 = vpop.f32.mrf.mxu0
        %v4865 = vadd.f32 0.0, %v4864
        %v4866 = vpop.f32.mrf.mxu0
        %4867 = vmatprep.mubr.bf16.mxu0 0
        %4868 = vmatmul.mubr.bf16.gmra.mxu0 %v4538
        %v4869 = vpop.f32.mrf.mxu0
        %v4870 = vadd.f32 0.0, %v4869
        %v4871 = vpop.f32.mrf.mxu0
        %v4872 = vpop.f32.mrf.mxu0
        %v4873 = vadd.f32 0.0, %v4872
        %v4874 = vpop.f32.mrf.mxu0
        %4875 = vmatprep.mubr.bf16.mxu0 0
        %4876 = vmatmul.mubr.bf16.gmra.mxu0 %v4541
        %v4877 = vpop.f32.mrf.mxu0
        %v4878 = vadd.f32 0.0, %v4877
        %v4879 = vpop.f32.mrf.mxu0
        %v4880 = vpop.f32.mrf.mxu0
        %v4881 = vadd.f32 0.0, %v4880
        %v4882 = vpop.f32.mrf.mxu0
        %4883 = vmatprep.mubr.bf16.mxu0 0
        %4884 = vmatmul.mubr.bf16.gmra.mxu0 %v4544
        %v4885 = vpop.f32.mrf.mxu0
        %v4886 = vadd.f32 0.0, %v4885
        %v4887 = vpop.f32.mrf.mxu0
        %v4888 = vpop.f32.mrf.mxu0
        %v4889 = vadd.f32 0.0, %v4888
        %v4890 = vpop.f32.mrf.mxu0
        %4891 = vmatprep.mubr.bf16.mxu0 0
        %4892 = vmatmul.mubr.bf16.gmra.mxu0 %v4547
        %v4893 = vpop.f32.mrf.mxu0
        %v4894 = vadd.f32 0.0, %v4893
        %v4895 = vpop.f32.mrf.mxu0
        %v4896 = vpop.f32.mrf.mxu0
        %v4897 = vadd.f32 0.0, %v4896
        %v4898 = vpop.f32.mrf.mxu0
        %4899 = vmatprep.mubr.bf16.mxu0 0
        %4900 = vmatmul.mubr.bf16.gmra.mxu0 %v4550
        %v4901 = vpop.f32.mrf.mxu0
        %v4902 = vadd.f32 0.0, %v4901
        %v4903 = vpop.f32.mrf.mxu0
        %v4904 = vpop.f32.mrf.mxu0
        %v4905 = vadd.f32 0.0, %v4904
        %v4906 = vpop.f32.mrf.mxu0
        %4907 = vdwg.mxu0
        %v4908 = vadd.f32 %v4060, %v4590
        %v4909 = vadd.f32 %v4061, %v4593
        %v4910 = vadd.f32 %v4062, %v4598
        %v4911 = vadd.f32 %v4063, %v4601
        %v4912 = vadd.f32 %v4064, %v4606
        %v4913 = vadd.f32 %v4065, %v4609
        %v4914 = vadd.f32 %v4066, %v4614
        %v4915 = vadd.f32 %v4067, %v4617
        %v4916 = vadd.f32 %v4068, %v4622
        %v4917 = vadd.f32 %v4069, %v4625
        %v4918 = vadd.f32 %v4070, %v4630
        %v4919 = vadd.f32 %v4071, %v4633
        %v4920 = vadd.f32 %v4072, %v4638
        %v4921 = vadd.f32 %v4073, %v4641
        %v4922 = vadd.f32 %v4074, %v4646
        %v4923 = vadd.f32 %v4075, %v4649
        %v4924 = vadd.f32 %v4076, %v4654
        %v4925 = vadd.f32 %v4077, %v4657
        %v4926 = vadd.f32 %v4078, %v4662
        %v4927 = vadd.f32 %v4079, %v4665
        %v4928 = vadd.f32 %v4080, %v4670
        %v4929 = vadd.f32 %v4081, %v4673
        %v4930 = vadd.f32 %v4082, %v4678
        %v4931 = vadd.f32 %v4083, %v4681
        %v4932 = vadd.f32 %v4084, %v4686
        %v4933 = vadd.f32 %v4085, %v4689
        %v4934 = vadd.f32 %v4086, %v4694
        %v4935 = vadd.f32 %v4087, %v4697
        %v4936 = vadd.f32 %v4088, %v4702
        %v4937 = vadd.f32 %v4089, %v4705
        %v4938 = vadd.f32 %v4090, %v4710
        %v4939 = vadd.f32 %v4091, %v4713
        %v4940 = vadd.f32 %v4092, %v4718
        %v4941 = vadd.f32 %v4093, %v4721
        %v4942 = vadd.f32 %v4094, %v4726
        %v4943 = vadd.f32 %v4095, %v4729
        %v4944 = vadd.f32 %v4096, %v4734
        %v4945 = vadd.f32 %v4097, %v4737
        %v4946 = vadd.f32 %v4098, %v4742
        %v4947 = vadd.f32 %v4099, %v4745
        %v4948 = vadd.f32 %v4100, %v4750
        %v4949 = vadd.f32 %v4101, %v4753
        %v4950 = vadd.f32 %v4102, %v4758
        %v4951 = vadd.f32 %v4103, %v4761
        %v4952 = vadd.f32 %v4104, %v4766
        %v4953 = vadd.f32 %v4105, %v4769
        %v4954 = vadd.f32 %v4106, %v4774
        %v4955 = vadd.f32 %v4107, %v4777
        %v4956 = vadd.f32 %v4108, %v4782
        %v4957 = vadd.f32 %v4109, %v4785
        %v4958 = vadd.f32 %v4110, %v4790
        %v4959 = vadd.f32 %v4111, %v4793
        %v4960 = vadd.f32 %v4112, %v4798
        %v4961 = vadd.f32 %v4113, %v4801
        %v4962 = vadd.f32 %v4114, %v4806
        %v4963 = vadd.f32 %v4115, %v4809
        %v4964 = vadd.f32 %v4116, %v4814
        %v4965 = vadd.f32 %v4117, %v4817
        %v4966 = vadd.f32 %v4118, %v4822
        %v4967 = vadd.f32 %v4119, %v4825
        %v4968 = vadd.f32 %v4120, %v4830
        %v4969 = vadd.f32 %v4121, %v4833
        %v4970 = vadd.f32 %v4122, %v4838
        %v4971 = vadd.f32 %v4123, %v4841
        %v4972 = vadd.f32 %v4124, %v4846
        %v4973 = vadd.f32 %v4125, %v4849
        %v4974 = vadd.f32 %v4126, %v4854
        %v4975 = vadd.f32 %v4127, %v4857
        %v4976 = vadd.f32 %v4128, %v4862
        %v4977 = vadd.f32 %v4129, %v4865
        %v4978 = vadd.f32 %v4130, %v4870
        %v4979 = vadd.f32 %v4131, %v4873
        %v4980 = vadd.f32 %v4132, %v4878
        %v4981 = vadd.f32 %v4133, %v4881
        %v4982 = vadd.f32 %v4134, %v4886
        %v4983 = vadd.f32 %v4135, %v4889
        %v4984 = vadd.f32 %v4136, %v4894
        %v4985 = vadd.f32 %v4137, %v4897
        %v4986 = vadd.f32 %v4138, %v4902
        %v4987 = vadd.f32 %v4139, %v4905
        %4988 = vst.msk [vmem:[#allocation2] sm:$0xff] %vm951, %v4908
        %4989 = vst.msk [vmem:[#allocation2 + $0x8] sm:$0xff] %vm951, %v4909
        %4990 = vst.msk [vmem:[#allocation2 + $0x10] sm:$0xff] %vm951, %v4910
        %4991 = vst.msk [vmem:[#allocation2 + $0x18] sm:$0xff] %vm951, %v4911
        %4992 = vst.msk [vmem:[#allocation2 + $0x20] sm:$0xff] %vm951, %v4912
        %4993 = vst.msk [vmem:[#allocation2 + $0x28] sm:$0xff] %vm951, %v4913
        %4994 = vst.msk [vmem:[#allocation2 + $0x30] sm:$0xff] %vm951, %v4914
        %4995 = vst.msk [vmem:[#allocation2 + $0x38] sm:$0xff] %vm951, %v4915
        %4996 = vst.msk [vmem:[#allocation2 + $0x40] sm:$0xff] %vm951, %v4916
        %4997 = vst.msk [vmem:[#allocation2 + $0x48] sm:$0xff] %vm951, %v4917
        %4998 = vst.msk [vmem:[#allocation2 + $0x50] sm:$0xff] %vm951, %v4918
        %4999 = vst.msk [vmem:[#allocation2 + $0x58] sm:$0xff] %vm951, %v4919
        %5000 = vst.msk [vmem:[#allocation2 + $0x60] sm:$0xff] %vm951, %v4920
        %5001 = vst.msk [vmem:[#allocation2 + $0x68] sm:$0xff] %vm951, %v4921
        %5002 = vst.msk [vmem:[#allocation2 + $0x70] sm:$0xff] %vm951, %v4922
        %5003 = vst.msk [vmem:[#allocation2 + $0x78] sm:$0xff] %vm951, %v4923
        %5004 = vst.msk [vmem:[#allocation2 + $0x80] sm:$0xff] %vm951, %v4924
        %5005 = vst.msk [vmem:[#allocation2 + $0x88] sm:$0xff] %vm951, %v4925
        %5006 = vst.msk [vmem:[#allocation2 + $0x90] sm:$0xff] %vm951, %v4926
        %5007 = vst.msk [vmem:[#allocation2 + $0x98] sm:$0xff] %vm951, %v4927
        %5008 = vst.msk [vmem:[#allocation2 + $0xa0] sm:$0xff] %vm951, %v4928
        %5009 = vst.msk [vmem:[#allocation2 + $0xa8] sm:$0xff] %vm951, %v4929
        %5010 = vst.msk [vmem:[#allocation2 + $0xb0] sm:$0xff] %vm951, %v4930
        %5011 = vst.msk [vmem:[#allocation2 + $0xb8] sm:$0xff] %vm951, %v4931
        %5012 = vst.msk [vmem:[#allocation2 + $0xc0] sm:$0xff] %vm951, %v4932
        %5013 = vst.msk [vmem:[#allocation2 + $0xc8] sm:$0xff] %vm951, %v4933
        %5014 = vst.msk [vmem:[#allocation2 + $0xd0] sm:$0xff] %vm951, %v4934
        %5015 = vst.msk [vmem:[#allocation2 + $0xd8] sm:$0xff] %vm951, %v4935
        %5016 = vst.msk [vmem:[#allocation2 + $0xe0] sm:$0xff] %vm951, %v4936
        %5017 = vst.msk [vmem:[#allocation2 + $0xe8] sm:$0xff] %vm951, %v4937
        %5018 = vst.msk [vmem:[#allocation2 + $0xf0] sm:$0xff] %vm951, %v4938
        %5019 = vst.msk [vmem:[#allocation2 + $0xf8] sm:$0xff] %vm951, %v4939
        %5020 = vst.msk [vmem:[#allocation2 + $0x100] sm:$0xff] %vm951, %v4940
        %5021 = vst.msk [vmem:[#allocation2 + $0x108] sm:$0xff] %vm951, %v4941
        %5022 = vst.msk [vmem:[#allocation2 + $0x110] sm:$0xff] %vm951, %v4942
        %5023 = vst.msk [vmem:[#allocation2 + $0x118] sm:$0xff] %vm951, %v4943
        %5024 = vst.msk [vmem:[#allocation2 + $0x120] sm:$0xff] %vm951, %v4944
        %5025 = vst.msk [vmem:[#allocation2 + $0x128] sm:$0xff] %vm951, %v4945
        %5026 = vst.msk [vmem:[#allocation2 + $0x130] sm:$0xff] %vm951, %v4946
        %5027 = vst.msk [vmem:[#allocation2 + $0x138] sm:$0xff] %vm951, %v4947
        %5028 = vst.msk [vmem:[#allocation2 + $0x140] sm:$0xff] %vm951, %v4948
        %5029 = vst.msk [vmem:[#allocation2 + $0x148] sm:$0xff] %vm951, %v4949
        %5030 = vst.msk [vmem:[#allocation2 + $0x150] sm:$0xff] %vm951, %v4950
        %5031 = vst.msk [vmem:[#allocation2 + $0x158] sm:$0xff] %vm951, %v4951
        %5032 = vst.msk [vmem:[#allocation2 + $0x160] sm:$0xff] %vm951, %v4952
        %5033 = vst.msk [vmem:[#allocation2 + $0x168] sm:$0xff] %vm951, %v4953
        %5034 = vst.msk [vmem:[#allocation2 + $0x170] sm:$0xff] %vm951, %v4954
        %5035 = vst.msk [vmem:[#allocation2 + $0x178] sm:$0xff] %vm951, %v4955
        %5036 = vst.msk [vmem:[#allocation2 + $0x180] sm:$0xff] %vm951, %v4956
        %5037 = vst.msk [vmem:[#allocation2 + $0x188] sm:$0xff] %vm951, %v4957
        %5038 = vst.msk [vmem:[#allocation2 + $0x190] sm:$0xff] %vm951, %v4958
        %5039 = vst.msk [vmem:[#allocation2 + $0x198] sm:$0xff] %vm951, %v4959
        %5040 = vst.msk [vmem:[#allocation2 + $0x1a0] sm:$0xff] %vm951, %v4960
        %5041 = vst.msk [vmem:[#allocation2 + $0x1a8] sm:$0xff] %vm951, %v4961
        %5042 = vst.msk [vmem:[#allocation2 + $0x1b0] sm:$0xff] %vm951, %v4962
        %5043 = vst.msk [vmem:[#allocation2 + $0x1b8] sm:$0xff] %vm951, %v4963
        %5044 = vst.msk [vmem:[#allocation2 + $0x1c0] sm:$0xff] %vm951, %v4964
        %5045 = vst.msk [vmem:[#allocation2 + $0x1c8] sm:$0xff] %vm951, %v4965
        %5046 = vst.msk [vmem:[#allocation2 + $0x1d0] sm:$0xff] %vm951, %v4966
        %5047 = vst.msk [vmem:[#allocation2 + $0x1d8] sm:$0xff] %vm951, %v4967
        %5048 = vst.msk [vmem:[#allocation2 + $0x1e0] sm:$0xff] %vm951, %v4968
        %5049 = vst.msk [vmem:[#allocation2 + $0x1e8] sm:$0xff] %vm951, %v4969
        %5050 = vst.msk [vmem:[#allocation2 + $0x1f0] sm:$0xff] %vm951, %v4970
        %5051 = vst.msk [vmem:[#allocation2 + $0x1f8] sm:$0xff] %vm951, %v4971
        %5052 = vst.msk [vmem:[#allocation2 + $0x200] sm:$0xff] %vm951, %v4972
        %5053 = vst.msk [vmem:[#allocation2 + $0x208] sm:$0xff] %vm951, %v4973
        %5054 = vst.msk [vmem:[#allocation2 + $0x210] sm:$0xff] %vm951, %v4974
        %5055 = vst.msk [vmem:[#allocation2 + $0x218] sm:$0xff] %vm951, %v4975
        %5056 = vst.msk [vmem:[#allocation2 + $0x220] sm:$0xff] %vm951, %v4976
        %5057 = vst.msk [vmem:[#allocation2 + $0x228] sm:$0xff] %vm951, %v4977
        %5058 = vst.msk [vmem:[#allocation2 + $0x230] sm:$0xff] %vm951, %v4978
        %5059 = vst.msk [vmem:[#allocation2 + $0x238] sm:$0xff] %vm951, %v4979
        %5060 = vst.msk [vmem:[#allocation2 + $0x240] sm:$0xff] %vm951, %v4980
        %5061 = vst.msk [vmem:[#allocation2 + $0x248] sm:$0xff] %vm951, %v4981
        %5062 = vst.msk [vmem:[#allocation2 + $0x250] sm:$0xff] %vm951, %v4982
        %5063 = vst.msk [vmem:[#allocation2 + $0x258] sm:$0xff] %vm951, %v4983
        %5064 = vst.msk [vmem:[#allocation2 + $0x260] sm:$0xff] %vm951, %v4984
        %5065 = vst.msk [vmem:[#allocation2 + $0x268] sm:$0xff] %vm951, %v4985
        %5066 = vst.msk [vmem:[#allocation2 + $0x270] sm:$0xff] %vm951, %v4986
        %5067 = vst.msk [vmem:[#allocation2 + $0x278] sm:$0xff] %vm951, %v4987
        %v5068 = vld [vmem:[#allocation2] sm:$0xff]
        %v5069 = vld [vmem:[#allocation2 + $0x8] sm:$0xff]
        %v5070 = vld [vmem:[#allocation2 + $0x10] sm:$0xff]
        %v5071 = vld [vmem:[#allocation2 + $0x18] sm:$0xff]
        %v5072 = vld [vmem:[#allocation2 + $0x20] sm:$0xff]
        %v5073 = vld [vmem:[#allocation2 + $0x28] sm:$0xff]
        %v5074 = vld [vmem:[#allocation2 + $0x30] sm:$0xff]
        %v5075 = vld [vmem:[#allocation2 + $0x38] sm:$0xff]
        %v5076 = vld [vmem:[#allocation2 + $0x40] sm:$0xff]
        %v5077 = vld [vmem:[#allocation2 + $0x48] sm:$0xff]
        %v5078 = vmax.f32 %v5068, %v5073
        %v5079 = vmax.f32 %v5069, %v5074
        %v5080 = vmax.f32 %v5070, %v5075
        %v5081 = vmax.f32 %v5071, %v5076
        %v5082 = vmax.f32 %v5072, %v5077
        %v5083 = vld [vmem:[#allocation2 + $0x50] sm:$0xff]
        %v5084 = vld [vmem:[#allocation2 + $0x58] sm:$0xff]
        %v5085 = vld [vmem:[#allocation2 + $0x60] sm:$0xff]
        %v5086 = vld [vmem:[#allocation2 + $0x68] sm:$0xff]
        %v5087 = vld [vmem:[#allocation2 + $0x70] sm:$0xff]
        %v5088 = vmax.f32 %v5078, %v5083
        %v5089 = vmax.f32 %v5079, %v5084
        %v5090 = vmax.f32 %v5080, %v5085
        %v5091 = vmax.f32 %v5081, %v5086
        %v5092 = vmax.f32 %v5082, %v5087
        %v5093 = vld [vmem:[#allocation2 + $0x78] sm:$0xff]
        %v5094 = vld [vmem:[#allocation2 + $0x80] sm:$0xff]
        %v5095 = vld [vmem:[#allocation2 + $0x88] sm:$0xff]
        %v5096 = vld [vmem:[#allocation2 + $0x90] sm:$0xff]
        %v5097 = vld [vmem:[#allocation2 + $0x98] sm:$0xff]
        %v5098 = vmax.f32 %v5088, %v5093
        %v5099 = vmax.f32 %v5089, %v5094
        %v5100 = vmax.f32 %v5090, %v5095
        %v5101 = vmax.f32 %v5091, %v5096
        %v5102 = vmax.f32 %v5092, %v5097
        %v5103 = vld [vmem:[#allocation2 + $0xa0] sm:$0xff]
        %v5104 = vld [vmem:[#allocation2 + $0xa8] sm:$0xff]
        %v5105 = vld [vmem:[#allocation2 + $0xb0] sm:$0xff]
        %v5106 = vld [vmem:[#allocation2 + $0xb8] sm:$0xff]
        %v5107 = vld [vmem:[#allocation2 + $0xc0] sm:$0xff]
        %v5108 = vmax.f32 %v5098, %v5103
        %v5109 = vmax.f32 %v5099, %v5104
        %v5110 = vmax.f32 %v5100, %v5105
        %v5111 = vmax.f32 %v5101, %v5106
        %v5112 = vmax.f32 %v5102, %v5107
        %v5113 = vld [vmem:[#allocation2 + $0xc8] sm:$0xff]
        %v5114 = vld [vmem:[#allocation2 + $0xd0] sm:$0xff]
        %v5115 = vld [vmem:[#allocation2 + $0xd8] sm:$0xff]
        %v5116 = vld [vmem:[#allocation2 + $0xe0] sm:$0xff]
        %v5117 = vld [vmem:[#allocation2 + $0xe8] sm:$0xff]
        %v5118 = vmax.f32 %v5108, %v5113
        %v5119 = vmax.f32 %v5109, %v5114
        %v5120 = vmax.f32 %v5110, %v5115
        %v5121 = vmax.f32 %v5111, %v5116
        %v5122 = vmax.f32 %v5112, %v5117
        %v5123 = vld [vmem:[#allocation2 + $0xf0] sm:$0xff]
        %v5124 = vld [vmem:[#allocation2 + $0xf8] sm:$0xff]
        %v5125 = vld [vmem:[#allocation2 + $0x100] sm:$0xff]
        %v5126 = vld [vmem:[#allocation2 + $0x108] sm:$0xff]
        %v5127 = vld [vmem:[#allocation2 + $0x110] sm:$0xff]
        %v5128 = vmax.f32 %v5118, %v5123
        %v5129 = vmax.f32 %v5119, %v5124
        %v5130 = vmax.f32 %v5120, %v5125
        %v5131 = vmax.f32 %v5121, %v5126
        %v5132 = vmax.f32 %v5122, %v5127
        %v5133 = vld [vmem:[#allocation2 + $0x118] sm:$0xff]
        %v5134 = vld [vmem:[#allocation2 + $0x120] sm:$0xff]
        %v5135 = vld [vmem:[#allocation2 + $0x128] sm:$0xff]
        %v5136 = vld [vmem:[#allocation2 + $0x130] sm:$0xff]
        %v5137 = vld [vmem:[#allocation2 + $0x138] sm:$0xff]
        %v5138 = vmax.f32 %v5128, %v5133
        %v5139 = vmax.f32 %v5129, %v5134
        %v5140 = vmax.f32 %v5130, %v5135
        %v5141 = vmax.f32 %v5131, %v5136
        %v5142 = vmax.f32 %v5132, %v5137
        %v5143 = vld [vmem:[#allocation2 + $0x140] sm:$0xff]
        %v5144 = vld [vmem:[#allocation2 + $0x148] sm:$0xff]
        %v5145 = vld [vmem:[#allocation2 + $0x150] sm:$0xff]
        %v5146 = vld [vmem:[#allocation2 + $0x158] sm:$0xff]
        %v5147 = vld [vmem:[#allocation2 + $0x160] sm:$0xff]
        %v5148 = vmax.f32 %v5138, %v5143
        %v5149 = vmax.f32 %v5139, %v5144
        %v5150 = vmax.f32 %v5140, %v5145
        %v5151 = vmax.f32 %v5141, %v5146
        %v5152 = vmax.f32 %v5142, %v5147
        %v5153 = vld [vmem:[#allocation2 + $0x168] sm:$0xff]
        %v5154 = vld [vmem:[#allocation2 + $0x170] sm:$0xff]
        %v5155 = vld [vmem:[#allocation2 + $0x178] sm:$0xff]
        %v5156 = vld [vmem:[#allocation2 + $0x180] sm:$0xff]
        %v5157 = vld [vmem:[#allocation2 + $0x188] sm:$0xff]
        %v5158 = vmax.f32 %v5148, %v5153
        %v5159 = vmax.f32 %v5149, %v5154
        %v5160 = vmax.f32 %v5150, %v5155
        %v5161 = vmax.f32 %v5151, %v5156
        %v5162 = vmax.f32 %v5152, %v5157
        %v5163 = vld [vmem:[#allocation2 + $0x190] sm:$0xff]
        %v5164 = vld [vmem:[#allocation2 + $0x198] sm:$0xff]
        %v5165 = vld [vmem:[#allocation2 + $0x1a0] sm:$0xff]
        %v5166 = vld [vmem:[#allocation2 + $0x1a8] sm:$0xff]
        %v5167 = vld [vmem:[#allocation2 + $0x1b0] sm:$0xff]
        %v5168 = vmax.f32 %v5158, %v5163
        %v5169 = vmax.f32 %v5159, %v5164
        %v5170 = vmax.f32 %v5160, %v5165
        %v5171 = vmax.f32 %v5161, %v5166
        %v5172 = vmax.f32 %v5162, %v5167
        %v5173 = vld [vmem:[#allocation2 + $0x1b8] sm:$0xff]
        %v5174 = vld [vmem:[#allocation2 + $0x1c0] sm:$0xff]
        %v5175 = vld [vmem:[#allocation2 + $0x1c8] sm:$0xff]
        %v5176 = vld [vmem:[#allocation2 + $0x1d0] sm:$0xff]
        %v5177 = vld [vmem:[#allocation2 + $0x1d8] sm:$0xff]
        %v5178 = vmax.f32 %v5168, %v5173
        %v5179 = vmax.f32 %v5169, %v5174
        %v5180 = vmax.f32 %v5170, %v5175
        %v5181 = vmax.f32 %v5171, %v5176
        %v5182 = vmax.f32 %v5172, %v5177
        %v5183 = vld [vmem:[#allocation2 + $0x1e0] sm:$0xff]
        %v5184 = vld [vmem:[#allocation2 + $0x1e8] sm:$0xff]
        %v5185 = vld [vmem:[#allocation2 + $0x1f0] sm:$0xff]
        %v5186 = vld [vmem:[#allocation2 + $0x1f8] sm:$0xff]
        %v5187 = vld [vmem:[#allocation2 + $0x200] sm:$0xff]
        %v5188 = vmax.f32 %v5178, %v5183
        %v5189 = vmax.f32 %v5179, %v5184
        %v5190 = vmax.f32 %v5180, %v5185
        %v5191 = vmax.f32 %v5181, %v5186
        %v5192 = vmax.f32 %v5182, %v5187
        %v5193 = vld [vmem:[#allocation2 + $0x208] sm:$0xff]
        %v5194 = vld [vmem:[#allocation2 + $0x210] sm:$0xff]
        %v5195 = vld [vmem:[#allocation2 + $0x218] sm:$0xff]
        %v5196 = vld [vmem:[#allocation2 + $0x220] sm:$0xff]
        %v5197 = vld [vmem:[#allocation2 + $0x228] sm:$0xff]
        %v5198 = vmax.f32 %v5188, %v5193
        %v5199 = vmax.f32 %v5189, %v5194
        %v5200 = vmax.f32 %v5190, %v5195
        %v5201 = vmax.f32 %v5191, %v5196
        %v5202 = vmax.f32 %v5192, %v5197
        %v5203 = vld [vmem:[#allocation2 + $0x230] sm:$0xff]
        %v5204 = vld [vmem:[#allocation2 + $0x238] sm:$0xff]
        %v5205 = vld [vmem:[#allocation2 + $0x240] sm:$0xff]
        %v5206 = vld [vmem:[#allocation2 + $0x248] sm:$0xff]
        %v5207 = vld [vmem:[#allocation2 + $0x250] sm:$0xff]
        %v5208 = vmax.f32 %v5198, %v5203
        %v5209 = vmax.f32 %v5199, %v5204
        %v5210 = vmax.f32 %v5200, %v5205
        %v5211 = vmax.f32 %v5201, %v5206
        %v5212 = vmax.f32 %v5202, %v5207
        %v5213 = vld [vmem:[#allocation2 + $0x258] sm:$0xff]
        %v5214 = vld [vmem:[#allocation2 + $0x260] sm:$0xff]
        %v5215 = vld [vmem:[#allocation2 + $0x268] sm:$0xff]
        %v5216 = vld [vmem:[#allocation2 + $0x270] sm:$0xff]
        %v5217 = vld [vmem:[#allocation2 + $0x278] sm:$0xff]
        %v5218 = vmax.f32 %v5208, %v5213
        %v5219 = vmax.f32 %v5209, %v5214
        %v5220 = vmax.f32 %v5210, %v5215
        %v5221 = vmax.f32 %v5211, %v5216
        %v5222 = vmax.f32 %v5212, %v5217
        %v5223 = vld [vmem:[%s2] sm:$0x1]
        %v5225 = vlaneseq
        %v5226 = vshrl.u32 %v5225, 7
        %v5227 = vsub.s32 0, %v5226
        %v5228 = vrot.slane %v5223, %v5227
        %v5230 = vadd.f32 %v5218, %v5228
        %v5231 = vadd.f32 %v5219, %v5228
        %v5232 = vadd.f32 %v5220, %v5228
        %v5233 = vadd.f32 %v5221, %v5228
        %v5234 = vadd.f32 %v5222, %v5228
        %v5235 = vtanh.pop %v5230
        %v5236 = vtanh.pop %v5231
        %v5237 = vtanh.pop %v5232
        %v5238 = vtanh.pop %v5233
        %v5239 = vtanh.pop %v5234
        %v5240 = vpack.c.bf16 %v5236, %v5235
        %v5241 = vpack.c.bf16 %v5238, %v5237
        %v5242 = vpack.c.bf16 %v5239, %v5239
        %v5246 = vunpack.c.l.b16 %v5240
        %v5247 = vunpack.c.h.b16 %v5240
        %v5248 = vunpack.c.l.b16 %v5241
        %v5249 = vunpack.c.h.b16 %v5241
        %v5250 = vunpack.c.l.b16 %v5242
        %v5251 = vpack.c.b16 %v5246, %v5246
        %v5252 = vpack.c.b16 %v5247, %v5247
        %v5253 = vpack.c.b16 %v5248, %v5248
        %v5254 = vpack.c.b16 %v5249, %v5249
        %v5255 = vpack.c.b16 %v5250, %v5250
        %s5261 = smul.u32 %s173, 5
        %s5262 = smul.addr %s5261, 4
        %s5263 = scalar_lea.vmem %s170, %s5262
        %vm5264 = vcmask 322560
        %5265 = vst.msk [vmem:[%s5263] sm:$0xf] %vm5264, %v5251
        %5266 = vst.msk [vmem:[%s5263 + $0x4] sm:$0xf] %vm5264, %v5252
        %5267 = vst.msk [vmem:[%s5263 + $0x8] sm:$0xf] %vm5264, %v5253
        %5268 = vst.msk [vmem:[%s5263 + $0xc] sm:$0xf] %vm5264, %v5254
        %vm5269 = vcmask 322560
        %vm5270 = vsmask.f32 3328
        %vm5271 = vmand %vm5269, %vm5270
        %v5272 = vld [vmem:[%s5263 + $0x10] sm:$0xf]
        %v5273 = vsel %vm5271, %v5255, %v5272
        %5274 = vst [vmem:[%s5263 + $0x10] sm:$0xf] %v5273
      $region37: #{neural_net_forward.3} parent=31 // loop_footer
        %s177 = sadd.s32 1, %s173
      $region38: #{neural_net_forward.3} parent=31 // loop_footer_branch
        %172 = sbr.rel target = $region34
      $region39: #{neural_net_forward.3} parent=31 // loop_exit
        _
      %p5275 = scmp.lt.s32.totalorder %s14, 1
      %s5276 = scalar_select %p5275, %s14, 1
      %s5277 = smul.addr %s5276, 145
      %s5278 = smul.addr %s5277, 4
      %s5279 = scalar_lea.vmem %s3, %s5278
      // Predicated region
      $region40: #{neural_net_forward.3} parent=31 // pred_check
        %p5280 = pneg %p100
      $region41: #{neural_net_forward.3} parent=31 // pred_check_branch
        %5282 = sbr.rel (%p5280) target = $region43
      $region42: #{neural_net_forward.3} parent=31 // pred_region
        _
      $region43: #{neural_net_forward.3} parent=31 // pred_fallthru
        _
    $region32: #{neural_net_forward.3} parent=5 // pred_fallthru
      _
    %p5283 = scmp.le.s32.totalorder 2, %s9
    // Predicated region
    $region44: #{neural_net_forward.3} parent=5 // pred_check
      %p5284 = pneg %p5283
    $region45: #{neural_net_forward.3} parent=5 // pred_check_branch
      %5286 = sbr.rel (%p5284) target = $region47
    $region46: #{neural_net_forward.3} parent=5 // pred_region
      %s5287 = ssub.s32 %s9, 2
      // Predicated region
      $region48: #{neural_net_forward.3} parent=46 // pred_check
        %p5288 = pneg %p106
      $region49: #{neural_net_forward.3} parent=46 // pred_check_branch
        %5290 = sbr.rel (%p5288) target = $region51
      $region50: #{neural_net_forward.3} parent=46 // pred_region
        %p5291 = scmp.lt.s32.totalorder %s15, 1
        %s5292 = scalar_select %p5291, %s15, 1
        %s5293 = smul.addr %s5292, 145
        %s5294 = smul.addr %s5293, 4
        %s5295 = scalar_lea.vmem %s3, %s5294
      $region51: #{neural_net_forward.3} parent=46 // pred_fallthru
        _
    $region47: #{neural_net_forward.3} parent=5 // pred_fallthru
      _
  $region6: #{neural_net_forward.3} parent=0 // loop_footer
    %s13 = sadd.s32 1, %s9
  $region7: #{neural_net_forward.3} parent=0 // loop_footer_branch
    %8 = sbr.rel target = $region3
  $region8: #{neural_net_forward.3} parent=0 // loop_exit
    _

// kernel: neural_net_forward.4
$region0: #{neural_net_forward.4}
  #allocation0 [shape = 'u32[]', space=smem, size = 0x4, offset = 0x4, fixed_abs, tag = 'smem constant byte address 0x4 - core index']
  #allocation1 [shape = 'u32[144,128]{1,0:T(1,128)}', space=vmem, size = 0x12000, scoped, tag = 'internal scratch']
  #allocation2 [shape = 'f32[128,60]{1,0:T(8,128)}', space=vmem, size = 0x10000, scoped, tag = 'scratch operand']
  %s0 = inlined_call_operand.vmem [shape: bf16[2,928,200], index: 0, kind: input, shape index: {}]
  %s1 = inlined_call_operand.vmem [shape: bf16[5,200,60], index: 1, kind: input, shape index: {}]
  %s2 = inlined_call_operand.vmem [shape: f32[1,60], index: 2, kind: input, shape index: {}]
  %s3 = inlined_call_operand.vmem [shape: bf16[2,6,8,60], index: 3, kind: output, shape index: {}]
  %s4 = sld [smem:[#allocation0]]
  $region52: #{neural_net_forward.4} parent=0
    _
  %s6 = ssub.s32 1, %s4
  %s7 = scalar_select 0, %s6, %s4
  loop: start=0, step=1, limit=4
  $region2: #{neural_net_forward.4} parent=0 // loop_pre_header
    _
  $region3: #{neural_net_forward.4} parent=0 // loop_header
    %s9 = sphi 0, %s13
    %p10 = scmp.ge.s32.totalorder %s9, 4
    %s19 = sphi 0, %s21
    %s22 = sphi 0, %s19
    %s23 = sphi 0, %s22
    %s39 = sphi 0, %s23
    %s43 = sphi 0, %s43
    %s45 = sphi 0, %s43
    %s46 = sphi 0, %s45
    %s60 = sphi 0, %s46
    %s64 = sphi 0, %s64
    %s66 = sphi 0, %s64
    %s67 = sphi 0, %s66
    %s81 = sphi 0, %s67
    %s87 = sphi 0, %s89
    %s90 = sphi 0, %s87
    %s91 = sphi 0, %s90
    %s107 = sphi 0, %s91
  $region4: #{neural_net_forward.4} parent=0 // loop_header_branch
    %12 = sbr.rel (%p10) target = $region8
  $region5: #{neural_net_forward.4} parent=0 // loop_body
    %s14 = ssub.s32 %s9, 1
    %s15 = ssub.s32 %s9, 2
    %s16 = sadd.s32 %s9, 1
    %s17 = ssub.s32 %s9, %s16
    %p18 = scmp.eq.s32.totalorder %s17, 0
    %s20 = sadd.s32 %s19, 1
    %s21 = scalar_select %p18, %s19, %s20
    %p24 = pneg %p18
    %p25 = scmp.eq.s32.totalorder %s9, 1
    %p26 = por %p24, %p25
    %p27 = scmp.ne.s32.totalorder %s19, %s22
    %p28 = scmp.eq.s32.totalorder %s9, 0
    %p29 = por %p27, %p28
    %p30 = scmp.ne.s32.totalorder %s19, %s22
    %p31 = scmp.eq.s32.totalorder %s14, 1
    %p32 = por %p30, %p31
    %p33 = scmp.ne.s32.totalorder %s22, %s23
    %p34 = scmp.eq.s32.totalorder %s14, 0
    %p35 = por %p33, %p34
    %p36 = scmp.ne.s32.totalorder %s22, %s23
    %p37 = scmp.eq.s32.totalorder %s15, 1
    %p38 = por %p36, %p37
    %p40 = scmp.ne.s32.totalorder %s23, %s39
    %p41 = scmp.eq.s32.totalorder %s15, 0
    %p42 = por %p40, %p41
    %s44 = sadd.s32 %s43, 1
    %p47 = scmp.eq.s32.totalorder %s9, 1
    %p48 = scmp.ne.s32.totalorder %s43, %s45
    %p49 = scmp.eq.s32.totalorder %s9, 0
    %p50 = por %p48, %p49
    %p51 = scmp.ne.s32.totalorder %s43, %s45
    %p52 = scmp.eq.s32.totalorder %s14, 1
    %p53 = por %p51, %p52
    %p54 = scmp.ne.s32.totalorder %s45, %s46
    %p55 = scmp.eq.s32.totalorder %s14, 0
    %p56 = por %p54, %p55
    %p57 = scmp.ne.s32.totalorder %s45, %s46
    %p58 = scmp.eq.s32.totalorder %s15, 1
    %p59 = por %p57, %p58
    %p61 = scmp.ne.s32.totalorder %s46, %s60
    %p62 = scmp.eq.s32.totalorder %s15, 0
    %p63 = por %p61, %p62
    %s65 = sadd.s32 %s64, 1
    %p68 = scmp.eq.s32.totalorder %s9, 1
    %p69 = scmp.ne.s32.totalorder %s64, %s66
    %p70 = scmp.eq.s32.totalorder %s9, 0
    %p71 = por %p69, %p70
    %p72 = scmp.ne.s32.totalorder %s64, %s66
    %p73 = scmp.eq.s32.totalorder %s14, 1
    %p74 = por %p72, %p73
    %p75 = scmp.ne.s32.totalorder %s66, %s67
    %p76 = scmp.eq.s32.totalorder %s14, 0
    %p77 = por %p75, %p76
    %p78 = scmp.ne.s32.totalorder %s66, %s67
    %p79 = scmp.eq.s32.totalorder %s15, 1
    %p80 = por %p78, %p79
    %p82 = scmp.ne.s32.totalorder %s67, %s81
    %p83 = scmp.eq.s32.totalorder %s15, 0
    %p84 = por %p82, %p83
    %s85 = ssub.s32 %s9, %s16
    %p86 = scmp.eq.s32.totalorder %s85, 0
    %s88 = sadd.s32 %s87, 1
    %s89 = scalar_select %p86, %s87, %s88
    %p92 = pneg %p86
    %p93 = scmp.eq.s32.totalorder %s9, 1
    %p94 = por %p92, %p93
    %p95 = scmp.ne.s32.totalorder %s87, %s90
    %p96 = scmp.eq.s32.totalorder %s9, 0
    %p97 = por %p95, %p96
    %p98 = scmp.ne.s32.totalorder %s87, %s90
    %p99 = scmp.eq.s32.totalorder %s14, 1
    %p100 = por %p98, %p99
    %p101 = scmp.ne.s32.totalorder %s90, %s91
    %p102 = scmp.eq.s32.totalorder %s14, 0
    %p103 = por %p101, %p102
    %p104 = scmp.ne.s32.totalorder %s90, %s91
    %p105 = scmp.eq.s32.totalorder %s15, 1
    %p106 = por %p104, %p105
    %p108 = scmp.ne.s32.totalorder %s91, %s107
    %p109 = scmp.eq.s32.totalorder %s15, 0
    %p110 = por %p108, %p109
    %p111 = scmp.le.s32.totalorder 1, %s9
    %p112 = scmp.lt.s32.totalorder %s9, 3
    %p113 = pnand %p111, %p112
    %p114 = pneg %p113
    // Predicated region
    $region9: #{neural_net_forward.4} parent=5 // pred_check
      _
    $region10: #{neural_net_forward.4} parent=5 // pred_check_branch
      %116 = sbr.rel (%p113) target = $region12
    $region11: #{neural_net_forward.4} parent=5 // pred_region
      %s117 = ssub.s32 %s9, 1
      // Predicated region
      $region13: #{neural_net_forward.4} parent=11 // pred_check
        %p118 = pneg %p56
      $region14: #{neural_net_forward.4} parent=11 // pred_check_branch
        %120 = sbr.rel (%p118) target = $region16
      $region15: #{neural_net_forward.4} parent=11 // pred_region
        _
      $region16: #{neural_net_forward.4} parent=11 // pred_fallthru
        _
      // Predicated region
      $region17: #{neural_net_forward.4} parent=11 // pred_check
        %p121 = pneg %p77
      $region18: #{neural_net_forward.4} parent=11 // pred_check_branch
        %123 = sbr.rel (%p121) target = $region20
      $region19: #{neural_net_forward.4} parent=11 // pred_region
        _
      $region20: #{neural_net_forward.4} parent=11 // pred_fallthru
        _
    $region12: #{neural_net_forward.4} parent=5 // pred_fallthru
      _
    %p124 = scmp.lt.s32.totalorder %s9, 2
    // Predicated region
    $region21: #{neural_net_forward.4} parent=5 // pred_check
      %p125 = pneg %p124
    $region22: #{neural_net_forward.4} parent=5 // pred_check_branch
      %127 = sbr.rel (%p125) target = $region24
    $region23: #{neural_net_forward.4} parent=5 // pred_region
      // Predicated region
      $region25: #{neural_net_forward.4} parent=23 // pred_check
        %p128 = pneg %p29
      $region26: #{neural_net_forward.4} parent=23 // pred_check_branch
        %130 = sbr.rel (%p128) target = $region28
      $region27: #{neural_net_forward.4} parent=23 // pred_region
        %p131 = scmp.lt.s32.totalorder %s9, 1
        %s132 = scalar_select %p131, %s9, 1
        %s133 = smul.addr %s132, 232
        %s134 = smul.addr %s133, 4
        %s135 = scalar_lea.vmem %s0, %s134
      $region28: #{neural_net_forward.4} parent=23 // pred_fallthru
        _
    $region24: #{neural_net_forward.4} parent=5 // pred_fallthru
      _
    %p136 = scmp.le.s32.totalorder 1, %s9
    %p137 = scmp.lt.s32.totalorder %s9, 3
    %p138 = pnand %p136, %p137
    %p139 = pneg %p138
    // Predicated region
    $region29: #{neural_net_forward.4} parent=5 // pred_check
      _
    $region30: #{neural_net_forward.4} parent=5 // pred_check_branch
      %141 = sbr.rel (%p138) target = $region32
    $region31: #{neural_net_forward.4} parent=5 // pred_region
      %s142 = ssub.s32 %s9, 1
      %p143 = scmp.lt.s32.totalorder %s14, 1
      %s144 = scalar_select %p143, %s14, 1
      %s145 = smul.addr %s144, 232
      %s146 = smul.addr %s145, 4
      %s147 = scalar_lea.vmem %s0, %s146
      %p148 = pneg %p35
      %p149 = pneg %p32
      %p150 = pneg %p56
      %p151 = pneg %p53
      %p152 = pneg %p77
      %p153 = pneg %p74
      %p154 = pneg %p103
      %p155 = pneg %p100
      %p156 = scmp.lt.s32.totalorder %s14, 1
      %s157 = scalar_select %p156, %s14, 1
      %s158 = smul.addr %s157, 6
      %s159 = smul.addr %s158, 4
      %s160 = scalar_lea.vmem %s3, %s159
      %p161 = scmp.lt.s32.totalorder %s14, 1
      %s162 = scalar_select %p161, %s14, 1
      %s163 = smul.addr %s162, 232
      %s164 = smul.addr %s163, 4
      %s165 = scalar_lea.vmem %s0, %s164
      %p166 = scmp.lt.s32.totalorder %s14, 1
      %s167 = scalar_select %p166, %s14, 1
      %s168 = smul.addr %s167, 6
      %s169 = smul.addr %s168, 4
      %s170 = scalar_lea.vmem %s3, %s169
      loop: start=0, step=1, limit=6
      $region33: #{neural_net_forward.4} parent=31 // loop_pre_header
        _
      $region34: #{neural_net_forward.4} parent=31 // loop_header
        %s173 = sphi 0, %s177
        %p174 = scmp.ge.s32.totalorder %s173, 6
      $region35: #{neural_net_forward.4} parent=31 // loop_header_branch
        %176 = sbr.rel (%p174) target = $region39
      $region36: #{neural_net_forward.4} parent=31 // loop_body
        %s178 = smul.u32 %s173, 128
        %s179 = sshra.s32 %s178, 3
        %s180 = sand.u32 %s178, 7
        %s181 = smul.u32 %s179, 2
        %s182 = smul.addr %s181, 4
        %s183 = scalar_lea.vmem %s165, %s182
        %v184 = vld [vmem:[%s183] sm:$0xff]
        %v185 = vld [vmem:[%s183 + $0x8] sm:$0xff]
        %v186 = vld [vmem:[%s183 + $0x10] sm:$0xff]
        %v187 = vld [vmem:[%s183 + $0x18] sm:$0xff]
        %v188 = vld [vmem:[%s183 + $0x20] sm:$0xff]
        %v189 = vld [vmem:[%s183 + $0x28] sm:$0xff]
        %v190 = vld [vmem:[%s183 + $0x30] sm:$0xff]
        %v191 = vld [vmem:[%s183 + $0x38] sm:$0xff]
        %v192 = vld [vmem:[%s183 + $0x40] sm:$0xff]
        %v193 = vld [vmem:[%s183 + $0x48] sm:$0xff]
        %v194 = vld [vmem:[%s183 + $0x50] sm:$0xff]
        %v195 = vld [vmem:[%s183 + $0x58] sm:$0xff]
        %v196 = vld [vmem:[%s183 + $0x60] sm:$0xff]
        %v197 = vld [vmem:[%s183 + $0x68] sm:$0xff]
        %v198 = vld [vmem:[%s183 + $0x70] sm:$0xff]
        %v199 = vld [vmem:[%s183 + $0x78] sm:$0xff]
        %v200 = vld [vmem:[%s1] sm:$0xf]
        %v201 = vld [vmem:[%s1 + $0x4] sm:$0xf]
        %v202 = vld [vmem:[%s1 + $0x8] sm:$0xf]
        %v203 = vld [vmem:[%s1 + $0xc] sm:$0xf]
        %v204 = vld [vmem:[%s1 + $0x10] sm:$0xf]
        %v205 = vld [vmem:[%s1 + $0x14] sm:$0xf]
        %v206 = vld [vmem:[%s1 + $0x18] sm:$0xf]
        %v207 = vld [vmem:[%s1 + $0x1c] sm:$0xf]
        %v208 = vld [vmem:[%s1 + $0x20] sm:$0xf]
        %v209 = vld [vmem:[%s1 + $0x24] sm:$0xf]
        %v210 = vld [vmem:[%s1 + $0x28] sm:$0xf]
        %v211 = vld [vmem:[%s1 + $0x2c] sm:$0xf]
        %v212 = vld [vmem:[%s1 + $0x30] sm:$0xf]
        %v213 = vld [vmem:[%s1 + $0x34] sm:$0xf]
        %v214 = vld [vmem:[%s1 + $0x38] sm:$0xf]
        %v215 = vld [vmem:[%s1 + $0x3c] sm:$0xf]
        %v216 = vld [vmem:[%s1 + $0x40] sm:$0xf]
        %v217 = vld [vmem:[%s1 + $0x44] sm:$0xf]
        %v218 = vld [vmem:[%s1 + $0x48] sm:$0xf]
        %v219 = vld [vmem:[%s1 + $0x4c] sm:$0xf]
        %v220 = vld [vmem:[%s1 + $0x50] sm:$0xf]
        %v221 = vld [vmem:[%s1 + $0x54] sm:$0xf]
        %v222 = vld [vmem:[%s1 + $0x58] sm:$0xf]
        %v223 = vld [vmem:[%s1 + $0x5c] sm:$0xf]
        %v224 = vld [vmem:[%s1 + $0x60] sm:$0xf]
        %v241 = vunpack.c.l.b16 %v184
        %v242 = vunpack.c.h.b16 %v184
        %v243 = vunpack.c.l.b16 %v185
        %v244 = vunpack.c.h.b16 %v185
        %v245 = vunpack.c.l.b16 %v186
        %v246 = vunpack.c.h.b16 %v186
        %v247 = vunpack.c.l.b16 %v187
        %v248 = vunpack.c.h.b16 %v187
        %v249 = vunpack.c.l.b16 %v188
        %v250 = vunpack.c.h.b16 %v188
        %v251 = vunpack.c.l.b16 %v189
        %v252 = vunpack.c.h.b16 %v189
        %v253 = vunpack.c.l.b16 %v190
        %v254 = vunpack.c.h.b16 %v190
        %v255 = vunpack.c.l.b16 %v191
        %v256 = vunpack.c.h.b16 %v191
        %v257 = vunpack.c.l.b16 %v192
        %v258 = vunpack.c.h.b16 %v192
        %v259 = vunpack.c.l.b16 %v193
        %v260 = vunpack.c.h.b16 %v193
        %v261 = vunpack.c.l.b16 %v194
        %v262 = vunpack.c.h.b16 %v194
        %v263 = vunpack.c.l.b16 %v195
        %v264 = vunpack.c.h.b16 %v195
        %v265 = vunpack.c.l.b16 %v196
        %v266 = vunpack.c.h.b16 %v196
        %v267 = vunpack.c.l.b16 %v197
        %v268 = vunpack.c.h.b16 %v197
        %v269 = vunpack.c.l.b16 %v198
        %v270 = vunpack.c.h.b16 %v198
        %v271 = vunpack.c.l.b16 %v199
        %v272 = vunpack.c.h.b16 %v199
        %v273 = vpack.c.b16 %v243, %v241
        %v274 = vpack.c.b16 %v244, %v242
        %v275 = vpack.c.b16 %v247, %v245
        %v276 = vpack.c.b16 %v248, %v246
        %v277 = vpack.c.b16 %v251, %v249
        %v278 = vpack.c.b16 %v252, %v250
        %v279 = vpack.c.b16 %v255, %v253
        %v280 = vpack.c.b16 %v256, %v254
        %v281 = vpack.c.b16 %v259, %v257
        %v282 = vpack.c.b16 %v260, %v258
        %v283 = vpack.c.b16 %v263, %v261
        %v284 = vpack.c.b16 %v264, %v262
        %v285 = vpack.c.b16 %v267, %v265
        %v286 = vpack.c.b16 %v268, %v266
        %v287 = vpack.c.b16 %v271, %v269
        %v288 = vpack.c.b16 %v272, %v270
        %v322 = vunpack.c.l.b16 %v200
        %v323 = vunpack.c.l.b16 %v201
        %v324 = vunpack.c.l.b16 %v202
        %v325 = vunpack.c.l.b16 %v203
        %v326 = vunpack.c.l.b16 %v204
        %v327 = vunpack.c.l.b16 %v205
        %v328 = vunpack.c.l.b16 %v206
        %v329 = vunpack.c.l.b16 %v207
        %v330 = vunpack.c.l.b16 %v208
        %v331 = vunpack.c.l.b16 %v209
        %v332 = vunpack.c.l.b16 %v210
        %v333 = vunpack.c.l.b16 %v211
        %v334 = vunpack.c.l.b16 %v212
        %v335 = vunpack.c.l.b16 %v213
        %v336 = vunpack.c.l.b16 %v214
        %v337 = vunpack.c.l.b16 %v215
        %v338 = vunpack.c.l.b16 %v216
        %v339 = vunpack.c.l.b16 %v217
        %v340 = vunpack.c.l.b16 %v218
        %v341 = vunpack.c.l.b16 %v219
        %v342 = vunpack.c.l.b16 %v220
        %v343 = vunpack.c.l.b16 %v221
        %v344 = vunpack.c.l.b16 %v222
        %v345 = vunpack.c.l.b16 %v223
        %v346 = vunpack.c.l.b16 %v224
        %v347 = vpack.c.b16 %v323, %v322
        %v348 = vpack.c.b16 %v325, %v324
        %v349 = vpack.c.b16 %v327, %v326
        %v350 = vpack.c.b16 %v329, %v328
        %v351 = vpack.c.b16 %v331, %v330
        %v352 = vpack.c.b16 %v333, %v332
        %v353 = vpack.c.b16 %v335, %v334
        %v354 = vpack.c.b16 %v337, %v336
        %v355 = vpack.c.b16 %v339, %v338
        %v356 = vpack.c.b16 %v341, %v340
        %v357 = vpack.c.b16 %v343, %v342
        %v358 = vpack.c.b16 %v345, %v344
        %v359 = vpack.c.b16 %v346, %v346
        %vm372 = vcmask 588800
        %v374 = vsel %vm372, %v274, 0
        %v377 = vsel %vm372, %v276, 0
        %v380 = vsel %vm372, %v278, 0
        %v383 = vsel %vm372, %v280, 0
        %v386 = vsel %vm372, %v282, 0
        %v389 = vsel %vm372, %v284, 0
        %v392 = vsel %vm372, %v286, 0
        %v395 = vsel %vm372, %v288, 0
        %vm397 = vcmask 1043456
        %v399 = vsel %vm397, %v359, 0
        %401 = vmatprep.subr.bf16.mxu0 0
        %402 = vmatpush1.bf16.msra.mxu0 %v354
        %403 = vmatprep.subr.bf16.mxu0 0
        %404 = vmatpush1.bf16.msra.mxu0 %v353
        %405 = vmatprep.subr.bf16.mxu0 0
        %406 = vmatpush1.bf16.msra.mxu0 %v352
        %407 = vmatprep.subr.bf16.mxu0 0
        %408 = vmatpush1.bf16.msra.mxu0 %v351
        %409 = vmatprep.subr.bf16.mxu0 0
        %410 = vmatpush1.bf16.msra.mxu0 %v350
        %411 = vmatprep.subr.bf16.mxu0 0
        %412 = vmatpush1.bf16.msra.mxu0 %v349
        %413 = vmatprep.subr.bf16.mxu0 0
        %414 = vmatpush1.bf16.msra.mxu0 %v348
        %415 = vmatprep.subr.bf16.mxu0 0
        %416 = vmatpush1.bf16.msra.mxu0 %v347
        %417 = vmatprep.subr.bf16.mxu0 0
        %418 = vmatpush2.bf16.msra.mxu0 0
        %419 = vmatprep.subr.bf16.mxu0 0
        %420 = vmatpush2.bf16.msra.mxu0 0
        %421 = vmatprep.subr.bf16.mxu0 0
        %422 = vmatpush2.bf16.msra.mxu0 0
        %423 = vmatprep.subr.bf16.mxu0 0
        %424 = vmatpush2.bf16.msra.mxu0 %v399
        %425 = vmatprep.subr.bf16.mxu0 0
        %426 = vmatpush2.bf16.msra.mxu0 %v358
        %427 = vmatprep.subr.bf16.mxu0 0
        %428 = vmatpush2.bf16.msra.mxu0 %v357
        %429 = vmatprep.subr.bf16.mxu0 0
        %430 = vmatpush2.bf16.msra.mxu0 %v356
        %431 = vmatprep.subr.bf16.mxu0 0
        %432 = vmatpush2.bf16.msra.mxu0 %v355
        %433 = vmatprep.mubr.bf16.mxu0 %v374
        %434 = vmatmul.mubr.bf16.gmra.mxu0 %v273
        %v435 = vpop.f32.mrf.mxu0
        %v436 = vadd.f32 0.0, %v435
        %v437 = vpop.f32.mrf.mxu0
        %v438 = vpop.f32.mrf.mxu0
        %v439 = vadd.f32 0.0, %v438
        %v440 = vpop.f32.mrf.mxu0
        %441 = vmatprep.mubr.bf16.mxu0 %v377
        %442 = vmatmul.mubr.bf16.gmra.mxu0 %v275
        %v443 = vpop.f32.mrf.mxu0
        %v444 = vadd.f32 0.0, %v443
        %v445 = vpop.f32.mrf.mxu0
        %v446 = vpop.f32.mrf.mxu0
        %v447 = vadd.f32 0.0, %v446
        %v448 = vpop.f32.mrf.mxu0
        %449 = vmatprep.mubr.bf16.mxu0 %v380
        %450 = vmatmul.mubr.bf16.gmra.mxu0 %v277
        %v451 = vpop.f32.mrf.mxu0
        %v452 = vadd.f32 0.0, %v451
        %v453 = vpop.f32.mrf.mxu0
        %v454 = vpop.f32.mrf.mxu0
        %v455 = vadd.f32 0.0, %v454
        %v456 = vpop.f32.mrf.mxu0
        %457 = vmatprep.mubr.bf16.mxu0 %v383
        %458 = vmatmul.mubr.bf16.gmra.mxu0 %v279
        %v459 = vpop.f32.mrf.mxu0
        %v460 = vadd.f32 0.0, %v459
        %v461 = vpop.f32.mrf.mxu0
        %v462 = vpop.f32.mrf.mxu0
        %v463 = vadd.f32 0.0, %v462
        %v464 = vpop.f32.mrf.mxu0
        %465 = vmatprep.mubr.bf16.mxu0 %v386
        %466 = vmatmul.mubr.bf16.gmra.mxu0 %v281
        %v467 = vpop.f32.mrf.mxu0
        %v468 = vadd.f32 0.0, %v467
        %v469 = vpop.f32.mrf.mxu0
        %v470 = vpop.f32.mrf.mxu0
        %v471 = vadd.f32 0.0, %v470
        %v472 = vpop.f32.mrf.mxu0
        %473 = vmatprep.mubr.bf16.mxu0 %v389
        %474 = vmatmul.mubr.bf16.gmra.mxu0 %v283
        %v475 = vpop.f32.mrf.mxu0
        %v476 = vadd.f32 0.0, %v475
        %v477 = vpop.f32.mrf.mxu0
        %v478 = vpop.f32.mrf.mxu0
        %v479 = vadd.f32 0.0, %v478
        %v480 = vpop.f32.mrf.mxu0
        %481 = vmatprep.mubr.bf16.mxu0 %v392
        %482 = vmatmul.mubr.bf16.gmra.mxu0 %v285
        %v483 = vpop.f32.mrf.mxu0
        %v484 = vadd.f32 0.0, %v483
        %v485 = vpop.f32.mrf.mxu0
        %v486 = vpop.f32.mrf.mxu0
        %v487 = vadd.f32 0.0, %v486
        %v488 = vpop.f32.mrf.mxu0
        %489 = vmatprep.mubr.bf16.mxu0 %v395
        %490 = vmatmul.mubr.bf16.gmra.mxu0 %v287
        %v491 = vpop.f32.mrf.mxu0
        %v492 = vadd.f32 0.0, %v491
        %v493 = vpop.f32.mrf.mxu0
        %v494 = vpop.f32.mrf.mxu0
        %v495 = vadd.f32 0.0, %v494
        %v496 = vpop.f32.mrf.mxu0
        %497 = vdwg.mxu0
        %vm498 = vcmask 490496
        %499 = vst.msk [vmem:[#allocation2] sm:$0xff] %vm498, %v436
        %500 = vst.msk [vmem:[#allocation2 + $0x8] sm:$0xff] %vm498, %v439
        %501 = vst.msk [vmem:[#allocation2 + $0x10] sm:$0xff] %vm498, %v444
        %502 = vst.msk [vmem:[#allocation2 + $0x18] sm:$0xff] %vm498, %v447
        %503 = vst.msk [vmem:[#allocation2 + $0x20] sm:$0xff] %vm498, %v452
        %504 = vst.msk [vmem:[#allocation2 + $0x28] sm:$0xff] %vm498, %v455
        %505 = vst.msk [vmem:[#allocation2 + $0x30] sm:$0xff] %vm498, %v460
        %506 = vst.msk [vmem:[#allocation2 + $0x38] sm:$0xff] %vm498, %v463
        %507 = vst.msk [vmem:[#allocation2 + $0x40] sm:$0xff] %vm498, %v468
        %508 = vst.msk [vmem:[#allocation2 + $0x48] sm:$0xff] %vm498, %v471
        %509 = vst.msk [vmem:[#allocation2 + $0x50] sm:$0xff] %vm498, %v476
        %510 = vst.msk [vmem:[#allocation2 + $0x58] sm:$0xff] %vm498, %v479
        %511 = vst.msk [vmem:[#allocation2 + $0x60] sm:$0xff] %vm498, %v484
        %512 = vst.msk [vmem:[#allocation2 + $0x68] sm:$0xff] %vm498, %v487
        %513 = vst.msk [vmem:[#allocation2 + $0x70] sm:$0xff] %vm498, %v492
        %514 = vst.msk [vmem:[#allocation2 + $0x78] sm:$0xff] %vm498, %v495
        %s515 = sadd.s32 %s178, 32
        %v516 = vld [vmem:[#allocation2] sm:$0xff]
        %v517 = vld [vmem:[#allocation2 + $0x8] sm:$0xff]
        %v518 = vld [vmem:[#allocation2 + $0x10] sm:$0xff]
        %v519 = vld [vmem:[#allocation2 + $0x18] sm:$0xff]
        %v520 = vld [vmem:[#allocation2 + $0x20] sm:$0xff]
        %v521 = vld [vmem:[#allocation2 + $0x28] sm:$0xff]
        %v522 = vld [vmem:[#allocation2 + $0x30] sm:$0xff]
        %v523 = vld [vmem:[#allocation2 + $0x38] sm:$0xff]
        %v524 = vld [vmem:[#allocation2 + $0x40] sm:$0xff]
        %v525 = vld [vmem:[#allocation2 + $0x48] sm:$0xff]
        %v526 = vld [vmem:[#allocation2 + $0x50] sm:$0xff]
        %v527 = vld [vmem:[#allocation2 + $0x58] sm:$0xff]
        %v528 = vld [vmem:[#allocation2 + $0x60] sm:$0xff]
        %v529 = vld [vmem:[#allocation2 + $0x68] sm:$0xff]
        %v530 = vld [vmem:[#allocation2 + $0x70] sm:$0xff]
        %v531 = vld [vmem:[#allocation2 + $0x78] sm:$0xff]
        %s532 = sshra.s32 %s515, 3
        %s533 = sand.u32 %s515, 7
        %s534 = smul.u32 %s532, 2
        %s535 = smul.addr %s534, 4
        %s536 = scalar_lea.vmem %s165, %s535
        %v537 = vld [vmem:[%s536] sm:$0xff]
        %v538 = vld [vmem:[%s536 + $0x8] sm:$0xff]
        %v539 = vld [vmem:[%s536 + $0x10] sm:$0xff]
        %v540 = vld [vmem:[%s536 + $0x18] sm:$0xff]
        %v541 = vld [vmem:[%s536 + $0x20] sm:$0xff]
        %v542 = vld [vmem:[%s536 + $0x28] sm:$0xff]
        %v543 = vld [vmem:[%s536 + $0x30] sm:$0xff]
        %v544 = vld [vmem:[%s536 + $0x38] sm:$0xff]
        %v545 = vld [vmem:[%s536 + $0x40] sm:$0xff]
        %v546 = vld [vmem:[%s536 + $0x48] sm:$0xff]
        %v547 = vld [vmem:[%s536 + $0x50] sm:$0xff]
        %v548 = vld [vmem:[%s536 + $0x58] sm:$0xff]
        %v549 = vld [vmem:[%s536 + $0x60] sm:$0xff]
        %v550 = vld [vmem:[%s536 + $0x68] sm:$0xff]
        %v551 = vld [vmem:[%s536 + $0x70] sm:$0xff]
        %v552 = vld [vmem:[%s536 + $0x78] sm:$0xff]
        %s553 = scalar_lea.vmem %s1, 100
        %v554 = vld [vmem:[%s553] sm:$0xf]
        %v555 = vld [vmem:[%s553 + $0x4] sm:$0xf]
        %v556 = vld [vmem:[%s553 + $0x8] sm:$0xf]
        %v557 = vld [vmem:[%s553 + $0xc] sm:$0xf]
        %v558 = vld [vmem:[%s553 + $0x10] sm:$0xf]
        %v559 = vld [vmem:[%s553 + $0x14] sm:$0xf]
        %v560 = vld [vmem:[%s553 + $0x18] sm:$0xf]
        %v561 = vld [vmem:[%s553 + $0x1c] sm:$0xf]
        %v562 = vld [vmem:[%s553 + $0x20] sm:$0xf]
        %v563 = vld [vmem:[%s553 + $0x24] sm:$0xf]
        %v564 = vld [vmem:[%s553 + $0x28] sm:$0xf]
        %v565 = vld [vmem:[%s553 + $0x2c] sm:$0xf]
        %v566 = vld [vmem:[%s553 + $0x30] sm:$0xf]
        %v567 = vld [vmem:[%s553 + $0x34] sm:$0xf]
        %v568 = vld [vmem:[%s553 + $0x38] sm:$0xf]
        %v569 = vld [vmem:[%s553 + $0x3c] sm:$0xf]
        %v570 = vld [vmem:[%s553 + $0x40] sm:$0xf]
        %v571 = vld [vmem:[%s553 + $0x44] sm:$0xf]
        %v572 = vld [vmem:[%s553 + $0x48] sm:$0xf]
        %v573 = vld [vmem:[%s553 + $0x4c] sm:$0xf]
        %v574 = vld [vmem:[%s553 + $0x50] sm:$0xf]
        %v575 = vld [vmem:[%s553 + $0x54] sm:$0xf]
        %v576 = vld [vmem:[%s553 + $0x58] sm:$0xf]
        %v577 = vld [vmem:[%s553 + $0x5c] sm:$0xf]
        %v578 = vld [vmem:[%s553 + $0x60] sm:$0xf]
        %v595 = vunpack.c.l.b16 %v537
        %v596 = vunpack.c.h.b16 %v537
        %v597 = vunpack.c.l.b16 %v538
        %v598 = vunpack.c.h.b16 %v538
        %v599 = vunpack.c.l.b16 %v539
        %v600 = vunpack.c.h.b16 %v539
        %v601 = vunpack.c.l.b16 %v540
        %v602 = vunpack.c.h.b16 %v540
        %v603 = vunpack.c.l.b16 %v541
        %v604 = vunpack.c.h.b16 %v541
        %v605 = vunpack.c.l.b16 %v542
        %v606 = vunpack.c.h.b16 %v542
        %v607 = vunpack.c.l.b16 %v543
        %v608 = vunpack.c.h.b16 %v543
        %v609 = vunpack.c.l.b16 %v544
        %v610 = vunpack.c.h.b16 %v544
        %v611 = vunpack.c.l.b16 %v545
        %v612 = vunpack.c.h.b16 %v545
        %v613 = vunpack.c.l.b16 %v546
        %v614 = vunpack.c.h.b16 %v546
        %v615 = vunpack.c.l.b16 %v547
        %v616 = vunpack.c.h.b16 %v547
        %v617 = vunpack.c.l.b16 %v548
        %v618 = vunpack.c.h.b16 %v548
        %v619 = vunpack.c.l.b16 %v549
        %v620 = vunpack.c.h.b16 %v549
        %v621 = vunpack.c.l.b16 %v550
        %v622 = vunpack.c.h.b16 %v550
        %v623 = vunpack.c.l.b16 %v551
        %v624 = vunpack.c.h.b16 %v551
        %v625 = vunpack.c.l.b16 %v552
        %v626 = vunpack.c.h.b16 %v552
        %v627 = vpack.c.b16 %v597, %v595
        %v628 = vpack.c.b16 %v598, %v596
        %v629 = vpack.c.b16 %v601, %v599
        %v630 = vpack.c.b16 %v602, %v600
        %v631 = vpack.c.b16 %v605, %v603
        %v632 = vpack.c.b16 %v606, %v604
        %v633 = vpack.c.b16 %v609, %v607
        %v634 = vpack.c.b16 %v610, %v608
        %v635 = vpack.c.b16 %v613, %v611
        %v636 = vpack.c.b16 %v614, %v612
        %v637 = vpack.c.b16 %v617, %v615
        %v638 = vpack.c.b16 %v618, %v616
        %v639 = vpack.c.b16 %v621, %v619
        %v640 = vpack.c.b16 %v622, %v620
        %v641 = vpack.c.b16 %v625, %v623
        %v642 = vpack.c.b16 %v626, %v624
        %v676 = vunpack.c.l.b16 %v554
        %v677 = vunpack.c.l.b16 %v555
        %v678 = vunpack.c.l.b16 %v556
        %v679 = vunpack.c.l.b16 %v557
        %v680 = vunpack.c.l.b16 %v558
        %v681 = vunpack.c.l.b16 %v559
        %v682 = vunpack.c.l.b16 %v560
        %v683 = vunpack.c.l.b16 %v561
        %v684 = vunpack.c.l.b16 %v562
        %v685 = vunpack.c.l.b16 %v563
        %v686 = vunpack.c.l.b16 %v564
        %v687 = vunpack.c.l.b16 %v565
        %v688 = vunpack.c.l.b16 %v566
        %v689 = vunpack.c.l.b16 %v567
        %v690 = vunpack.c.l.b16 %v568
        %v691 = vunpack.c.l.b16 %v569
        %v692 = vunpack.c.l.b16 %v570
        %v693 = vunpack.c.l.b16 %v571
        %v694 = vunpack.c.l.b16 %v572
        %v695 = vunpack.c.l.b16 %v573
        %v696 = vunpack.c.l.b16 %v574
        %v697 = vunpack.c.l.b16 %v575
        %v698 = vunpack.c.l.b16 %v576
        %v699 = vunpack.c.l.b16 %v577
        %v700 = vunpack.c.l.b16 %v578
        %v701 = vpack.c.b16 %v677, %v676
        %v702 = vpack.c.b16 %v679, %v678
        %v703 = vpack.c.b16 %v681, %v680
        %v704 = vpack.c.b16 %v683, %v682
        %v705 = vpack.c.b16 %v685, %v684
        %v706 = vpack.c.b16 %v687, %v686
        %v707 = vpack.c.b16 %v689, %v688
        %v708 = vpack.c.b16 %v691, %v690
        %v709 = vpack.c.b16 %v693, %v692
        %v710 = vpack.c.b16 %v695, %v694
        %v711 = vpack.c.b16 %v697, %v696
        %v712 = vpack.c.b16 %v699, %v698
        %v713 = vpack.c.b16 %v700, %v700
        %v727 = vsel %vm372, %v628, 0
        %v730 = vsel %vm372, %v630, 0
        %v733 = vsel %vm372, %v632, 0
        %v736 = vsel %vm372, %v634, 0
        %v739 = vsel %vm372, %v636, 0
        %v742 = vsel %vm372, %v638, 0
        %v745 = vsel %vm372, %v640, 0
        %v748 = vsel %vm372, %v642, 0
        %v751 = vsel %vm397, %v713, 0
        %753 = vmatprep.subr.bf16.mxu0 0
        %754 = vmatpush1.bf16.msra.mxu0 %v708
        %755 = vmatprep.subr.bf16.mxu0 0
        %756 = vmatpush1.bf16.msra.mxu0 %v707
        %757 = vmatprep.subr.bf16.mxu0 0
        %758 = vmatpush1.bf16.msra.mxu0 %v706
        %759 = vmatprep.subr.bf16.mxu0 0
        %760 = vmatpush1.bf16.msra.mxu0 %v705
        %761 = vmatprep.subr.bf16.mxu0 0
        %762 = vmatpush1.bf16.msra.mxu0 %v704
        %763 = vmatprep.subr.bf16.mxu0 0
        %764 = vmatpush1.bf16.msra.mxu0 %v703
        %765 = vmatprep.subr.bf16.mxu0 0
        %766 = vmatpush1.bf16.msra.mxu0 %v702
        %767 = vmatprep.subr.bf16.mxu0 0
        %768 = vmatpush1.bf16.msra.mxu0 %v701
        %769 = vmatprep.subr.bf16.mxu0 0
        %770 = vmatpush2.bf16.msra.mxu0 0
        %771 = vmatprep.subr.bf16.mxu0 0
        %772 = vmatpush2.bf16.msra.mxu0 0
        %773 = vmatprep.subr.bf16.mxu0 0
        %774 = vmatpush2.bf16.msra.mxu0 0
        %775 = vmatprep.subr.bf16.mxu0 0
        %776 = vmatpush2.bf16.msra.mxu0 %v751
        %777 = vmatprep.subr.bf16.mxu0 0
        %778 = vmatpush2.bf16.msra.mxu0 %v712
        %779 = vmatprep.subr.bf16.mxu0 0
        %780 = vmatpush2.bf16.msra.mxu0 %v711
        %781 = vmatprep.subr.bf16.mxu0 0
        %782 = vmatpush2.bf16.msra.mxu0 %v710
        %783 = vmatprep.subr.bf16.mxu0 0
        %784 = vmatpush2.bf16.msra.mxu0 %v709
        %785 = vmatprep.mubr.bf16.mxu0 %v727
        %786 = vmatmul.mubr.bf16.gmra.mxu0 %v627
        %v787 = vpop.f32.mrf.mxu0
        %v788 = vadd.f32 0.0, %v787
        %v789 = vpop.f32.mrf.mxu0
        %v790 = vpop.f32.mrf.mxu0
        %v791 = vadd.f32 0.0, %v790
        %v792 = vpop.f32.mrf.mxu0
        %793 = vmatprep.mubr.bf16.mxu0 %v730
        %794 = vmatmul.mubr.bf16.gmra.mxu0 %v629
        %v795 = vpop.f32.mrf.mxu0
        %v796 = vadd.f32 0.0, %v795
        %v797 = vpop.f32.mrf.mxu0
        %v798 = vpop.f32.mrf.mxu0
        %v799 = vadd.f32 0.0, %v798
        %v800 = vpop.f32.mrf.mxu0
        %801 = vmatprep.mubr.bf16.mxu0 %v733
        %802 = vmatmul.mubr.bf16.gmra.mxu0 %v631
        %v803 = vpop.f32.mrf.mxu0
        %v804 = vadd.f32 0.0, %v803
        %v805 = vpop.f32.mrf.mxu0
        %v806 = vpop.f32.mrf.mxu0
        %v807 = vadd.f32 0.0, %v806
        %v808 = vpop.f32.mrf.mxu0
        %809 = vmatprep.mubr.bf16.mxu0 %v736
        %810 = vmatmul.mubr.bf16.gmra.mxu0 %v633
        %v811 = vpop.f32.mrf.mxu0
        %v812 = vadd.f32 0.0, %v811
        %v813 = vpop.f32.mrf.mxu0
        %v814 = vpop.f32.mrf.mxu0
        %v815 = vadd.f32 0.0, %v814
        %v816 = vpop.f32.mrf.mxu0
        %817 = vmatprep.mubr.bf16.mxu0 %v739
        %818 = vmatmul.mubr.bf16.gmra.mxu0 %v635
        %v819 = vpop.f32.mrf.mxu0
        %v820 = vadd.f32 0.0, %v819
        %v821 = vpop.f32.mrf.mxu0
        %v822 = vpop.f32.mrf.mxu0
        %v823 = vadd.f32 0.0, %v822
        %v824 = vpop.f32.mrf.mxu0
        %825 = vmatprep.mubr.bf16.mxu0 %v742
        %826 = vmatmul.mubr.bf16.gmra.mxu0 %v637
        %v827 = vpop.f32.mrf.mxu0
        %v828 = vadd.f32 0.0, %v827
        %v829 = vpop.f32.mrf.mxu0
        %v830 = vpop.f32.mrf.mxu0
        %v831 = vadd.f32 0.0, %v830
        %v832 = vpop.f32.mrf.mxu0
        %833 = vmatprep.mubr.bf16.mxu0 %v745
        %834 = vmatmul.mubr.bf16.gmra.mxu0 %v639
        %v835 = vpop.f32.mrf.mxu0
        %v836 = vadd.f32 0.0, %v835
        %v837 = vpop.f32.mrf.mxu0
        %v838 = vpop.f32.mrf.mxu0
        %v839 = vadd.f32 0.0, %v838
        %v840 = vpop.f32.mrf.mxu0
        %841 = vmatprep.mubr.bf16.mxu0 %v748
        %842 = vmatmul.mubr.bf16.gmra.mxu0 %v641
        %v843 = vpop.f32.mrf.mxu0
        %v844 = vadd.f32 0.0, %v843
        %v845 = vpop.f32.mrf.mxu0
        %v846 = vpop.f32.mrf.mxu0
        %v847 = vadd.f32 0.0, %v846
        %v848 = vpop.f32.mrf.mxu0
        %849 = vdwg.mxu0
        %v850 = vadd.f32 %v516, %v788
        %v851 = vadd.f32 %v517, %v791
        %v852 = vadd.f32 %v518, %v796
        %v853 = vadd.f32 %v519, %v799
        %v854 = vadd.f32 %v520, %v804
        %v855 = vadd.f32 %v521, %v807
        %v856 = vadd.f32 %v522, %v812
        %v857 = vadd.f32 %v523, %v815
        %v858 = vadd.f32 %v524, %v820
        %v859 = vadd.f32 %v525, %v823
        %v860 = vadd.f32 %v526, %v828
        %v861 = vadd.f32 %v527, %v831
        %v862 = vadd.f32 %v528, %v836
        %v863 = vadd.f32 %v529, %v839
        %v864 = vadd.f32 %v530, %v844
        %v865 = vadd.f32 %v531, %v847
        %866 = vst.msk [vmem:[#allocation2] sm:$0xff] %vm498, %v850
        %867 = vst.msk [vmem:[#allocation2 + $0x8] sm:$0xff] %vm498, %v851
        %868 = vst.msk [vmem:[#allocation2 + $0x10] sm:$0xff] %vm498, %v852
        %869 = vst.msk [vmem:[#allocation2 + $0x18] sm:$0xff] %vm498, %v853
        %870 = vst.msk [vmem:[#allocation2 + $0x20] sm:$0xff] %vm498, %v854
        %871 = vst.msk [vmem:[#allocation2 + $0x28] sm:$0xff] %vm498, %v855
        %872 = vst.msk [vmem:[#allocation2 + $0x30] sm:$0xff] %vm498, %v856
        %873 = vst.msk [vmem:[#allocation2 + $0x38] sm:$0xff] %vm498, %v857
        %874 = vst.msk [vmem:[#allocation2 + $0x40] sm:$0xff] %vm498, %v858
        %875 = vst.msk [vmem:[#allocation2 + $0x48] sm:$0xff] %vm498, %v859
        %876 = vst.msk [vmem:[#allocation2 + $0x50] sm:$0xff] %vm498, %v860
        %877 = vst.msk [vmem:[#allocation2 + $0x58] sm:$0xff] %vm498, %v861
        %878 = vst.msk [vmem:[#allocation2 + $0x60] sm:$0xff] %vm498, %v862
        %879 = vst.msk [vmem:[#allocation2 + $0x68] sm:$0xff] %vm498, %v863
        %880 = vst.msk [vmem:[#allocation2 + $0x70] sm:$0xff] %vm498, %v864
        %881 = vst.msk [vmem:[#allocation2 + $0x78] sm:$0xff] %vm498, %v865
        %s882 = sadd.s32 %s178, 64
        %v883 = vld [vmem:[#allocation2] sm:$0xff]
        %v884 = vld [vmem:[#allocation2 + $0x8] sm:$0xff]
        %v885 = vld [vmem:[#allocation2 + $0x10] sm:$0xff]
        %v886 = vld [vmem:[#allocation2 + $0x18] sm:$0xff]
        %v887 = vld [vmem:[#allocation2 + $0x20] sm:$0xff]
        %v888 = vld [vmem:[#allocation2 + $0x28] sm:$0xff]
        %v889 = vld [vmem:[#allocation2 + $0x30] sm:$0xff]
        %v890 = vld [vmem:[#allocation2 + $0x38] sm:$0xff]
        %v891 = vld [vmem:[#allocation2 + $0x40] sm:$0xff]
        %v892 = vld [vmem:[#allocation2 + $0x48] sm:$0xff]
        %v893 = vld [vmem:[#allocation2 + $0x50] sm:$0xff]
        %v894 = vld [vmem:[#allocation2 + $0x58] sm:$0xff]
        %v895 = vld [vmem:[#allocation2 + $0x60] sm:$0xff]
        %v896 = vld [vmem:[#allocation2 + $0x68] sm:$0xff]
        %v897 = vld [vmem:[#allocation2 + $0x70] sm:$0xff]
        %v898 = vld [vmem:[#allocation2 + $0x78] sm:$0xff]
        %s899 = sshra.s32 %s882, 3
        %s900 = sand.u32 %s882, 7
        %s901 = smul.u32 %s899, 2
        %s902 = smul.addr %s901, 4
        %s903 = scalar_lea.vmem %s165, %s902
        %v904 = vld [vmem:[%s903] sm:$0xff]
        %v905 = vld [vmem:[%s903 + $0x8] sm:$0xff]
        %v906 = vld [vmem:[%s903 + $0x10] sm:$0xff]
        %v907 = vld [vmem:[%s903 + $0x18] sm:$0xff]
        %v908 = vld [vmem:[%s903 + $0x20] sm:$0xff]
        %v909 = vld [vmem:[%s903 + $0x28] sm:$0xff]
        %v910 = vld [vmem:[%s903 + $0x30] sm:$0xff]
        %v911 = vld [vmem:[%s903 + $0x38] sm:$0xff]
        %v912 = vld [vmem:[%s903 + $0x40] sm:$0xff]
        %v913 = vld [vmem:[%s903 + $0x48] sm:$0xff]
        %v914 = vld [vmem:[%s903 + $0x50] sm:$0xff]
        %v915 = vld [vmem:[%s903 + $0x58] sm:$0xff]
        %v916 = vld [vmem:[%s903 + $0x60] sm:$0xff]
        %v917 = vld [vmem:[%s903 + $0x68] sm:$0xff]
        %v918 = vld [vmem:[%s903 + $0x70] sm:$0xff]
        %v919 = vld [vmem:[%s903 + $0x78] sm:$0xff]
        %s920 = scalar_lea.vmem %s1, 200
        %v921 = vld [vmem:[%s920] sm:$0xf]
        %v922 = vld [vmem:[%s920 + $0x4] sm:$0xf]
        %v923 = vld [vmem:[%s920 + $0x8] sm:$0xf]
        %v924 = vld [vmem:[%s920 + $0xc] sm:$0xf]
        %v925 = vld [vmem:[%s920 + $0x10] sm:$0xf]
        %v926 = vld [vmem:[%s920 + $0x14] sm:$0xf]
        %v927 = vld [vmem:[%s920 + $0x18] sm:$0xf]
        %v928 = vld [vmem:[%s920 + $0x1c] sm:$0xf]
        %v929 = vld [vmem:[%s920 + $0x20] sm:$0xf]
        %v930 = vld [vmem:[%s920 + $0x24] sm:$0xf]
        %v931 = vld [vmem:[%s920 + $0x28] sm:$0xf]
        %v932 = vld [vmem:[%s920 + $0x2c] sm:$0xf]
        %v933 = vld [vmem:[%s920 + $0x30] sm:$0xf]
        %v934 = vld [vmem:[%s920 + $0x34] sm:$0xf]
        %v935 = vld [vmem:[%s920 + $0x38] sm:$0xf]
        %v936 = vld [vmem:[%s920 + $0x3c] sm:$0xf]
        %v937 = vld [vmem:[%s920 + $0x40] sm:$0xf]
        %v938 = vld [vmem:[%s920 + $0x44] sm:$0xf]
        %v939 = vld [vmem:[%s920 + $0x48] sm:$0xf]
        %v940 = vld [vmem:[%s920 + $0x4c] sm:$0xf]
        %v941 = vld [vmem:[%s920 + $0x50] sm:$0xf]
        %v942 = vld [vmem:[%s920 + $0x54] sm:$0xf]
        %v943 = vld [vmem:[%s920 + $0x58] sm:$0xf]
        %v944 = vld [vmem:[%s920 + $0x5c] sm:$0xf]
        %v945 = vld [vmem:[%s920 + $0x60] sm:$0xf]
        %v962 = vunpack.c.l.b16 %v904
        %v963 = vunpack.c.h.b16 %v904
        %v964 = vunpack.c.l.b16 %v905
        %v965 = vunpack.c.h.b16 %v905
        %v966 = vunpack.c.l.b16 %v906
        %v967 = vunpack.c.h.b16 %v906
        %v968 = vunpack.c.l.b16 %v907
        %v969 = vunpack.c.h.b16 %v907
        %v970 = vunpack.c.l.b16 %v908
        %v971 = vunpack.c.h.b16 %v908
        %v972 = vunpack.c.l.b16 %v909
        %v973 = vunpack.c.h.b16 %v909
        %v974 = vunpack.c.l.b16 %v910
        %v975 = vunpack.c.h.b16 %v910
        %v976 = vunpack.c.l.b16 %v911
        %v977 = vunpack.c.h.b16 %v911
        %v978 = vunpack.c.l.b16 %v912
        %v979 = vunpack.c.h.b16 %v912
        %v980 = vunpack.c.l.b16 %v913
        %v981 = vunpack.c.h.b16 %v913
        %v982 = vunpack.c.l.b16 %v914
        %v983 = vunpack.c.h.b16 %v914
        %v984 = vunpack.c.l.b16 %v915
        %v985 = vunpack.c.h.b16 %v915
        %v986 = vunpack.c.l.b16 %v916
        %v987 = vunpack.c.h.b16 %v916
        %v988 = vunpack.c.l.b16 %v917
        %v989 = vunpack.c.h.b16 %v917
        %v990 = vunpack.c.l.b16 %v918
        %v991 = vunpack.c.h.b16 %v918
        %v992 = vunpack.c.l.b16 %v919
        %v993 = vunpack.c.h.b16 %v919
        %v994 = vpack.c.b16 %v964, %v962
        %v995 = vpack.c.b16 %v965, %v963
        %v996 = vpack.c.b16 %v968, %v966
        %v997 = vpack.c.b16 %v969, %v967
        %v998 = vpack.c.b16 %v972, %v970
        %v999 = vpack.c.b16 %v973, %v971
        %v1000 = vpack.c.b16 %v976, %v974
        %v1001 = vpack.c.b16 %v977, %v975
        %v1002 = vpack.c.b16 %v980, %v978
        %v1003 = vpack.c.b16 %v981, %v979
        %v1004 = vpack.c.b16 %v984, %v982
        %v1005 = vpack.c.b16 %v985, %v983
        %v1006 = vpack.c.b16 %v988, %v986
        %v1007 = vpack.c.b16 %v989, %v987
        %v1008 = vpack.c.b16 %v992, %v990
        %v1009 = vpack.c.b16 %v993, %v991
        %v1043 = vunpack.c.l.b16 %v921
        %v1044 = vunpack.c.l.b16 %v922
        %v1045 = vunpack.c.l.b16 %v923
        %v1046 = vunpack.c.l.b16 %v924
        %v1047 = vunpack.c.l.b16 %v925
        %v1048 = vunpack.c.l.b16 %v926
        %v1049 = vunpack.c.l.b16 %v927
        %v1050 = vunpack.c.l.b16 %v928
        %v1051 = vunpack.c.l.b16 %v929
        %v1052 = vunpack.c.l.b16 %v930
        %v1053 = vunpack.c.l.b16 %v931
        %v1054 = vunpack.c.l.b16 %v932
        %v1055 = vunpack.c.l.b16 %v933
        %v1056 = vunpack.c.l.b16 %v934
        %v1057 = vunpack.c.l.b16 %v935
        %v1058 = vunpack.c.l.b16 %v936
        %v1059 = vunpack.c.l.b16 %v937
        %v1060 = vunpack.c.l.b16 %v938
        %v1061 = vunpack.c.l.b16 %v939
        %v1062 = vunpack.c.l.b16 %v940
        %v1063 = vunpack.c.l.b16 %v941
        %v1064 = vunpack.c.l.b16 %v942
        %v1065 = vunpack.c.l.b16 %v943
        %v1066 = vunpack.c.l.b16 %v944
        %v1067 = vunpack.c.l.b16 %v945
        %v1068 = vpack.c.b16 %v1044, %v1043
        %v1069 = vpack.c.b16 %v1046, %v1045
        %v1070 = vpack.c.b16 %v1048, %v1047
        %v1071 = vpack.c.b16 %v1050, %v1049
        %v1072 = vpack.c.b16 %v1052, %v1051
        %v1073 = vpack.c.b16 %v1054, %v1053
        %v1074 = vpack.c.b16 %v1056, %v1055
        %v1075 = vpack.c.b16 %v1058, %v1057
        %v1076 = vpack.c.b16 %v1060, %v1059
        %v1077 = vpack.c.b16 %v1062, %v1061
        %v1078 = vpack.c.b16 %v1064, %v1063
        %v1079 = vpack.c.b16 %v1066, %v1065
        %v1080 = vpack.c.b16 %v1067, %v1067
        %v1094 = vsel %vm372, %v995, 0
        %v1097 = vsel %vm372, %v997, 0
        %v1100 = vsel %vm372, %v999, 0
        %v1103 = vsel %vm372, %v1001, 0
        %v1106 = vsel %vm372, %v1003, 0
        %v1109 = vsel %vm372, %v1005, 0
        %v1112 = vsel %vm372, %v1007, 0
        %v1115 = vsel %vm372, %v1009, 0
        %v1118 = vsel %vm397, %v1080, 0
        %1120 = vmatprep.subr.bf16.mxu0 0
        %1121 = vmatpush1.bf16.msra.mxu0 %v1075
        %1122 = vmatprep.subr.bf16.mxu0 0
        %1123 = vmatpush1.bf16.msra.mxu0 %v1074
        %1124 = vmatprep.subr.bf16.mxu0 0
        %1125 = vmatpush1.bf16.msra.mxu0 %v1073
        %1126 = vmatprep.subr.bf16.mxu0 0
        %1127 = vmatpush1.bf16.msra.mxu0 %v1072
        %1128 = vmatprep.subr.bf16.mxu0 0
        %1129 = vmatpush1.bf16.msra.mxu0 %v1071
        %1130 = vmatprep.subr.bf16.mxu0 0
        %1131 = vmatpush1.bf16.msra.mxu0 %v1070
        %1132 = vmatprep.subr.bf16.mxu0 0
        %1133 = vmatpush1.bf16.msra.mxu0 %v1069
        %1134 = vmatprep.subr.bf16.mxu0 0
        %1135 = vmatpush1.bf16.msra.mxu0 %v1068
        %1136 = vmatprep.subr.bf16.mxu0 0
        %1137 = vmatpush2.bf16.msra.mxu0 0
        %1138 = vmatprep.subr.bf16.mxu0 0
        %1139 = vmatpush2.bf16.msra.mxu0 0
        %1140 = vmatprep.subr.bf16.mxu0 0
        %1141 = vmatpush2.bf16.msra.mxu0 0
        %1142 = vmatprep.subr.bf16.mxu0 0
        %1143 = vmatpush2.bf16.msra.mxu0 %v1118
        %1144 = vmatprep.subr.bf16.mxu0 0
        %1145 = vmatpush2.bf16.msra.mxu0 %v1079
        %1146 = vmatprep.subr.bf16.mxu0 0
        %1147 = vmatpush2.bf16.msra.mxu0 %v1078
        %1148 = vmatprep.subr.bf16.mxu0 0
        %1149 = vmatpush2.bf16.msra.mxu0 %v1077
        %1150 = vmatprep.subr.bf16.mxu0 0
        %1151 = vmatpush2.bf16.msra.mxu0 %v1076
        %1152 = vmatprep.mubr.bf16.mxu0 %v1094
        %1153 = vmatmul.mubr.bf16.gmra.mxu0 %v994
        %v1154 = vpop.f32.mrf.mxu0
        %v1155 = vadd.f32 0.0, %v1154
        %v1156 = vpop.f32.mrf.mxu0
        %v1157 = vpop.f32.mrf.mxu0
        %v1158 = vadd.f32 0.0, %v1157
        %v1159 = vpop.f32.mrf.mxu0
        %1160 = vmatprep.mubr.bf16.mxu0 %v1097
        %1161 = vmatmul.mubr.bf16.gmra.mxu0 %v996
        %v1162 = vpop.f32.mrf.mxu0
        %v1163 = vadd.f32 0.0, %v1162
        %v1164 = vpop.f32.mrf.mxu0
        %v1165 = vpop.f32.mrf.mxu0
        %v1166 = vadd.f32 0.0, %v1165
        %v1167 = vpop.f32.mrf.mxu0
        %1168 = vmatprep.mubr.bf16.mxu0 %v1100
        %1169 = vmatmul.mubr.bf16.gmra.mxu0 %v998
        %v1170 = vpop.f32.mrf.mxu0
        %v1171 = vadd.f32 0.0, %v1170
        %v1172 = vpop.f32.mrf.mxu0
        %v1173 = vpop.f32.mrf.mxu0
        %v1174 = vadd.f32 0.0, %v1173
        %v1175 = vpop.f32.mrf.mxu0
        %1176 = vmatprep.mubr.bf16.mxu0 %v1103
        %1177 = vmatmul.mubr.bf16.gmra.mxu0 %v1000
        %v1178 = vpop.f32.mrf.mxu0
        %v1179 = vadd.f32 0.0, %v1178
        %v1180 = vpop.f32.mrf.mxu0
        %v1181 = vpop.f32.mrf.mxu0
        %v1182 = vadd.f32 0.0, %v1181
        %v1183 = vpop.f32.mrf.mxu0
        %1184 = vmatprep.mubr.bf16.mxu0 %v1106
        %1185 = vmatmul.mubr.bf16.gmra.mxu0 %v1002
        %v1186 = vpop.f32.mrf.mxu0
        %v1187 = vadd.f32 0.0, %v1186
        %v1188 = vpop.f32.mrf.mxu0
        %v1189 = vpop.f32.mrf.mxu0
        %v1190 = vadd.f32 0.0, %v1189
        %v1191 = vpop.f32.mrf.mxu0
        %1192 = vmatprep.mubr.bf16.mxu0 %v1109
        %1193 = vmatmul.mubr.bf16.gmra.mxu0 %v1004
        %v1194 = vpop.f32.mrf.mxu0
        %v1195 = vadd.f32 0.0, %v1194
        %v1196 = vpop.f32.mrf.mxu0
        %v1197 = vpop.f32.mrf.mxu0
        %v1198 = vadd.f32 0.0, %v1197
        %v1199 = vpop.f32.mrf.mxu0
        %1200 = vmatprep.mubr.bf16.mxu0 %v1112
        %1201 = vmatmul.mubr.bf16.gmra.mxu0 %v1006
        %v1202 = vpop.f32.mrf.mxu0
        %v1203 = vadd.f32 0.0, %v1202
        %v1204 = vpop.f32.mrf.mxu0
        %v1205 = vpop.f32.mrf.mxu0
        %v1206 = vadd.f32 0.0, %v1205
        %v1207 = vpop.f32.mrf.mxu0
        %1208 = vmatprep.mubr.bf16.mxu0 %v1115
        %1209 = vmatmul.mubr.bf16.gmra.mxu0 %v1008
        %v1210 = vpop.f32.mrf.mxu0
        %v1211 = vadd.f32 0.0, %v1210
        %v1212 = vpop.f32.mrf.mxu0
        %v1213 = vpop.f32.mrf.mxu0
        %v1214 = vadd.f32 0.0, %v1213
        %v1215 = vpop.f32.mrf.mxu0
        %1216 = vdwg.mxu0
        %v1217 = vadd.f32 %v883, %v1155
        %v1218 = vadd.f32 %v884, %v1158
        %v1219 = vadd.f32 %v885, %v1163
        %v1220 = vadd.f32 %v886, %v1166
        %v1221 = vadd.f32 %v887, %v1171
        %v1222 = vadd.f32 %v888, %v1174
        %v1223 = vadd.f32 %v889, %v1179
        %v1224 = vadd.f32 %v890, %v1182
        %v1225 = vadd.f32 %v891, %v1187
        %v1226 = vadd.f32 %v892, %v1190
        %v1227 = vadd.f32 %v893, %v1195
        %v1228 = vadd.f32 %v894, %v1198
        %v1229 = vadd.f32 %v895, %v1203
        %v1230 = vadd.f32 %v896, %v1206
        %v1231 = vadd.f32 %v897, %v1211
        %v1232 = vadd.f32 %v898, %v1214
        %1233 = vst.msk [vmem:[#allocation2] sm:$0xff] %vm498, %v1217
        %1234 = vst.msk [vmem:[#allocation2 + $0x8] sm:$0xff] %vm498, %v1218
        %1235 = vst.msk [vmem:[#allocation2 + $0x10] sm:$0xff] %vm498, %v1219
        %1236 = vst.msk [vmem:[#allocation2 + $0x18] sm:$0xff] %vm498, %v1220
        %1237 = vst.msk [vmem:[#allocation2 + $0x20] sm:$0xff] %vm498, %v1221
        %1238 = vst.msk [vmem:[#allocation2 + $0x28] sm:$0xff] %vm498, %v1222
        %1239 = vst.msk [vmem:[#allocation2 + $0x30] sm:$0xff] %vm498, %v1223
        %1240 = vst.msk [vmem:[#allocation2 + $0x38] sm:$0xff] %vm498, %v1224
        %1241 = vst.msk [vmem:[#allocation2 + $0x40] sm:$0xff] %vm498, %v1225
        %1242 = vst.msk [vmem:[#allocation2 + $0x48] sm:$0xff] %vm498, %v1226
        %1243 = vst.msk [vmem:[#allocation2 + $0x50] sm:$0xff] %vm498, %v1227
        %1244 = vst.msk [vmem:[#allocation2 + $0x58] sm:$0xff] %vm498, %v1228
        %1245 = vst.msk [vmem:[#allocation2 + $0x60] sm:$0xff] %vm498, %v1229
        %1246 = vst.msk [vmem:[#allocation2 + $0x68] sm:$0xff] %vm498, %v1230
        %1247 = vst.msk [vmem:[#allocation2 + $0x70] sm:$0xff] %vm498, %v1231
        %1248 = vst.msk [vmem:[#allocation2 + $0x78] sm:$0xff] %vm498, %v1232
        %s1249 = sadd.s32 %s178, 96
        %v1250 = vld [vmem:[#allocation2] sm:$0xff]
        %v1251 = vld [vmem:[#allocation2 + $0x8] sm:$0xff]
        %v1252 = vld [vmem:[#allocation2 + $0x10] sm:$0xff]
        %v1253 = vld [vmem:[#allocation2 + $0x18] sm:$0xff]
        %v1254 = vld [vmem:[#allocation2 + $0x20] sm:$0xff]
        %v1255 = vld [vmem:[#allocation2 + $0x28] sm:$0xff]
        %v1256 = vld [vmem:[#allocation2 + $0x30] sm:$0xff]
        %v1257 = vld [vmem:[#allocation2 + $0x38] sm:$0xff]
        %v1258 = vld [vmem:[#allocation2 + $0x40] sm:$0xff]
        %v1259 = vld [vmem:[#allocation2 + $0x48] sm:$0xff]
        %v1260 = vld [vmem:[#allocation2 + $0x50] sm:$0xff]
        %v1261 = vld [vmem:[#allocation2 + $0x58] sm:$0xff]
        %v1262 = vld [vmem:[#allocation2 + $0x60] sm:$0xff]
        %v1263 = vld [vmem:[#allocation2 + $0x68] sm:$0xff]
        %v1264 = vld [vmem:[#allocation2 + $0x70] sm:$0xff]
        %v1265 = vld [vmem:[#allocation2 + $0x78] sm:$0xff]
        %s1266 = sshra.s32 %s1249, 3
        %s1267 = sand.u32 %s1249, 7
        %s1268 = smul.u32 %s1266, 2
        %s1269 = smul.addr %s1268, 4
        %s1270 = scalar_lea.vmem %s165, %s1269
        %v1271 = vld [vmem:[%s1270] sm:$0xff]
        %v1272 = vld [vmem:[%s1270 + $0x8] sm:$0xff]
        %v1273 = vld [vmem:[%s1270 + $0x10] sm:$0xff]
        %v1274 = vld [vmem:[%s1270 + $0x18] sm:$0xff]
        %v1275 = vld [vmem:[%s1270 + $0x20] sm:$0xff]
        %v1276 = vld [vmem:[%s1270 + $0x28] sm:$0xff]
        %v1277 = vld [vmem:[%s1270 + $0x30] sm:$0xff]
        %v1278 = vld [vmem:[%s1270 + $0x38] sm:$0xff]
        %v1279 = vld [vmem:[%s1270 + $0x40] sm:$0xff]
        %v1280 = vld [vmem:[%s1270 + $0x48] sm:$0xff]
        %v1281 = vld [vmem:[%s1270 + $0x50] sm:$0xff]
        %v1282 = vld [vmem:[%s1270 + $0x58] sm:$0xff]
        %v1283 = vld [vmem:[%s1270 + $0x60] sm:$0xff]
        %v1284 = vld [vmem:[%s1270 + $0x68] sm:$0xff]
        %v1285 = vld [vmem:[%s1270 + $0x70] sm:$0xff]
        %v1286 = vld [vmem:[%s1270 + $0x78] sm:$0xff]
        %s1287 = scalar_lea.vmem %s1, 300
        %v1288 = vld [vmem:[%s1287] sm:$0xf]
        %v1289 = vld [vmem:[%s1287 + $0x4] sm:$0xf]
        %v1290 = vld [vmem:[%s1287 + $0x8] sm:$0xf]
        %v1291 = vld [vmem:[%s1287 + $0xc] sm:$0xf]
        %v1292 = vld [vmem:[%s1287 + $0x10] sm:$0xf]
        %v1293 = vld [vmem:[%s1287 + $0x14] sm:$0xf]
        %v1294 = vld [vmem:[%s1287 + $0x18] sm:$0xf]
        %v1295 = vld [vmem:[%s1287 + $0x1c] sm:$0xf]
        %v1296 = vld [vmem:[%s1287 + $0x20] sm:$0xf]
        %v1297 = vld [vmem:[%s1287 + $0x24] sm:$0xf]
        %v1298 = vld [vmem:[%s1287 + $0x28] sm:$0xf]
        %v1299 = vld [vmem:[%s1287 + $0x2c] sm:$0xf]
        %v1300 = vld [vmem:[%s1287 + $0x30] sm:$0xf]
        %v1301 = vld [vmem:[%s1287 + $0x34] sm:$0xf]
        %v1302 = vld [vmem:[%s1287 + $0x38] sm:$0xf]
        %v1303 = vld [vmem:[%s1287 + $0x3c] sm:$0xf]
        %v1304 = vld [vmem:[%s1287 + $0x40] sm:$0xf]
        %v1305 = vld [vmem:[%s1287 + $0x44] sm:$0xf]
        %v1306 = vld [vmem:[%s1287 + $0x48] sm:$0xf]
        %v1307 = vld [vmem:[%s1287 + $0x4c] sm:$0xf]
        %v1308 = vld [vmem:[%s1287 + $0x50] sm:$0xf]
        %v1309 = vld [vmem:[%s1287 + $0x54] sm:$0xf]
        %v1310 = vld [vmem:[%s1287 + $0x58] sm:$0xf]
        %v1311 = vld [vmem:[%s1287 + $0x5c] sm:$0xf]
        %v1312 = vld [vmem:[%s1287 + $0x60] sm:$0xf]
        %v1329 = vunpack.c.l.b16 %v1271
        %v1330 = vunpack.c.h.b16 %v1271
        %v1331 = vunpack.c.l.b16 %v1272
        %v1332 = vunpack.c.h.b16 %v1272
        %v1333 = vunpack.c.l.b16 %v1273
        %v1334 = vunpack.c.h.b16 %v1273
        %v1335 = vunpack.c.l.b16 %v1274
        %v1336 = vunpack.c.h.b16 %v1274
        %v1337 = vunpack.c.l.b16 %v1275
        %v1338 = vunpack.c.h.b16 %v1275
        %v1339 = vunpack.c.l.b16 %v1276
        %v1340 = vunpack.c.h.b16 %v1276
        %v1341 = vunpack.c.l.b16 %v1277
        %v1342 = vunpack.c.h.b16 %v1277
        %v1343 = vunpack.c.l.b16 %v1278
        %v1344 = vunpack.c.h.b16 %v1278
        %v1345 = vunpack.c.l.b16 %v1279
        %v1346 = vunpack.c.h.b16 %v1279
        %v1347 = vunpack.c.l.b16 %v1280
        %v1348 = vunpack.c.h.b16 %v1280
        %v1349 = vunpack.c.l.b16 %v1281
        %v1350 = vunpack.c.h.b16 %v1281
        %v1351 = vunpack.c.l.b16 %v1282
        %v1352 = vunpack.c.h.b16 %v1282
        %v1353 = vunpack.c.l.b16 %v1283
        %v1354 = vunpack.c.h.b16 %v1283
        %v1355 = vunpack.c.l.b16 %v1284
        %v1356 = vunpack.c.h.b16 %v1284
        %v1357 = vunpack.c.l.b16 %v1285
        %v1358 = vunpack.c.h.b16 %v1285
        %v1359 = vunpack.c.l.b16 %v1286
        %v1360 = vunpack.c.h.b16 %v1286
        %v1361 = vpack.c.b16 %v1331, %v1329
        %v1362 = vpack.c.b16 %v1332, %v1330
        %v1363 = vpack.c.b16 %v1335, %v1333
        %v1364 = vpack.c.b16 %v1336, %v1334
        %v1365 = vpack.c.b16 %v1339, %v1337
        %v1366 = vpack.c.b16 %v1340, %v1338
        %v1367 = vpack.c.b16 %v1343, %v1341
        %v1368 = vpack.c.b16 %v1344, %v1342
        %v1369 = vpack.c.b16 %v1347, %v1345
        %v1370 = vpack.c.b16 %v1348, %v1346
        %v1371 = vpack.c.b16 %v1351, %v1349
        %v1372 = vpack.c.b16 %v1352, %v1350
        %v1373 = vpack.c.b16 %v1355, %v1353
        %v1374 = vpack.c.b16 %v1356, %v1354
        %v1375 = vpack.c.b16 %v1359, %v1357
        %v1376 = vpack.c.b16 %v1360, %v1358
        %v1410 = vunpack.c.l.b16 %v1288
        %v1411 = vunpack.c.l.b16 %v1289
        %v1412 = vunpack.c.l.b16 %v1290
        %v1413 = vunpack.c.l.b16 %v1291
        %v1414 = vunpack.c.l.b16 %v1292
        %v1415 = vunpack.c.l.b16 %v1293
        %v1416 = vunpack.c.l.b16 %v1294
        %v1417 = vunpack.c.l.b16 %v1295
        %v1418 = vunpack.c.l.b16 %v1296
        %v1419 = vunpack.c.l.b16 %v1297
        %v1420 = vunpack.c.l.b16 %v1298
        %v1421 = vunpack.c.l.b16 %v1299
        %v1422 = vunpack.c.l.b16 %v1300
        %v1423 = vunpack.c.l.b16 %v1301
        %v1424 = vunpack.c.l.b16 %v1302
        %v1425 = vunpack.c.l.b16 %v1303
        %v1426 = vunpack.c.l.b16 %v1304
        %v1427 = vunpack.c.l.b16 %v1305
        %v1428 = vunpack.c.l.b16 %v1306
        %v1429 = vunpack.c.l.b16 %v1307
        %v1430 = vunpack.c.l.b16 %v1308
        %v1431 = vunpack.c.l.b16 %v1309
        %v1432 = vunpack.c.l.b16 %v1310
        %v1433 = vunpack.c.l.b16 %v1311
        %v1434 = vunpack.c.l.b16 %v1312
        %v1435 = vpack.c.b16 %v1411, %v1410
        %v1436 = vpack.c.b16 %v1413, %v1412
        %v1437 = vpack.c.b16 %v1415, %v1414
        %v1438 = vpack.c.b16 %v1417, %v1416
        %v1439 = vpack.c.b16 %v1419, %v1418
        %v1440 = vpack.c.b16 %v1421, %v1420
        %v1441 = vpack.c.b16 %v1423, %v1422
        %v1442 = vpack.c.b16 %v1425, %v1424
        %v1443 = vpack.c.b16 %v1427, %v1426
        %v1444 = vpack.c.b16 %v1429, %v1428
        %v1445 = vpack.c.b16 %v1431, %v1430
        %v1446 = vpack.c.b16 %v1433, %v1432
        %v1447 = vpack.c.b16 %v1434, %v1434
        %v1461 = vsel %vm372, %v1362, 0
        %v1464 = vsel %vm372, %v1364, 0
        %v1467 = vsel %vm372, %v1366, 0
        %v1470 = vsel %vm372, %v1368, 0
        %v1473 = vsel %vm372, %v1370, 0
        %v1476 = vsel %vm372, %v1372, 0
        %v1479 = vsel %vm372, %v1374, 0
        %v1482 = vsel %vm372, %v1376, 0
        %v1485 = vsel %vm397, %v1447, 0
        %1487 = vmatprep.subr.bf16.mxu0 0
        %1488 = vmatpush1.bf16.msra.mxu0 %v1442
        %1489 = vmatprep.subr.bf16.mxu0 0
        %1490 = vmatpush1.bf16.msra.mxu0 %v1441
        %1491 = vmatprep.subr.bf16.mxu0 0
        %1492 = vmatpush1.bf16.msra.mxu0 %v1440
        %1493 = vmatprep.subr.bf16.mxu0 0
        %1494 = vmatpush1.bf16.msra.mxu0 %v1439
        %1495 = vmatprep.subr.bf16.mxu0 0
        %1496 = vmatpush1.bf16.msra.mxu0 %v1438
        %1497 = vmatprep.subr.bf16.mxu0 0
        %1498 = vmatpush1.bf16.msra.mxu0 %v1437
        %1499 = vmatprep.subr.bf16.mxu0 0
        %1500 = vmatpush1.bf16.msra.mxu0 %v1436
        %1501 = vmatprep.subr.bf16.mxu0 0
        %1502 = vmatpush1.bf16.msra.mxu0 %v1435
        %1503 = vmatprep.subr.bf16.mxu0 0
        %1504 = vmatpush2.bf16.msra.mxu0 0
        %1505 = vmatprep.subr.bf16.mxu0 0
        %1506 = vmatpush2.bf16.msra.mxu0 0
        %1507 = vmatprep.subr.bf16.mxu0 0
        %1508 = vmatpush2.bf16.msra.mxu0 0
        %1509 = vmatprep.subr.bf16.mxu0 0
        %1510 = vmatpush2.bf16.msra.mxu0 %v1485
        %1511 = vmatprep.subr.bf16.mxu0 0
        %1512 = vmatpush2.bf16.msra.mxu0 %v1446
        %1513 = vmatprep.subr.bf16.mxu0 0
        %1514 = vmatpush2.bf16.msra.mxu0 %v1445
        %1515 = vmatprep.subr.bf16.mxu0 0
        %1516 = vmatpush2.bf16.msra.mxu0 %v1444
        %1517 = vmatprep.subr.bf16.mxu0 0
        %1518 = vmatpush2.bf16.msra.mxu0 %v1443
        %1519 = vmatprep.mubr.bf16.mxu0 %v1461
        %1520 = vmatmul.mubr.bf16.gmra.mxu0 %v1361
        %v1521 = vpop.f32.mrf.mxu0
        %v1522 = vadd.f32 0.0, %v1521
        %v1523 = vpop.f32.mrf.mxu0
        %v1524 = vpop.f32.mrf.mxu0
        %v1525 = vadd.f32 0.0, %v1524
        %v1526 = vpop.f32.mrf.mxu0
        %1527 = vmatprep.mubr.bf16.mxu0 %v1464
        %1528 = vmatmul.mubr.bf16.gmra.mxu0 %v1363
        %v1529 = vpop.f32.mrf.mxu0
        %v1530 = vadd.f32 0.0, %v1529
        %v1531 = vpop.f32.mrf.mxu0
        %v1532 = vpop.f32.mrf.mxu0
        %v1533 = vadd.f32 0.0, %v1532
        %v1534 = vpop.f32.mrf.mxu0
        %1535 = vmatprep.mubr.bf16.mxu0 %v1467
        %1536 = vmatmul.mubr.bf16.gmra.mxu0 %v1365
        %v1537 = vpop.f32.mrf.mxu0
        %v1538 = vadd.f32 0.0, %v1537
        %v1539 = vpop.f32.mrf.mxu0
        %v1540 = vpop.f32.mrf.mxu0
        %v1541 = vadd.f32 0.0, %v1540
        %v1542 = vpop.f32.mrf.mxu0
        %1543 = vmatprep.mubr.bf16.mxu0 %v1470
        %1544 = vmatmul.mubr.bf16.gmra.mxu0 %v1367
        %v1545 = vpop.f32.mrf.mxu0
        %v1546 = vadd.f32 0.0, %v1545
        %v1547 = vpop.f32.mrf.mxu0
        %v1548 = vpop.f32.mrf.mxu0
        %v1549 = vadd.f32 0.0, %v1548
        %v1550 = vpop.f32.mrf.mxu0
        %1551 = vmatprep.mubr.bf16.mxu0 %v1473
        %1552 = vmatmul.mubr.bf16.gmra.mxu0 %v1369
        %v1553 = vpop.f32.mrf.mxu0
        %v1554 = vadd.f32 0.0, %v1553
        %v1555 = vpop.f32.mrf.mxu0
        %v1556 = vpop.f32.mrf.mxu0
        %v1557 = vadd.f32 0.0, %v1556
        %v1558 = vpop.f32.mrf.mxu0
        %1559 = vmatprep.mubr.bf16.mxu0 %v1476
        %1560 = vmatmul.mubr.bf16.gmra.mxu0 %v1371
        %v1561 = vpop.f32.mrf.mxu0
        %v1562 = vadd.f32 0.0, %v1561
        %v1563 = vpop.f32.mrf.mxu0
        %v1564 = vpop.f32.mrf.mxu0
        %v1565 = vadd.f32 0.0, %v1564
        %v1566 = vpop.f32.mrf.mxu0
        %1567 = vmatprep.mubr.bf16.mxu0 %v1479
        %1568 = vmatmul.mubr.bf16.gmra.mxu0 %v1373
        %v1569 = vpop.f32.mrf.mxu0
        %v1570 = vadd.f32 0.0, %v1569
        %v1571 = vpop.f32.mrf.mxu0
        %v1572 = vpop.f32.mrf.mxu0
        %v1573 = vadd.f32 0.0, %v1572
        %v1574 = vpop.f32.mrf.mxu0
        %1575 = vmatprep.mubr.bf16.mxu0 %v1482
        %1576 = vmatmul.mubr.bf16.gmra.mxu0 %v1375
        %v1577 = vpop.f32.mrf.mxu0
        %v1578 = vadd.f32 0.0, %v1577
        %v1579 = vpop.f32.mrf.mxu0
        %v1580 = vpop.f32.mrf.mxu0
        %v1581 = vadd.f32 0.0, %v1580
        %v1582 = vpop.f32.mrf.mxu0
        %1583 = vdwg.mxu0
        %v1584 = vadd.f32 %v1250, %v1522
        %v1585 = vadd.f32 %v1251, %v1525
        %v1586 = vadd.f32 %v1252, %v1530
        %v1587 = vadd.f32 %v1253, %v1533
        %v1588 = vadd.f32 %v1254, %v1538
        %v1589 = vadd.f32 %v1255, %v1541
        %v1590 = vadd.f32 %v1256, %v1546
        %v1591 = vadd.f32 %v1257, %v1549
        %v1592 = vadd.f32 %v1258, %v1554
        %v1593 = vadd.f32 %v1259, %v1557
        %v1594 = vadd.f32 %v1260, %v1562
        %v1595 = vadd.f32 %v1261, %v1565
        %v1596 = vadd.f32 %v1262, %v1570
        %v1597 = vadd.f32 %v1263, %v1573
        %v1598 = vadd.f32 %v1264, %v1578
        %v1599 = vadd.f32 %v1265, %v1581
        %1600 = vst.msk [vmem:[#allocation2] sm:$0xff] %vm498, %v1584
        %1601 = vst.msk [vmem:[#allocation2 + $0x8] sm:$0xff] %vm498, %v1585
        %1602 = vst.msk [vmem:[#allocation2 + $0x10] sm:$0xff] %vm498, %v1586
        %1603 = vst.msk [vmem:[#allocation2 + $0x18] sm:$0xff] %vm498, %v1587
        %1604 = vst.msk [vmem:[#allocation2 + $0x20] sm:$0xff] %vm498, %v1588
        %1605 = vst.msk [vmem:[#allocation2 + $0x28] sm:$0xff] %vm498, %v1589
        %1606 = vst.msk [vmem:[#allocation2 + $0x30] sm:$0xff] %vm498, %v1590
        %1607 = vst.msk [vmem:[#allocation2 + $0x38] sm:$0xff] %vm498, %v1591
        %1608 = vst.msk [vmem:[#allocation2 + $0x40] sm:$0xff] %vm498, %v1592
        %1609 = vst.msk [vmem:[#allocation2 + $0x48] sm:$0xff] %vm498, %v1593
        %1610 = vst.msk [vmem:[#allocation2 + $0x50] sm:$0xff] %vm498, %v1594
        %1611 = vst.msk [vmem:[#allocation2 + $0x58] sm:$0xff] %vm498, %v1595
        %1612 = vst.msk [vmem:[#allocation2 + $0x60] sm:$0xff] %vm498, %v1596
        %1613 = vst.msk [vmem:[#allocation2 + $0x68] sm:$0xff] %vm498, %v1597
        %1614 = vst.msk [vmem:[#allocation2 + $0x70] sm:$0xff] %vm498, %v1598
        %1615 = vst.msk [vmem:[#allocation2 + $0x78] sm:$0xff] %vm498, %v1599
        %s1616 = sadd.s32 %s178, 128
        %v1617 = vld [vmem:[#allocation2] sm:$0xff]
        %v1618 = vld [vmem:[#allocation2 + $0x8] sm:$0xff]
        %v1619 = vld [vmem:[#allocation2 + $0x10] sm:$0xff]
        %v1620 = vld [vmem:[#allocation2 + $0x18] sm:$0xff]
        %v1621 = vld [vmem:[#allocation2 + $0x20] sm:$0xff]
        %v1622 = vld [vmem:[#allocation2 + $0x28] sm:$0xff]
        %v1623 = vld [vmem:[#allocation2 + $0x30] sm:$0xff]
        %v1624 = vld [vmem:[#allocation2 + $0x38] sm:$0xff]
        %v1625 = vld [vmem:[#allocation2 + $0x40] sm:$0xff]
        %v1626 = vld [vmem:[#allocation2 + $0x48] sm:$0xff]
        %v1627 = vld [vmem:[#allocation2 + $0x50] sm:$0xff]
        %v1628 = vld [vmem:[#allocation2 + $0x58] sm:$0xff]
        %v1629 = vld [vmem:[#allocation2 + $0x60] sm:$0xff]
        %v1630 = vld [vmem:[#allocation2 + $0x68] sm:$0xff]
        %v1631 = vld [vmem:[#allocation2 + $0x70] sm:$0xff]
        %v1632 = vld [vmem:[#allocation2 + $0x78] sm:$0xff]
        %s1633 = sshra.s32 %s1616, 3
        %s1634 = sand.u32 %s1616, 7
        %s1635 = smul.u32 %s1633, 2
        %s1636 = smul.addr %s1635, 4
        %s1637 = scalar_lea.vmem %s165, %s1636
        %v1638 = vld [vmem:[%s1637] sm:$0xff]
        %v1639 = vld [vmem:[%s1637 + $0x8] sm:$0xff]
        %v1640 = vld [vmem:[%s1637 + $0x10] sm:$0xff]
        %v1641 = vld [vmem:[%s1637 + $0x18] sm:$0xff]
        %v1642 = vld [vmem:[%s1637 + $0x20] sm:$0xff]
        %v1643 = vld [vmem:[%s1637 + $0x28] sm:$0xff]
        %v1644 = vld [vmem:[%s1637 + $0x30] sm:$0xff]
        %v1645 = vld [vmem:[%s1637 + $0x38] sm:$0xff]
        %v1646 = vld [vmem:[%s1637 + $0x40] sm:$0xff]
        %v1647 = vld [vmem:[%s1637 + $0x48] sm:$0xff]
        %v1648 = vld [vmem:[%s1637 + $0x50] sm:$0xff]
        %v1649 = vld [vmem:[%s1637 + $0x58] sm:$0xff]
        %v1650 = vld [vmem:[%s1637 + $0x60] sm:$0xff]
        %v1651 = vld [vmem:[%s1637 + $0x68] sm:$0xff]
        %v1652 = vld [vmem:[%s1637 + $0x70] sm:$0xff]
        %v1653 = vld [vmem:[%s1637 + $0x78] sm:$0xff]
        %s1654 = scalar_lea.vmem %s1, 400
        %v1655 = vld [vmem:[%s1654] sm:$0xf]
        %v1656 = vld [vmem:[%s1654 + $0x4] sm:$0xf]
        %v1657 = vld [vmem:[%s1654 + $0x8] sm:$0xf]
        %v1658 = vld [vmem:[%s1654 + $0xc] sm:$0xf]
        %v1659 = vld [vmem:[%s1654 + $0x10] sm:$0xf]
        %v1660 = vld [vmem:[%s1654 + $0x14] sm:$0xf]
        %v1661 = vld [vmem:[%s1654 + $0x18] sm:$0xf]
        %v1662 = vld [vmem:[%s1654 + $0x1c] sm:$0xf]
        %v1663 = vld [vmem:[%s1654 + $0x20] sm:$0xf]
        %v1664 = vld [vmem:[%s1654 + $0x24] sm:$0xf]
        %v1665 = vld [vmem:[%s1654 + $0x28] sm:$0xf]
        %v1666 = vld [vmem:[%s1654 + $0x2c] sm:$0xf]
        %v1667 = vld [vmem:[%s1654 + $0x30] sm:$0xf]
        %v1668 = vld [vmem:[%s1654 + $0x34] sm:$0xf]
        %v1669 = vld [vmem:[%s1654 + $0x38] sm:$0xf]
        %v1670 = vld [vmem:[%s1654 + $0x3c] sm:$0xf]
        %v1671 = vld [vmem:[%s1654 + $0x40] sm:$0xf]
        %v1672 = vld [vmem:[%s1654 + $0x44] sm:$0xf]
        %v1673 = vld [vmem:[%s1654 + $0x48] sm:$0xf]
        %v1674 = vld [vmem:[%s1654 + $0x4c] sm:$0xf]
        %v1675 = vld [vmem:[%s1654 + $0x50] sm:$0xf]
        %v1676 = vld [vmem:[%s1654 + $0x54] sm:$0xf]
        %v1677 = vld [vmem:[%s1654 + $0x58] sm:$0xf]
        %v1678 = vld [vmem:[%s1654 + $0x5c] sm:$0xf]
        %v1679 = vld [vmem:[%s1654 + $0x60] sm:$0xf]
        %v1696 = vunpack.c.l.b16 %v1638
        %v1697 = vunpack.c.h.b16 %v1638
        %v1698 = vunpack.c.l.b16 %v1639
        %v1699 = vunpack.c.h.b16 %v1639
        %v1700 = vunpack.c.l.b16 %v1640
        %v1701 = vunpack.c.h.b16 %v1640
        %v1702 = vunpack.c.l.b16 %v1641
        %v1703 = vunpack.c.h.b16 %v1641
        %v1704 = vunpack.c.l.b16 %v1642
        %v1705 = vunpack.c.h.b16 %v1642
        %v1706 = vunpack.c.l.b16 %v1643
        %v1707 = vunpack.c.h.b16 %v1643
        %v1708 = vunpack.c.l.b16 %v1644
        %v1709 = vunpack.c.h.b16 %v1644
        %v1710 = vunpack.c.l.b16 %v1645
        %v1711 = vunpack.c.h.b16 %v1645
        %v1712 = vunpack.c.l.b16 %v1646
        %v1713 = vunpack.c.h.b16 %v1646
        %v1714 = vunpack.c.l.b16 %v1647
        %v1715 = vunpack.c.h.b16 %v1647
        %v1716 = vunpack.c.l.b16 %v1648
        %v1717 = vunpack.c.h.b16 %v1648
        %v1718 = vunpack.c.l.b16 %v1649
        %v1719 = vunpack.c.h.b16 %v1649
        %v1720 = vunpack.c.l.b16 %v1650
        %v1721 = vunpack.c.h.b16 %v1650
        %v1722 = vunpack.c.l.b16 %v1651
        %v1723 = vunpack.c.h.b16 %v1651
        %v1724 = vunpack.c.l.b16 %v1652
        %v1725 = vunpack.c.h.b16 %v1652
        %v1726 = vunpack.c.l.b16 %v1653
        %v1727 = vunpack.c.h.b16 %v1653
        %v1728 = vpack.c.b16 %v1698, %v1696
        %v1729 = vpack.c.b16 %v1699, %v1697
        %v1730 = vpack.c.b16 %v1702, %v1700
        %v1731 = vpack.c.b16 %v1703, %v1701
        %v1732 = vpack.c.b16 %v1706, %v1704
        %v1733 = vpack.c.b16 %v1707, %v1705
        %v1734 = vpack.c.b16 %v1710, %v1708
        %v1735 = vpack.c.b16 %v1711, %v1709
        %v1736 = vpack.c.b16 %v1714, %v1712
        %v1737 = vpack.c.b16 %v1715, %v1713
        %v1738 = vpack.c.b16 %v1718, %v1716
        %v1739 = vpack.c.b16 %v1719, %v1717
        %v1740 = vpack.c.b16 %v1722, %v1720
        %v1741 = vpack.c.b16 %v1723, %v1721
        %v1742 = vpack.c.b16 %v1726, %v1724
        %v1743 = vpack.c.b16 %v1727, %v1725
        %v1777 = vunpack.c.l.b16 %v1655
        %v1778 = vunpack.c.l.b16 %v1656
        %v1779 = vunpack.c.l.b16 %v1657
        %v1780 = vunpack.c.l.b16 %v1658
        %v1781 = vunpack.c.l.b16 %v1659
        %v1782 = vunpack.c.l.b16 %v1660
        %v1783 = vunpack.c.l.b16 %v1661
        %v1784 = vunpack.c.l.b16 %v1662
        %v1785 = vunpack.c.l.b16 %v1663
        %v1786 = vunpack.c.l.b16 %v1664
        %v1787 = vunpack.c.l.b16 %v1665
        %v1788 = vunpack.c.l.b16 %v1666
        %v1789 = vunpack.c.l.b16 %v1667
        %v1790 = vunpack.c.l.b16 %v1668
        %v1791 = vunpack.c.l.b16 %v1669
        %v1792 = vunpack.c.l.b16 %v1670
        %v1793 = vunpack.c.l.b16 %v1671
        %v1794 = vunpack.c.l.b16 %v1672
        %v1795 = vunpack.c.l.b16 %v1673
        %v1796 = vunpack.c.l.b16 %v1674
        %v1797 = vunpack.c.l.b16 %v1675
        %v1798 = vunpack.c.l.b16 %v1676
        %v1799 = vunpack.c.l.b16 %v1677
        %v1800 = vunpack.c.l.b16 %v1678
        %v1801 = vunpack.c.l.b16 %v1679
        %v1802 = vpack.c.b16 %v1778, %v1777
        %v1803 = vpack.c.b16 %v1780, %v1779
        %v1804 = vpack.c.b16 %v1782, %v1781
        %v1805 = vpack.c.b16 %v1784, %v1783
        %v1806 = vpack.c.b16 %v1786, %v1785
        %v1807 = vpack.c.b16 %v1788, %v1787
        %v1808 = vpack.c.b16 %v1790, %v1789
        %v1809 = vpack.c.b16 %v1792, %v1791
        %v1810 = vpack.c.b16 %v1794, %v1793
        %v1811 = vpack.c.b16 %v1796, %v1795
        %v1812 = vpack.c.b16 %v1798, %v1797
        %v1813 = vpack.c.b16 %v1800, %v1799
        %v1814 = vpack.c.b16 %v1801, %v1801
        %v1828 = vsel %vm372, %v1729, 0
        %v1831 = vsel %vm372, %v1731, 0
        %v1834 = vsel %vm372, %v1733, 0
        %v1837 = vsel %vm372, %v1735, 0
        %v1840 = vsel %vm372, %v1737, 0
        %v1843 = vsel %vm372, %v1739, 0
        %v1846 = vsel %vm372, %v1741, 0
        %v1849 = vsel %vm372, %v1743, 0
        %v1852 = vsel %vm397, %v1814, 0
        %1854 = vmatprep.subr.bf16.mxu0 0
        %1855 = vmatpush1.bf16.msra.mxu0 %v1809
        %1856 = vmatprep.subr.bf16.mxu0 0
        %1857 = vmatpush1.bf16.msra.mxu0 %v1808
        %1858 = vmatprep.subr.bf16.mxu0 0
        %1859 = vmatpush1.bf16.msra.mxu0 %v1807
        %1860 = vmatprep.subr.bf16.mxu0 0
        %1861 = vmatpush1.bf16.msra.mxu0 %v1806
        %1862 = vmatprep.subr.bf16.mxu0 0
        %1863 = vmatpush1.bf16.msra.mxu0 %v1805
        %1864 = vmatprep.subr.bf16.mxu0 0
        %1865 = vmatpush1.bf16.msra.mxu0 %v1804
        %1866 = vmatprep.subr.bf16.mxu0 0
        %1867 = vmatpush1.bf16.msra.mxu0 %v1803
        %1868 = vmatprep.subr.bf16.mxu0 0
        %1869 = vmatpush1.bf16.msra.mxu0 %v1802
        %1870 = vmatprep.subr.bf16.mxu0 0
        %1871 = vmatpush2.bf16.msra.mxu0 0
        %1872 = vmatprep.subr.bf16.mxu0 0
        %1873 = vmatpush2.bf16.msra.mxu0 0
        %1874 = vmatprep.subr.bf16.mxu0 0
        %1875 = vmatpush2.bf16.msra.mxu0 0
        %1876 = vmatprep.subr.bf16.mxu0 0
        %1877 = vmatpush2.bf16.msra.mxu0 %v1852
        %1878 = vmatprep.subr.bf16.mxu0 0
        %1879 = vmatpush2.bf16.msra.mxu0 %v1813
        %1880 = vmatprep.subr.bf16.mxu0 0
        %1881 = vmatpush2.bf16.msra.mxu0 %v1812
        %1882 = vmatprep.subr.bf16.mxu0 0
        %1883 = vmatpush2.bf16.msra.mxu0 %v1811
        %1884 = vmatprep.subr.bf16.mxu0 0
        %1885 = vmatpush2.bf16.msra.mxu0 %v1810
        %1886 = vmatprep.mubr.bf16.mxu0 %v1828
        %1887 = vmatmul.mubr.bf16.gmra.mxu0 %v1728
        %v1888 = vpop.f32.mrf.mxu0
        %v1889 = vadd.f32 0.0, %v1888
        %v1890 = vpop.f32.mrf.mxu0
        %v1891 = vpop.f32.mrf.mxu0
        %v1892 = vadd.f32 0.0, %v1891
        %v1893 = vpop.f32.mrf.mxu0
        %1894 = vmatprep.mubr.bf16.mxu0 %v1831
        %1895 = vmatmul.mubr.bf16.gmra.mxu0 %v1730
        %v1896 = vpop.f32.mrf.mxu0
        %v1897 = vadd.f32 0.0, %v1896
        %v1898 = vpop.f32.mrf.mxu0
        %v1899 = vpop.f32.mrf.mxu0
        %v1900 = vadd.f32 0.0, %v1899
        %v1901 = vpop.f32.mrf.mxu0
        %1902 = vmatprep.mubr.bf16.mxu0 %v1834
        %1903 = vmatmul.mubr.bf16.gmra.mxu0 %v1732
        %v1904 = vpop.f32.mrf.mxu0
        %v1905 = vadd.f32 0.0, %v1904
        %v1906 = vpop.f32.mrf.mxu0
        %v1907 = vpop.f32.mrf.mxu0
        %v1908 = vadd.f32 0.0, %v1907
        %v1909 = vpop.f32.mrf.mxu0
        %1910 = vmatprep.mubr.bf16.mxu0 %v1837
        %1911 = vmatmul.mubr.bf16.gmra.mxu0 %v1734
        %v1912 = vpop.f32.mrf.mxu0
        %v1913 = vadd.f32 0.0, %v1912
        %v1914 = vpop.f32.mrf.mxu0
        %v1915 = vpop.f32.mrf.mxu0
        %v1916 = vadd.f32 0.0, %v1915
        %v1917 = vpop.f32.mrf.mxu0
        %1918 = vmatprep.mubr.bf16.mxu0 %v1840
        %1919 = vmatmul.mubr.bf16.gmra.mxu0 %v1736
        %v1920 = vpop.f32.mrf.mxu0
        %v1921 = vadd.f32 0.0, %v1920
        %v1922 = vpop.f32.mrf.mxu0
        %v1923 = vpop.f32.mrf.mxu0
        %v1924 = vadd.f32 0.0, %v1923
        %v1925 = vpop.f32.mrf.mxu0
        %1926 = vmatprep.mubr.bf16.mxu0 %v1843
        %1927 = vmatmul.mubr.bf16.gmra.mxu0 %v1738
        %v1928 = vpop.f32.mrf.mxu0
        %v1929 = vadd.f32 0.0, %v1928
        %v1930 = vpop.f32.mrf.mxu0
        %v1931 = vpop.f32.mrf.mxu0
        %v1932 = vadd.f32 0.0, %v1931
        %v1933 = vpop.f32.mrf.mxu0
        %1934 = vmatprep.mubr.bf16.mxu0 %v1846
        %1935 = vmatmul.mubr.bf16.gmra.mxu0 %v1740
        %v1936 = vpop.f32.mrf.mxu0
        %v1937 = vadd.f32 0.0, %v1936
        %v1938 = vpop.f32.mrf.mxu0
        %v1939 = vpop.f32.mrf.mxu0
        %v1940 = vadd.f32 0.0, %v1939
        %v1941 = vpop.f32.mrf.mxu0
        %1942 = vmatprep.mubr.bf16.mxu0 %v1849
        %1943 = vmatmul.mubr.bf16.gmra.mxu0 %v1742
        %v1944 = vpop.f32.mrf.mxu0
        %v1945 = vadd.f32 0.0, %v1944
        %v1946 = vpop.f32.mrf.mxu0
        %v1947 = vpop.f32.mrf.mxu0
        %v1948 = vadd.f32 0.0, %v1947
        %v1949 = vpop.f32.mrf.mxu0
        %1950 = vdwg.mxu0
        %v1951 = vadd.f32 %v1617, %v1889
        %v1952 = vadd.f32 %v1618, %v1892
        %v1953 = vadd.f32 %v1619, %v1897
        %v1954 = vadd.f32 %v1620, %v1900
        %v1955 = vadd.f32 %v1621, %v1905
        %v1956 = vadd.f32 %v1622, %v1908
        %v1957 = vadd.f32 %v1623, %v1913
        %v1958 = vadd.f32 %v1624, %v1916
        %v1959 = vadd.f32 %v1625, %v1921
        %v1960 = vadd.f32 %v1626, %v1924
        %v1961 = vadd.f32 %v1627, %v1929
        %v1962 = vadd.f32 %v1628, %v1932
        %v1963 = vadd.f32 %v1629, %v1937
        %v1964 = vadd.f32 %v1630, %v1940
        %v1965 = vadd.f32 %v1631, %v1945
        %v1966 = vadd.f32 %v1632, %v1948
        %1967 = vst.msk [vmem:[#allocation2] sm:$0xff] %vm498, %v1951
        %1968 = vst.msk [vmem:[#allocation2 + $0x8] sm:$0xff] %vm498, %v1952
        %1969 = vst.msk [vmem:[#allocation2 + $0x10] sm:$0xff] %vm498, %v1953
        %1970 = vst.msk [vmem:[#allocation2 + $0x18] sm:$0xff] %vm498, %v1954
        %1971 = vst.msk [vmem:[#allocation2 + $0x20] sm:$0xff] %vm498, %v1955
        %1972 = vst.msk [vmem:[#allocation2 + $0x28] sm:$0xff] %vm498, %v1956
        %1973 = vst.msk [vmem:[#allocation2 + $0x30] sm:$0xff] %vm498, %v1957
        %1974 = vst.msk [vmem:[#allocation2 + $0x38] sm:$0xff] %vm498, %v1958
        %1975 = vst.msk [vmem:[#allocation2 + $0x40] sm:$0xff] %vm498, %v1959
        %1976 = vst.msk [vmem:[#allocation2 + $0x48] sm:$0xff] %vm498, %v1960
        %1977 = vst.msk [vmem:[#allocation2 + $0x50] sm:$0xff] %vm498, %v1961
        %1978 = vst.msk [vmem:[#allocation2 + $0x58] sm:$0xff] %vm498, %v1962
        %1979 = vst.msk [vmem:[#allocation2 + $0x60] sm:$0xff] %vm498, %v1963
        %1980 = vst.msk [vmem:[#allocation2 + $0x68] sm:$0xff] %vm498, %v1964
        %1981 = vst.msk [vmem:[#allocation2 + $0x70] sm:$0xff] %vm498, %v1965
        %1982 = vst.msk [vmem:[#allocation2 + $0x78] sm:$0xff] %vm498, %v1966
        %v1983 = vld [vmem:[#allocation2] sm:$0xff]
        %v1984 = vld [vmem:[#allocation2 + $0x8] sm:$0xff]
        %v1985 = vmax.f32 %v1983, %v1984
        %v1986 = vld [vmem:[#allocation2 + $0x10] sm:$0xff]
        %v1987 = vmax.f32 %v1985, %v1986
        %v1988 = vld [vmem:[#allocation2 + $0x18] sm:$0xff]
        %v1989 = vmax.f32 %v1987, %v1988
        %v1990 = vld [vmem:[#allocation2 + $0x20] sm:$0xff]
        %v1991 = vmax.f32 %v1989, %v1990
        %v1992 = vld [vmem:[#allocation2 + $0x28] sm:$0xff]
        %v1993 = vmax.f32 %v1991, %v1992
        %v1994 = vld [vmem:[#allocation2 + $0x30] sm:$0xff]
        %v1995 = vmax.f32 %v1993, %v1994
        %v1996 = vld [vmem:[#allocation2 + $0x38] sm:$0xff]
        %v1997 = vmax.f32 %v1995, %v1996
        %v1998 = vld [vmem:[#allocation2 + $0x40] sm:$0xff]
        %v1999 = vmax.f32 %v1997, %v1998
        %v2000 = vld [vmem:[#allocation2 + $0x48] sm:$0xff]
        %v2001 = vmax.f32 %v1999, %v2000
        %v2002 = vld [vmem:[#allocation2 + $0x50] sm:$0xff]
        %v2003 = vmax.f32 %v2001, %v2002
        %v2004 = vld [vmem:[#allocation2 + $0x58] sm:$0xff]
        %v2005 = vmax.f32 %v2003, %v2004
        %v2006 = vld [vmem:[#allocation2 + $0x60] sm:$0xff]
        %v2007 = vmax.f32 %v2005, %v2006
        %v2008 = vld [vmem:[#allocation2 + $0x68] sm:$0xff]
        %v2009 = vmax.f32 %v2007, %v2008
        %v2010 = vld [vmem:[#allocation2 + $0x70] sm:$0xff]
        %v2011 = vmax.f32 %v2009, %v2010
        %v2012 = vld [vmem:[#allocation2 + $0x78] sm:$0xff]
        %v2013 = vmax.f32 %v2011, %v2012
        %v2014 = vld [vmem:[%s2] sm:$0x1]
        %v2016 = vlaneseq
        %v2017 = vshrl.u32 %v2016, 7
        %v2018 = vsub.s32 0, %v2017
        %v2019 = vrot.slane %v2014, %v2018
        %v2021 = vadd.f32 %v2013, %v2019
        %v2022 = vtanh.pop %v2021
        %v2023 = vpack.c.bf16 %v2022, %v2022
        %s2024 = smul.addr %s173, 4
        %s2025 = scalar_lea.vmem %s170, %s2024
        %vm2026 = vcmask 486400
        %2027 = vst.msk [vmem:[%s2025] sm:$0xf] %vm2026, %v2023
      $region37: #{neural_net_forward.4} parent=31 // loop_footer
        %s177 = sadd.s32 1, %s173
      $region38: #{neural_net_forward.4} parent=31 // loop_footer_branch
        %172 = sbr.rel target = $region34
      $region39: #{neural_net_forward.4} parent=31 // loop_exit
        _
      %p2028 = scmp.lt.s32.totalorder %s14, 1
      %s2029 = scalar_select %p2028, %s14, 1
      %s2030 = smul.addr %s2029, 6
      %s2031 = smul.addr %s2030, 4
      %s2032 = scalar_lea.vmem %s3, %s2031
      // Predicated region
      $region40: #{neural_net_forward.4} parent=31 // pred_check
        %p2033 = pneg %p100
      $region41: #{neural_net_forward.4} parent=31 // pred_check_branch
        %2035 = sbr.rel (%p2033) target = $region43
      $region42: #{neural_net_forward.4} parent=31 // pred_region
        _
      $region43: #{neural_net_forward.4} parent=31 // pred_fallthru
        _
    $region32: #{neural_net_forward.4} parent=5 // pred_fallthru
      _
    %p2036 = scmp.le.s32.totalorder 2, %s9
    // Predicated region
    $region44: #{neural_net_forward.4} parent=5 // pred_check
      %p2037 = pneg %p2036
    $region45: #{neural_net_forward.4} parent=5 // pred_check_branch
      %2039 = sbr.rel (%p2037) target = $region47
    $region46: #{neural_net_forward.4} parent=5 // pred_region
      %s2040 = ssub.s32 %s9, 2
      // Predicated region
      $region48: #{neural_net_forward.4} parent=46 // pred_check
        %p2041 = pneg %p106
      $region49: #{neural_net_forward.4} parent=46 // pred_check_branch
        %2043 = sbr.rel (%p2041) target = $region51
      $region50: #{neural_net_forward.4} parent=46 // pred_region
        %p2044 = scmp.lt.s32.totalorder %s15, 1
        %s2045 = scalar_select %p2044, %s15, 1
        %s2046 = smul.addr %s2045, 6
        %s2047 = smul.addr %s2046, 4
        %s2048 = scalar_lea.vmem %s3, %s2047
      $region51: #{neural_net_forward.4} parent=46 // pred_fallthru
        _
    $region47: #{neural_net_forward.4} parent=5 // pred_fallthru
      _
  $region6: #{neural_net_forward.4} parent=0 // loop_footer
    %s13 = sadd.s32 1, %s9
  $region7: #{neural_net_forward.4} parent=0 // loop_footer_branch
    %8 = sbr.rel target = $region3
  $region8: #{neural_net_forward.4} parent=0 // loop_exit
    _

// kernel: neural_net_forward.5
$region0: #{neural_net_forward.5}
  #allocation0 [shape = 'u32[]', space=smem, size = 0x4, offset = 0x4, fixed_abs, tag = 'smem constant byte address 0x4 - core index']
  #allocation1 [shape = 'u32[144,128]{1,0:T(1,128)}', space=vmem, size = 0x12000, scoped, tag = 'internal scratch']
  %s0 = inlined_call_operand.vmem [shape: bf16[2,6,8,60], index: 0, kind: input, shape index: {}]
  %s1 = inlined_call_operand.vmem [shape: bf16[9,60,240], index: 1, kind: input, shape index: {}]
  %s2 = inlined_call_operand.vmem [shape: f32[1,240], index: 2, kind: input, shape index: {}]
  %s3 = inlined_call_operand.vmem [shape: bf16[240,240], index: 3, kind: input, shape index: {}]
  %s4 = inlined_call_operand.vmem [shape: f32[1,240], index: 4, kind: input, shape index: {}]
  %s5 = inlined_call_operand.vmem [shape: bf16[240,120], index: 5, kind: input, shape index: {}]
  %s6 = inlined_call_operand.vmem [shape: f32[1,120], index: 6, kind: input, shape index: {}]
  %s7 = inlined_call_operand.vmem [shape: bf16[120,60], index: 7, kind: input, shape index: {}]
  %s8 = inlined_call_operand.vmem [shape: f32[1,60], index: 8, kind: input, shape index: {}]
  %s9 = inlined_call_operand.vmem [shape: bf16[60,128], index: 9, kind: input, shape index: {}]
  %s10 = inlined_call_operand.vmem [shape: f32[1,128], index: 10, kind: input, shape index: {}]
  %s11 = inlined_call_operand.vmem [shape: f32[2,1,128], index: 11, kind: output, shape index: {}]
  %s12 = sld [smem:[#allocation0]]
  $region77: #{neural_net_forward.5} parent=0
    _
  %s14 = ssub.s32 1, %s12
  %s15 = scalar_select 0, %s14, %s12
  loop: start=0, step=1, limit=4
  $region2: #{neural_net_forward.5} parent=0 // loop_pre_header
    _
  $region3: #{neural_net_forward.5} parent=0 // loop_header
    %s17 = sphi 0, %s21
    %p18 = scmp.ge.s32.totalorder %s17, 4
    %s27 = sphi 0, %s29
    %s30 = sphi 0, %s27
    %s31 = sphi 0, %s30
    %s47 = sphi 0, %s31
    %s51 = sphi 0, %s51
    %s53 = sphi 0, %s51
    %s54 = sphi 0, %s53
    %s68 = sphi 0, %s54
    %s72 = sphi 0, %s72
    %s74 = sphi 0, %s72
    %s75 = sphi 0, %s74
    %s89 = sphi 0, %s75
    %s93 = sphi 0, %s93
    %s95 = sphi 0, %s93
    %s96 = sphi 0, %s95
    %s110 = sphi 0, %s96
    %s114 = sphi 0, %s114
    %s116 = sphi 0, %s114
    %s117 = sphi 0, %s116
    %s131 = sphi 0, %s117
    %s135 = sphi 0, %s135
    %s137 = sphi 0, %s135
    %s138 = sphi 0, %s137
    %s152 = sphi 0, %s138
    %s156 = sphi 0, %s156
    %s158 = sphi 0, %s156
    %s159 = sphi 0, %s158
    %s173 = sphi 0, %s159
    %s177 = sphi 0, %s177
    %s179 = sphi 0, %s177
    %s180 = sphi 0, %s179
    %s194 = sphi 0, %s180
    %s198 = sphi 0, %s198
    %s200 = sphi 0, %s198
    %s201 = sphi 0, %s200
    %s215 = sphi 0, %s201
    %s219 = sphi 0, %s219
    %s221 = sphi 0, %s219
    %s222 = sphi 0, %s221
    %s236 = sphi 0, %s222
    %s240 = sphi 0, %s240
    %s242 = sphi 0, %s240
    %s243 = sphi 0, %s242
    %s257 = sphi 0, %s243
    %s263 = sphi 0, %s265
    %s266 = sphi 0, %s263
    %s267 = sphi 0, %s266
    %s283 = sphi 0, %s267
  $region4: #{neural_net_forward.5} parent=0 // loop_header_branch
    %20 = sbr.rel (%p18) target = $region8
  $region5: #{neural_net_forward.5} parent=0 // loop_body
    %s22 = ssub.s32 %s17, 1
    %s23 = ssub.s32 %s17, 2
    %s24 = sadd.s32 %s17, 1
    %s25 = ssub.s32 %s17, %s24
    %p26 = scmp.eq.s32.totalorder %s25, 0
    %s28 = sadd.s32 %s27, 1
    %s29 = scalar_select %p26, %s27, %s28
    %p32 = pneg %p26
    %p33 = scmp.eq.s32.totalorder %s17, 1
    %p34 = por %p32, %p33
    %p35 = scmp.ne.s32.totalorder %s27, %s30
    %p36 = scmp.eq.s32.totalorder %s17, 0
    %p37 = por %p35, %p36
    %p38 = scmp.ne.s32.totalorder %s27, %s30
    %p39 = scmp.eq.s32.totalorder %s22, 1
    %p40 = por %p38, %p39
    %p41 = scmp.ne.s32.totalorder %s30, %s31
    %p42 = scmp.eq.s32.totalorder %s22, 0
    %p43 = por %p41, %p42
    %p44 = scmp.ne.s32.totalorder %s30, %s31
    %p45 = scmp.eq.s32.totalorder %s23, 1
    %p46 = por %p44, %p45
    %p48 = scmp.ne.s32.totalorder %s31, %s47
    %p49 = scmp.eq.s32.totalorder %s23, 0
    %p50 = por %p48, %p49
    %s52 = sadd.s32 %s51, 1
    %p55 = scmp.eq.s32.totalorder %s17, 1
    %p56 = scmp.ne.s32.totalorder %s51, %s53
    %p57 = scmp.eq.s32.totalorder %s17, 0
    %p58 = por %p56, %p57
    %p59 = scmp.ne.s32.totalorder %s51, %s53
    %p60 = scmp.eq.s32.totalorder %s22, 1
    %p61 = por %p59, %p60
    %p62 = scmp.ne.s32.totalorder %s53, %s54
    %p63 = scmp.eq.s32.totalorder %s22, 0
    %p64 = por %p62, %p63
    %p65 = scmp.ne.s32.totalorder %s53, %s54
    %p66 = scmp.eq.s32.totalorder %s23, 1
    %p67 = por %p65, %p66
    %p69 = scmp.ne.s32.totalorder %s54, %s68
    %p70 = scmp.eq.s32.totalorder %s23, 0
    %p71 = por %p69, %p70
    %s73 = sadd.s32 %s72, 1
    %p76 = scmp.eq.s32.totalorder %s17, 1
    %p77 = scmp.ne.s32.totalorder %s72, %s74
    %p78 = scmp.eq.s32.totalorder %s17, 0
    %p79 = por %p77, %p78
    %p80 = scmp.ne.s32.totalorder %s72, %s74
    %p81 = scmp.eq.s32.totalorder %s22, 1
    %p82 = por %p80, %p81
    %p83 = scmp.ne.s32.totalorder %s74, %s75
    %p84 = scmp.eq.s32.totalorder %s22, 0
    %p85 = por %p83, %p84
    %p86 = scmp.ne.s32.totalorder %s74, %s75
    %p87 = scmp.eq.s32.totalorder %s23, 1
    %p88 = por %p86, %p87
    %p90 = scmp.ne.s32.totalorder %s75, %s89
    %p91 = scmp.eq.s32.totalorder %s23, 0
    %p92 = por %p90, %p91
    %s94 = sadd.s32 %s93, 1
    %p97 = scmp.eq.s32.totalorder %s17, 1
    %p98 = scmp.ne.s32.totalorder %s93, %s95
    %p99 = scmp.eq.s32.totalorder %s17, 0
    %p100 = por %p98, %p99
    %p101 = scmp.ne.s32.totalorder %s93, %s95
    %p102 = scmp.eq.s32.totalorder %s22, 1
    %p103 = por %p101, %p102
    %p104 = scmp.ne.s32.totalorder %s95, %s96
    %p105 = scmp.eq.s32.totalorder %s22, 0
    %p106 = por %p104, %p105
    %p107 = scmp.ne.s32.totalorder %s95, %s96
    %p108 = scmp.eq.s32.totalorder %s23, 1
    %p109 = por %p107, %p108
    %p111 = scmp.ne.s32.totalorder %s96, %s110
    %p112 = scmp.eq.s32.totalorder %s23, 0
    %p113 = por %p111, %p112
    %s115 = sadd.s32 %s114, 1
    %p118 = scmp.eq.s32.totalorder %s17, 1
    %p119 = scmp.ne.s32.totalorder %s114, %s116
    %p120 = scmp.eq.s32.totalorder %s17, 0
    %p121 = por %p119, %p120
    %p122 = scmp.ne.s32.totalorder %s114, %s116
    %p123 = scmp.eq.s32.totalorder %s22, 1
    %p124 = por %p122, %p123
    %p125 = scmp.ne.s32.totalorder %s116, %s117
    %p126 = scmp.eq.s32.totalorder %s22, 0
    %p127 = por %p125, %p126
    %p128 = scmp.ne.s32.totalorder %s116, %s117
    %p129 = scmp.eq.s32.totalorder %s23, 1
    %p130 = por %p128, %p129
    %p132 = scmp.ne.s32.totalorder %s117, %s131
    %p133 = scmp.eq.s32.totalorder %s23, 0
    %p134 = por %p132, %p133
    %s136 = sadd.s32 %s135, 1
    %p139 = scmp.eq.s32.totalorder %s17, 1
    %p140 = scmp.ne.s32.totalorder %s135, %s137
    %p141 = scmp.eq.s32.totalorder %s17, 0
    %p142 = por %p140, %p141
    %p143 = scmp.ne.s32.totalorder %s135, %s137
    %p144 = scmp.eq.s32.totalorder %s22, 1
    %p145 = por %p143, %p144
    %p146 = scmp.ne.s32.totalorder %s137, %s138
    %p147 = scmp.eq.s32.totalorder %s22, 0
    %p148 = por %p146, %p147
    %p149 = scmp.ne.s32.totalorder %s137, %s138
    %p150 = scmp.eq.s32.totalorder %s23, 1
    %p151 = por %p149, %p150
    %p153 = scmp.ne.s32.totalorder %s138, %s152
    %p154 = scmp.eq.s32.totalorder %s23, 0
    %p155 = por %p153, %p154
    %s157 = sadd.s32 %s156, 1
    %p160 = scmp.eq.s32.totalorder %s17, 1
    %p161 = scmp.ne.s32.totalorder %s156, %s158
    %p162 = scmp.eq.s32.totalorder %s17, 0
    %p163 = por %p161, %p162
    %p164 = scmp.ne.s32.totalorder %s156, %s158
    %p165 = scmp.eq.s32.totalorder %s22, 1
    %p166 = por %p164, %p165
    %p167 = scmp.ne.s32.totalorder %s158, %s159
    %p168 = scmp.eq.s32.totalorder %s22, 0
    %p169 = por %p167, %p168
    %p170 = scmp.ne.s32.totalorder %s158, %s159
    %p171 = scmp.eq.s32.totalorder %s23, 1
    %p172 = por %p170, %p171
    %p174 = scmp.ne.s32.totalorder %s159, %s173
    %p175 = scmp.eq.s32.totalorder %s23, 0
    %p176 = por %p174, %p175
    %s178 = sadd.s32 %s177, 1
    %p181 = scmp.eq.s32.totalorder %s17, 1
    %p182 = scmp.ne.s32.totalorder %s177, %s179
    %p183 = scmp.eq.s32.totalorder %s17, 0
    %p184 = por %p182, %p183
    %p185 = scmp.ne.s32.totalorder %s177, %s179
    %p186 = scmp.eq.s32.totalorder %s22, 1
    %p187 = por %p185, %p186
    %p188 = scmp.ne.s32.totalorder %s179, %s180
    %p189 = scmp.eq.s32.totalorder %s22, 0
    %p190 = por %p188, %p189
    %p191 = scmp.ne.s32.totalorder %s179, %s180
    %p192 = scmp.eq.s32.totalorder %s23, 1
    %p193 = por %p191, %p192
    %p195 = scmp.ne.s32.totalorder %s180, %s194
    %p196 = scmp.eq.s32.totalorder %s23, 0
    %p197 = por %p195, %p196
    %s199 = sadd.s32 %s198, 1
    %p202 = scmp.eq.s32.totalorder %s17, 1
    %p203 = scmp.ne.s32.totalorder %s198, %s200
    %p204 = scmp.eq.s32.totalorder %s17, 0
    %p205 = por %p203, %p204
    %p206 = scmp.ne.s32.totalorder %s198, %s200
    %p207 = scmp.eq.s32.totalorder %s22, 1
    %p208 = por %p206, %p207
    %p209 = scmp.ne.s32.totalorder %s200, %s201
    %p210 = scmp.eq.s32.totalorder %s22, 0
    %p211 = por %p209, %p210
    %p212 = scmp.ne.s32.totalorder %s200, %s201
    %p213 = scmp.eq.s32.totalorder %s23, 1
    %p214 = por %p212, %p213
    %p216 = scmp.ne.s32.totalorder %s201, %s215
    %p217 = scmp.eq.s32.totalorder %s23, 0
    %p218 = por %p216, %p217
    %s220 = sadd.s32 %s219, 1
    %p223 = scmp.eq.s32.totalorder %s17, 1
    %p224 = scmp.ne.s32.totalorder %s219, %s221
    %p225 = scmp.eq.s32.totalorder %s17, 0
    %p226 = por %p224, %p225
    %p227 = scmp.ne.s32.totalorder %s219, %s221
    %p228 = scmp.eq.s32.totalorder %s22, 1
    %p229 = por %p227, %p228
    %p230 = scmp.ne.s32.totalorder %s221, %s222
    %p231 = scmp.eq.s32.totalorder %s22, 0
    %p232 = por %p230, %p231
    %p233 = scmp.ne.s32.totalorder %s221, %s222
    %p234 = scmp.eq.s32.totalorder %s23, 1
    %p235 = por %p233, %p234
    %p237 = scmp.ne.s32.totalorder %s222, %s236
    %p238 = scmp.eq.s32.totalorder %s23, 0
    %p239 = por %p237, %p238
    %s241 = sadd.s32 %s240, 1
    %p244 = scmp.eq.s32.totalorder %s17, 1
    %p245 = scmp.ne.s32.totalorder %s240, %s242
    %p246 = scmp.eq.s32.totalorder %s17, 0
    %p247 = por %p245, %p246
    %p248 = scmp.ne.s32.totalorder %s240, %s242
    %p249 = scmp.eq.s32.totalorder %s22, 1
    %p250 = por %p248, %p249
    %p251 = scmp.ne.s32.totalorder %s242, %s243
    %p252 = scmp.eq.s32.totalorder %s22, 0
    %p253 = por %p251, %p252
    %p254 = scmp.ne.s32.totalorder %s242, %s243
    %p255 = scmp.eq.s32.totalorder %s23, 1
    %p256 = por %p254, %p255
    %p258 = scmp.ne.s32.totalorder %s243, %s257
    %p259 = scmp.eq.s32.totalorder %s23, 0
    %p260 = por %p258, %p259
    %s261 = ssub.s32 %s17, %s24
    %p262 = scmp.eq.s32.totalorder %s261, 0
    %s264 = sadd.s32 %s263, 1
    %s265 = scalar_select %p262, %s263, %s264
    %p268 = pneg %p262
    %p269 = scmp.eq.s32.totalorder %s17, 1
    %p270 = por %p268, %p269
    %p271 = scmp.ne.s32.totalorder %s263, %s266
    %p272 = scmp.eq.s32.totalorder %s17, 0
    %p273 = por %p271, %p272
    %p274 = scmp.ne.s32.totalorder %s263, %s266
    %p275 = scmp.eq.s32.totalorder %s22, 1
    %p276 = por %p274, %p275
    %p277 = scmp.ne.s32.totalorder %s266, %s267
    %p278 = scmp.eq.s32.totalorder %s22, 0
    %p279 = por %p277, %p278
    %p280 = scmp.ne.s32.totalorder %s266, %s267
    %p281 = scmp.eq.s32.totalorder %s23, 1
    %p282 = por %p280, %p281
    %p284 = scmp.ne.s32.totalorder %s267, %s283
    %p285 = scmp.eq.s32.totalorder %s23, 0
    %p286 = por %p284, %p285
    %p287 = scmp.le.s32.totalorder 1, %s17
    %p288 = scmp.lt.s32.totalorder %s17, 3
    %p289 = pnand %p287, %p288
    %p290 = pneg %p289
    // Predicated region
    $region9: #{neural_net_forward.5} parent=5 // pred_check
      _
    $region10: #{neural_net_forward.5} parent=5 // pred_check_branch
      %292 = sbr.rel (%p289) target = $region12
    $region11: #{neural_net_forward.5} parent=5 // pred_region
      %s293 = ssub.s32 %s17, 1
      // Predicated region
      $region13: #{neural_net_forward.5} parent=11 // pred_check
        %p294 = pneg %p64
      $region14: #{neural_net_forward.5} parent=11 // pred_check_branch
        %296 = sbr.rel (%p294) target = $region16
      $region15: #{neural_net_forward.5} parent=11 // pred_region
        _
      $region16: #{neural_net_forward.5} parent=11 // pred_fallthru
        _
      // Predicated region
      $region17: #{neural_net_forward.5} parent=11 // pred_check
        %p297 = pneg %p85
      $region18: #{neural_net_forward.5} parent=11 // pred_check_branch
        %299 = sbr.rel (%p297) target = $region20
      $region19: #{neural_net_forward.5} parent=11 // pred_region
        _
      $region20: #{neural_net_forward.5} parent=11 // pred_fallthru
        _
      // Predicated region
      $region21: #{neural_net_forward.5} parent=11 // pred_check
        %p300 = pneg %p106
      $region22: #{neural_net_forward.5} parent=11 // pred_check_branch
        %302 = sbr.rel (%p300) target = $region24
      $region23: #{neural_net_forward.5} parent=11 // pred_region
        _
      $region24: #{neural_net_forward.5} parent=11 // pred_fallthru
        _
      // Predicated region
      $region25: #{neural_net_forward.5} parent=11 // pred_check
        %p303 = pneg %p127
      $region26: #{neural_net_forward.5} parent=11 // pred_check_branch
        %305 = sbr.rel (%p303) target = $region28
      $region27: #{neural_net_forward.5} parent=11 // pred_region
        _
      $region28: #{neural_net_forward.5} parent=11 // pred_fallthru
        _
      // Predicated region
      $region29: #{neural_net_forward.5} parent=11 // pred_check
        %p306 = pneg %p148
      $region30: #{neural_net_forward.5} parent=11 // pred_check_branch
        %308 = sbr.rel (%p306) target = $region32
      $region31: #{neural_net_forward.5} parent=11 // pred_region
        _
      $region32: #{neural_net_forward.5} parent=11 // pred_fallthru
        _
      // Predicated region
      $region33: #{neural_net_forward.5} parent=11 // pred_check
        %p309 = pneg %p169
      $region34: #{neural_net_forward.5} parent=11 // pred_check_branch
        %311 = sbr.rel (%p309) target = $region36
      $region35: #{neural_net_forward.5} parent=11 // pred_region
        _
      $region36: #{neural_net_forward.5} parent=11 // pred_fallthru
        _
      // Predicated region
      $region37: #{neural_net_forward.5} parent=11 // pred_check
        %p312 = pneg %p190
      $region38: #{neural_net_forward.5} parent=11 // pred_check_branch
        %314 = sbr.rel (%p312) target = $region40
      $region39: #{neural_net_forward.5} parent=11 // pred_region
        _
      $region40: #{neural_net_forward.5} parent=11 // pred_fallthru
        _
      // Predicated region
      $region41: #{neural_net_forward.5} parent=11 // pred_check
        %p315 = pneg %p211
      $region42: #{neural_net_forward.5} parent=11 // pred_check_branch
        %317 = sbr.rel (%p315) target = $region44
      $region43: #{neural_net_forward.5} parent=11 // pred_region
        _
      $region44: #{neural_net_forward.5} parent=11 // pred_fallthru
        _
      // Predicated region
      $region45: #{neural_net_forward.5} parent=11 // pred_check
        %p318 = pneg %p232
      $region46: #{neural_net_forward.5} parent=11 // pred_check_branch
        %320 = sbr.rel (%p318) target = $region48
      $region47: #{neural_net_forward.5} parent=11 // pred_region
        _
      $region48: #{neural_net_forward.5} parent=11 // pred_fallthru
        _
      // Predicated region
      $region49: #{neural_net_forward.5} parent=11 // pred_check
        %p321 = pneg %p253
      $region50: #{neural_net_forward.5} parent=11 // pred_check_branch
        %323 = sbr.rel (%p321) target = $region52
      $region51: #{neural_net_forward.5} parent=11 // pred_region
        _
      $region52: #{neural_net_forward.5} parent=11 // pred_fallthru
        _
    $region12: #{neural_net_forward.5} parent=5 // pred_fallthru
      _
    %p324 = scmp.lt.s32.totalorder %s17, 2
    // Predicated region
    $region53: #{neural_net_forward.5} parent=5 // pred_check
      %p325 = pneg %p324
    $region54: #{neural_net_forward.5} parent=5 // pred_check_branch
      %327 = sbr.rel (%p325) target = $region56
    $region55: #{neural_net_forward.5} parent=5 // pred_region
      // Predicated region
      $region57: #{neural_net_forward.5} parent=55 // pred_check
        %p328 = pneg %p37
      $region58: #{neural_net_forward.5} parent=55 // pred_check_branch
        %330 = sbr.rel (%p328) target = $region60
      $region59: #{neural_net_forward.5} parent=55 // pred_region
        %p331 = scmp.lt.s32.totalorder %s17, 1
        %s332 = scalar_select %p331, %s17, 1
        %s333 = smul.addr %s332, 6
        %s334 = smul.addr %s333, 4
        %s335 = scalar_lea.vmem %s0, %s334
      $region60: #{neural_net_forward.5} parent=55 // pred_fallthru
        _
    $region56: #{neural_net_forward.5} parent=5 // pred_fallthru
      _
    %p336 = scmp.le.s32.totalorder 1, %s17
    %p337 = scmp.lt.s32.totalorder %s17, 3
    %p338 = pnand %p336, %p337
    %p339 = pneg %p338
    // Predicated region
    $region61: #{neural_net_forward.5} parent=5 // pred_check
      _
    $region62: #{neural_net_forward.5} parent=5 // pred_check_branch
      %341 = sbr.rel (%p338) target = $region64
    $region63: #{neural_net_forward.5} parent=5 // pred_region
      %s342 = ssub.s32 %s17, 1
      %p343 = scmp.lt.s32.totalorder %s22, 1
      %s344 = scalar_select %p343, %s22, 1
      %s345 = smul.addr %s344, 6
      %s346 = smul.addr %s345, 4
      %s347 = scalar_lea.vmem %s0, %s346
      %p348 = pneg %p43
      %p349 = pneg %p40
      %p350 = pneg %p64
      %p351 = pneg %p61
      %p352 = pneg %p85
      %p353 = pneg %p82
      %p354 = pneg %p106
      %p355 = pneg %p103
      %p356 = pneg %p127
      %p357 = pneg %p124
      %p358 = pneg %p148
      %p359 = pneg %p145
      %p360 = pneg %p169
      %p361 = pneg %p166
      %p362 = pneg %p190
      %p363 = pneg %p187
      %p364 = pneg %p211
      %p365 = pneg %p208
      %p366 = pneg %p232
      %p367 = pneg %p229
      %p368 = pneg %p253
      %p369 = pneg %p250
      %p370 = pneg %p279
      %p371 = pneg %p276
      %p372 = scmp.lt.s32.totalorder %s22, 1
      %s373 = scalar_select %p372, %s22, 1
      %s374 = scalar_lea.vmem %s11, %s373
      %p375 = scmp.lt.s32.totalorder %s22, 1
      %s376 = scalar_select %p375, %s22, 1
      %s377 = smul.addr %s376, 6
      %s378 = smul.addr %s377, 4
      %s379 = scalar_lea.vmem %s0, %s378
      %p380 = scmp.lt.s32.totalorder %s22, 1
      %s381 = scalar_select %p380, %s22, 1
      %s382 = scalar_lea.vmem %s11, %s381
      %v384 = vld [vmem:[%s379] sm:$0x3]
      %s385 = scalar_lea.vmem %s379, 4
      %v386 = vld [vmem:[%s385] sm:$0x3]
      %s387 = scalar_lea.vmem %s379, 8
      %v388 = vld [vmem:[%s387] sm:$0x3]
      %s389 = scalar_lea.vmem %s379, 12
      %v390 = vld [vmem:[%s389] sm:$0x3]
      %v392 = vunpack.c.l.b16 %v386
      %v393 = vpack.c.b16 %v392, %v392
      %v394 = vrot.slane %v393, 6
      %v396 = vunpack.c.l.b16 %v388
      %v397 = vpack.c.b16 %v396, %v396
      %v399 = vunpack.c.l.b16 %v390
      %v400 = vpack.c.b16 %v399, %v399
      %v401 = vrot.slane %v400, 2
      %vm402 = vcmask 1041408
      %v405 = vsel %vm402, %v384, %v394
      %vm406 = vcmask 1043456
      %v408 = vsel %vm406, %v405, %v397
      %vm409 = vcmask 1045504
      %v411 = vsel %vm409, %v408, %v401
      %v412 = vld [vmem:[%s1] sm:$0xff]
      %v413 = vld [vmem:[%s1 + $0x8] sm:$0xff]
      %v414 = vld [vmem:[%s1 + $0x10] sm:$0xff]
      %v415 = vld [vmem:[%s1 + $0x18] sm:$0xff]
      %v416 = vld [vmem:[%s1 + $0x20] sm:$0xff]
      %v417 = vld [vmem:[%s1 + $0x28] sm:$0xff]
      %v418 = vld [vmem:[%s1 + $0x30] sm:$0xff]
      %v419 = vld [vmem:[%s1 + $0x38] sm:$0x33]
      %v420 = vld [vmem:[%s379] sm:$0x7]
      %v421 = vld [vmem:[%s385] sm:$0x7]
      %v422 = vld [vmem:[%s387] sm:$0x7]
      %v423 = vld [vmem:[%s389] sm:$0x7]
      %v425 = vunpack.c.l.b16 %v420
      %v426 = vpack.c.b16 %v425, %v425
      %v428 = vshrl.u32 %v426, 16
      %v430 = vshll.u32 %v426, 16
      %v432 = vrot.slane %v430, 1
      %v433 = vor.u32 %v428, %v432
      %v435 = vunpack.c.l.b16 %v421
      %v436 = vpack.c.b16 %v435, %v435
      %v438 = vshrl.u32 %v436, 16
      %v440 = vrot.slane %v438, 6
      %v441 = vshll.u32 %v436, 16
      %v443 = vrot.slane %v441, 7
      %v444 = vor.u32 %v440, %v443
      %v446 = vunpack.c.l.b16 %v422
      %v447 = vpack.c.b16 %v446, %v446
      %v449 = vshrl.u32 %v447, 16
      %v451 = vrot.slane %v449, 4
      %v452 = vshll.u32 %v447, 16
      %v454 = vrot.slane %v452, 5
      %v455 = vor.u32 %v451, %v454
      %v457 = vunpack.c.l.b16 %v423
      %v458 = vpack.c.b16 %v457, %v457
      %v460 = vshrl.u32 %v458, 16
      %v462 = vrot.slane %v460, 2
      %v463 = vshll.u32 %v458, 16
      %v465 = vrot.slane %v463, 3
      %v466 = vor.u32 %v462, %v465
      %v469 = vsel %vm402, %v433, %v444
      %v471 = vsel %vm406, %v469, %v455
      %v473 = vsel %vm409, %v471, %v466
      %s474 = scalar_lea.vmem %s1, 64
      %v475 = vld [vmem:[%s474] sm:$0xff]
      %v476 = vld [vmem:[%s474 + $0x8] sm:$0xff]
      %v477 = vld [vmem:[%s474 + $0x10] sm:$0xff]
      %v478 = vld [vmem:[%s474 + $0x18] sm:$0xff]
      %v479 = vld [vmem:[%s474 + $0x20] sm:$0xff]
      %v480 = vld [vmem:[%s474 + $0x28] sm:$0xff]
      %v481 = vld [vmem:[%s474 + $0x30] sm:$0xff]
      %v482 = vld [vmem:[%s474 + $0x38] sm:$0x33]
      %v491 = vunpack.c.l.b16 %v475
      %v492 = vunpack.c.h.b16 %v475
      %v493 = vunpack.c.l.b16 %v476
      %v494 = vunpack.c.h.b16 %v476
      %v495 = vunpack.c.l.b16 %v477
      %v496 = vunpack.c.h.b16 %v477
      %v497 = vunpack.c.l.b16 %v478
      %v498 = vunpack.c.h.b16 %v478
      %v499 = vunpack.c.l.b16 %v479
      %v500 = vunpack.c.h.b16 %v479
      %v501 = vunpack.c.l.b16 %v480
      %v502 = vunpack.c.h.b16 %v480
      %v503 = vunpack.c.l.b16 %v481
      %v504 = vunpack.c.h.b16 %v481
      %v505 = vunpack.c.l.b16 %v482
      %v506 = vunpack.c.h.b16 %v482
      %v507 = vpack.c.b16 %v493, %v491
      %v508 = vpack.c.b16 %v494, %v492
      %v509 = vpack.c.b16 %v497, %v495
      %v510 = vpack.c.b16 %v498, %v496
      %v511 = vpack.c.b16 %v501, %v499
      %v512 = vpack.c.b16 %v502, %v500
      %v513 = vpack.c.b16 %v505, %v503
      %v514 = vpack.c.b16 %v506, %v504
      %vm521 = vcmask 490496
      %v522 = vsel %vm521, %v473, 0
      %v525 = vsel %vm409, %v513, 0
      %v528 = vsel %vm409, %v514, 0
      %530 = vmatprep.subr.bf16.mxu0 0
      %531 = vmatpush1.bf16.msra.mxu0 0
      %532 = vmatprep.subr.bf16.mxu0 0
      %533 = vmatpush1.bf16.msra.mxu0 0
      %534 = vmatprep.subr.bf16.mxu0 0
      %535 = vmatpush1.bf16.msra.mxu0 0
      %536 = vmatprep.subr.bf16.mxu0 0
      %537 = vmatpush1.bf16.msra.mxu0 0
      %538 = vmatprep.subr.bf16.mxu0 %v528
      %539 = vmatpush1.bf16.msra.mxu0 %v525
      %540 = vmatprep.subr.bf16.mxu0 %v512
      %541 = vmatpush1.bf16.msra.mxu0 %v511
      %542 = vmatprep.subr.bf16.mxu0 %v510
      %543 = vmatpush1.bf16.msra.mxu0 %v509
      %544 = vmatprep.subr.bf16.mxu0 %v508
      %545 = vmatpush1.bf16.msra.mxu0 %v507
      %546 = vmatprep.subr.bf16.mxu0 0
      %547 = vmatpush2.bf16.msra.mxu0 0
      %548 = vmatprep.subr.bf16.mxu0 0
      %549 = vmatpush2.bf16.msra.mxu0 0
      %550 = vmatprep.subr.bf16.mxu0 0
      %551 = vmatpush2.bf16.msra.mxu0 0
      %552 = vmatprep.subr.bf16.mxu0 0
      %553 = vmatpush2.bf16.msra.mxu0 0
      %554 = vmatprep.subr.bf16.mxu0 0
      %555 = vmatpush2.bf16.msra.mxu0 0
      %556 = vmatprep.subr.bf16.mxu0 0
      %557 = vmatpush2.bf16.msra.mxu0 0
      %558 = vmatprep.subr.bf16.mxu0 0
      %559 = vmatpush2.bf16.msra.mxu0 0
      %560 = vmatprep.subr.bf16.mxu0 0
      %561 = vmatpush2.bf16.msra.mxu0 0
      %562 = vmatprep.mubr.bf16.mxu0 0
      %563 = vmatmul.mubr.bf16.gmra.mxu0 %v522
      %v564 = vpop.f32.mrf.mxu0
      %v565 = vadd.f32 0.0, %v564
      %v566 = vpop.f32.mrf.mxu0
      %v567 = vadd.f32 0.0, %v566
      %v568 = vpop.f32.mrf.mxu0
      %v569 = vadd.f32 0.0, %v568
      %v570 = vpop.f32.mrf.mxu0
      %v571 = vadd.f32 0.0, %v570
      %572 = vdwg.mxu0
      %v581 = vunpack.c.l.b16 %v412
      %v582 = vunpack.c.h.b16 %v412
      %v583 = vunpack.c.l.b16 %v413
      %v584 = vunpack.c.h.b16 %v413
      %v585 = vunpack.c.l.b16 %v414
      %v586 = vunpack.c.h.b16 %v414
      %v587 = vunpack.c.l.b16 %v415
      %v588 = vunpack.c.h.b16 %v415
      %v589 = vunpack.c.l.b16 %v416
      %v590 = vunpack.c.h.b16 %v416
      %v591 = vunpack.c.l.b16 %v417
      %v592 = vunpack.c.h.b16 %v417
      %v593 = vunpack.c.l.b16 %v418
      %v594 = vunpack.c.h.b16 %v418
      %v595 = vunpack.c.l.b16 %v419
      %v596 = vunpack.c.h.b16 %v419
      %v597 = vpack.c.b16 %v583, %v581
      %v598 = vpack.c.b16 %v584, %v582
      %v599 = vpack.c.b16 %v587, %v585
      %v600 = vpack.c.b16 %v588, %v586
      %v601 = vpack.c.b16 %v591, %v589
      %v602 = vpack.c.b16 %v592, %v590
      %v603 = vpack.c.b16 %v595, %v593
      %v604 = vpack.c.b16 %v596, %v594
      %v611 = vsel %vm521, %v411, 0
      %v614 = vsel %vm409, %v603, 0
      %v617 = vsel %vm409, %v604, 0
      %619 = vmatprep.subr.bf16.mxu0 0
      %620 = vmatpush1.bf16.msra.mxu0 0
      %621 = vmatprep.subr.bf16.mxu0 0
      %622 = vmatpush1.bf16.msra.mxu0 0
      %623 = vmatprep.subr.bf16.mxu0 0
      %624 = vmatpush1.bf16.msra.mxu0 0
      %625 = vmatprep.subr.bf16.mxu0 0
      %626 = vmatpush1.bf16.msra.mxu0 0
      %627 = vmatprep.subr.bf16.mxu0 %v617
      %628 = vmatpush1.bf16.msra.mxu0 %v614
      %629 = vmatprep.subr.bf16.mxu0 %v602
      %630 = vmatpush1.bf16.msra.mxu0 %v601
      %631 = vmatprep.subr.bf16.mxu0 %v600
      %632 = vmatpush1.bf16.msra.mxu0 %v599
      %633 = vmatprep.subr.bf16.mxu0 %v598
      %634 = vmatpush1.bf16.msra.mxu0 %v597
      %635 = vmatprep.subr.bf16.mxu0 0
      %636 = vmatpush2.bf16.msra.mxu0 0
      %637 = vmatprep.subr.bf16.mxu0 0
      %638 = vmatpush2.bf16.msra.mxu0 0
      %639 = vmatprep.subr.bf16.mxu0 0
      %640 = vmatpush2.bf16.msra.mxu0 0
      %641 = vmatprep.subr.bf16.mxu0 0
      %642 = vmatpush2.bf16.msra.mxu0 0
      %643 = vmatprep.subr.bf16.mxu0 0
      %644 = vmatpush2.bf16.msra.mxu0 0
      %645 = vmatprep.subr.bf16.mxu0 0
      %646 = vmatpush2.bf16.msra.mxu0 0
      %647 = vmatprep.subr.bf16.mxu0 0
      %648 = vmatpush2.bf16.msra.mxu0 0
      %649 = vmatprep.subr.bf16.mxu0 0
      %650 = vmatpush2.bf16.msra.mxu0 0
      %651 = vmatprep.mubr.bf16.mxu0 0
      %652 = vmatmul.mubr.bf16.gmra.mxu0 %v611
      %v653 = vpop.f32.mrf.mxu0
      %v654 = vadd.f32 %v565, %v653
      %v655 = vpop.f32.mrf.mxu0
      %v656 = vadd.f32 %v567, %v655
      %v657 = vpop.f32.mrf.mxu0
      %v658 = vadd.f32 %v569, %v657
      %v659 = vpop.f32.mrf.mxu0
      %v660 = vadd.f32 %v571, %v659
      %661 = vdwg.mxu0
      %v662 = vld [vmem:[%s379] sm:$0x6]
      %v663 = vld [vmem:[%s385] sm:$0x6]
      %v664 = vld [vmem:[%s387] sm:$0x6]
      %v665 = vld [vmem:[%s389] sm:$0x6]
      %v667 = vunpack.c.l.b16 %v662
      %v668 = vpack.c.b16 %v667, %v667
      %v669 = vrot.slane %v668, 1
      %v671 = vunpack.c.l.b16 %v663
      %v672 = vpack.c.b16 %v671, %v671
      %v673 = vrot.slane %v672, 7
      %v675 = vunpack.c.l.b16 %v664
      %v676 = vpack.c.b16 %v675, %v675
      %v677 = vrot.slane %v676, 5
      %v679 = vunpack.c.l.b16 %v665
      %v680 = vpack.c.b16 %v679, %v679
      %v681 = vrot.slane %v680, 3
      %v684 = vsel %vm402, %v669, %v673
      %v686 = vsel %vm406, %v684, %v677
      %v688 = vsel %vm409, %v686, %v681
      %s689 = scalar_lea.vmem %s1, 128
      %v690 = vld [vmem:[%s689] sm:$0xff]
      %v691 = vld [vmem:[%s689 + $0x8] sm:$0xff]
      %v692 = vld [vmem:[%s689 + $0x10] sm:$0xff]
      %v693 = vld [vmem:[%s689 + $0x18] sm:$0xff]
      %v694 = vld [vmem:[%s689 + $0x20] sm:$0xff]
      %v695 = vld [vmem:[%s689 + $0x28] sm:$0xff]
      %v696 = vld [vmem:[%s689 + $0x30] sm:$0xff]
      %v697 = vld [vmem:[%s689 + $0x38] sm:$0x33]
      %v706 = vunpack.c.l.b16 %v690
      %v707 = vunpack.c.h.b16 %v690
      %v708 = vunpack.c.l.b16 %v691
      %v709 = vunpack.c.h.b16 %v691
      %v710 = vunpack.c.l.b16 %v692
      %v711 = vunpack.c.h.b16 %v692
      %v712 = vunpack.c.l.b16 %v693
      %v713 = vunpack.c.h.b16 %v693
      %v714 = vunpack.c.l.b16 %v694
      %v715 = vunpack.c.h.b16 %v694
      %v716 = vunpack.c.l.b16 %v695
      %v717 = vunpack.c.h.b16 %v695
      %v718 = vunpack.c.l.b16 %v696
      %v719 = vunpack.c.h.b16 %v696
      %v720 = vunpack.c.l.b16 %v697
      %v721 = vunpack.c.h.b16 %v697
      %v722 = vpack.c.b16 %v708, %v706
      %v723 = vpack.c.b16 %v709, %v707
      %v724 = vpack.c.b16 %v712, %v710
      %v725 = vpack.c.b16 %v713, %v711
      %v726 = vpack.c.b16 %v716, %v714
      %v727 = vpack.c.b16 %v717, %v715
      %v728 = vpack.c.b16 %v720, %v718
      %v729 = vpack.c.b16 %v721, %v719
      %v736 = vsel %vm521, %v688, 0
      %v739 = vsel %vm409, %v728, 0
      %v742 = vsel %vm409, %v729, 0
      %744 = vmatprep.subr.bf16.mxu0 0
      %745 = vmatpush1.bf16.msra.mxu0 0
      %746 = vmatprep.subr.bf16.mxu0 0
      %747 = vmatpush1.bf16.msra.mxu0 0
      %748 = vmatprep.subr.bf16.mxu0 0
      %749 = vmatpush1.bf16.msra.mxu0 0
      %750 = vmatprep.subr.bf16.mxu0 0
      %751 = vmatpush1.bf16.msra.mxu0 0
      %752 = vmatprep.subr.bf16.mxu0 %v742
      %753 = vmatpush1.bf16.msra.mxu0 %v739
      %754 = vmatprep.subr.bf16.mxu0 %v727
      %755 = vmatpush1.bf16.msra.mxu0 %v726
      %756 = vmatprep.subr.bf16.mxu0 %v725
      %757 = vmatpush1.bf16.msra.mxu0 %v724
      %758 = vmatprep.subr.bf16.mxu0 %v723
      %759 = vmatpush1.bf16.msra.mxu0 %v722
      %760 = vmatprep.subr.bf16.mxu0 0
      %761 = vmatpush2.bf16.msra.mxu0 0
      %762 = vmatprep.subr.bf16.mxu0 0
      %763 = vmatpush2.bf16.msra.mxu0 0
      %764 = vmatprep.subr.bf16.mxu0 0
      %765 = vmatpush2.bf16.msra.mxu0 0
      %766 = vmatprep.subr.bf16.mxu0 0
      %767 = vmatpush2.bf16.msra.mxu0 0
      %768 = vmatprep.subr.bf16.mxu0 0
      %769 = vmatpush2.bf16.msra.mxu0 0
      %770 = vmatprep.subr.bf16.mxu0 0
      %771 = vmatpush2.bf16.msra.mxu0 0
      %772 = vmatprep.subr.bf16.mxu0 0
      %773 = vmatpush2.bf16.msra.mxu0 0
      %774 = vmatprep.subr.bf16.mxu0 0
      %775 = vmatpush2.bf16.msra.mxu0 0
      %776 = vmatprep.mubr.bf16.mxu0 0
      %777 = vmatmul.mubr.bf16.gmra.mxu0 %v736
      %v778 = vpop.f32.mrf.mxu0
      %v779 = vadd.f32 0.0, %v778
      %v780 = vpop.f32.mrf.mxu0
      %v781 = vadd.f32 0.0, %v780
      %v782 = vpop.f32.mrf.mxu0
      %v783 = vadd.f32 0.0, %v782
      %v784 = vpop.f32.mrf.mxu0
      %v785 = vadd.f32 0.0, %v784
      %786 = vdwg.mxu0
      %v787 = vadd.f32 %v654, %v779
      %v788 = vadd.f32 %v656, %v781
      %v789 = vadd.f32 %v658, %v783
      %v790 = vadd.f32 %v660, %v785
      %s791 = scalar_lea.vmem %s379, 16
      %v792 = vld [vmem:[%s791] sm:$0x3]
      %v793 = vrot.slane %v397, 6
      %v795 = vunpack.c.l.b16 %v792
      %v796 = vpack.c.b16 %v795, %v795
      %v797 = vrot.slane %v796, 2
      %v800 = vsel %vm402, %v386, %v793
      %v802 = vsel %vm406, %v800, %v400
      %v804 = vsel %vm409, %v802, %v797
      %s805 = scalar_lea.vmem %s1, 192
      %v806 = vld [vmem:[%s805] sm:$0xff]
      %v807 = vld [vmem:[%s805 + $0x8] sm:$0xff]
      %v808 = vld [vmem:[%s805 + $0x10] sm:$0xff]
      %v809 = vld [vmem:[%s805 + $0x18] sm:$0xff]
      %v810 = vld [vmem:[%s805 + $0x20] sm:$0xff]
      %v811 = vld [vmem:[%s805 + $0x28] sm:$0xff]
      %v812 = vld [vmem:[%s805 + $0x30] sm:$0xff]
      %v813 = vld [vmem:[%s805 + $0x38] sm:$0x33]
      %v822 = vunpack.c.l.b16 %v806
      %v823 = vunpack.c.h.b16 %v806
      %v824 = vunpack.c.l.b16 %v807
      %v825 = vunpack.c.h.b16 %v807
      %v826 = vunpack.c.l.b16 %v808
      %v827 = vunpack.c.h.b16 %v808
      %v828 = vunpack.c.l.b16 %v809
      %v829 = vunpack.c.h.b16 %v809
      %v830 = vunpack.c.l.b16 %v810
      %v831 = vunpack.c.h.b16 %v810
      %v832 = vunpack.c.l.b16 %v811
      %v833 = vunpack.c.h.b16 %v811
      %v834 = vunpack.c.l.b16 %v812
      %v835 = vunpack.c.h.b16 %v812
      %v836 = vunpack.c.l.b16 %v813
      %v837 = vunpack.c.h.b16 %v813
      %v838 = vpack.c.b16 %v824, %v822
      %v839 = vpack.c.b16 %v825, %v823
      %v840 = vpack.c.b16 %v828, %v826
      %v841 = vpack.c.b16 %v829, %v827
      %v842 = vpack.c.b16 %v832, %v830
      %v843 = vpack.c.b16 %v833, %v831
      %v844 = vpack.c.b16 %v836, %v834
      %v845 = vpack.c.b16 %v837, %v835
      %v852 = vsel %vm521, %v804, 0
      %v855 = vsel %vm409, %v844, 0
      %v858 = vsel %vm409, %v845, 0
      %860 = vmatprep.subr.bf16.mxu0 0
      %861 = vmatpush1.bf16.msra.mxu0 0
      %862 = vmatprep.subr.bf16.mxu0 0
      %863 = vmatpush1.bf16.msra.mxu0 0
      %864 = vmatprep.subr.bf16.mxu0 0
      %865 = vmatpush1.bf16.msra.mxu0 0
      %866 = vmatprep.subr.bf16.mxu0 0
      %867 = vmatpush1.bf16.msra.mxu0 0
      %868 = vmatprep.subr.bf16.mxu0 %v858
      %869 = vmatpush1.bf16.msra.mxu0 %v855
      %870 = vmatprep.subr.bf16.mxu0 %v843
      %871 = vmatpush1.bf16.msra.mxu0 %v842
      %872 = vmatprep.subr.bf16.mxu0 %v841
      %873 = vmatpush1.bf16.msra.mxu0 %v840
      %874 = vmatprep.subr.bf16.mxu0 %v839
      %875 = vmatpush1.bf16.msra.mxu0 %v838
      %876 = vmatprep.subr.bf16.mxu0 0
      %877 = vmatpush2.bf16.msra.mxu0 0
      %878 = vmatprep.subr.bf16.mxu0 0
      %879 = vmatpush2.bf16.msra.mxu0 0
      %880 = vmatprep.subr.bf16.mxu0 0
      %881 = vmatpush2.bf16.msra.mxu0 0
      %882 = vmatprep.subr.bf16.mxu0 0
      %883 = vmatpush2.bf16.msra.mxu0 0
      %884 = vmatprep.subr.bf16.mxu0 0
      %885 = vmatpush2.bf16.msra.mxu0 0
      %886 = vmatprep.subr.bf16.mxu0 0
      %887 = vmatpush2.bf16.msra.mxu0 0
      %888 = vmatprep.subr.bf16.mxu0 0
      %889 = vmatpush2.bf16.msra.mxu0 0
      %890 = vmatprep.subr.bf16.mxu0 0
      %891 = vmatpush2.bf16.msra.mxu0 0
      %892 = vmatprep.mubr.bf16.mxu0 0
      %893 = vmatmul.mubr.bf16.gmra.mxu0 %v852
      %v894 = vpop.f32.mrf.mxu0
      %v895 = vadd.f32 0.0, %v894
      %v896 = vpop.f32.mrf.mxu0
      %v897 = vadd.f32 0.0, %v896
      %v898 = vpop.f32.mrf.mxu0
      %v899 = vadd.f32 0.0, %v898
      %v900 = vpop.f32.mrf.mxu0
      %v901 = vadd.f32 0.0, %v900
      %902 = vdwg.mxu0
      %v903 = vadd.f32 %v787, %v895
      %v904 = vadd.f32 %v788, %v897
      %v905 = vadd.f32 %v789, %v899
      %v906 = vadd.f32 %v790, %v901
      %v907 = vld [vmem:[%s791] sm:$0x7]
      %v908 = vrot.slane %v441, 1
      %v909 = vor.u32 %v438, %v908
      %v910 = vrot.slane %v449, 6
      %v911 = vrot.slane %v452, 7
      %v912 = vor.u32 %v910, %v911
      %v913 = vrot.slane %v460, 4
      %v914 = vrot.slane %v463, 5
      %v915 = vor.u32 %v913, %v914
      %v917 = vunpack.c.l.b16 %v907
      %v918 = vpack.c.b16 %v917, %v917
      %v920 = vshrl.u32 %v918, 16
      %v922 = vrot.slane %v920, 2
      %v923 = vshll.u32 %v918, 16
      %v925 = vrot.slane %v923, 3
      %v926 = vor.u32 %v922, %v925
      %v929 = vsel %vm402, %v909, %v912
      %v931 = vsel %vm406, %v929, %v915
      %v933 = vsel %vm409, %v931, %v926
      %s934 = scalar_lea.vmem %s1, 256
      %v935 = vld [vmem:[%s934] sm:$0xff]
      %v936 = vld [vmem:[%s934 + $0x8] sm:$0xff]
      %v937 = vld [vmem:[%s934 + $0x10] sm:$0xff]
      %v938 = vld [vmem:[%s934 + $0x18] sm:$0xff]
      %v939 = vld [vmem:[%s934 + $0x20] sm:$0xff]
      %v940 = vld [vmem:[%s934 + $0x28] sm:$0xff]
      %v941 = vld [vmem:[%s934 + $0x30] sm:$0xff]
      %v942 = vld [vmem:[%s934 + $0x38] sm:$0x33]
      %v951 = vunpack.c.l.b16 %v935
      %v952 = vunpack.c.h.b16 %v935
      %v953 = vunpack.c.l.b16 %v936
      %v954 = vunpack.c.h.b16 %v936
      %v955 = vunpack.c.l.b16 %v937
      %v956 = vunpack.c.h.b16 %v937
      %v957 = vunpack.c.l.b16 %v938
      %v958 = vunpack.c.h.b16 %v938
      %v959 = vunpack.c.l.b16 %v939
      %v960 = vunpack.c.h.b16 %v939
      %v961 = vunpack.c.l.b16 %v940
      %v962 = vunpack.c.h.b16 %v940
      %v963 = vunpack.c.l.b16 %v941
      %v964 = vunpack.c.h.b16 %v941
      %v965 = vunpack.c.l.b16 %v942
      %v966 = vunpack.c.h.b16 %v942
      %v967 = vpack.c.b16 %v953, %v951
      %v968 = vpack.c.b16 %v954, %v952
      %v969 = vpack.c.b16 %v957, %v955
      %v970 = vpack.c.b16 %v958, %v956
      %v971 = vpack.c.b16 %v961, %v959
      %v972 = vpack.c.b16 %v962, %v960
      %v973 = vpack.c.b16 %v965, %v963
      %v974 = vpack.c.b16 %v966, %v964
      %v981 = vsel %vm521, %v933, 0
      %v984 = vsel %vm409, %v973, 0
      %v987 = vsel %vm409, %v974, 0
      %989 = vmatprep.subr.bf16.mxu0 0
      %990 = vmatpush1.bf16.msra.mxu0 0
      %991 = vmatprep.subr.bf16.mxu0 0
      %992 = vmatpush1.bf16.msra.mxu0 0
      %993 = vmatprep.subr.bf16.mxu0 0
      %994 = vmatpush1.bf16.msra.mxu0 0
      %995 = vmatprep.subr.bf16.mxu0 0
      %996 = vmatpush1.bf16.msra.mxu0 0
      %997 = vmatprep.subr.bf16.mxu0 %v987
      %998 = vmatpush1.bf16.msra.mxu0 %v984
      %999 = vmatprep.subr.bf16.mxu0 %v972
      %1000 = vmatpush1.bf16.msra.mxu0 %v971
      %1001 = vmatprep.subr.bf16.mxu0 %v970
      %1002 = vmatpush1.bf16.msra.mxu0 %v969
      %1003 = vmatprep.subr.bf16.mxu0 %v968
      %1004 = vmatpush1.bf16.msra.mxu0 %v967
      %1005 = vmatprep.subr.bf16.mxu0 0
      %1006 = vmatpush2.bf16.msra.mxu0 0
      %1007 = vmatprep.subr.bf16.mxu0 0
      %1008 = vmatpush2.bf16.msra.mxu0 0
      %1009 = vmatprep.subr.bf16.mxu0 0
      %1010 = vmatpush2.bf16.msra.mxu0 0
      %1011 = vmatprep.subr.bf16.mxu0 0
      %1012 = vmatpush2.bf16.msra.mxu0 0
      %1013 = vmatprep.subr.bf16.mxu0 0
      %1014 = vmatpush2.bf16.msra.mxu0 0
      %1015 = vmatprep.subr.bf16.mxu0 0
      %1016 = vmatpush2.bf16.msra.mxu0 0
      %1017 = vmatprep.subr.bf16.mxu0 0
      %1018 = vmatpush2.bf16.msra.mxu0 0
      %1019 = vmatprep.subr.bf16.mxu0 0
      %1020 = vmatpush2.bf16.msra.mxu0 0
      %1021 = vmatprep.mubr.bf16.mxu0 0
      %1022 = vmatmul.mubr.bf16.gmra.mxu0 %v981
      %v1023 = vpop.f32.mrf.mxu0
      %v1024 = vadd.f32 0.0, %v1023
      %v1025 = vpop.f32.mrf.mxu0
      %v1026 = vadd.f32 0.0, %v1025
      %v1027 = vpop.f32.mrf.mxu0
      %v1028 = vadd.f32 0.0, %v1027
      %v1029 = vpop.f32.mrf.mxu0
      %v1030 = vadd.f32 0.0, %v1029
      %1031 = vdwg.mxu0
      %v1032 = vadd.f32 %v903, %v1024
      %v1033 = vadd.f32 %v904, %v1026
      %v1034 = vadd.f32 %v905, %v1028
      %v1035 = vadd.f32 %v906, %v1030
      %v1036 = vld [vmem:[%s791] sm:$0x6]
      %v1037 = vrot.slane %v672, 1
      %v1038 = vrot.slane %v676, 7
      %v1039 = vrot.slane %v680, 5
      %v1041 = vunpack.c.l.b16 %v1036
      %v1042 = vpack.c.b16 %v1041, %v1041
      %v1043 = vrot.slane %v1042, 3
      %v1046 = vsel %vm402, %v1037, %v1038
      %v1048 = vsel %vm406, %v1046, %v1039
      %v1050 = vsel %vm409, %v1048, %v1043
      %s1051 = scalar_lea.vmem %s1, 320
      %v1052 = vld [vmem:[%s1051] sm:$0xff]
      %v1053 = vld [vmem:[%s1051 + $0x8] sm:$0xff]
      %v1054 = vld [vmem:[%s1051 + $0x10] sm:$0xff]
      %v1055 = vld [vmem:[%s1051 + $0x18] sm:$0xff]
      %v1056 = vld [vmem:[%s1051 + $0x20] sm:$0xff]
      %v1057 = vld [vmem:[%s1051 + $0x28] sm:$0xff]
      %v1058 = vld [vmem:[%s1051 + $0x30] sm:$0xff]
      %v1059 = vld [vmem:[%s1051 + $0x38] sm:$0x33]
      %v1068 = vunpack.c.l.b16 %v1052
      %v1069 = vunpack.c.h.b16 %v1052
      %v1070 = vunpack.c.l.b16 %v1053
      %v1071 = vunpack.c.h.b16 %v1053
      %v1072 = vunpack.c.l.b16 %v1054
      %v1073 = vunpack.c.h.b16 %v1054
      %v1074 = vunpack.c.l.b16 %v1055
      %v1075 = vunpack.c.h.b16 %v1055
      %v1076 = vunpack.c.l.b16 %v1056
      %v1077 = vunpack.c.h.b16 %v1056
      %v1078 = vunpack.c.l.b16 %v1057
      %v1079 = vunpack.c.h.b16 %v1057
      %v1080 = vunpack.c.l.b16 %v1058
      %v1081 = vunpack.c.h.b16 %v1058
      %v1082 = vunpack.c.l.b16 %v1059
      %v1083 = vunpack.c.h.b16 %v1059
      %v1084 = vpack.c.b16 %v1070, %v1068
      %v1085 = vpack.c.b16 %v1071, %v1069
      %v1086 = vpack.c.b16 %v1074, %v1072
      %v1087 = vpack.c.b16 %v1075, %v1073
      %v1088 = vpack.c.b16 %v1078, %v1076
      %v1089 = vpack.c.b16 %v1079, %v1077
      %v1090 = vpack.c.b16 %v1082, %v1080
      %v1091 = vpack.c.b16 %v1083, %v1081
      %v1098 = vsel %vm521, %v1050, 0
      %v1101 = vsel %vm409, %v1090, 0
      %v1104 = vsel %vm409, %v1091, 0
      %1106 = vmatprep.subr.bf16.mxu0 0
      %1107 = vmatpush1.bf16.msra.mxu0 0
      %1108 = vmatprep.subr.bf16.mxu0 0
      %1109 = vmatpush1.bf16.msra.mxu0 0
      %1110 = vmatprep.subr.bf16.mxu0 0
      %1111 = vmatpush1.bf16.msra.mxu0 0
      %1112 = vmatprep.subr.bf16.mxu0 0
      %1113 = vmatpush1.bf16.msra.mxu0 0
      %1114 = vmatprep.subr.bf16.mxu0 %v1104
      %1115 = vmatpush1.bf16.msra.mxu0 %v1101
      %1116 = vmatprep.subr.bf16.mxu0 %v1089
      %1117 = vmatpush1.bf16.msra.mxu0 %v1088
      %1118 = vmatprep.subr.bf16.mxu0 %v1087
      %1119 = vmatpush1.bf16.msra.mxu0 %v1086
      %1120 = vmatprep.subr.bf16.mxu0 %v1085
      %1121 = vmatpush1.bf16.msra.mxu0 %v1084
      %1122 = vmatprep.subr.bf16.mxu0 0
      %1123 = vmatpush2.bf16.msra.mxu0 0
      %1124 = vmatprep.subr.bf16.mxu0 0
      %1125 = vmatpush2.bf16.msra.mxu0 0
      %1126 = vmatprep.subr.bf16.mxu0 0
      %1127 = vmatpush2.bf16.msra.mxu0 0
      %1128 = vmatprep.subr.bf16.mxu0 0
      %1129 = vmatpush2.bf16.msra.mxu0 0
      %1130 = vmatprep.subr.bf16.mxu0 0
      %1131 = vmatpush2.bf16.msra.mxu0 0
      %1132 = vmatprep.subr.bf16.mxu0 0
      %1133 = vmatpush2.bf16.msra.mxu0 0
      %1134 = vmatprep.subr.bf16.mxu0 0
      %1135 = vmatpush2.bf16.msra.mxu0 0
      %1136 = vmatprep.subr.bf16.mxu0 0
      %1137 = vmatpush2.bf16.msra.mxu0 0
      %1138 = vmatprep.mubr.bf16.mxu0 0
      %1139 = vmatmul.mubr.bf16.gmra.mxu0 %v1098
      %v1140 = vpop.f32.mrf.mxu0
      %v1141 = vadd.f32 0.0, %v1140
      %v1142 = vpop.f32.mrf.mxu0
      %v1143 = vadd.f32 0.0, %v1142
      %v1144 = vpop.f32.mrf.mxu0
      %v1145 = vadd.f32 0.0, %v1144
      %v1146 = vpop.f32.mrf.mxu0
      %v1147 = vadd.f32 0.0, %v1146
      %1148 = vdwg.mxu0
      %v1149 = vadd.f32 %v1032, %v1141
      %v1150 = vadd.f32 %v1033, %v1143
      %v1151 = vadd.f32 %v1034, %v1145
      %v1152 = vadd.f32 %v1035, %v1147
      %s1153 = scalar_lea.vmem %s379, 20
      %v1154 = vld [vmem:[%s1153] sm:$0x3]
      %v1155 = vrot.slane %v400, 6
      %v1157 = vunpack.c.l.b16 %v1154
      %v1158 = vpack.c.b16 %v1157, %v1157
      %v1159 = vrot.slane %v1158, 2
      %v1162 = vsel %vm402, %v388, %v1155
      %v1164 = vsel %vm406, %v1162, %v796
      %v1166 = vsel %vm409, %v1164, %v1159
      %s1167 = scalar_lea.vmem %s1, 384
      %v1168 = vld [vmem:[%s1167] sm:$0xff]
      %v1169 = vld [vmem:[%s1167 + $0x8] sm:$0xff]
      %v1170 = vld [vmem:[%s1167 + $0x10] sm:$0xff]
      %v1171 = vld [vmem:[%s1167 + $0x18] sm:$0xff]
      %v1172 = vld [vmem:[%s1167 + $0x20] sm:$0xff]
      %v1173 = vld [vmem:[%s1167 + $0x28] sm:$0xff]
      %v1174 = vld [vmem:[%s1167 + $0x30] sm:$0xff]
      %v1175 = vld [vmem:[%s1167 + $0x38] sm:$0x33]
      %v1184 = vunpack.c.l.b16 %v1168
      %v1185 = vunpack.c.h.b16 %v1168
      %v1186 = vunpack.c.l.b16 %v1169
      %v1187 = vunpack.c.h.b16 %v1169
      %v1188 = vunpack.c.l.b16 %v1170
      %v1189 = vunpack.c.h.b16 %v1170
      %v1190 = vunpack.c.l.b16 %v1171
      %v1191 = vunpack.c.h.b16 %v1171
      %v1192 = vunpack.c.l.b16 %v1172
      %v1193 = vunpack.c.h.b16 %v1172
      %v1194 = vunpack.c.l.b16 %v1173
      %v1195 = vunpack.c.h.b16 %v1173
      %v1196 = vunpack.c.l.b16 %v1174
      %v1197 = vunpack.c.h.b16 %v1174
      %v1198 = vunpack.c.l.b16 %v1175
      %v1199 = vunpack.c.h.b16 %v1175
      %v1200 = vpack.c.b16 %v1186, %v1184
      %v1201 = vpack.c.b16 %v1187, %v1185
      %v1202 = vpack.c.b16 %v1190, %v1188
      %v1203 = vpack.c.b16 %v1191, %v1189
      %v1204 = vpack.c.b16 %v1194, %v1192
      %v1205 = vpack.c.b16 %v1195, %v1193
      %v1206 = vpack.c.b16 %v1198, %v1196
      %v1207 = vpack.c.b16 %v1199, %v1197
      %v1214 = vsel %vm521, %v1166, 0
      %v1217 = vsel %vm409, %v1206, 0
      %v1220 = vsel %vm409, %v1207, 0
      %1222 = vmatprep.subr.bf16.mxu0 0
      %1223 = vmatpush1.bf16.msra.mxu0 0
      %1224 = vmatprep.subr.bf16.mxu0 0
      %1225 = vmatpush1.bf16.msra.mxu0 0
      %1226 = vmatprep.subr.bf16.mxu0 0
      %1227 = vmatpush1.bf16.msra.mxu0 0
      %1228 = vmatprep.subr.bf16.mxu0 0
      %1229 = vmatpush1.bf16.msra.mxu0 0
      %1230 = vmatprep.subr.bf16.mxu0 %v1220
      %1231 = vmatpush1.bf16.msra.mxu0 %v1217
      %1232 = vmatprep.subr.bf16.mxu0 %v1205
      %1233 = vmatpush1.bf16.msra.mxu0 %v1204
      %1234 = vmatprep.subr.bf16.mxu0 %v1203
      %1235 = vmatpush1.bf16.msra.mxu0 %v1202
      %1236 = vmatprep.subr.bf16.mxu0 %v1201
      %1237 = vmatpush1.bf16.msra.mxu0 %v1200
      %1238 = vmatprep.subr.bf16.mxu0 0
      %1239 = vmatpush2.bf16.msra.mxu0 0
      %1240 = vmatprep.subr.bf16.mxu0 0
      %1241 = vmatpush2.bf16.msra.mxu0 0
      %1242 = vmatprep.subr.bf16.mxu0 0
      %1243 = vmatpush2.bf16.msra.mxu0 0
      %1244 = vmatprep.subr.bf16.mxu0 0
      %1245 = vmatpush2.bf16.msra.mxu0 0
      %1246 = vmatprep.subr.bf16.mxu0 0
      %1247 = vmatpush2.bf16.msra.mxu0 0
      %1248 = vmatprep.subr.bf16.mxu0 0
      %1249 = vmatpush2.bf16.msra.mxu0 0
      %1250 = vmatprep.subr.bf16.mxu0 0
      %1251 = vmatpush2.bf16.msra.mxu0 0
      %1252 = vmatprep.subr.bf16.mxu0 0
      %1253 = vmatpush2.bf16.msra.mxu0 0
      %1254 = vmatprep.mubr.bf16.mxu0 0
      %1255 = vmatmul.mubr.bf16.gmra.mxu0 %v1214
      %v1256 = vpop.f32.mrf.mxu0
      %v1257 = vadd.f32 0.0, %v1256
      %v1258 = vpop.f32.mrf.mxu0
      %v1259 = vadd.f32 0.0, %v1258
      %v1260 = vpop.f32.mrf.mxu0
      %v1261 = vadd.f32 0.0, %v1260
      %v1262 = vpop.f32.mrf.mxu0
      %v1263 = vadd.f32 0.0, %v1262
      %1264 = vdwg.mxu0
      %v1265 = vadd.f32 %v1149, %v1257
      %v1266 = vadd.f32 %v1150, %v1259
      %v1267 = vadd.f32 %v1151, %v1261
      %v1268 = vadd.f32 %v1152, %v1263
      %v1269 = vld [vmem:[%s1153] sm:$0x7]
      %v1270 = vrot.slane %v452, 1
      %v1271 = vor.u32 %v449, %v1270
      %v1272 = vrot.slane %v460, 6
      %v1273 = vrot.slane %v463, 7
      %v1274 = vor.u32 %v1272, %v1273
      %v1275 = vrot.slane %v920, 4
      %v1276 = vrot.slane %v923, 5
      %v1277 = vor.u32 %v1275, %v1276
      %v1279 = vunpack.c.l.b16 %v1269
      %v1280 = vpack.c.b16 %v1279, %v1279
      %v1282 = vshrl.u32 %v1280, 16
      %v1284 = vrot.slane %v1282, 2
      %v1285 = vshll.u32 %v1280, 16
      %v1287 = vrot.slane %v1285, 3
      %v1288 = vor.u32 %v1284, %v1287
      %v1291 = vsel %vm402, %v1271, %v1274
      %v1293 = vsel %vm406, %v1291, %v1277
      %v1295 = vsel %vm409, %v1293, %v1288
      %s1296 = scalar_lea.vmem %s1, 448
      %v1297 = vld [vmem:[%s1296] sm:$0xff]
      %v1298 = vld [vmem:[%s1296 + $0x8] sm:$0xff]
      %v1299 = vld [vmem:[%s1296 + $0x10] sm:$0xff]
      %v1300 = vld [vmem:[%s1296 + $0x18] sm:$0xff]
      %v1301 = vld [vmem:[%s1296 + $0x20] sm:$0xff]
      %v1302 = vld [vmem:[%s1296 + $0x28] sm:$0xff]
      %v1303 = vld [vmem:[%s1296 + $0x30] sm:$0xff]
      %v1304 = vld [vmem:[%s1296 + $0x38] sm:$0x33]
      %v1313 = vunpack.c.l.b16 %v1297
      %v1314 = vunpack.c.h.b16 %v1297
      %v1315 = vunpack.c.l.b16 %v1298
      %v1316 = vunpack.c.h.b16 %v1298
      %v1317 = vunpack.c.l.b16 %v1299
      %v1318 = vunpack.c.h.b16 %v1299
      %v1319 = vunpack.c.l.b16 %v1300
      %v1320 = vunpack.c.h.b16 %v1300
      %v1321 = vunpack.c.l.b16 %v1301
      %v1322 = vunpack.c.h.b16 %v1301
      %v1323 = vunpack.c.l.b16 %v1302
      %v1324 = vunpack.c.h.b16 %v1302
      %v1325 = vunpack.c.l.b16 %v1303
      %v1326 = vunpack.c.h.b16 %v1303
      %v1327 = vunpack.c.l.b16 %v1304
      %v1328 = vunpack.c.h.b16 %v1304
      %v1329 = vpack.c.b16 %v1315, %v1313
      %v1330 = vpack.c.b16 %v1316, %v1314
      %v1331 = vpack.c.b16 %v1319, %v1317
      %v1332 = vpack.c.b16 %v1320, %v1318
      %v1333 = vpack.c.b16 %v1323, %v1321
      %v1334 = vpack.c.b16 %v1324, %v1322
      %v1335 = vpack.c.b16 %v1327, %v1325
      %v1336 = vpack.c.b16 %v1328, %v1326
      %v1343 = vsel %vm521, %v1295, 0
      %v1346 = vsel %vm409, %v1335, 0
      %v1349 = vsel %vm409, %v1336, 0
      %1351 = vmatprep.subr.bf16.mxu0 0
      %1352 = vmatpush1.bf16.msra.mxu0 0
      %1353 = vmatprep.subr.bf16.mxu0 0
      %1354 = vmatpush1.bf16.msra.mxu0 0
      %1355 = vmatprep.subr.bf16.mxu0 0
      %1356 = vmatpush1.bf16.msra.mxu0 0
      %1357 = vmatprep.subr.bf16.mxu0 0
      %1358 = vmatpush1.bf16.msra.mxu0 0
      %1359 = vmatprep.subr.bf16.mxu0 %v1349
      %1360 = vmatpush1.bf16.msra.mxu0 %v1346
      %1361 = vmatprep.subr.bf16.mxu0 %v1334
      %1362 = vmatpush1.bf16.msra.mxu0 %v1333
      %1363 = vmatprep.subr.bf16.mxu0 %v1332
      %1364 = vmatpush1.bf16.msra.mxu0 %v1331
      %1365 = vmatprep.subr.bf16.mxu0 %v1330
      %1366 = vmatpush1.bf16.msra.mxu0 %v1329
      %1367 = vmatprep.subr.bf16.mxu0 0
      %1368 = vmatpush2.bf16.msra.mxu0 0
      %1369 = vmatprep.subr.bf16.mxu0 0
      %1370 = vmatpush2.bf16.msra.mxu0 0
      %1371 = vmatprep.subr.bf16.mxu0 0
      %1372 = vmatpush2.bf16.msra.mxu0 0
      %1373 = vmatprep.subr.bf16.mxu0 0
      %1374 = vmatpush2.bf16.msra.mxu0 0
      %1375 = vmatprep.subr.bf16.mxu0 0
      %1376 = vmatpush2.bf16.msra.mxu0 0
      %1377 = vmatprep.subr.bf16.mxu0 0
      %1378 = vmatpush2.bf16.msra.mxu0 0
      %1379 = vmatprep.subr.bf16.mxu0 0
      %1380 = vmatpush2.bf16.msra.mxu0 0
      %1381 = vmatprep.subr.bf16.mxu0 0
      %1382 = vmatpush2.bf16.msra.mxu0 0
      %1383 = vmatprep.mubr.bf16.mxu0 0
      %1384 = vmatmul.mubr.bf16.gmra.mxu0 %v1343
      %v1385 = vpop.f32.mrf.mxu0
      %v1386 = vadd.f32 0.0, %v1385
      %v1387 = vpop.f32.mrf.mxu0
      %v1388 = vadd.f32 0.0, %v1387
      %v1389 = vpop.f32.mrf.mxu0
      %v1390 = vadd.f32 0.0, %v1389
      %v1391 = vpop.f32.mrf.mxu0
      %v1392 = vadd.f32 0.0, %v1391
      %1393 = vdwg.mxu0
      %v1394 = vadd.f32 %v1265, %v1386
      %v1395 = vadd.f32 %v1266, %v1388
      %v1396 = vadd.f32 %v1267, %v1390
      %v1397 = vadd.f32 %v1268, %v1392
      %v1398 = vld [vmem:[%s1153] sm:$0x6]
      %v1399 = vrot.slane %v676, 1
      %v1400 = vrot.slane %v680, 7
      %v1401 = vrot.slane %v1042, 5
      %v1403 = vunpack.c.l.b16 %v1398
      %v1404 = vpack.c.b16 %v1403, %v1403
      %v1405 = vrot.slane %v1404, 3
      %v1408 = vsel %vm402, %v1399, %v1400
      %v1410 = vsel %vm406, %v1408, %v1401
      %v1412 = vsel %vm409, %v1410, %v1405
      %s1413 = scalar_lea.vmem %s1, 512
      %v1414 = vld [vmem:[%s1413] sm:$0xff]
      %v1415 = vld [vmem:[%s1413 + $0x8] sm:$0xff]
      %v1416 = vld [vmem:[%s1413 + $0x10] sm:$0xff]
      %v1417 = vld [vmem:[%s1413 + $0x18] sm:$0xff]
      %v1418 = vld [vmem:[%s1413 + $0x20] sm:$0xff]
      %v1419 = vld [vmem:[%s1413 + $0x28] sm:$0xff]
      %v1420 = vld [vmem:[%s1413 + $0x30] sm:$0xff]
      %v1421 = vld [vmem:[%s1413 + $0x38] sm:$0x33]
      %v1430 = vunpack.c.l.b16 %v1414
      %v1431 = vunpack.c.h.b16 %v1414
      %v1432 = vunpack.c.l.b16 %v1415
      %v1433 = vunpack.c.h.b16 %v1415
      %v1434 = vunpack.c.l.b16 %v1416
      %v1435 = vunpack.c.h.b16 %v1416
      %v1436 = vunpack.c.l.b16 %v1417
      %v1437 = vunpack.c.h.b16 %v1417
      %v1438 = vunpack.c.l.b16 %v1418
      %v1439 = vunpack.c.h.b16 %v1418
      %v1440 = vunpack.c.l.b16 %v1419
      %v1441 = vunpack.c.h.b16 %v1419
      %v1442 = vunpack.c.l.b16 %v1420
      %v1443 = vunpack.c.h.b16 %v1420
      %v1444 = vunpack.c.l.b16 %v1421
      %v1445 = vunpack.c.h.b16 %v1421
      %v1446 = vpack.c.b16 %v1432, %v1430
      %v1447 = vpack.c.b16 %v1433, %v1431
      %v1448 = vpack.c.b16 %v1436, %v1434
      %v1449 = vpack.c.b16 %v1437, %v1435
      %v1450 = vpack.c.b16 %v1440, %v1438
      %v1451 = vpack.c.b16 %v1441, %v1439
      %v1452 = vpack.c.b16 %v1444, %v1442
      %v1453 = vpack.c.b16 %v1445, %v1443
      %v1460 = vsel %vm521, %v1412, 0
      %v1463 = vsel %vm409, %v1452, 0
      %v1466 = vsel %vm409, %v1453, 0
      %1468 = vmatprep.subr.bf16.mxu0 0
      %1469 = vmatpush1.bf16.msra.mxu0 0
      %1470 = vmatprep.subr.bf16.mxu0 0
      %1471 = vmatpush1.bf16.msra.mxu0 0
      %1472 = vmatprep.subr.bf16.mxu0 0
      %1473 = vmatpush1.bf16.msra.mxu0 0
      %1474 = vmatprep.subr.bf16.mxu0 0
      %1475 = vmatpush1.bf16.msra.mxu0 0
      %1476 = vmatprep.subr.bf16.mxu0 %v1466
      %1477 = vmatpush1.bf16.msra.mxu0 %v1463
      %1478 = vmatprep.subr.bf16.mxu0 %v1451
      %1479 = vmatpush1.bf16.msra.mxu0 %v1450
      %1480 = vmatprep.subr.bf16.mxu0 %v1449
      %1481 = vmatpush1.bf16.msra.mxu0 %v1448
      %1482 = vmatprep.subr.bf16.mxu0 %v1447
      %1483 = vmatpush1.bf16.msra.mxu0 %v1446
      %1484 = vmatprep.subr.bf16.mxu0 0
      %1485 = vmatpush2.bf16.msra.mxu0 0
      %1486 = vmatprep.subr.bf16.mxu0 0
      %1487 = vmatpush2.bf16.msra.mxu0 0
      %1488 = vmatprep.subr.bf16.mxu0 0
      %1489 = vmatpush2.bf16.msra.mxu0 0
      %1490 = vmatprep.subr.bf16.mxu0 0
      %1491 = vmatpush2.bf16.msra.mxu0 0
      %1492 = vmatprep.subr.bf16.mxu0 0
      %1493 = vmatpush2.bf16.msra.mxu0 0
      %1494 = vmatprep.subr.bf16.mxu0 0
      %1495 = vmatpush2.bf16.msra.mxu0 0
      %1496 = vmatprep.subr.bf16.mxu0 0
      %1497 = vmatpush2.bf16.msra.mxu0 0
      %1498 = vmatprep.subr.bf16.mxu0 0
      %1499 = vmatpush2.bf16.msra.mxu0 0
      %1500 = vmatprep.mubr.bf16.mxu0 0
      %1501 = vmatmul.mubr.bf16.gmra.mxu0 %v1460
      %v1502 = vpop.f32.mrf.mxu0
      %v1503 = vadd.f32 0.0, %v1502
      %v1504 = vpop.f32.mrf.mxu0
      %v1505 = vadd.f32 0.0, %v1504
      %v1506 = vpop.f32.mrf.mxu0
      %v1507 = vadd.f32 0.0, %v1506
      %v1508 = vpop.f32.mrf.mxu0
      %v1509 = vadd.f32 0.0, %v1508
      %1510 = vdwg.mxu0
      %v1511 = vadd.f32 %v1394, %v1503
      %v1512 = vadd.f32 %v1395, %v1505
      %v1513 = vadd.f32 %v1396, %v1507
      %v1514 = vadd.f32 %v1397, %v1509
      %v1515 = vmax.f32 %v1511, %v1513
      %v1516 = vrot.slane %v1515, 4
      %v1517 = vmax.f32 %v1515, %v1516
      %v1518 = vrot.slane %v1517, 2
      %v1519 = vmax.f32 %v1517, %v1518
      %v1520 = vrot.slane %v1519, 1
      %v1521 = vmax.f32 %v1519, %v1520
      %vm1522 = vcmask 916480
      %v1523 = vsel %vm1522, %v1512, -inf
      %v1524 = vsel %vm1522, %v1514, -inf
      %v1525 = vmax.f32 %v1523, %v1524
      %v1526 = vrot.slane %v1525, 4
      %v1527 = vmax.f32 %v1525, %v1526
      %v1528 = vrot.slane %v1527, 2
      %v1529 = vmax.f32 %v1527, %v1528
      %v1530 = vrot.slane %v1529, 1
      %v1531 = vmax.f32 %v1529, %v1530
      %v1532 = vld [vmem:[%s2] sm:$0x3]
      %v1534 = vlaneseq
      %v1535 = vshrl.u32 %v1534, 7
      %v1536 = vsub.s32 0, %v1535
      %v1537 = vrot.slane %v1532, %v1536
      %v1538 = vlaneseq
      %v1539 = vshrl.u32 %v1538, 7
      %v1540 = vsub.s32 1, %v1539
      %v1541 = vrot.slane %v1532, %v1540
      %v1544 = vadd.f32 %v1521, %v1537
      %v1545 = vadd.f32 %v1531, %v1541
      %v1546 = vmax.f32 %v1544, 0.0
      %v1547 = vmax.f32 %v1545, 0.0
      %v1548 = vpack.c.bf16 %v1546, %v1546
      %v1549 = vpack.c.bf16 %v1547, %v1547
      %v1550 = vld [vmem:[%s3] sm:$0xff]
      %v1551 = vld [vmem:[%s3 + $0x8] sm:$0xff]
      %v1552 = vld [vmem:[%s3 + $0x10] sm:$0xff]
      %v1553 = vld [vmem:[%s3 + $0x18] sm:$0xff]
      %v1554 = vld [vmem:[%s3 + $0x20] sm:$0xff]
      %v1555 = vld [vmem:[%s3 + $0x28] sm:$0xff]
      %v1556 = vld [vmem:[%s3 + $0x30] sm:$0xff]
      %v1557 = vld [vmem:[%s3 + $0x38] sm:$0xff]
      %v1558 = vld [vmem:[%s3 + $0x40] sm:$0xff]
      %v1559 = vld [vmem:[%s3 + $0x48] sm:$0xff]
      %v1560 = vld [vmem:[%s3 + $0x50] sm:$0xff]
      %v1561 = vld [vmem:[%s3 + $0x58] sm:$0xff]
      %v1562 = vld [vmem:[%s3 + $0x60] sm:$0xff]
      %v1563 = vld [vmem:[%s3 + $0x68] sm:$0xff]
      %v1564 = vld [vmem:[%s3 + $0x70] sm:$0xff]
      %v1565 = vld [vmem:[%s3 + $0x78] sm:$0xff]
      %v1566 = vld [vmem:[%s3 + $0x80] sm:$0xff]
      %v1567 = vld [vmem:[%s3 + $0x88] sm:$0xff]
      %v1568 = vld [vmem:[%s3 + $0x90] sm:$0xff]
      %v1569 = vld [vmem:[%s3 + $0x98] sm:$0xff]
      %v1570 = vld [vmem:[%s3 + $0xa0] sm:$0xff]
      %v1571 = vld [vmem:[%s3 + $0xa8] sm:$0xff]
      %v1572 = vld [vmem:[%s3 + $0xb0] sm:$0xff]
      %v1573 = vld [vmem:[%s3 + $0xb8] sm:$0xff]
      %v1574 = vld [vmem:[%s3 + $0xc0] sm:$0xff]
      %v1575 = vld [vmem:[%s3 + $0xc8] sm:$0xff]
      %v1576 = vld [vmem:[%s3 + $0xd0] sm:$0xff]
      %v1577 = vld [vmem:[%s3 + $0xd8] sm:$0xff]
      %v1578 = vld [vmem:[%s3 + $0xe0] sm:$0xff]
      %v1579 = vld [vmem:[%s3 + $0xe8] sm:$0xff]
      %v1580 = vld [vmem:[%s4] sm:$0x3]
      %v1611 = vunpack.c.l.b16 %v1550
      %v1612 = vunpack.c.h.b16 %v1550
      %v1613 = vunpack.c.l.b16 %v1551
      %v1614 = vunpack.c.h.b16 %v1551
      %v1615 = vunpack.c.l.b16 %v1552
      %v1616 = vunpack.c.h.b16 %v1552
      %v1617 = vunpack.c.l.b16 %v1553
      %v1618 = vunpack.c.h.b16 %v1553
      %v1619 = vunpack.c.l.b16 %v1554
      %v1620 = vunpack.c.h.b16 %v1554
      %v1621 = vunpack.c.l.b16 %v1555
      %v1622 = vunpack.c.h.b16 %v1555
      %v1623 = vunpack.c.l.b16 %v1556
      %v1624 = vunpack.c.h.b16 %v1556
      %v1625 = vunpack.c.l.b16 %v1557
      %v1626 = vunpack.c.h.b16 %v1557
      %v1627 = vunpack.c.l.b16 %v1558
      %v1628 = vunpack.c.h.b16 %v1558
      %v1629 = vunpack.c.l.b16 %v1559
      %v1630 = vunpack.c.h.b16 %v1559
      %v1631 = vunpack.c.l.b16 %v1560
      %v1632 = vunpack.c.h.b16 %v1560
      %v1633 = vunpack.c.l.b16 %v1561
      %v1634 = vunpack.c.h.b16 %v1561
      %v1635 = vunpack.c.l.b16 %v1562
      %v1636 = vunpack.c.h.b16 %v1562
      %v1637 = vunpack.c.l.b16 %v1563
      %v1638 = vunpack.c.h.b16 %v1563
      %v1639 = vunpack.c.l.b16 %v1564
      %v1640 = vunpack.c.h.b16 %v1564
      %v1641 = vunpack.c.l.b16 %v1565
      %v1642 = vunpack.c.h.b16 %v1565
      %v1643 = vunpack.c.l.b16 %v1566
      %v1644 = vunpack.c.h.b16 %v1566
      %v1645 = vunpack.c.l.b16 %v1567
      %v1646 = vunpack.c.h.b16 %v1567
      %v1647 = vunpack.c.l.b16 %v1568
      %v1648 = vunpack.c.h.b16 %v1568
      %v1649 = vunpack.c.l.b16 %v1569
      %v1650 = vunpack.c.h.b16 %v1569
      %v1651 = vunpack.c.l.b16 %v1570
      %v1652 = vunpack.c.h.b16 %v1570
      %v1653 = vunpack.c.l.b16 %v1571
      %v1654 = vunpack.c.h.b16 %v1571
      %v1655 = vunpack.c.l.b16 %v1572
      %v1656 = vunpack.c.h.b16 %v1572
      %v1657 = vunpack.c.l.b16 %v1573
      %v1658 = vunpack.c.h.b16 %v1573
      %v1659 = vunpack.c.l.b16 %v1574
      %v1660 = vunpack.c.h.b16 %v1574
      %v1661 = vunpack.c.l.b16 %v1575
      %v1662 = vunpack.c.h.b16 %v1575
      %v1663 = vunpack.c.l.b16 %v1576
      %v1664 = vunpack.c.h.b16 %v1576
      %v1665 = vunpack.c.l.b16 %v1577
      %v1666 = vunpack.c.h.b16 %v1577
      %v1667 = vunpack.c.l.b16 %v1578
      %v1668 = vunpack.c.h.b16 %v1578
      %v1669 = vunpack.c.l.b16 %v1579
      %v1670 = vunpack.c.h.b16 %v1579
      %v1671 = vpack.c.b16 %v1613, %v1611
      %v1672 = vpack.c.b16 %v1614, %v1612
      %v1673 = vpack.c.b16 %v1617, %v1615
      %v1674 = vpack.c.b16 %v1618, %v1616
      %v1675 = vpack.c.b16 %v1621, %v1619
      %v1676 = vpack.c.b16 %v1622, %v1620
      %v1677 = vpack.c.b16 %v1625, %v1623
      %v1678 = vpack.c.b16 %v1626, %v1624
      %v1679 = vpack.c.b16 %v1629, %v1627
      %v1680 = vpack.c.b16 %v1630, %v1628
      %v1681 = vpack.c.b16 %v1633, %v1631
      %v1682 = vpack.c.b16 %v1634, %v1632
      %v1683 = vpack.c.b16 %v1637, %v1635
      %v1684 = vpack.c.b16 %v1638, %v1636
      %v1685 = vpack.c.b16 %v1641, %v1639
      %v1686 = vpack.c.b16 %v1642, %v1640
      %v1687 = vpack.c.b16 %v1645, %v1643
      %v1688 = vpack.c.b16 %v1646, %v1644
      %v1689 = vpack.c.b16 %v1649, %v1647
      %v1690 = vpack.c.b16 %v1650, %v1648
      %v1691 = vpack.c.b16 %v1653, %v1651
      %v1692 = vpack.c.b16 %v1654, %v1652
      %v1693 = vpack.c.b16 %v1657, %v1655
      %v1694 = vpack.c.b16 %v1658, %v1656
      %v1695 = vpack.c.b16 %v1661, %v1659
      %v1696 = vpack.c.b16 %v1662, %v1660
      %v1697 = vpack.c.b16 %v1665, %v1663
      %v1698 = vpack.c.b16 %v1666, %v1664
      %v1699 = vpack.c.b16 %v1669, %v1667
      %v1700 = vpack.c.b16 %v1670, %v1668
      %v1732 = vlaneseq
      %v1733 = vshrl.u32 %v1732, 7
      %v1734 = vsub.s32 0, %v1733
      %v1735 = vrot.slane %v1580, %v1734
      %v1736 = vlaneseq
      %v1737 = vshrl.u32 %v1736, 7
      %v1738 = vsub.s32 1, %v1737
      %v1739 = vrot.slane %v1580, %v1738
      %v1743 = vsel %vm1522, %v1549, 0
      %1745 = vmatprep.subr.bf16.mxu0 %v1686
      %1746 = vmatpush1.bf16.msra.mxu0 %v1685
      %1747 = vmatprep.subr.bf16.mxu0 %v1684
      %1748 = vmatpush1.bf16.msra.mxu0 %v1683
      %1749 = vmatprep.subr.bf16.mxu0 %v1682
      %1750 = vmatpush1.bf16.msra.mxu0 %v1681
      %1751 = vmatprep.subr.bf16.mxu0 %v1680
      %1752 = vmatpush1.bf16.msra.mxu0 %v1679
      %1753 = vmatprep.subr.bf16.mxu0 %v1678
      %1754 = vmatpush1.bf16.msra.mxu0 %v1677
      %1755 = vmatprep.subr.bf16.mxu0 %v1676
      %1756 = vmatpush1.bf16.msra.mxu0 %v1675
      %1757 = vmatprep.subr.bf16.mxu0 %v1674
      %1758 = vmatpush1.bf16.msra.mxu0 %v1673
      %1759 = vmatprep.subr.bf16.mxu0 %v1672
      %1760 = vmatpush1.bf16.msra.mxu0 %v1671
      %1761 = vmatprep.subr.bf16.mxu0 0
      %1762 = vmatpush2.bf16.msra.mxu0 0
      %1763 = vmatprep.subr.bf16.mxu0 %v1700
      %1764 = vmatpush2.bf16.msra.mxu0 %v1699
      %1765 = vmatprep.subr.bf16.mxu0 %v1698
      %1766 = vmatpush2.bf16.msra.mxu0 %v1697
      %1767 = vmatprep.subr.bf16.mxu0 %v1696
      %1768 = vmatpush2.bf16.msra.mxu0 %v1695
      %1769 = vmatprep.subr.bf16.mxu0 %v1694
      %1770 = vmatpush2.bf16.msra.mxu0 %v1693
      %1771 = vmatprep.subr.bf16.mxu0 %v1692
      %1772 = vmatpush2.bf16.msra.mxu0 %v1691
      %1773 = vmatprep.subr.bf16.mxu0 %v1690
      %1774 = vmatpush2.bf16.msra.mxu0 %v1689
      %1775 = vmatprep.subr.bf16.mxu0 %v1688
      %1776 = vmatpush2.bf16.msra.mxu0 %v1687
      %1777 = vmatprep.mubr.bf16.mxu0 %v1743
      %1778 = vmatmul.mubr.bf16.gmra.mxu0 %v1548
      %v1779 = vpop.f32.mrf.mxu0
      %v1780 = vadd.f32 %v1735, %v1779
      %v1781 = vpop.f32.mrf.mxu0
      %v1782 = vadd.f32 %v1739, %v1781
      %v1783 = vpop.f32.mrf.mxu0
      %v1784 = vpop.f32.mrf.mxu0
      %1785 = vdwg.mxu0
      %v1786 = vmax.f32 %v1780, 0.0
      %v1787 = vmax.f32 %v1782, 0.0
      %v1788 = vpack.c.bf16 %v1786, %v1786
      %v1789 = vpack.c.bf16 %v1787, %v1787
      %v1791 = vsel %vm1522, %v1789, 0
      %1793 = vmatprep.subr.bf16.mxu0 %v1686
      %1794 = vmatpush1.bf16.msra.mxu0 %v1685
      %1795 = vmatprep.subr.bf16.mxu0 %v1684
      %1796 = vmatpush1.bf16.msra.mxu0 %v1683
      %1797 = vmatprep.subr.bf16.mxu0 %v1682
      %1798 = vmatpush1.bf16.msra.mxu0 %v1681
      %1799 = vmatprep.subr.bf16.mxu0 %v1680
      %1800 = vmatpush1.bf16.msra.mxu0 %v1679
      %1801 = vmatprep.subr.bf16.mxu0 %v1678
      %1802 = vmatpush1.bf16.msra.mxu0 %v1677
      %1803 = vmatprep.subr.bf16.mxu0 %v1676
      %1804 = vmatpush1.bf16.msra.mxu0 %v1675
      %1805 = vmatprep.subr.bf16.mxu0 %v1674
      %1806 = vmatpush1.bf16.msra.mxu0 %v1673
      %1807 = vmatprep.subr.bf16.mxu0 %v1672
      %1808 = vmatpush1.bf16.msra.mxu0 %v1671
      %1809 = vmatprep.subr.bf16.mxu0 0
      %1810 = vmatpush2.bf16.msra.mxu0 0
      %1811 = vmatprep.subr.bf16.mxu0 %v1700
      %1812 = vmatpush2.bf16.msra.mxu0 %v1699
      %1813 = vmatprep.subr.bf16.mxu0 %v1698
      %1814 = vmatpush2.bf16.msra.mxu0 %v1697
      %1815 = vmatprep.subr.bf16.mxu0 %v1696
      %1816 = vmatpush2.bf16.msra.mxu0 %v1695
      %1817 = vmatprep.subr.bf16.mxu0 %v1694
      %1818 = vmatpush2.bf16.msra.mxu0 %v1693
      %1819 = vmatprep.subr.bf16.mxu0 %v1692
      %1820 = vmatpush2.bf16.msra.mxu0 %v1691
      %1821 = vmatprep.subr.bf16.mxu0 %v1690
      %1822 = vmatpush2.bf16.msra.mxu0 %v1689
      %1823 = vmatprep.subr.bf16.mxu0 %v1688
      %1824 = vmatpush2.bf16.msra.mxu0 %v1687
      %1825 = vmatprep.mubr.bf16.mxu0 %v1791
      %1826 = vmatmul.mubr.bf16.gmra.mxu0 %v1788
      %v1827 = vpop.f32.mrf.mxu0
      %v1828 = vadd.f32 %v1735, %v1827
      %v1829 = vpop.f32.mrf.mxu0
      %v1830 = vadd.f32 %v1739, %v1829
      %v1831 = vpop.f32.mrf.mxu0
      %v1832 = vpop.f32.mrf.mxu0
      %1833 = vdwg.mxu0
      %v1834 = vmax.f32 %v1828, 0.0
      %v1835 = vmax.f32 %v1830, 0.0
      %v1836 = vpack.c.bf16 %v1834, %v1834
      %v1837 = vpack.c.bf16 %v1835, %v1835
      %v1838 = vld [vmem:[%s5] sm:$0xf]
      %v1839 = vld [vmem:[%s5 + $0x4] sm:$0xf]
      %v1840 = vld [vmem:[%s5 + $0x8] sm:$0xf]
      %v1841 = vld [vmem:[%s5 + $0xc] sm:$0xf]
      %v1842 = vld [vmem:[%s5 + $0x10] sm:$0xf]
      %v1843 = vld [vmem:[%s5 + $0x14] sm:$0xf]
      %v1844 = vld [vmem:[%s5 + $0x18] sm:$0xf]
      %v1845 = vld [vmem:[%s5 + $0x1c] sm:$0xf]
      %v1846 = vld [vmem:[%s5 + $0x20] sm:$0xf]
      %v1847 = vld [vmem:[%s5 + $0x24] sm:$0xf]
      %v1848 = vld [vmem:[%s5 + $0x28] sm:$0xf]
      %v1849 = vld [vmem:[%s5 + $0x2c] sm:$0xf]
      %v1850 = vld [vmem:[%s5 + $0x30] sm:$0xf]
      %v1851 = vld [vmem:[%s5 + $0x34] sm:$0xf]
      %v1852 = vld [vmem:[%s5 + $0x38] sm:$0xf]
      %v1853 = vld [vmem:[%s5 + $0x3c] sm:$0xf]
      %v1854 = vld [vmem:[%s5 + $0x40] sm:$0xf]
      %v1855 = vld [vmem:[%s5 + $0x44] sm:$0xf]
      %v1856 = vld [vmem:[%s5 + $0x48] sm:$0xf]
      %v1857 = vld [vmem:[%s5 + $0x4c] sm:$0xf]
      %v1858 = vld [vmem:[%s5 + $0x50] sm:$0xf]
      %v1859 = vld [vmem:[%s5 + $0x54] sm:$0xf]
      %v1860 = vld [vmem:[%s5 + $0x58] sm:$0xf]
      %v1861 = vld [vmem:[%s5 + $0x5c] sm:$0xf]
      %v1862 = vld [vmem:[%s5 + $0x60] sm:$0xf]
      %v1863 = vld [vmem:[%s5 + $0x64] sm:$0xf]
      %v1864 = vld [vmem:[%s5 + $0x68] sm:$0xf]
      %v1865 = vld [vmem:[%s5 + $0x6c] sm:$0xf]
      %v1866 = vld [vmem:[%s5 + $0x70] sm:$0xf]
      %v1867 = vld [vmem:[%s5 + $0x74] sm:$0xf]
      %v1868 = vld [vmem:[%s6] sm:$0x1]
      %v1899 = vunpack.c.l.b16 %v1838
      %v1900 = vunpack.c.l.b16 %v1839
      %v1901 = vunpack.c.l.b16 %v1840
      %v1902 = vunpack.c.l.b16 %v1841
      %v1903 = vunpack.c.l.b16 %v1842
      %v1904 = vunpack.c.l.b16 %v1843
      %v1905 = vunpack.c.l.b16 %v1844
      %v1906 = vunpack.c.l.b16 %v1845
      %v1907 = vunpack.c.l.b16 %v1846
      %v1908 = vunpack.c.l.b16 %v1847
      %v1909 = vunpack.c.l.b16 %v1848
      %v1910 = vunpack.c.l.b16 %v1849
      %v1911 = vunpack.c.l.b16 %v1850
      %v1912 = vunpack.c.l.b16 %v1851
      %v1913 = vunpack.c.l.b16 %v1852
      %v1914 = vunpack.c.l.b16 %v1853
      %v1915 = vunpack.c.l.b16 %v1854
      %v1916 = vunpack.c.l.b16 %v1855
      %v1917 = vunpack.c.l.b16 %v1856
      %v1918 = vunpack.c.l.b16 %v1857
      %v1919 = vunpack.c.l.b16 %v1858
      %v1920 = vunpack.c.l.b16 %v1859
      %v1921 = vunpack.c.l.b16 %v1860
      %v1922 = vunpack.c.l.b16 %v1861
      %v1923 = vunpack.c.l.b16 %v1862
      %v1924 = vunpack.c.l.b16 %v1863
      %v1925 = vunpack.c.l.b16 %v1864
      %v1926 = vunpack.c.l.b16 %v1865
      %v1927 = vunpack.c.l.b16 %v1866
      %v1928 = vunpack.c.l.b16 %v1867
      %v1929 = vpack.c.b16 %v1900, %v1899
      %v1930 = vpack.c.b16 %v1902, %v1901
      %v1931 = vpack.c.b16 %v1904, %v1903
      %v1932 = vpack.c.b16 %v1906, %v1905
      %v1933 = vpack.c.b16 %v1908, %v1907
      %v1934 = vpack.c.b16 %v1910, %v1909
      %v1935 = vpack.c.b16 %v1912, %v1911
      %v1936 = vpack.c.b16 %v1914, %v1913
      %v1937 = vpack.c.b16 %v1916, %v1915
      %v1938 = vpack.c.b16 %v1918, %v1917
      %v1939 = vpack.c.b16 %v1920, %v1919
      %v1940 = vpack.c.b16 %v1922, %v1921
      %v1941 = vpack.c.b16 %v1924, %v1923
      %v1942 = vpack.c.b16 %v1926, %v1925
      %v1943 = vpack.c.b16 %v1928, %v1927
      %v1960 = vsel %vm1522, %v1837, 0
      %1962 = vmatprep.subr.bf16.mxu0 0
      %1963 = vmatpush1.bf16.msra.mxu0 %v1936
      %1964 = vmatprep.subr.bf16.mxu0 0
      %1965 = vmatpush1.bf16.msra.mxu0 %v1935
      %1966 = vmatprep.subr.bf16.mxu0 0
      %1967 = vmatpush1.bf16.msra.mxu0 %v1934
      %1968 = vmatprep.subr.bf16.mxu0 0
      %1969 = vmatpush1.bf16.msra.mxu0 %v1933
      %1970 = vmatprep.subr.bf16.mxu0 0
      %1971 = vmatpush1.bf16.msra.mxu0 %v1932
      %1972 = vmatprep.subr.bf16.mxu0 0
      %1973 = vmatpush1.bf16.msra.mxu0 %v1931
      %1974 = vmatprep.subr.bf16.mxu0 0
      %1975 = vmatpush1.bf16.msra.mxu0 %v1930
      %1976 = vmatprep.subr.bf16.mxu0 0
      %1977 = vmatpush1.bf16.msra.mxu0 %v1929
      %1978 = vmatprep.subr.bf16.mxu0 0
      %1979 = vmatpush2.bf16.msra.mxu0 0
      %1980 = vmatprep.subr.bf16.mxu0 0
      %1981 = vmatpush2.bf16.msra.mxu0 %v1943
      %1982 = vmatprep.subr.bf16.mxu0 0
      %1983 = vmatpush2.bf16.msra.mxu0 %v1942
      %1984 = vmatprep.subr.bf16.mxu0 0
      %1985 = vmatpush2.bf16.msra.mxu0 %v1941
      %1986 = vmatprep.subr.bf16.mxu0 0
      %1987 = vmatpush2.bf16.msra.mxu0 %v1940
      %1988 = vmatprep.subr.bf16.mxu0 0
      %1989 = vmatpush2.bf16.msra.mxu0 %v1939
      %1990 = vmatprep.subr.bf16.mxu0 0
      %1991 = vmatpush2.bf16.msra.mxu0 %v1938
      %1992 = vmatprep.subr.bf16.mxu0 0
      %1993 = vmatpush2.bf16.msra.mxu0 %v1937
      %1994 = vmatprep.mubr.bf16.mxu0 %v1960
      %1995 = vmatmul.mubr.bf16.gmra.mxu0 %v1836
      %v1996 = vpop.f32.mrf.mxu0
      %v1997 = vadd.f32 %v1868, %v1996
      %v1998 = vpop.f32.mrf.mxu0
      %v1999 = vpop.f32.mrf.mxu0
      %v2000 = vpop.f32.mrf.mxu0
      %2001 = vdwg.mxu0
      %v2002 = vmax.f32 %v1997, 0.0
      %v2003 = vpack.c.bf16 %v2002, %v2002
      %v2004 = vld [vmem:[%s7] sm:$0xf]
      %v2005 = vld [vmem:[%s7 + $0x4] sm:$0xf]
      %v2006 = vld [vmem:[%s7 + $0x8] sm:$0xf]
      %v2007 = vld [vmem:[%s7 + $0xc] sm:$0xf]
      %v2008 = vld [vmem:[%s7 + $0x10] sm:$0xf]
      %v2009 = vld [vmem:[%s7 + $0x14] sm:$0xf]
      %v2010 = vld [vmem:[%s7 + $0x18] sm:$0xf]
      %v2011 = vld [vmem:[%s7 + $0x1c] sm:$0xf]
      %v2012 = vld [vmem:[%s7 + $0x20] sm:$0xf]
      %v2013 = vld [vmem:[%s7 + $0x24] sm:$0xf]
      %v2014 = vld [vmem:[%s7 + $0x28] sm:$0xf]
      %v2015 = vld [vmem:[%s7 + $0x2c] sm:$0xf]
      %v2016 = vld [vmem:[%s7 + $0x30] sm:$0xf]
      %v2017 = vld [vmem:[%s7 + $0x34] sm:$0xf]
      %v2018 = vld [vmem:[%s7 + $0x38] sm:$0xf]
      %v2019 = vld [vmem:[%s8] sm:$0x1]
      %v2035 = vunpack.c.l.b16 %v2004
      %v2036 = vunpack.c.l.b16 %v2005
      %v2037 = vunpack.c.l.b16 %v2006
      %v2038 = vunpack.c.l.b16 %v2007
      %v2039 = vunpack.c.l.b16 %v2008
      %v2040 = vunpack.c.l.b16 %v2009
      %v2041 = vunpack.c.l.b16 %v2010
      %v2042 = vunpack.c.l.b16 %v2011
      %v2043 = vunpack.c.l.b16 %v2012
      %v2044 = vunpack.c.l.b16 %v2013
      %v2045 = vunpack.c.l.b16 %v2014
      %v2046 = vunpack.c.l.b16 %v2015
      %v2047 = vunpack.c.l.b16 %v2016
      %v2048 = vunpack.c.l.b16 %v2017
      %v2049 = vunpack.c.l.b16 %v2018
      %v2050 = vpack.c.b16 %v2036, %v2035
      %v2051 = vpack.c.b16 %v2038, %v2037
      %v2052 = vpack.c.b16 %v2040, %v2039
      %v2053 = vpack.c.b16 %v2042, %v2041
      %v2054 = vpack.c.b16 %v2044, %v2043
      %v2055 = vpack.c.b16 %v2046, %v2045
      %v2056 = vpack.c.b16 %v2048, %v2047
      %v2057 = vpack.c.b16 %v2049, %v2049
      %vm2065 = vcmask 982016
      %v2067 = vsel %vm2065, %v2003, 0
      %v2070 = vsel %vm406, %v2057, 0
      %2072 = vmatprep.subr.bf16.mxu0 0
      %2073 = vmatpush1.bf16.msra.mxu0 %v2070
      %2074 = vmatprep.subr.bf16.mxu0 0
      %2075 = vmatpush1.bf16.msra.mxu0 %v2056
      %2076 = vmatprep.subr.bf16.mxu0 0
      %2077 = vmatpush1.bf16.msra.mxu0 %v2055
      %2078 = vmatprep.subr.bf16.mxu0 0
      %2079 = vmatpush1.bf16.msra.mxu0 %v2054
      %2080 = vmatprep.subr.bf16.mxu0 0
      %2081 = vmatpush1.bf16.msra.mxu0 %v2053
      %2082 = vmatprep.subr.bf16.mxu0 0
      %2083 = vmatpush1.bf16.msra.mxu0 %v2052
      %2084 = vmatprep.subr.bf16.mxu0 0
      %2085 = vmatpush1.bf16.msra.mxu0 %v2051
      %2086 = vmatprep.subr.bf16.mxu0 0
      %2087 = vmatpush1.bf16.msra.mxu0 %v2050
      %2088 = vmatprep.subr.bf16.mxu0 0
      %2089 = vmatpush2.bf16.msra.mxu0 0
      %2090 = vmatprep.subr.bf16.mxu0 0
      %2091 = vmatpush2.bf16.msra.mxu0 0
      %2092 = vmatprep.subr.bf16.mxu0 0
      %2093 = vmatpush2.bf16.msra.mxu0 0
      %2094 = vmatprep.subr.bf16.mxu0 0
      %2095 = vmatpush2.bf16.msra.mxu0 0
      %2096 = vmatprep.subr.bf16.mxu0 0
      %2097 = vmatpush2.bf16.msra.mxu0 0
      %2098 = vmatprep.subr.bf16.mxu0 0
      %2099 = vmatpush2.bf16.msra.mxu0 0
      %2100 = vmatprep.subr.bf16.mxu0 0
      %2101 = vmatpush2.bf16.msra.mxu0 0
      %2102 = vmatprep.subr.bf16.mxu0 0
      %2103 = vmatpush2.bf16.msra.mxu0 0
      %2104 = vmatprep.mubr.bf16.mxu0 0
      %2105 = vmatmul.mubr.bf16.gmra.mxu0 %v2067
      %v2106 = vpop.f32.mrf.mxu0
      %v2107 = vadd.f32 %v2019, %v2106
      %v2108 = vpop.f32.mrf.mxu0
      %v2109 = vpop.f32.mrf.mxu0
      %v2110 = vpop.f32.mrf.mxu0
      %2111 = vdwg.mxu0
      %v2112 = vmax.f32 %v2107, 0.0
      %v2113 = vpack.c.bf16 %v2112, %v2112
      %v2114 = vld [vmem:[%s9] sm:$0xf]
      %v2115 = vld [vmem:[%s9 + $0x4] sm:$0xf]
      %v2116 = vld [vmem:[%s9 + $0x8] sm:$0xf]
      %v2117 = vld [vmem:[%s9 + $0xc] sm:$0xf]
      %v2118 = vld [vmem:[%s9 + $0x10] sm:$0xf]
      %v2119 = vld [vmem:[%s9 + $0x14] sm:$0xf]
      %v2120 = vld [vmem:[%s9 + $0x18] sm:$0xf]
      %v2121 = vld [vmem:[%s9 + $0x1c] sm:$0x3]
      %v2122 = vld [vmem:[%s10] sm:$0x1]
      %v2131 = vunpack.c.l.b16 %v2114
      %v2132 = vunpack.c.l.b16 %v2115
      %v2133 = vunpack.c.l.b16 %v2116
      %v2134 = vunpack.c.l.b16 %v2117
      %v2135 = vunpack.c.l.b16 %v2118
      %v2136 = vunpack.c.l.b16 %v2119
      %v2137 = vunpack.c.l.b16 %v2120
      %v2138 = vunpack.c.l.b16 %v2121
      %v2139 = vpack.c.b16 %v2132, %v2131
      %v2140 = vpack.c.b16 %v2134, %v2133
      %v2141 = vpack.c.b16 %v2136, %v2135
      %v2142 = vpack.c.b16 %v2138, %v2137
      %v2147 = vsel %vm521, %v2113, 0
      %v2150 = vsel %vm409, %v2142, 0
      %2152 = vmatprep.subr.bf16.mxu0 0
      %2153 = vmatpush1.bf16.msra.mxu0 0
      %2154 = vmatprep.subr.bf16.mxu0 0
      %2155 = vmatpush1.bf16.msra.mxu0 0
      %2156 = vmatprep.subr.bf16.mxu0 0
      %2157 = vmatpush1.bf16.msra.mxu0 0
      %2158 = vmatprep.subr.bf16.mxu0 0
      %2159 = vmatpush1.bf16.msra.mxu0 0
      %2160 = vmatprep.subr.bf16.mxu0 0
      %2161 = vmatpush1.bf16.msra.mxu0 %v2150
      %2162 = vmatprep.subr.bf16.mxu0 0
      %2163 = vmatpush1.bf16.msra.mxu0 %v2141
      %2164 = vmatprep.subr.bf16.mxu0 0
      %2165 = vmatpush1.bf16.msra.mxu0 %v2140
      %2166 = vmatprep.subr.bf16.mxu0 0
      %2167 = vmatpush1.bf16.msra.mxu0 %v2139
      %2168 = vmatprep.subr.bf16.mxu0 0
      %2169 = vmatpush2.bf16.msra.mxu0 0
      %2170 = vmatprep.subr.bf16.mxu0 0
      %2171 = vmatpush2.bf16.msra.mxu0 0
      %2172 = vmatprep.subr.bf16.mxu0 0
      %2173 = vmatpush2.bf16.msra.mxu0 0
      %2174 = vmatprep.subr.bf16.mxu0 0
      %2175 = vmatpush2.bf16.msra.mxu0 0
      %2176 = vmatprep.subr.bf16.mxu0 0
      %2177 = vmatpush2.bf16.msra.mxu0 0
      %2178 = vmatprep.subr.bf16.mxu0 0
      %2179 = vmatpush2.bf16.msra.mxu0 0
      %2180 = vmatprep.subr.bf16.mxu0 0
      %2181 = vmatpush2.bf16.msra.mxu0 0
      %2182 = vmatprep.subr.bf16.mxu0 0
      %2183 = vmatpush2.bf16.msra.mxu0 0
      %2184 = vmatprep.mubr.bf16.mxu0 0
      %2185 = vmatmul.mubr.bf16.gmra.mxu0 %v2147
      %v2186 = vpop.f32.mrf.mxu0
      %v2187 = vadd.f32 %v2122, %v2186
      %v2188 = vpop.f32.mrf.mxu0
      %v2189 = vpop.f32.mrf.mxu0
      %v2190 = vpop.f32.mrf.mxu0
      %2191 = vdwg.mxu0
      %2192 = vst [vmem:[%s382] sm:$0x1] %v2187
      %p2193 = scmp.lt.s32.totalorder %s22, 1
      %s2194 = scalar_select %p2193, %s22, 1
      %s2195 = scalar_lea.vmem %s11, %s2194
      // Predicated region
      $region65: #{neural_net_forward.5} parent=63 // pred_check
        %p2196 = pneg %p276
      $region66: #{neural_net_forward.5} parent=63 // pred_check_branch
        %2198 = sbr.rel (%p2196) target = $region68
      $region67: #{neural_net_forward.5} parent=63 // pred_region
        _
      $region68: #{neural_net_forward.5} parent=63 // pred_fallthru
        _
    $region64: #{neural_net_forward.5} parent=5 // pred_fallthru
      _
    %p2199 = scmp.le.s32.totalorder 2, %s17
    // Predicated region
    $region69: #{neural_net_forward.5} parent=5 // pred_check
      %p2200 = pneg %p2199
    $region70: #{neural_net_forward.5} parent=5 // pred_check_branch
      %2202 = sbr.rel (%p2200) target = $region72
    $region71: #{neural_net_forward.5} parent=5 // pred_region
      %s2203 = ssub.s32 %s17, 2
      // Predicated region
      $region73: #{neural_net_forward.5} parent=71 // pred_check
        %p2204 = pneg %p282
      $region74: #{neural_net_forward.5} parent=71 // pred_check_branch
        %2206 = sbr.rel (%p2204) target = $region76
      $region75: #{neural_net_forward.5} parent=71 // pred_region
        %p2207 = scmp.lt.s32.totalorder %s23, 1
        %s2208 = scalar_select %p2207, %s23, 1
        %s2209 = scalar_lea.vmem %s11, %s2208
      $region76: #{neural_net_forward.5} parent=71 // pred_fallthru
        _
    $region72: #{neural_net_forward.5} parent=5 // pred_fallthru
      _
  $region6: #{neural_net_forward.5} parent=0 // loop_footer
    %s21 = sadd.s32 1, %s17
  $region7: #{neural_net_forward.5} parent=0 // loop_footer_branch
    %16 = sbr.rel target = $region3
  $region8: #{neural_net_forward.5} parent=0 // loop_exit
    _

</llo_original>
